<compile_context>
chip_gen: v6e
topology: v6e:2x2x1
jax: 0.10.0
libtpu: 0.0.40
codegen_flags: <defaults>
</compile_context>

<pallas_src>
import jax
import jax.numpy as jnp
from jax import lax
from jax.experimental import pallas as pl
from jax.experimental.pallas import tpu as pltpu

LEAKY_SLOPE = 0.1
BN_EPS = 1e-5
LANE = 128


def _leaky(y):
    return jnp.where(y > 0, y, LEAKY_SLOPE * y)


def _round_up(x, m):
    return ((x + m - 1) // m) * m


def _pad_axis_to(a, axis, target):
    pad = target - a.shape[axis]
    if pad == 0:
        return a
    widths = [(0, 0)] * a.ndim
    widths[axis] = (0, pad)
    return jnp.pad(a, widths)


def _vmem_limit_bytes():
    # Generation-aware VMEM budget: ~75% of physical capacity
    # (v5e/v6e: 128 MiB -> 96 MiB, v7x: 64 MiB -> 48 MiB), leaving headroom
    # for the double-buffered activation blocks and Mosaic internal scratch.
    try:
        cap = int(pltpu.get_tpu_info().vmem_capacity_bytes)
    except Exception:
        cap = 64 * 1024 * 1024
    return (cap * 3) // 4


def _const_spec():
    # Whole-array, grid-invariant VMEM resident: copied in once for the whole
    # kernel, never streamed / double-buffered per grid step (single-buffered
    # constants).
    return pl.BlockSpec(memory_space=pltpu.MemorySpace.VMEM)


# --------------------------------------------------------------------------
# Pallas kernels
# --------------------------------------------------------------------------
def _conv1_conv3x3_conv1_kernel(x_ref, w1_ref, b1_ref, w2_ref, b2_ref,
                                w3_ref, b3_ref, o_ref, s1_ref):
    """conv1(1x1) -> conv2(3x3, pad=1) -> conv3(1x1), each +BN(folded)+leaky.

    x_ref : (H, W, Cin)      bf16  one image (batch dim squeezed by BlockSpec)
    w1_ref: (Cin, Cp)        bf16  Cp = out_channels rounded up to 128
    w2_ref: (9, Cp, Dp)      bf16  per-tap 3x3 weights, Dp = 2*out ch. -> 128x
    w3_ref: (Dp, Cp)         bf16
    b*_ref: (1, Cp|Dp)       f32
    o_ref : (H+2, W+2, Cp)   bf16  zero-halo output (ready for the next 3x3)
    s1_ref: (H+2, W+2, Cp)   bf16  VMEM scratch: zero-halo conv1 output
    """
    h, w, cin = x_ref.shape
    cp = w1_ref.shape[1]
    dp = w2_ref.shape[2]
    m = h * w

    # ---- conv1 (1x1): prologue, result lives only in VMEM ----
    x = x_ref[...].reshape(m, cin)
    y1 = jnp.dot(x, w1_ref[...], preferred_element_type=jnp.float32)
    y1 = _leaky(y1 + b1_ref[...])                       # f32 epilogue (v5e-safe)
    s1_ref[...] = jnp.zeros_like(s1_ref)                # halo = 0 (SAME padding)
    s1_ref[1:h + 1, 1:w + 1, :] = y1.astype(s1_ref.dtype).reshape(h, w, cp)

    # ---- conv2 (3x3): in-VMEM halo im2col as 9 accumulating K=Cp matmuls ----
    acc = jnp.zeros((m, dp), jnp.float32)
    for t in range(9):
        dy, dx = divmod(t, 3)
        tap = s1_ref[dy:dy + h, dx:dx + w, :].reshape(m, cp)
        acc = acc + jnp.dot(tap, w2_ref[t], preferred_element_type=jnp.float32)
    y2 = _leaky(acc + b2_ref[...]).astype(s1_ref.dtype)
    # TODO(synk): strip-mine Dp (e.g. 256-wide) so the f32 intermediate stays
    # in a few vregs when Cmid is large (v7x VMEM / v5e store-slot relief).

    # ---- conv3 (1x1): epilogue, store with a zero spatial halo ----
    y3 = jnp.dot(y2, w3_ref[...], preferred_element_type=jnp.float32)
    y3 = _leaky(y3 + b3_ref[...])
    o_ref[...] = jnp.zeros_like(o_ref)
    o_ref[1:h + 1, 1:w + 1, :] = y3.astype(o_ref.dtype).reshape(h, w, cp)


def _conv3x3_conv1_kernel(x_ref, w4_ref, b4_ref, w5_ref, b5_ref, o_ref):
    """conv4(3x3, pad=1) -> conv5(1x1), each +BN(folded)+leaky.

    x_ref : (H+2, W+2, Cp)  bf16  zero-halo input (stage-A output)
    o_ref : (H, W, Cp)      bf16  lane-dense output (Cp multiple of 128)
    """
    hp, wp, cp = x_ref.shape
    h, w = hp - 2, wp - 2
    dp = w4_ref.shape[2]
    m = h * w

    acc = jnp.zeros((m, dp), jnp.float32)
    for t in range(9):
        dy, dx = divmod(t, 3)
        tap = x_ref[dy:dy + h, dx:dx + w, :].reshape(m, cp)
        acc = acc + jnp.dot(tap, w4_ref[t], preferred_element_type=jnp.float32)
    y4 = _leaky(acc + b4_ref[...]).astype(x_ref.dtype)

    y5 = jnp.dot(y4, w5_ref[...], preferred_element_type=jnp.float32)
    y5 = _leaky(y5 + b5_ref[...])
    o_ref[...] = y5.astype(o_ref.dtype).reshape(h, w, cp)


# --------------------------------------------------------------------------
# Wrappers (glue only: weight padding / casts; all FLOPs are in the kernels)
# --------------------------------------------------------------------------
def _stage_a(x, p1, p2, p3, *, cp, dp, compute_dtype=jnp.bfloat16):
    """Fused conv1 + conv2 + conv3.  Returns a zero-halo (N, H+2, W+2, Cp)."""
    n, h, w, cin = x.shape
    c = p1["w"].shape[-1]
    d = p2["w"].shape[-1]

    w1 = _pad_axis_to(p1["w"].reshape(cin, c), 1, cp).astype(compute_dtype)
    b1 = _pad_axis_to(p1["b"].reshape(1, c), 1, cp).astype(jnp.float32)
    w2 = _pad_axis_to(_pad_axis_to(p2["w"], 2, cp), 3, dp)       # (3,3,cp,dp)
    w2 = w2.reshape(9, cp, dp).astype(compute_dtype)
    b2 = _pad_axis_to(p2["b"].reshape(1, d), 1, dp).astype(jnp.float32)
    w3 = _pad_axis_to(_pad_axis_to(p3["w"].reshape(d, c), 0, dp), 1, cp)
    w3 = w3.astype(compute_dtype)
    b3 = _pad_axis_to(p3["b"].reshape(1, c), 1, cp).astype(jnp.float32)

    cs = _const_spec()
    return pl.pallas_call(
        _conv1_conv3x3_conv1_kernel,
        out_shape=jax.ShapeDtypeStruct((n, h + 2, w + 2, cp), compute_dtype),
        grid=(n,),
        in_specs=[pl.BlockSpec((None, h, w, cin), lambda i: (i, 0, 0, 0)),
                  cs, cs, cs, cs, cs, cs],
        out_specs=pl.BlockSpec((None, h + 2, w + 2, cp),
                               lambda i: (i, 0, 0, 0)),
        scratch_shapes=[pltpu.VMEM((h + 2, w + 2, cp), compute_dtype)],
        compiler_params=pltpu.CompilerParams(
            dimension_semantics=("parallel",),
            vmem_limit_bytes=_vmem_limit_bytes()),
    )(x.astype(compute_dtype), w1, b1, w2, b2, w3, b3)


def _stage_b(x_halo, p4, p5, *, cp, dp, compute_dtype=jnp.bfloat16,
             out_dtype=jnp.bfloat16):
    """Fused conv4 + conv5 on the zero-halo stage-A output."""
    n, hp, wp, _ = x_halo.shape
    h, w = hp - 2, wp - 2
    c = p5["w"].shape[-1]
    d = p4["w"].shape[-1]

    w4 = _pad_axis_to(_pad_axis_to(p4["w"], 2, cp), 3, dp)       # (3,3,cp,dp)
    w4 = w4.reshape(9, cp, dp).astype(compute_dtype)
    b4 = _pad_axis_to(p4["b"].reshape(1, d), 1, dp).astype(jnp.float32)
    w5 = _pad_axis_to(_pad_axis_to(p5["w"].reshape(d, c), 0, dp), 1, cp)
    w5 = w5.astype(compute_dtype)
    b5 = _pad_axis_to(p5["b"].reshape(1, c), 1, cp).astype(jnp.float32)

    cs = _const_spec()
    return pl.pallas_call(
        _conv3x3_conv1_kernel,
        out_shape=jax.ShapeDtypeStruct((n, h, w, cp), out_dtype),
        grid=(n,),
        in_specs=[pl.BlockSpec((None, hp, wp, cp), lambda i: (i, 0, 0, 0)),
                  cs, cs, cs, cs],
        out_specs=pl.BlockSpec((None, h, w, cp), lambda i: (i, 0, 0, 0)),
        compiler_params=pltpu.CompilerParams(
            dimension_semantics=("parallel",),
            vmem_limit_bytes=_vmem_limit_bytes()),
    )(x_halo, w4, b4, w5, b5)


# --------------------------------------------------------------------------
# DetectionBlock parameters & forward
# --------------------------------------------------------------------------
def init_detection_block_params(key, in_channels, out_channels):
    double = out_channels * 2
    layer_defs = [  # (name, k, cin, cout)
        ("conv1", 1, in_channels, out_channels),
        ("conv2", 3, out_channels, double),
        ("conv3", 1, double, out_channels),
        ("conv4", 3, out_channels, double),
        ("conv5", 1, double, out_channels),
    ]
    params = {}
    for name, k, cin, cout in layer_defs:
        key, kw_, kg, kb, km, kv = jax.random.split(key, 6)
        w = 0.1 * jax.random.normal(kw_, (k, k, cin, cout), jnp.float32)
        gamma = 1.0 + 0.1 * jax.random.normal(kg, (cout,), jnp.float32)
        beta = 0.1 * jax.random.normal(kb, (cout,), jnp.float32)
        mean = 0.1 * jax.random.normal(km, (cout,), jnp.float32)
        var = jax.random.uniform(kv, (cout,), jnp.float32,
                                 minval=0.5, maxval=1.5)
        # Fold eval-mode BN into the conv weights (conv has no bias):
        #   BN(conv(x)) = conv(x) * scale + bias  ==  conv_{w*scale}(x) + bias
        scale = gamma / jnp.sqrt(var + BN_EPS)
        params[name] = dict(w=w * scale[None, None, None, :],
                            b=beta - mean * scale)
    return params


@jax.jit
def detection_block_forward(x_nchw, params):
    x = jnp.transpose(x_nchw, (0, 2, 3, 1))                     # NCHW -> NHWC
    c_out = params["conv1"]["w"].shape[-1]
    cp = _round_up(c_out, LANE)          # lane-dense padded out_channels
    dp = _round_up(2 * c_out, LANE)      # lane-dense padded 2*out_channels
    y = _stage_a(x, params["conv1"], params["conv2"], params["conv3"],
                 cp=cp, dp=dp)
    z = _stage_b(y, params["conv4"], params["conv5"], cp=cp, dp=dp)
    z = z[..., :c_out]                                          # drop lane pad
    z = jnp.transpose(z, (0, 3, 1, 2))                          # NHWC -> NCHW
    return z.astype(jnp.float32)         # f32 cast deferred past the transpose


# Pure-JAX reference (f32 everywhere) for the correctness check.
def detection_block_reference(x_nchw, params):
    x = jnp.transpose(x_nchw, (0, 2, 3, 1))
    for name in ("conv1", "conv2", "conv3", "conv4", "conv5"):
        p = params[name]
        pad = "SAME" if p["w"].shape[0] == 3 else "VALID"
        y = lax.conv_general_dilated(
            x, p["w"], window_strides=(1, 1), padding=pad,
            dimension_numbers=("NHWC", "HWIO", "NHWC"))
        x = _leaky(y + p["b"])
    return jnp.transpose(x, (0, 3, 1, 2))


if __name__ == "__main__":
    key = jax.random.PRNGKey(0)
    k_x, k_p = jax.random.split(key)

    N, C_IN, C_OUT, H, W = 2, 8, 16, 16, 16
    x = jax.random.normal(k_x, (N, C_IN, H, W), jnp.float32)  # NCHW like torch
    params = init_detection_block_params(k_p, C_IN, C_OUT)

    out = jax.block_until_ready(detection_block_forward(x, params))
    ref = detection_block_reference(x, params)

    assert out.shape == (N, C_OUT, H, W), out.shape
    # bf16 matmul inputs / intermediates (f32 accumulation) across 5 layers ->
    # loosened tolerance vs the f32 reference.
    max_err = float(jnp.max(jnp.abs(out - ref)))
    assert jnp.allclose(out, ref, atol=5e-2, rtol=5e-2), max_err

    print("KERNEL_OK")
</pallas_src>

<mosaic_0001>
module attributes {stable_mosaic.version = 11 : i64} {
  func.func @_conv1_conv3x3_conv1_kernel(%arg0: i32, %arg1: memref<1x16x16x8xbf16, #tpu.memory_space<vmem>>, %arg2: memref<8x128xbf16, #tpu.memory_space<vmem>>, %arg3: memref<1x128xf32, #tpu.memory_space<vmem>>, %arg4: memref<9x128x128xbf16, #tpu.memory_space<vmem>>, %arg5: memref<1x128xf32, #tpu.memory_space<vmem>>, %arg6: memref<128x128xbf16, #tpu.memory_space<vmem>>, %arg7: memref<1x128xf32, #tpu.memory_space<vmem>>, %arg8: memref<1x18x18x128xbf16, #tpu.memory_space<vmem>>, %arg9: memref<18x18x128xbf16, #tpu.memory_space<vmem>>) attributes {dimension_semantics = [#tpu.dimension_semantics<parallel>], iteration_bounds = array<i64: 2>, scalar_prefetch = 0 : i64, scratch_operands = 1 : i64, tpu.core_type = #tpu.core_type<tc>, window_params = [{transform_indices = @transform_0, window_bounds = array<i64: 1, 16, 16, 8>}, {pipeline_mode = #tpu.pipeline_mode<synchronous>, transform_indices = @transform_1, window_bounds = array<i64: 8, 128>}, {pipeline_mode = #tpu.pipeline_mode<synchronous>, transform_indices = @transform_2, window_bounds = array<i64: 1, 128>}, {pipeline_mode = #tpu.pipeline_mode<synchronous>, transform_indices = @transform_3, window_bounds = array<i64: 9, 128, 128>}, {pipeline_mode = #tpu.pipeline_mode<synchronous>, transform_indices = @transform_4, window_bounds = array<i64: 1, 128>}, {pipeline_mode = #tpu.pipeline_mode<synchronous>, transform_indices = @transform_5, window_bounds = array<i64: 128, 128>}, {pipeline_mode = #tpu.pipeline_mode<synchronous>, transform_indices = @transform_6, window_bounds = array<i64: 1, 128>}, {transform_indices = @transform_7, window_bounds = array<i64: 1, 18, 18, 128>}]} {
    %c0 = arith.constant 0 : index
    %c0_0 = arith.constant 0 : index
    %c0_1 = arith.constant 0 : index
    %c0_2 = arith.constant 0 : index
    %0 = vector.load %arg1[%c0, %c0_0, %c0_1, %c0_2] : memref<1x16x16x8xbf16, #tpu.memory_space<vmem>>, vector<1x16x16x8xbf16>
    %1 = vector.shape_cast %0 : vector<1x16x16x8xbf16> to vector<16x16x8xbf16>
    %2 = vector.shape_cast %1 : vector<16x16x8xbf16> to vector<256x8xbf16>
    %c0_3 = arith.constant 0 : index
    %c0_4 = arith.constant 0 : index
    %3 = vector.load %arg2[%c0_3, %c0_4] : memref<8x128xbf16, #tpu.memory_space<vmem>>, vector<8x128xbf16>
    %cst = arith.constant dense<0.000000e+00> : vector<256x128xf32>
    %4 = tpu.matmul %2, %3, %cst {dimension_numbers = #tpu.dot_dimension_numbers<[1], [0], [0], [1], [0, 0, 1, 1], [], []>} : vector<256x8xbf16>, vector<8x128xbf16>, vector<256x128xf32> -> vector<256x128xf32>
    %c0_5 = arith.constant 0 : index
    %c0_6 = arith.constant 0 : index
    %5 = vector.load %arg3[%c0_5, %c0_6] : memref<1x128xf32, #tpu.memory_space<vmem>>, vector<1x128xf32>
    %6 = vector.broadcast %5 : vector<1x128xf32> to vector<256x128xf32>
    %7 = arith.addf %4, %6 : vector<256x128xf32>
    %cst_7 = arith.constant 0.000000e+00 : f32
    %8 = vector.broadcast %cst_7 : f32 to vector<256x128xf32>
    %9 = arith.cmpf ogt, %7, %8 : vector<256x128xf32>
    %cst_8 = arith.constant 1.000000e-01 : f32
    %10 = vector.broadcast %cst_8 : f32 to vector<256x128xf32>
    %11 = arith.mulf %10, %7 : vector<256x128xf32>
    %12 = arith.select %9, %7, %11 : vector<256x128xi1>, vector<256x128xf32>
    %cst_9 = arith.constant 0.000000e+00 : bf16
    %13 = vector.broadcast %cst_9 : bf16 to vector<18x18x128xbf16>
    %c0_10 = arith.constant 0 : index
    %c0_11 = arith.constant 0 : index
    %c0_12 = arith.constant 0 : index
    %14 = vector.load %arg9[%c0_10, %c0_11, %c0_12] : memref<18x18x128xbf16, #tpu.memory_space<vmem>>, vector<18x18x128xbf16>
    tpu.vector_store %arg9[%c0_10, %c0_11, %c0_12], %13 {strides = array<i32>} : memref<18x18x128xbf16, #tpu.memory_space<vmem>>, vector<18x18x128xbf16>,
    %15 = arith.truncf %12 : vector<256x128xf32> to vector<256x128xbf16>
    %16 = vector.shape_cast %15 : vector<256x128xbf16> to vector<16x16x128xbf16>
    %c1 = arith.constant 1 : index
    %c1_13 = arith.constant 1 : index
    %c0_14 = arith.constant 0 : index
    %17 = vector.load %arg9[%c1, %c1_13, %c0_14] : memref<18x18x128xbf16, #tpu.memory_space<vmem>>, vector<16x16x128xbf16>
    tpu.vector_store %arg9[%c1, %c1_13, %c0_14], %16 {strides = array<i32>} : memref<18x18x128xbf16, #tpu.memory_space<vmem>>, vector<16x16x128xbf16>,
    %cst_15 = arith.constant 0.000000e+00 : f32
    %18 = vector.broadcast %cst_15 : f32 to vector<256x128xf32>
    %c0_16 = arith.constant 0 : index
    %c0_17 = arith.constant 0 : index
    %c0_18 = arith.constant 0 : index
    %19 = vector.load %arg9[%c0_16, %c0_17, %c0_18] : memref<18x18x128xbf16, #tpu.memory_space<vmem>>, vector<16x16x128xbf16>
    %20 = vector.shape_cast %19 : vector<16x16x128xbf16> to vector<256x128xbf16>
    %c0_19 = arith.constant 0 : index
    %c0_20 = arith.constant 0 : index
    %c0_21 = arith.constant 0 : index
    %21 = vector.load %arg4[%c0_19, %c0_20, %c0_21] : memref<9x128x128xbf16, #tpu.memory_space<vmem>>, vector<1x128x128xbf16>
    %22 = vector.shape_cast %21 : vector<1x128x128xbf16> to vector<128x128xbf16>
    %cst_22 = arith.constant dense<0.000000e+00> : vector<256x128xf32>
    %23 = tpu.matmul %20, %22, %cst_22 {dimension_numbers = #tpu.dot_dimension_numbers<[1], [0], [0], [1], [0, 0, 1, 1], [], []>} : vector<256x128xbf16>, vector<128x128xbf16>, vector<256x128xf32> -> vector<256x128xf32>
    %24 = arith.addf %18, %23 : vector<256x128xf32>
    %c0_23 = arith.constant 0 : index
    %c1_24 = arith.constant 1 : index
    %c0_25 = arith.constant 0 : index
    %25 = vector.load %arg9[%c0_23, %c1_24, %c0_25] : memref<18x18x128xbf16, #tpu.memory_space<vmem>>, vector<16x16x128xbf16>
    %26 = vector.shape_cast %25 : vector<16x16x128xbf16> to vector<256x128xbf16>
    %c1_26 = arith.constant 1 : index
    %c0_27 = arith.constant 0 : index
    %c0_28 = arith.constant 0 : index
    %27 = vector.load %arg4[%c1_26, %c0_27, %c0_28] : memref<9x128x128xbf16, #tpu.memory_space<vmem>>, vector<1x128x128xbf16>
    %28 = vector.shape_cast %27 : vector<1x128x128xbf16> to vector<128x128xbf16>
    %cst_29 = arith.constant dense<0.000000e+00> : vector<256x128xf32>
    %29 = tpu.matmul %26, %28, %cst_29 {dimension_numbers = #tpu.dot_dimension_numbers<[1], [0], [0], [1], [0, 0, 1, 1], [], []>} : vector<256x128xbf16>, vector<128x128xbf16>, vector<256x128xf32> -> vector<256x128xf32>
    %30 = arith.addf %24, %29 : vector<256x128xf32>
    %c0_30 = arith.constant 0 : index
    %c2 = arith.constant 2 : index
    %c0_31 = arith.constant 0 : index
    %31 = vector.load %arg9[%c0_30, %c2, %c0_31] : memref<18x18x128xbf16, #tpu.memory_space<vmem>>, vector<16x16x128xbf16>
    %32 = vector.shape_cast %31 : vector<16x16x128xbf16> to vector<256x128xbf16>
    %c2_32 = arith.constant 2 : index
    %c0_33 = arith.constant 0 : index
    %c0_34 = arith.constant 0 : index
    %33 = vector.load %arg4[%c2_32, %c0_33, %c0_34] : memref<9x128x128xbf16, #tpu.memory_space<vmem>>, vector<1x128x128xbf16>
    %34 = vector.shape_cast %33 : vector<1x128x128xbf16> to vector<128x128xbf16>
    %cst_35 = arith.constant dense<0.000000e+00> : vector<256x128xf32>
    %35 = tpu.matmul %32, %34, %cst_35 {dimension_numbers = #tpu.dot_dimension_numbers<[1], [0], [0], [1], [0, 0, 1, 1], [], []>} : vector<256x128xbf16>, vector<128x128xbf16>, vector<256x128xf32> -> vector<256x128xf32>
    %36 = arith.addf %30, %35 : vector<256x128xf32>
    %c1_36 = arith.constant 1 : index
    %c0_37 = arith.constant 0 : index
    %c0_38 = arith.constant 0 : index
    %37 = vector.load %arg9[%c1_36, %c0_37, %c0_38] : memref<18x18x128xbf16, #tpu.memory_space<vmem>>, vector<16x16x128xbf16>
    %38 = vector.shape_cast %37 : vector<16x16x128xbf16> to vector<256x128xbf16>
    %c3 = arith.constant 3 : index
    %c0_39 = arith.constant 0 : index
    %c0_40 = arith.constant 0 : index
    %39 = vector.load %arg4[%c3, %c0_39, %c0_40] : memref<9x128x128xbf16, #tpu.memory_space<vmem>>, vector<1x128x128xbf16>
    %40 = vector.shape_cast %39 : vector<1x128x128xbf16> to vector<128x128xbf16>
    %cst_41 = arith.constant dense<0.000000e+00> : vector<256x128xf32>
    %41 = tpu.matmul %38, %40, %cst_41 {dimension_numbers = #tpu.dot_dimension_numbers<[1], [0], [0], [1], [0, 0, 1, 1], [], []>} : vector<256x128xbf16>, vector<128x128xbf16>, vector<256x128xf32> -> vector<256x128xf32>
    %42 = arith.addf %36, %41 : vector<256x128xf32>
    %c1_42 = arith.constant 1 : index
    %c1_43 = arith.constant 1 : index
    %c0_44 = arith.constant 0 : index
    %43 = vector.load %arg9[%c1_42, %c1_43, %c0_44] : memref<18x18x128xbf16, #tpu.memory_space<vmem>>, vector<16x16x128xbf16>
    %44 = vector.shape_cast %43 : vector<16x16x128xbf16> to vector<256x128xbf16>
    %c4 = arith.constant 4 : index
    %c0_45 = arith.constant 0 : index
    %c0_46 = arith.constant 0 : index
    %45 = vector.load %arg4[%c4, %c0_45, %c0_46] : memref<9x128x128xbf16, #tpu.memory_space<vmem>>, vector<1x128x128xbf16>
    %46 = vector.shape_cast %45 : vector<1x128x128xbf16> to vector<128x128xbf16>
    %cst_47 = arith.constant dense<0.000000e+00> : vector<256x128xf32>
    %47 = tpu.matmul %44, %46, %cst_47 {dimension_numbers = #tpu.dot_dimension_numbers<[1], [0], [0], [1], [0, 0, 1, 1], [], []>} : vector<256x128xbf16>, vector<128x128xbf16>, vector<256x128xf32> -> vector<256x128xf32>
    %48 = arith.addf %42, %47 : vector<256x128xf32>
    %c1_48 = arith.constant 1 : index
    %c2_49 = arith.constant 2 : index
    %c0_50 = arith.constant 0 : index
    %49 = vector.load %arg9[%c1_48, %c2_49, %c0_50] : memref<18x18x128xbf16, #tpu.memory_space<vmem>>, vector<16x16x128xbf16>
    %50 = vector.shape_cast %49 : vector<16x16x128xbf16> to vector<256x128xbf16>
    %c5 = arith.constant 5 : index
    %c0_51 = arith.constant 0 : index
    %c0_52 = arith.constant 0 : index
    %51 = vector.load %arg4[%c5, %c0_51, %c0_52] : memref<9x128x128xbf16, #tpu.memory_space<vmem>>, vector<1x128x128xbf16>
    %52 = vector.shape_cast %51 : vector<1x128x128xbf16> to vector<128x128xbf16>
    %cst_53 = arith.constant dense<0.000000e+00> : vector<256x128xf32>
    %53 = tpu.matmul %50, %52, %cst_53 {dimension_numbers = #tpu.dot_dimension_numbers<[1], [0], [0], [1], [0, 0, 1, 1], [], []>} : vector<256x128xbf16>, vector<128x128xbf16>, vector<256x128xf32> -> vector<256x128xf32>
    %54 = arith.addf %48, %53 : vector<256x128xf32>
    %c2_54 = arith.constant 2 : index
    %c0_55 = arith.constant 0 : index
    %c0_56 = arith.constant 0 : index
    %55 = vector.load %arg9[%c2_54, %c0_55, %c0_56] : memref<18x18x128xbf16, #tpu.memory_space<vmem>>, vector<16x16x128xbf16>
    %56 = vector.shape_cast %55 : vector<16x16x128xbf16> to vector<256x128xbf16>
    %c6 = arith.constant 6 : index
    %c0_57 = arith.constant 0 : index
    %c0_58 = arith.constant 0 : index
    %57 = vector.load %arg4[%c6, %c0_57, %c0_58] : memref<9x128x128xbf16, #tpu.memory_space<vmem>>, vector<1x128x128xbf16>
    %58 = vector.shape_cast %57 : vector<1x128x128xbf16> to vector<128x128xbf16>
    %cst_59 = arith.constant dense<0.000000e+00> : vector<256x128xf32>
    %59 = tpu.matmul %56, %58, %cst_59 {dimension_numbers = #tpu.dot_dimension_numbers<[1], [0], [0], [1], [0, 0, 1, 1], [], []>} : vector<256x128xbf16>, vector<128x128xbf16>, vector<256x128xf32> -> vector<256x128xf32>
    %60 = arith.addf %54, %59 : vector<256x128xf32>
    %c2_60 = arith.constant 2 : index
    %c1_61 = arith.constant 1 : index
    %c0_62 = arith.constant 0 : index
    %61 = vector.load %arg9[%c2_60, %c1_61, %c0_62] : memref<18x18x128xbf16, #tpu.memory_space<vmem>>, vector<16x16x128xbf16>
    %62 = vector.shape_cast %61 : vector<16x16x128xbf16> to vector<256x128xbf16>
    %c7 = arith.constant 7 : index
    %c0_63 = arith.constant 0 : index
    %c0_64 = arith.constant 0 : index
    %63 = vector.load %arg4[%c7, %c0_63, %c0_64] : memref<9x128x128xbf16, #tpu.memory_space<vmem>>, vector<1x128x128xbf16>
    %64 = vector.shape_cast %63 : vector<1x128x128xbf16> to vector<128x128xbf16>
    %cst_65 = arith.constant dense<0.000000e+00> : vector<256x128xf32>
    %65 = tpu.matmul %62, %64, %cst_65 {dimension_numbers = #tpu.dot_dimension_numbers<[1], [0], [0], [1], [0, 0, 1, 1], [], []>} : vector<256x128xbf16>, vector<128x128xbf16>, vector<256x128xf32> -> vector<256x128xf32>
    %66 = arith.addf %60, %65 : vector<256x128xf32>
    %c2_66 = arith.constant 2 : index
    %c2_67 = arith.constant 2 : index
    %c0_68 = arith.constant 0 : index
    %67 = vector.load %arg9[%c2_66, %c2_67, %c0_68] : memref<18x18x128xbf16, #tpu.memory_space<vmem>>, vector<16x16x128xbf16>
    %68 = vector.shape_cast %67 : vector<16x16x128xbf16> to vector<256x128xbf16>
    %c8 = arith.constant 8 : index
    %c0_69 = arith.constant 0 : index
    %c0_70 = arith.constant 0 : index
    %69 = vector.load %arg4[%c8, %c0_69, %c0_70] : memref<9x128x128xbf16, #tpu.memory_space<vmem>>, vector<1x128x128xbf16>
    %70 = vector.shape_cast %69 : vector<1x128x128xbf16> to vector<128x128xbf16>
    %cst_71 = arith.constant dense<0.000000e+00> : vector<256x128xf32>
    %71 = tpu.matmul %68, %70, %cst_71 {dimension_numbers = #tpu.dot_dimension_numbers<[1], [0], [0], [1], [0, 0, 1, 1], [], []>} : vector<256x128xbf16>, vector<128x128xbf16>, vector<256x128xf32> -> vector<256x128xf32>
    %72 = arith.addf %66, %71 : vector<256x128xf32>
    %c0_72 = arith.constant 0 : index
    %c0_73 = arith.constant 0 : index
    %73 = vector.load %arg5[%c0_72, %c0_73] : memref<1x128xf32, #tpu.memory_space<vmem>>, vector<1x128xf32>
    %74 = vector.broadcast %73 : vector<1x128xf32> to vector<256x128xf32>
    %75 = arith.addf %72, %74 : vector<256x128xf32>
    %cst_74 = arith.constant 0.000000e+00 : f32
    %76 = vector.broadcast %cst_74 : f32 to vector<256x128xf32>
    %77 = arith.cmpf ogt, %75, %76 : vector<256x128xf32>
    %cst_75 = arith.constant 1.000000e-01 : f32
    %78 = vector.broadcast %cst_75 : f32 to vector<256x128xf32>
    %79 = arith.mulf %78, %75 : vector<256x128xf32>
    %80 = arith.select %77, %75, %79 : vector<256x128xi1>, vector<256x128xf32>
    %81 = arith.truncf %80 : vector<256x128xf32> to vector<256x128xbf16>
    %c0_76 = arith.constant 0 : index
    %c0_77 = arith.constant 0 : index
    %82 = vector.load %arg6[%c0_76, %c0_77] : memref<128x128xbf16, #tpu.memory_space<vmem>>, vector<128x128xbf16>
    %cst_78 = arith.constant dense<0.000000e+00> : vector<256x128xf32>
    %83 = tpu.matmul %81, %82, %cst_78 {dimension_numbers = #tpu.dot_dimension_numbers<[1], [0], [0], [1], [0, 0, 1, 1], [], []>} : vector<256x128xbf16>, vector<128x128xbf16>, vector<256x128xf32> -> vector<256x128xf32>
    %c0_79 = arith.constant 0 : index
    %c0_80 = arith.constant 0 : index
    %84 = vector.load %arg7[%c0_79, %c0_80] : memref<1x128xf32, #tpu.memory_space<vmem>>, vector<1x128xf32>
    %85 = vector.broadcast %84 : vector<1x128xf32> to vector<256x128xf32>
    %86 = arith.addf %83, %85 : vector<256x128xf32>
    %cst_81 = arith.constant 0.000000e+00 : f32
    %87 = vector.broadcast %cst_81 : f32 to vector<256x128xf32>
    %88 = arith.cmpf ogt, %86, %87 : vector<256x128xf32>
    %cst_82 = arith.constant 1.000000e-01 : f32
    %89 = vector.broadcast %cst_82 : f32 to vector<256x128xf32>
    %90 = arith.mulf %89, %86 : vector<256x128xf32>
    %91 = arith.select %88, %86, %90 : vector<256x128xi1>, vector<256x128xf32>
    %cst_83 = arith.constant 0.000000e+00 : bf16
    %92 = vector.broadcast %cst_83 : bf16 to vector<18x18x128xbf16>
    %c0_84 = arith.constant 0 : index
    %c0_85 = arith.constant 0 : index
    %c0_86 = arith.constant 0 : index
    %c0_87 = arith.constant 0 : index
    %93 = vector.load %arg8[%c0_84, %c0_85, %c0_86, %c0_87] : memref<1x18x18x128xbf16, #tpu.memory_space<vmem>>, vector<1x18x18x128xbf16>
    %94 = vector.shape_cast %93 : vector<1x18x18x128xbf16> to vector<18x18x128xbf16>
    %95 = vector.shape_cast %92 : vector<18x18x128xbf16> to vector<1x18x18x128xbf16>
    tpu.vector_store %arg8[%c0_84, %c0_85, %c0_86, %c0_87], %95 {strides = array<i32>} : memref<1x18x18x128xbf16, #tpu.memory_space<vmem>>, vector<1x18x18x128xbf16>,
    %96 = arith.truncf %91 : vector<256x128xf32> to vector<256x128xbf16>
    %97 = vector.shape_cast %96 : vector<256x128xbf16> to vector<16x16x128xbf16>
    %c0_88 = arith.constant 0 : index
    %c1_89 = arith.constant 1 : index
    %c1_90 = arith.constant 1 : index
    %c0_91 = arith.constant 0 : index
    %98 = vector.load %arg8[%c0_88, %c1_89, %c1_90, %c0_91] : memref<1x18x18x128xbf16, #tpu.memory_space<vmem>>, vector<1x16x16x128xbf16>
    %99 = vector.shape_cast %98 : vector<1x16x16x128xbf16> to vector<16x16x128xbf16>
    %100 = vector.shape_cast %97 : vector<16x16x128xbf16> to vector<1x16x16x128xbf16>
    tpu.vector_store %arg8[%c0_88, %c1_89, %c1_90, %c0_91], %100 {strides = array<i32>} : memref<1x18x18x128xbf16, #tpu.memory_space<vmem>>, vector<1x16x16x128xbf16>,
    return
  }
  func.func @transform_0(%arg0: i32) -> (i32, i32, i32, i32) {
    %c0_i32 = arith.constant 0 : i32
    %c0_i32_0 = arith.constant 0 : i32
    %c0_i32_1 = arith.constant 0 : i32
    %c0_i32_2 = arith.constant 0 : i32
    return %arg0, %c0_i32, %c0_i32_0, %c0_i32_1 : i32, i32, i32, i32
  }
  func.func @transform_1(%arg0: i32) -> (i32, i32) {
    %c0_i32 = arith.constant 0 : i32
    %c0_i32_0 = arith.constant 0 : i32
    %c0_i32_1 = arith.constant 0 : i32
    return %c0_i32, %c0_i32_0 : i32, i32
  }
  func.func @transform_2(%arg0: i32) -> (i32, i32) {
    %c0_i32 = arith.constant 0 : i32
    %c0_i32_0 = arith.constant 0 : i32
    %c0_i32_1 = arith.constant 0 : i32
    return %c0_i32, %c0_i32_0 : i32, i32
  }
  func.func @transform_3(%arg0: i32) -> (i32, i32, i32) {
    %c0_i32 = arith.constant 0 : i32
    %c0_i32_0 = arith.constant 0 : i32
    %c0_i32_1 = arith.constant 0 : i32
    %c0_i32_2 = arith.constant 0 : i32
    return %c0_i32, %c0_i32_0, %c0_i32_1 : i32, i32, i32
  }
  func.func @transform_4(%arg0: i32) -> (i32, i32) {
    %c0_i32 = arith.constant 0 : i32
    %c0_i32_0 = arith.constant 0 : i32
    %c0_i32_1 = arith.constant 0 : i32
    return %c0_i32, %c0_i32_0 : i32, i32
  }
  func.func @transform_5(%arg0: i32) -> (i32, i32) {
    %c0_i32 = arith.constant 0 : i32
    %c0_i32_0 = arith.constant 0 : i32
    %c0_i32_1 = arith.constant 0 : i32
    return %c0_i32, %c0_i32_0 : i32, i32
  }
  func.func @transform_6(%arg0: i32) -> (i32, i32) {
    %c0_i32 = arith.constant 0 : i32
    %c0_i32_0 = arith.constant 0 : i32
    %c0_i32_1 = arith.constant 0 : i32
    return %c0_i32, %c0_i32_0 : i32, i32
  }
  func.func @transform_7(%arg0: i32) -> (i32, i32, i32, i32) {
    %c0_i32 = arith.constant 0 : i32
    %c0_i32_0 = arith.constant 0 : i32
    %c0_i32_1 = arith.constant 0 : i32
    %c0_i32_2 = arith.constant 0 : i32
    return %arg0, %c0_i32, %c0_i32_0, %c0_i32_1 : i32, i32, i32, i32
  }
}

module attributes {stable_mosaic.version = 11 : i64} {
  func.func @_conv3x3_conv1_kernel(%arg0: i32, %arg1: memref<1x18x18x128xbf16, #tpu.memory_space<vmem>>, %arg2: memref<9x128x128xbf16, #tpu.memory_space<vmem>>, %arg3: memref<1x128xf32, #tpu.memory_space<vmem>>, %arg4: memref<128x128xbf16, #tpu.memory_space<vmem>>, %arg5: memref<1x128xf32, #tpu.memory_space<vmem>>, %arg6: memref<1x16x16x128xbf16, #tpu.memory_space<vmem>>) attributes {dimension_semantics = [#tpu.dimension_semantics<parallel>], iteration_bounds = array<i64: 2>, scalar_prefetch = 0 : i64, scratch_operands = 0 : i64, tpu.core_type = #tpu.core_type<tc>, window_params = [{transform_indices = @transform_0, window_bounds = array<i64: 1, 18, 18, 128>}, {pipeline_mode = #tpu.pipeline_mode<synchronous>, transform_indices = @transform_1, window_bounds = array<i64: 9, 128, 128>}, {pipeline_mode = #tpu.pipeline_mode<synchronous>, transform_indices = @transform_2, window_bounds = array<i64: 1, 128>}, {pipeline_mode = #tpu.pipeline_mode<synchronous>, transform_indices = @transform_3, window_bounds = array<i64: 128, 128>}, {pipeline_mode = #tpu.pipeline_mode<synchronous>, transform_indices = @transform_4, window_bounds = array<i64: 1, 128>}, {transform_indices = @transform_5, window_bounds = array<i64: 1, 16, 16, 128>}]} {
    %cst = arith.constant 0.000000e+00 : f32
    %0 = vector.broadcast %cst : f32 to vector<256x128xf32>
    %c0 = arith.constant 0 : index
    %c0_0 = arith.constant 0 : index
    %c0_1 = arith.constant 0 : index
    %c0_2 = arith.constant 0 : index
    %1 = vector.load %arg1[%c0, %c0_0, %c0_1, %c0_2] : memref<1x18x18x128xbf16, #tpu.memory_space<vmem>>, vector<1x16x16x128xbf16>
    %2 = vector.shape_cast %1 : vector<1x16x16x128xbf16> to vector<16x16x128xbf16>
    %3 = vector.shape_cast %2 : vector<16x16x128xbf16> to vector<256x128xbf16>
    %c0_3 = arith.constant 0 : index
    %c0_4 = arith.constant 0 : index
    %c0_5 = arith.constant 0 : index
    %4 = vector.load %arg2[%c0_3, %c0_4, %c0_5] : memref<9x128x128xbf16, #tpu.memory_space<vmem>>, vector<1x128x128xbf16>
    %5 = vector.shape_cast %4 : vector<1x128x128xbf16> to vector<128x128xbf16>
    %cst_6 = arith.constant dense<0.000000e+00> : vector<256x128xf32>
    %6 = tpu.matmul %3, %5, %cst_6 {dimension_numbers = #tpu.dot_dimension_numbers<[1], [0], [0], [1], [0, 0, 1, 1], [], []>} : vector<256x128xbf16>, vector<128x128xbf16>, vector<256x128xf32> -> vector<256x128xf32>
    %7 = arith.addf %0, %6 : vector<256x128xf32>
    %c0_7 = arith.constant 0 : index
    %c0_8 = arith.constant 0 : index
    %c1 = arith.constant 1 : index
    %c0_9 = arith.constant 0 : index
    %8 = vector.load %arg1[%c0_7, %c0_8, %c1, %c0_9] : memref<1x18x18x128xbf16, #tpu.memory_space<vmem>>, vector<1x16x16x128xbf16>
    %9 = vector.shape_cast %8 : vector<1x16x16x128xbf16> to vector<16x16x128xbf16>
    %10 = vector.shape_cast %9 : vector<16x16x128xbf16> to vector<256x128xbf16>
    %c1_10 = arith.constant 1 : index
    %c0_11 = arith.constant 0 : index
    %c0_12 = arith.constant 0 : index
    %11 = vector.load %arg2[%c1_10, %c0_11, %c0_12] : memref<9x128x128xbf16, #tpu.memory_space<vmem>>, vector<1x128x128xbf16>
    %12 = vector.shape_cast %11 : vector<1x128x128xbf16> to vector<128x128xbf16>
    %cst_13 = arith.constant dense<0.000000e+00> : vector<256x128xf32>
    %13 = tpu.matmul %10, %12, %cst_13 {dimension_numbers = #tpu.dot_dimension_numbers<[1], [0], [0], [1], [0, 0, 1, 1], [], []>} : vector<256x128xbf16>, vector<128x128xbf16>, vector<256x128xf32> -> vector<256x128xf32>
    %14 = arith.addf %7, %13 : vector<256x128xf32>
    %c0_14 = arith.constant 0 : index
    %c0_15 = arith.constant 0 : index
    %c2 = arith.constant 2 : index
    %c0_16 = arith.constant 0 : index
    %15 = vector.load %arg1[%c0_14, %c0_15, %c2, %c0_16] : memref<1x18x18x128xbf16, #tpu.memory_space<vmem>>, vector<1x16x16x128xbf16>
    %16 = vector.shape_cast %15 : vector<1x16x16x128xbf16> to vector<16x16x128xbf16>
    %17 = vector.shape_cast %16 : vector<16x16x128xbf16> to vector<256x128xbf16>
    %c2_17 = arith.constant 2 : index
    %c0_18 = arith.constant 0 : index
    %c0_19 = arith.constant 0 : index
    %18 = vector.load %arg2[%c2_17, %c0_18, %c0_19] : memref<9x128x128xbf16, #tpu.memory_space<vmem>>, vector<1x128x128xbf16>
    %19 = vector.shape_cast %18 : vector<1x128x128xbf16> to vector<128x128xbf16>
    %cst_20 = arith.constant dense<0.000000e+00> : vector<256x128xf32>
    %20 = tpu.matmul %17, %19, %cst_20 {dimension_numbers = #tpu.dot_dimension_numbers<[1], [0], [0], [1], [0, 0, 1, 1], [], []>} : vector<256x128xbf16>, vector<128x128xbf16>, vector<256x128xf32> -> vector<256x128xf32>
    %21 = arith.addf %14, %20 : vector<256x128xf32>
    %c0_21 = arith.constant 0 : index
    %c1_22 = arith.constant 1 : index
    %c0_23 = arith.constant 0 : index
    %c0_24 = arith.constant 0 : index
    %22 = vector.load %arg1[%c0_21, %c1_22, %c0_23, %c0_24] : memref<1x18x18x128xbf16, #tpu.memory_space<vmem>>, vector<1x16x16x128xbf16>
    %23 = vector.shape_cast %22 : vector<1x16x16x128xbf16> to vector<16x16x128xbf16>
    %24 = vector.shape_cast %23 : vector<16x16x128xbf16> to vector<256x128xbf16>
    %c3 = arith.constant 3 : index
    %c0_25 = arith.constant 0 : index
    %c0_26 = arith.constant 0 : index
    %25 = vector.load %arg2[%c3, %c0_25, %c0_26] : memref<9x128x128xbf16, #tpu.memory_space<vmem>>, vector<1x128x128xbf16>
    %26 = vector.shape_cast %25 : vector<1x128x128xbf16> to vector<128x128xbf16>
    %cst_27 = arith.constant dense<0.000000e+00> : vector<256x128xf32>
    %27 = tpu.matmul %24, %26, %cst_27 {dimension_numbers = #tpu.dot_dimension_numbers<[1], [0], [0], [1], [0, 0, 1, 1], [], []>} : vector<256x128xbf16>, vector<128x128xbf16>, vector<256x128xf32> -> vector<256x128xf32>
    %28 = arith.addf %21, %27 : vector<256x128xf32>
    %c0_28 = arith.constant 0 : index
    %c1_29 = arith.constant 1 : index
    %c1_30 = arith.constant 1 : index
    %c0_31 = arith.constant 0 : index
    %29 = vector.load %arg1[%c0_28, %c1_29, %c1_30, %c0_31] : memref<1x18x18x128xbf16, #tpu.memory_space<vmem>>, vector<1x16x16x128xbf16>
    %30 = vector.shape_cast %29 : vector<1x16x16x128xbf16> to vector<16x16x128xbf16>
    %31 = vector.shape_cast %30 : vector<16x16x128xbf16> to vector<256x128xbf16>
    %c4 = arith.constant 4 : index
    %c0_32 = arith.constant 0 : index
    %c0_33 = arith.constant 0 : index
    %32 = vector.load %arg2[%c4, %c0_32, %c0_33] : memref<9x128x128xbf16, #tpu.memory_space<vmem>>, vector<1x128x128xbf16>
    %33 = vector.shape_cast %32 : vector<1x128x128xbf16> to vector<128x128xbf16>
    %cst_34 = arith.constant dense<0.000000e+00> : vector<256x128xf32>
    %34 = tpu.matmul %31, %33, %cst_34 {dimension_numbers = #tpu.dot_dimension_numbers<[1], [0], [0], [1], [0, 0, 1, 1], [], []>} : vector<256x128xbf16>, vector<128x128xbf16>, vector<256x128xf32> -> vector<256x128xf32>
    %35 = arith.addf %28, %34 : vector<256x128xf32>
    %c0_35 = arith.constant 0 : index
    %c1_36 = arith.constant 1 : index
    %c2_37 = arith.constant 2 : index
    %c0_38 = arith.constant 0 : index
    %36 = vector.load %arg1[%c0_35, %c1_36, %c2_37, %c0_38] : memref<1x18x18x128xbf16, #tpu.memory_space<vmem>>, vector<1x16x16x128xbf16>
    %37 = vector.shape_cast %36 : vector<1x16x16x128xbf16> to vector<16x16x128xbf16>
    %38 = vector.shape_cast %37 : vector<16x16x128xbf16> to vector<256x128xbf16>
    %c5 = arith.constant 5 : index
    %c0_39 = arith.constant 0 : index
    %c0_40 = arith.constant 0 : index
    %39 = vector.load %arg2[%c5, %c0_39, %c0_40] : memref<9x128x128xbf16, #tpu.memory_space<vmem>>, vector<1x128x128xbf16>
    %40 = vector.shape_cast %39 : vector<1x128x128xbf16> to vector<128x128xbf16>
    %cst_41 = arith.constant dense<0.000000e+00> : vector<256x128xf32>
    %41 = tpu.matmul %38, %40, %cst_41 {dimension_numbers = #tpu.dot_dimension_numbers<[1], [0], [0], [1], [0, 0, 1, 1], [], []>} : vector<256x128xbf16>, vector<128x128xbf16>, vector<256x128xf32> -> vector<256x128xf32>
    %42 = arith.addf %35, %41 : vector<256x128xf32>
    %c0_42 = arith.constant 0 : index
    %c2_43 = arith.constant 2 : index
    %c0_44 = arith.constant 0 : index
    %c0_45 = arith.constant 0 : index
    %43 = vector.load %arg1[%c0_42, %c2_43, %c0_44, %c0_45] : memref<1x18x18x128xbf16, #tpu.memory_space<vmem>>, vector<1x16x16x128xbf16>
    %44 = vector.shape_cast %43 : vector<1x16x16x128xbf16> to vector<16x16x128xbf16>
    %45 = vector.shape_cast %44 : vector<16x16x128xbf16> to vector<256x128xbf16>
    %c6 = arith.constant 6 : index
    %c0_46 = arith.constant 0 : index
    %c0_47 = arith.constant 0 : index
    %46 = vector.load %arg2[%c6, %c0_46, %c0_47] : memref<9x128x128xbf16, #tpu.memory_space<vmem>>, vector<1x128x128xbf16>
    %47 = vector.shape_cast %46 : vector<1x128x128xbf16> to vector<128x128xbf16>
    %cst_48 = arith.constant dense<0.000000e+00> : vector<256x128xf32>
    %48 = tpu.matmul %45, %47, %cst_48 {dimension_numbers = #tpu.dot_dimension_numbers<[1], [0], [0], [1], [0, 0, 1, 1], [], []>} : vector<256x128xbf16>, vector<128x128xbf16>, vector<256x128xf32> -> vector<256x128xf32>
    %49 = arith.addf %42, %48 : vector<256x128xf32>
    %c0_49 = arith.constant 0 : index
    %c2_50 = arith.constant 2 : index
    %c1_51 = arith.constant 1 : index
    %c0_52 = arith.constant 0 : index
    %50 = vector.load %arg1[%c0_49, %c2_50, %c1_51, %c0_52] : memref<1x18x18x128xbf16, #tpu.memory_space<vmem>>, vector<1x16x16x128xbf16>
    %51 = vector.shape_cast %50 : vector<1x16x16x128xbf16> to vector<16x16x128xbf16>
    %52 = vector.shape_cast %51 : vector<16x16x128xbf16> to vector<256x128xbf16>
    %c7 = arith.constant 7 : index
    %c0_53 = arith.constant 0 : index
    %c0_54 = arith.constant 0 : index
    %53 = vector.load %arg2[%c7, %c0_53, %c0_54] : memref<9x128x128xbf16, #tpu.memory_space<vmem>>, vector<1x128x128xbf16>
    %54 = vector.shape_cast %53 : vector<1x128x128xbf16> to vector<128x128xbf16>
    %cst_55 = arith.constant dense<0.000000e+00> : vector<256x128xf32>
    %55 = tpu.matmul %52, %54, %cst_55 {dimension_numbers = #tpu.dot_dimension_numbers<[1], [0], [0], [1], [0, 0, 1, 1], [], []>} : vector<256x128xbf16>, vector<128x128xbf16>, vector<256x128xf32> -> vector<256x128xf32>
    %56 = arith.addf %49, %55 : vector<256x128xf32>
    %c0_56 = arith.constant 0 : index
    %c2_57 = arith.constant 2 : index
    %c2_58 = arith.constant 2 : index
    %c0_59 = arith.constant 0 : index
    %57 = vector.load %arg1[%c0_56, %c2_57, %c2_58, %c0_59] : memref<1x18x18x128xbf16, #tpu.memory_space<vmem>>, vector<1x16x16x128xbf16>
    %58 = vector.shape_cast %57 : vector<1x16x16x128xbf16> to vector<16x16x128xbf16>
    %59 = vector.shape_cast %58 : vector<16x16x128xbf16> to vector<256x128xbf16>
    %c8 = arith.constant 8 : index
    %c0_60 = arith.constant 0 : index
    %c0_61 = arith.constant 0 : index
    %60 = vector.load %arg2[%c8, %c0_60, %c0_61] : memref<9x128x128xbf16, #tpu.memory_space<vmem>>, vector<1x128x128xbf16>
    %61 = vector.shape_cast %60 : vector<1x128x128xbf16> to vector<128x128xbf16>
    %cst_62 = arith.constant dense<0.000000e+00> : vector<256x128xf32>
    %62 = tpu.matmul %59, %61, %cst_62 {dimension_numbers = #tpu.dot_dimension_numbers<[1], [0], [0], [1], [0, 0, 1, 1], [], []>} : vector<256x128xbf16>, vector<128x128xbf16>, vector<256x128xf32> -> vector<256x128xf32>
    %63 = arith.addf %56, %62 : vector<256x128xf32>
    %c0_63 = arith.constant 0 : index
    %c0_64 = arith.constant 0 : index
    %64 = vector.load %arg3[%c0_63, %c0_64] : memref<1x128xf32, #tpu.memory_space<vmem>>, vector<1x128xf32>
    %65 = vector.broadcast %64 : vector<1x128xf32> to vector<256x128xf32>
    %66 = arith.addf %63, %65 : vector<256x128xf32>
    %cst_65 = arith.constant 0.000000e+00 : f32
    %67 = vector.broadcast %cst_65 : f32 to vector<256x128xf32>
    %68 = arith.cmpf ogt, %66, %67 : vector<256x128xf32>
    %cst_66 = arith.constant 1.000000e-01 : f32
    %69 = vector.broadcast %cst_66 : f32 to vector<256x128xf32>
    %70 = arith.mulf %69, %66 : vector<256x128xf32>
    %71 = arith.select %68, %66, %70 : vector<256x128xi1>, vector<256x128xf32>
    %72 = arith.truncf %71 : vector<256x128xf32> to vector<256x128xbf16>
    %c0_67 = arith.constant 0 : index
    %c0_68 = arith.constant 0 : index
    %73 = vector.load %arg4[%c0_67, %c0_68] : memref<128x128xbf16, #tpu.memory_space<vmem>>, vector<128x128xbf16>
    %cst_69 = arith.constant dense<0.000000e+00> : vector<256x128xf32>
    %74 = tpu.matmul %72, %73, %cst_69 {dimension_numbers = #tpu.dot_dimension_numbers<[1], [0], [0], [1], [0, 0, 1, 1], [], []>} : vector<256x128xbf16>, vector<128x128xbf16>, vector<256x128xf32> -> vector<256x128xf32>
    %c0_70 = arith.constant 0 : index
    %c0_71 = arith.constant 0 : index
    %75 = vector.load %arg5[%c0_70, %c0_71] : memref<1x128xf32, #tpu.memory_space<vmem>>, vector<1x128xf32>
    %76 = vector.broadcast %75 : vector<1x128xf32> to vector<256x128xf32>
    %77 = arith.addf %74, %76 : vector<256x128xf32>
    %cst_72 = arith.constant 0.000000e+00 : f32
    %78 = vector.broadcast %cst_72 : f32 to vector<256x128xf32>
    %79 = arith.cmpf ogt, %77, %78 : vector<256x128xf32>
    %cst_73 = arith.constant 1.000000e-01 : f32
    %80 = vector.broadcast %cst_73 : f32 to vector<256x128xf32>
    %81 = arith.mulf %80, %77 : vector<256x128xf32>
    %82 = arith.select %79, %77, %81 : vector<256x128xi1>, vector<256x128xf32>
    %83 = arith.truncf %82 : vector<256x128xf32> to vector<256x128xbf16>
    %84 = vector.shape_cast %83 : vector<256x128xbf16> to vector<16x16x128xbf16>
    %c0_74 = arith.constant 0 : index
    %c0_75 = arith.constant 0 : index
    %c0_76 = arith.constant 0 : index
    %c0_77 = arith.constant 0 : index
    %85 = vector.load %arg6[%c0_74, %c0_75, %c0_76, %c0_77] : memref<1x16x16x128xbf16, #tpu.memory_space<vmem>>, vector<1x16x16x128xbf16>
    %86 = vector.shape_cast %85 : vector<1x16x16x128xbf16> to vector<16x16x128xbf16>
    %87 = vector.shape_cast %84 : vector<16x16x128xbf16> to vector<1x16x16x128xbf16>
    tpu.vector_store %arg6[%c0_74, %c0_75, %c0_76, %c0_77], %87 {strides = array<i32>} : memref<1x16x16x128xbf16, #tpu.memory_space<vmem>>, vector<1x16x16x128xbf16>,
    return
  }
  func.func @transform_0(%arg0: i32) -> (i32, i32, i32, i32) {
    %c0_i32 = arith.constant 0 : i32
    %c0_i32_0 = arith.constant 0 : i32
    %c0_i32_1 = arith.constant 0 : i32
    %c0_i32_2 = arith.constant 0 : i32
    return %arg0, %c0_i32, %c0_i32_0, %c0_i32_1 : i32, i32, i32, i32
  }
  func.func @transform_1(%arg0: i32) -> (i32, i32, i32) {
    %c0_i32 = arith.constant 0 : i32
    %c0_i32_0 = arith.constant 0 : i32
    %c0_i32_1 = arith.constant 0 : i32
    %c0_i32_2 = arith.constant 0 : i32
    return %c0_i32, %c0_i32_0, %c0_i32_1 : i32, i32, i32
  }
  func.func @transform_2(%arg0: i32) -> (i32, i32) {
    %c0_i32 = arith.constant 0 : i32
    %c0_i32_0 = arith.constant 0 : i32
    %c0_i32_1 = arith.constant 0 : i32
    return %c0_i32, %c0_i32_0 : i32, i32
  }
  func.func @transform_3(%arg0: i32) -> (i32, i32) {
    %c0_i32 = arith.constant 0 : i32
    %c0_i32_0 = arith.constant 0 : i32
    %c0_i32_1 = arith.constant 0 : i32
    return %c0_i32, %c0_i32_0 : i32, i32
  }
  func.func @transform_4(%arg0: i32) -> (i32, i32) {
    %c0_i32 = arith.constant 0 : i32
    %c0_i32_0 = arith.constant 0 : i32
    %c0_i32_1 = arith.constant 0 : i32
    return %c0_i32, %c0_i32_0 : i32, i32
  }
  func.func @transform_5(%arg0: i32) -> (i32, i32, i32, i32) {
    %c0_i32 = arith.constant 0 : i32
    %c0_i32_0 = arith.constant 0 : i32
    %c0_i32_1 = arith.constant 0 : i32
    %c0_i32_2 = arith.constant 0 : i32
    return %arg0, %c0_i32, %c0_i32_0, %c0_i32_1 : i32, i32, i32, i32
  }
}

</mosaic_0001>

<llo_original>
// kernel: detection_block_forward.3
$region0: #{detection_block_forward.3}
  #allocation0 [shape = 'u32[]', space=smem, size = 0x4, offset = 0x4, fixed_abs, tag = 'smem constant byte address 0x4 - core index']
  #allocation1 [shape = 'u32[144,128]{1,0:T(1,128)}', space=vmem, size = 0x12000, scoped, tag = 'internal scratch']
  %s0 = inlined_call_operand.vmem [shape: bf16[2,18,18,128], index: 0, kind: input, shape index: {}]
  %s1 = inlined_call_operand.vmem [shape: bf16[9,128,128], index: 1, kind: input, shape index: {}]
  %s2 = inlined_call_operand.vmem [shape: f32[1,128], index: 2, kind: input, shape index: {}]
  %s3 = inlined_call_operand.vmem [shape: bf16[128,128], index: 3, kind: input, shape index: {}]
  %s4 = inlined_call_operand.vmem [shape: f32[1,128], index: 4, kind: input, shape index: {}]
  %s5 = inlined_call_operand.vmem [shape: bf16[2,16,16,128], index: 5, kind: output, shape index: {}]
  %s6 = sld [smem:[#allocation0]]
  $region53: #{detection_block_forward.3} parent=0
    _
  %s8 = ssub.s32 1, %s6
  %s9 = scalar_select 0, %s8, %s6
  loop: start=0, step=1, limit=4
  $region2: #{detection_block_forward.3} parent=0 // loop_pre_header
    _
  $region3: #{detection_block_forward.3} parent=0 // loop_header
    %s11 = sphi 0, %s15
    %p12 = scmp.ge.s32.totalorder %s11, 4
    %s21 = sphi 0, %s23
    %s24 = sphi 0, %s21
    %s25 = sphi 0, %s24
    %s41 = sphi 0, %s25
    %s45 = sphi 0, %s45
    %s47 = sphi 0, %s45
    %s48 = sphi 0, %s47
    %s62 = sphi 0, %s48
    %s66 = sphi 0, %s66
    %s68 = sphi 0, %s66
    %s69 = sphi 0, %s68
    %s83 = sphi 0, %s69
    %s87 = sphi 0, %s87
    %s89 = sphi 0, %s87
    %s90 = sphi 0, %s89
    %s104 = sphi 0, %s90
    %s108 = sphi 0, %s108
    %s110 = sphi 0, %s108
    %s111 = sphi 0, %s110
    %s125 = sphi 0, %s111
    %s131 = sphi 0, %s133
    %s134 = sphi 0, %s131
    %s135 = sphi 0, %s134
    %s151 = sphi 0, %s135
  $region4: #{detection_block_forward.3} parent=0 // loop_header_branch
    %14 = sbr.rel (%p12) target = $region8
  $region5: #{detection_block_forward.3} parent=0 // loop_body
    %s16 = ssub.s32 %s11, 1
    %s17 = ssub.s32 %s11, 2
    %s18 = sadd.s32 %s11, 1
    %s19 = ssub.s32 %s11, %s18
    %p20 = scmp.eq.s32.totalorder %s19, 0
    %s22 = sadd.s32 %s21, 1
    %s23 = scalar_select %p20, %s21, %s22
    %p26 = pneg %p20
    %p27 = scmp.eq.s32.totalorder %s11, 1
    %p28 = por %p26, %p27
    %p29 = scmp.ne.s32.totalorder %s21, %s24
    %p30 = scmp.eq.s32.totalorder %s11, 0
    %p31 = por %p29, %p30
    %p32 = scmp.ne.s32.totalorder %s21, %s24
    %p33 = scmp.eq.s32.totalorder %s16, 1
    %p34 = por %p32, %p33
    %p35 = scmp.ne.s32.totalorder %s24, %s25
    %p36 = scmp.eq.s32.totalorder %s16, 0
    %p37 = por %p35, %p36
    %p38 = scmp.ne.s32.totalorder %s24, %s25
    %p39 = scmp.eq.s32.totalorder %s17, 1
    %p40 = por %p38, %p39
    %p42 = scmp.ne.s32.totalorder %s25, %s41
    %p43 = scmp.eq.s32.totalorder %s17, 0
    %p44 = por %p42, %p43
    %s46 = sadd.s32 %s45, 1
    %p49 = scmp.eq.s32.totalorder %s11, 1
    %p50 = scmp.ne.s32.totalorder %s45, %s47
    %p51 = scmp.eq.s32.totalorder %s11, 0
    %p52 = por %p50, %p51
    %p53 = scmp.ne.s32.totalorder %s45, %s47
    %p54 = scmp.eq.s32.totalorder %s16, 1
    %p55 = por %p53, %p54
    %p56 = scmp.ne.s32.totalorder %s47, %s48
    %p57 = scmp.eq.s32.totalorder %s16, 0
    %p58 = por %p56, %p57
    %p59 = scmp.ne.s32.totalorder %s47, %s48
    %p60 = scmp.eq.s32.totalorder %s17, 1
    %p61 = por %p59, %p60
    %p63 = scmp.ne.s32.totalorder %s48, %s62
    %p64 = scmp.eq.s32.totalorder %s17, 0
    %p65 = por %p63, %p64
    %s67 = sadd.s32 %s66, 1
    %p70 = scmp.eq.s32.totalorder %s11, 1
    %p71 = scmp.ne.s32.totalorder %s66, %s68
    %p72 = scmp.eq.s32.totalorder %s11, 0
    %p73 = por %p71, %p72
    %p74 = scmp.ne.s32.totalorder %s66, %s68
    %p75 = scmp.eq.s32.totalorder %s16, 1
    %p76 = por %p74, %p75
    %p77 = scmp.ne.s32.totalorder %s68, %s69
    %p78 = scmp.eq.s32.totalorder %s16, 0
    %p79 = por %p77, %p78
    %p80 = scmp.ne.s32.totalorder %s68, %s69
    %p81 = scmp.eq.s32.totalorder %s17, 1
    %p82 = por %p80, %p81
    %p84 = scmp.ne.s32.totalorder %s69, %s83
    %p85 = scmp.eq.s32.totalorder %s17, 0
    %p86 = por %p84, %p85
    %s88 = sadd.s32 %s87, 1
    %p91 = scmp.eq.s32.totalorder %s11, 1
    %p92 = scmp.ne.s32.totalorder %s87, %s89
    %p93 = scmp.eq.s32.totalorder %s11, 0
    %p94 = por %p92, %p93
    %p95 = scmp.ne.s32.totalorder %s87, %s89
    %p96 = scmp.eq.s32.totalorder %s16, 1
    %p97 = por %p95, %p96
    %p98 = scmp.ne.s32.totalorder %s89, %s90
    %p99 = scmp.eq.s32.totalorder %s16, 0
    %p100 = por %p98, %p99
    %p101 = scmp.ne.s32.totalorder %s89, %s90
    %p102 = scmp.eq.s32.totalorder %s17, 1
    %p103 = por %p101, %p102
    %p105 = scmp.ne.s32.totalorder %s90, %s104
    %p106 = scmp.eq.s32.totalorder %s17, 0
    %p107 = por %p105, %p106
    %s109 = sadd.s32 %s108, 1
    %p112 = scmp.eq.s32.totalorder %s11, 1
    %p113 = scmp.ne.s32.totalorder %s108, %s110
    %p114 = scmp.eq.s32.totalorder %s11, 0
    %p115 = por %p113, %p114
    %p116 = scmp.ne.s32.totalorder %s108, %s110
    %p117 = scmp.eq.s32.totalorder %s16, 1
    %p118 = por %p116, %p117
    %p119 = scmp.ne.s32.totalorder %s110, %s111
    %p120 = scmp.eq.s32.totalorder %s16, 0
    %p121 = por %p119, %p120
    %p122 = scmp.ne.s32.totalorder %s110, %s111
    %p123 = scmp.eq.s32.totalorder %s17, 1
    %p124 = por %p122, %p123
    %p126 = scmp.ne.s32.totalorder %s111, %s125
    %p127 = scmp.eq.s32.totalorder %s17, 0
    %p128 = por %p126, %p127
    %s129 = ssub.s32 %s11, %s18
    %p130 = scmp.eq.s32.totalorder %s129, 0
    %s132 = sadd.s32 %s131, 1
    %s133 = scalar_select %p130, %s131, %s132
    %p136 = pneg %p130
    %p137 = scmp.eq.s32.totalorder %s11, 1
    %p138 = por %p136, %p137
    %p139 = scmp.ne.s32.totalorder %s131, %s134
    %p140 = scmp.eq.s32.totalorder %s11, 0
    %p141 = por %p139, %p140
    %p142 = scmp.ne.s32.totalorder %s131, %s134
    %p143 = scmp.eq.s32.totalorder %s16, 1
    %p144 = por %p142, %p143
    %p145 = scmp.ne.s32.totalorder %s134, %s135
    %p146 = scmp.eq.s32.totalorder %s16, 0
    %p147 = por %p145, %p146
    %p148 = scmp.ne.s32.totalorder %s134, %s135
    %p149 = scmp.eq.s32.totalorder %s17, 1
    %p150 = por %p148, %p149
    %p152 = scmp.ne.s32.totalorder %s135, %s151
    %p153 = scmp.eq.s32.totalorder %s17, 0
    %p154 = por %p152, %p153
    %p155 = scmp.le.s32.totalorder 1, %s11
    %p156 = scmp.lt.s32.totalorder %s11, 3
    %p157 = pnand %p155, %p156
    %p158 = pneg %p157
    // Predicated region
    $region9: #{detection_block_forward.3} parent=5 // pred_check
      _
    $region10: #{detection_block_forward.3} parent=5 // pred_check_branch
      %160 = sbr.rel (%p157) target = $region12
    $region11: #{detection_block_forward.3} parent=5 // pred_region
      %s161 = ssub.s32 %s11, 1
      // Predicated region
      $region13: #{detection_block_forward.3} parent=11 // pred_check
        %p162 = pneg %p58
      $region14: #{detection_block_forward.3} parent=11 // pred_check_branch
        %164 = sbr.rel (%p162) target = $region16
      $region15: #{detection_block_forward.3} parent=11 // pred_region
        _
      $region16: #{detection_block_forward.3} parent=11 // pred_fallthru
        _
      // Predicated region
      $region17: #{detection_block_forward.3} parent=11 // pred_check
        %p165 = pneg %p79
      $region18: #{detection_block_forward.3} parent=11 // pred_check_branch
        %167 = sbr.rel (%p165) target = $region20
      $region19: #{detection_block_forward.3} parent=11 // pred_region
        _
      $region20: #{detection_block_forward.3} parent=11 // pred_fallthru
        _
      // Predicated region
      $region21: #{detection_block_forward.3} parent=11 // pred_check
        %p168 = pneg %p100
      $region22: #{detection_block_forward.3} parent=11 // pred_check_branch
        %170 = sbr.rel (%p168) target = $region24
      $region23: #{detection_block_forward.3} parent=11 // pred_region
        _
      $region24: #{detection_block_forward.3} parent=11 // pred_fallthru
        _
      // Predicated region
      $region25: #{detection_block_forward.3} parent=11 // pred_check
        %p171 = pneg %p121
      $region26: #{detection_block_forward.3} parent=11 // pred_check_branch
        %173 = sbr.rel (%p171) target = $region28
      $region27: #{detection_block_forward.3} parent=11 // pred_region
        _
      $region28: #{detection_block_forward.3} parent=11 // pred_fallthru
        _
    $region12: #{detection_block_forward.3} parent=5 // pred_fallthru
      _
    %p174 = scmp.lt.s32.totalorder %s11, 2
    // Predicated region
    $region29: #{detection_block_forward.3} parent=5 // pred_check
      %p175 = pneg %p174
    $region30: #{detection_block_forward.3} parent=5 // pred_check_branch
      %177 = sbr.rel (%p175) target = $region32
    $region31: #{detection_block_forward.3} parent=5 // pred_region
      // Predicated region
      $region33: #{detection_block_forward.3} parent=31 // pred_check
        %p178 = pneg %p31
      $region34: #{detection_block_forward.3} parent=31 // pred_check_branch
        %180 = sbr.rel (%p178) target = $region36
      $region35: #{detection_block_forward.3} parent=31 // pred_region
        %p181 = scmp.lt.s32.totalorder %s11, 1
        %s182 = scalar_select %p181, %s11, 1
        %s183 = smul.addr %s182, 54
        %s184 = smul.addr %s183, 4
        %s185 = scalar_lea.vmem %s0, %s184
      $region36: #{detection_block_forward.3} parent=31 // pred_fallthru
        _
    $region32: #{detection_block_forward.3} parent=5 // pred_fallthru
      _
    %p186 = scmp.le.s32.totalorder 1, %s11
    %p187 = scmp.lt.s32.totalorder %s11, 3
    %p188 = pnand %p186, %p187
    %p189 = pneg %p188
    // Predicated region
    $region37: #{detection_block_forward.3} parent=5 // pred_check
      _
    $region38: #{detection_block_forward.3} parent=5 // pred_check_branch
      %191 = sbr.rel (%p188) target = $region40
    $region39: #{detection_block_forward.3} parent=5 // pred_region
      %s192 = ssub.s32 %s11, 1
      %p193 = scmp.lt.s32.totalorder %s16, 1
      %s194 = scalar_select %p193, %s16, 1
      %s195 = smul.addr %s194, 54
      %s196 = smul.addr %s195, 4
      %s197 = scalar_lea.vmem %s0, %s196
      %p198 = pneg %p37
      %p199 = pneg %p34
      %p200 = pneg %p58
      %p201 = pneg %p55
      %p202 = pneg %p79
      %p203 = pneg %p76
      %p204 = pneg %p100
      %p205 = pneg %p97
      %p206 = pneg %p121
      %p207 = pneg %p118
      %p208 = pneg %p147
      %p209 = pneg %p144
      %p210 = scmp.lt.s32.totalorder %s16, 1
      %s211 = scalar_select %p210, %s16, 1
      %s212 = smul.addr %s211, 32
      %s213 = smul.addr %s212, 4
      %s214 = scalar_lea.vmem %s5, %s213
      %p215 = scmp.lt.s32.totalorder %s16, 1
      %s216 = scalar_select %p215, %s16, 1
      %s217 = smul.addr %s216, 54
      %s218 = smul.addr %s217, 4
      %s219 = scalar_lea.vmem %s0, %s218
      %p220 = scmp.lt.s32.totalorder %s16, 1
      %s221 = scalar_select %p220, %s16, 1
      %s222 = smul.addr %s221, 32
      %s223 = smul.addr %s222, 4
      %s224 = scalar_lea.vmem %s5, %s223
      %v226 = vld [vmem:[%s219] sm:$0xf]
      %v227 = vld [vmem:[%s219 + $0x4] sm:$0xf]
      %v228 = vld [vmem:[%s219 + $0xc] sm:$0xf]
      %v229 = vld [vmem:[%s219 + $0x10] sm:$0xf]
      %v230 = vld [vmem:[%s219 + $0x18] sm:$0xf]
      %v231 = vld [vmem:[%s219 + $0x1c] sm:$0xf]
      %v232 = vld [vmem:[%s219 + $0x24] sm:$0xf]
      %v233 = vld [vmem:[%s219 + $0x28] sm:$0xf]
      %v234 = vld [vmem:[%s219 + $0x30] sm:$0xf]
      %v235 = vld [vmem:[%s219 + $0x34] sm:$0xf]
      %v236 = vld [vmem:[%s219 + $0x3c] sm:$0xf]
      %v237 = vld [vmem:[%s219 + $0x40] sm:$0xf]
      %v238 = vld [vmem:[%s219 + $0x48] sm:$0xf]
      %v239 = vld [vmem:[%s219 + $0x4c] sm:$0xf]
      %v240 = vld [vmem:[%s219 + $0x54] sm:$0xf]
      %v241 = vld [vmem:[%s219 + $0x58] sm:$0xf]
      %v242 = vld [vmem:[%s219 + $0x60] sm:$0xf]
      %v243 = vld [vmem:[%s219 + $0x64] sm:$0xf]
      %v244 = vld [vmem:[%s219 + $0x6c] sm:$0xf]
      %v245 = vld [vmem:[%s219 + $0x70] sm:$0xf]
      %v246 = vld [vmem:[%s219 + $0x78] sm:$0xf]
      %v247 = vld [vmem:[%s219 + $0x7c] sm:$0xf]
      %v248 = vld [vmem:[%s219 + $0x84] sm:$0xf]
      %v249 = vld [vmem:[%s219 + $0x88] sm:$0xf]
      %v250 = vld [vmem:[%s219 + $0x90] sm:$0xf]
      %v251 = vld [vmem:[%s219 + $0x94] sm:$0xf]
      %v252 = vld [vmem:[%s219 + $0x9c] sm:$0xf]
      %v253 = vld [vmem:[%s219 + $0xa0] sm:$0xf]
      %v254 = vld [vmem:[%s219 + $0xa8] sm:$0xf]
      %v255 = vld [vmem:[%s219 + $0xac] sm:$0xf]
      %v256 = vld [vmem:[%s219 + $0xb4] sm:$0xf]
      %v257 = vld [vmem:[%s219 + $0xb8] sm:$0xf]
      %v258 = vld [vmem:[%s1] sm:$0xf]
      %v259 = vld [vmem:[%s1 + $0x4] sm:$0xf]
      %v260 = vld [vmem:[%s1 + $0x8] sm:$0xf]
      %v261 = vld [vmem:[%s1 + $0xc] sm:$0xf]
      %v262 = vld [vmem:[%s1 + $0x10] sm:$0xf]
      %v263 = vld [vmem:[%s1 + $0x14] sm:$0xf]
      %v264 = vld [vmem:[%s1 + $0x18] sm:$0xf]
      %v265 = vld [vmem:[%s1 + $0x1c] sm:$0xf]
      %v266 = vld [vmem:[%s1 + $0x20] sm:$0xf]
      %v267 = vld [vmem:[%s1 + $0x24] sm:$0xf]
      %v268 = vld [vmem:[%s1 + $0x28] sm:$0xf]
      %v269 = vld [vmem:[%s1 + $0x2c] sm:$0xf]
      %v270 = vld [vmem:[%s1 + $0x30] sm:$0xf]
      %v271 = vld [vmem:[%s1 + $0x34] sm:$0xf]
      %v272 = vld [vmem:[%s1 + $0x38] sm:$0xf]
      %v273 = vld [vmem:[%s1 + $0x3c] sm:$0xf]
      %v274 = vld [vmem:[%s219 + $0x8] sm:$0x1]
      %v275 = vld [vmem:[%s219 + $0x14] sm:$0x1]
      %v276 = vld [vmem:[%s219 + $0x20] sm:$0x1]
      %v277 = vld [vmem:[%s219 + $0x2c] sm:$0x1]
      %v278 = vld [vmem:[%s219 + $0x38] sm:$0x1]
      %v279 = vld [vmem:[%s219 + $0x44] sm:$0x1]
      %v280 = vld [vmem:[%s219 + $0x50] sm:$0x1]
      %v281 = vld [vmem:[%s219 + $0x5c] sm:$0x1]
      %v282 = vld [vmem:[%s219 + $0x68] sm:$0x1]
      %v283 = vld [vmem:[%s219 + $0x74] sm:$0x1]
      %v284 = vld [vmem:[%s219 + $0x80] sm:$0x1]
      %v285 = vld [vmem:[%s219 + $0x8c] sm:$0x1]
      %v286 = vld [vmem:[%s219 + $0x98] sm:$0x1]
      %v287 = vld [vmem:[%s219 + $0xa4] sm:$0x1]
      %v288 = vld [vmem:[%s219 + $0xb0] sm:$0x1]
      %v289 = vld [vmem:[%s219 + $0xbc] sm:$0x1]
      %vm290 = vsmask.f32 3328
      %vm291 = vsmask.f32 7440
      %vm292 = vmor %vm290, %vm291
      %v294 = vshrl.u32 %v226, 16
      %v296 = vrot.slane %v294, 4
      %v297 = vshll.u32 %v226, 16
      %v299 = vrot.slane %v297, 5
      %v300 = vor.u32 %v296, %v299
      %v301 = vrot.slane %v300, 4
      %v303 = vshll.u32 %v227, 16
      %v305 = vrot.slane %v303, 5
      %v306 = vsel %vm292, %v301, %v305
      %v307 = vshrl.u32 %v227, 16
      %v309 = vrot.slane %v307, 4
      %v310 = vor.u32 %v309, %v305
      %v311 = vrot.slane %v310, 4
      %v313 = vshll.u32 %v274, 16
      %v315 = vrot.slane %v313, 5
      %v316 = vsel %vm292, %v311, %v315
      %v318 = vshrl.u32 %v228, 16
      %v320 = vrot.slane %v318, 4
      %v321 = vshll.u32 %v228, 16
      %v323 = vrot.slane %v321, 5
      %v324 = vor.u32 %v320, %v323
      %v325 = vrot.slane %v324, 4
      %v327 = vshll.u32 %v229, 16
      %v329 = vrot.slane %v327, 5
      %v330 = vsel %vm292, %v325, %v329
      %v331 = vshrl.u32 %v229, 16
      %v333 = vrot.slane %v331, 4
      %v334 = vor.u32 %v333, %v329
      %v335 = vrot.slane %v334, 4
      %v337 = vshll.u32 %v275, 16
      %v339 = vrot.slane %v337, 5
      %v340 = vsel %vm292, %v335, %v339
      %v342 = vshrl.u32 %v230, 16
      %v344 = vrot.slane %v342, 4
      %v345 = vshll.u32 %v230, 16
      %v347 = vrot.slane %v345, 5
      %v348 = vor.u32 %v344, %v347
      %v349 = vrot.slane %v348, 4
      %v351 = vshll.u32 %v231, 16
      %v353 = vrot.slane %v351, 5
      %v354 = vsel %vm292, %v349, %v353
      %v355 = vshrl.u32 %v231, 16
      %v357 = vrot.slane %v355, 4
      %v358 = vor.u32 %v357, %v353
      %v359 = vrot.slane %v358, 4
      %v361 = vshll.u32 %v276, 16
      %v363 = vrot.slane %v361, 5
      %v364 = vsel %vm292, %v359, %v363
      %v366 = vshrl.u32 %v232, 16
      %v368 = vrot.slane %v366, 4
      %v369 = vshll.u32 %v232, 16
      %v371 = vrot.slane %v369, 5
      %v372 = vor.u32 %v368, %v371
      %v373 = vrot.slane %v372, 4
      %v375 = vshll.u32 %v233, 16
      %v377 = vrot.slane %v375, 5
      %v378 = vsel %vm292, %v373, %v377
      %v379 = vshrl.u32 %v233, 16
      %v381 = vrot.slane %v379, 4
      %v382 = vor.u32 %v381, %v377
      %v383 = vrot.slane %v382, 4
      %v385 = vshll.u32 %v277, 16
      %v387 = vrot.slane %v385, 5
      %v388 = vsel %vm292, %v383, %v387
      %v390 = vshrl.u32 %v234, 16
      %v392 = vrot.slane %v390, 4
      %v393 = vshll.u32 %v234, 16
      %v395 = vrot.slane %v393, 5
      %v396 = vor.u32 %v392, %v395
      %v397 = vrot.slane %v396, 4
      %v399 = vshll.u32 %v235, 16
      %v401 = vrot.slane %v399, 5
      %v402 = vsel %vm292, %v397, %v401
      %v403 = vshrl.u32 %v235, 16
      %v405 = vrot.slane %v403, 4
      %v406 = vor.u32 %v405, %v401
      %v407 = vrot.slane %v406, 4
      %v409 = vshll.u32 %v278, 16
      %v411 = vrot.slane %v409, 5
      %v412 = vsel %vm292, %v407, %v411
      %v414 = vshrl.u32 %v236, 16
      %v416 = vrot.slane %v414, 4
      %v417 = vshll.u32 %v236, 16
      %v419 = vrot.slane %v417, 5
      %v420 = vor.u32 %v416, %v419
      %v421 = vrot.slane %v420, 4
      %v423 = vshll.u32 %v237, 16
      %v425 = vrot.slane %v423, 5
      %v426 = vsel %vm292, %v421, %v425
      %v427 = vshrl.u32 %v237, 16
      %v429 = vrot.slane %v427, 4
      %v430 = vor.u32 %v429, %v425
      %v431 = vrot.slane %v430, 4
      %v433 = vshll.u32 %v279, 16
      %v435 = vrot.slane %v433, 5
      %v436 = vsel %vm292, %v431, %v435
      %v438 = vshrl.u32 %v238, 16
      %v440 = vrot.slane %v438, 4
      %v441 = vshll.u32 %v238, 16
      %v443 = vrot.slane %v441, 5
      %v444 = vor.u32 %v440, %v443
      %v445 = vrot.slane %v444, 4
      %v447 = vshll.u32 %v239, 16
      %v449 = vrot.slane %v447, 5
      %v450 = vsel %vm292, %v445, %v449
      %v451 = vshrl.u32 %v239, 16
      %v453 = vrot.slane %v451, 4
      %v454 = vor.u32 %v453, %v449
      %v455 = vrot.slane %v454, 4
      %v457 = vshll.u32 %v280, 16
      %v459 = vrot.slane %v457, 5
      %v460 = vsel %vm292, %v455, %v459
      %v462 = vshrl.u32 %v240, 16
      %v464 = vrot.slane %v462, 4
      %v465 = vshll.u32 %v240, 16
      %v467 = vrot.slane %v465, 5
      %v468 = vor.u32 %v464, %v467
      %v469 = vrot.slane %v468, 4
      %v471 = vshll.u32 %v241, 16
      %v473 = vrot.slane %v471, 5
      %v474 = vsel %vm292, %v469, %v473
      %v475 = vshrl.u32 %v241, 16
      %v477 = vrot.slane %v475, 4
      %v478 = vor.u32 %v477, %v473
      %v479 = vrot.slane %v478, 4
      %v481 = vshll.u32 %v281, 16
      %v483 = vrot.slane %v481, 5
      %v484 = vsel %vm292, %v479, %v483
      %v486 = vshrl.u32 %v242, 16
      %v488 = vrot.slane %v486, 4
      %v489 = vshll.u32 %v242, 16
      %v491 = vrot.slane %v489, 5
      %v492 = vor.u32 %v488, %v491
      %v493 = vrot.slane %v492, 4
      %v495 = vshll.u32 %v243, 16
      %v497 = vrot.slane %v495, 5
      %v498 = vsel %vm292, %v493, %v497
      %v499 = vshrl.u32 %v243, 16
      %v501 = vrot.slane %v499, 4
      %v502 = vor.u32 %v501, %v497
      %v503 = vrot.slane %v502, 4
      %v505 = vshll.u32 %v282, 16
      %v507 = vrot.slane %v505, 5
      %v508 = vsel %vm292, %v503, %v507
      %v510 = vshrl.u32 %v244, 16
      %v512 = vrot.slane %v510, 4
      %v513 = vshll.u32 %v244, 16
      %v515 = vrot.slane %v513, 5
      %v516 = vor.u32 %v512, %v515
      %v517 = vrot.slane %v516, 4
      %v519 = vshll.u32 %v245, 16
      %v521 = vrot.slane %v519, 5
      %v522 = vsel %vm292, %v517, %v521
      %v523 = vshrl.u32 %v245, 16
      %v525 = vrot.slane %v523, 4
      %v526 = vor.u32 %v525, %v521
      %v527 = vrot.slane %v526, 4
      %v529 = vshll.u32 %v283, 16
      %v531 = vrot.slane %v529, 5
      %v532 = vsel %vm292, %v527, %v531
      %v534 = vshrl.u32 %v246, 16
      %v536 = vrot.slane %v534, 4
      %v537 = vshll.u32 %v246, 16
      %v539 = vrot.slane %v537, 5
      %v540 = vor.u32 %v536, %v539
      %v541 = vrot.slane %v540, 4
      %v543 = vshll.u32 %v247, 16
      %v545 = vrot.slane %v543, 5
      %v546 = vsel %vm292, %v541, %v545
      %v547 = vshrl.u32 %v247, 16
      %v549 = vrot.slane %v547, 4
      %v550 = vor.u32 %v549, %v545
      %v551 = vrot.slane %v550, 4
      %v553 = vshll.u32 %v284, 16
      %v555 = vrot.slane %v553, 5
      %v556 = vsel %vm292, %v551, %v555
      %v558 = vshrl.u32 %v248, 16
      %v560 = vrot.slane %v558, 4
      %v561 = vshll.u32 %v248, 16
      %v563 = vrot.slane %v561, 5
      %v564 = vor.u32 %v560, %v563
      %v565 = vrot.slane %v564, 4
      %v567 = vshll.u32 %v249, 16
      %v569 = vrot.slane %v567, 5
      %v570 = vsel %vm292, %v565, %v569
      %v571 = vshrl.u32 %v249, 16
      %v573 = vrot.slane %v571, 4
      %v574 = vor.u32 %v573, %v569
      %v575 = vrot.slane %v574, 4
      %v577 = vshll.u32 %v285, 16
      %v579 = vrot.slane %v577, 5
      %v580 = vsel %vm292, %v575, %v579
      %v582 = vshrl.u32 %v250, 16
      %v584 = vrot.slane %v582, 4
      %v585 = vshll.u32 %v250, 16
      %v587 = vrot.slane %v585, 5
      %v588 = vor.u32 %v584, %v587
      %v589 = vrot.slane %v588, 4
      %v591 = vshll.u32 %v251, 16
      %v593 = vrot.slane %v591, 5
      %v594 = vsel %vm292, %v589, %v593
      %v595 = vshrl.u32 %v251, 16
      %v597 = vrot.slane %v595, 4
      %v598 = vor.u32 %v597, %v593
      %v599 = vrot.slane %v598, 4
      %v601 = vshll.u32 %v286, 16
      %v603 = vrot.slane %v601, 5
      %v604 = vsel %vm292, %v599, %v603
      %v606 = vshrl.u32 %v252, 16
      %v608 = vrot.slane %v606, 4
      %v609 = vshll.u32 %v252, 16
      %v611 = vrot.slane %v609, 5
      %v612 = vor.u32 %v608, %v611
      %v613 = vrot.slane %v612, 4
      %v615 = vshll.u32 %v253, 16
      %v617 = vrot.slane %v615, 5
      %v618 = vsel %vm292, %v613, %v617
      %v619 = vshrl.u32 %v253, 16
      %v621 = vrot.slane %v619, 4
      %v622 = vor.u32 %v621, %v617
      %v623 = vrot.slane %v622, 4
      %v625 = vshll.u32 %v287, 16
      %v627 = vrot.slane %v625, 5
      %v628 = vsel %vm292, %v623, %v627
      %v630 = vshrl.u32 %v254, 16
      %v632 = vrot.slane %v630, 4
      %v633 = vshll.u32 %v254, 16
      %v635 = vrot.slane %v633, 5
      %v636 = vor.u32 %v632, %v635
      %v637 = vrot.slane %v636, 4
      %v639 = vshll.u32 %v255, 16
      %v641 = vrot.slane %v639, 5
      %v642 = vsel %vm292, %v637, %v641
      %v643 = vshrl.u32 %v255, 16
      %v645 = vrot.slane %v643, 4
      %v646 = vor.u32 %v645, %v641
      %v647 = vrot.slane %v646, 4
      %v649 = vshll.u32 %v288, 16
      %v651 = vrot.slane %v649, 5
      %v652 = vsel %vm292, %v647, %v651
      %v654 = vshrl.u32 %v256, 16
      %v656 = vrot.slane %v654, 4
      %v657 = vshll.u32 %v256, 16
      %v659 = vrot.slane %v657, 5
      %v660 = vor.u32 %v656, %v659
      %v661 = vrot.slane %v660, 4
      %v663 = vshll.u32 %v257, 16
      %v665 = vrot.slane %v663, 5
      %v666 = vsel %vm292, %v661, %v665
      %v667 = vshrl.u32 %v257, 16
      %v669 = vrot.slane %v667, 4
      %v670 = vor.u32 %v669, %v665
      %v671 = vrot.slane %v670, 4
      %v673 = vshll.u32 %v289, 16
      %v675 = vrot.slane %v673, 5
      %v676 = vsel %vm292, %v671, %v675
      %s677 = scalar_lea.vmem %s1, 64
      %v678 = vld [vmem:[%s677] sm:$0xf]
      %v679 = vld [vmem:[%s677 + $0x4] sm:$0xf]
      %v680 = vld [vmem:[%s677 + $0x8] sm:$0xf]
      %v681 = vld [vmem:[%s677 + $0xc] sm:$0xf]
      %v682 = vld [vmem:[%s677 + $0x10] sm:$0xf]
      %v683 = vld [vmem:[%s677 + $0x14] sm:$0xf]
      %v684 = vld [vmem:[%s677 + $0x18] sm:$0xf]
      %v685 = vld [vmem:[%s677 + $0x1c] sm:$0xf]
      %v686 = vld [vmem:[%s677 + $0x20] sm:$0xf]
      %v687 = vld [vmem:[%s677 + $0x24] sm:$0xf]
      %v688 = vld [vmem:[%s677 + $0x28] sm:$0xf]
      %v689 = vld [vmem:[%s677 + $0x2c] sm:$0xf]
      %v690 = vld [vmem:[%s677 + $0x30] sm:$0xf]
      %v691 = vld [vmem:[%s677 + $0x34] sm:$0xf]
      %v692 = vld [vmem:[%s677 + $0x38] sm:$0xf]
      %v693 = vld [vmem:[%s677 + $0x3c] sm:$0xf]
      %v694 = vunpack.c.l.b16 %v306
      %v695 = vunpack.c.l.b16 %v316
      %v696 = vunpack.c.l.b16 %v330
      %v697 = vunpack.c.l.b16 %v340
      %v698 = vunpack.c.l.b16 %v354
      %v699 = vunpack.c.l.b16 %v364
      %v700 = vunpack.c.l.b16 %v378
      %v701 = vunpack.c.l.b16 %v388
      %v702 = vunpack.c.l.b16 %v402
      %v703 = vunpack.c.l.b16 %v412
      %v704 = vunpack.c.l.b16 %v426
      %v705 = vunpack.c.l.b16 %v436
      %v706 = vunpack.c.l.b16 %v450
      %v707 = vunpack.c.l.b16 %v460
      %v708 = vunpack.c.l.b16 %v474
      %v709 = vunpack.c.l.b16 %v484
      %v710 = vunpack.c.l.b16 %v498
      %v711 = vunpack.c.l.b16 %v508
      %v712 = vunpack.c.l.b16 %v522
      %v713 = vunpack.c.l.b16 %v532
      %v714 = vunpack.c.l.b16 %v546
      %v715 = vunpack.c.l.b16 %v556
      %v716 = vunpack.c.l.b16 %v570
      %v717 = vunpack.c.l.b16 %v580
      %v718 = vunpack.c.l.b16 %v594
      %v719 = vunpack.c.l.b16 %v604
      %v720 = vunpack.c.l.b16 %v618
      %v721 = vunpack.c.l.b16 %v628
      %v722 = vunpack.c.l.b16 %v642
      %v723 = vunpack.c.l.b16 %v652
      %v724 = vunpack.c.l.b16 %v666
      %v725 = vunpack.c.l.b16 %v676
      %v726 = vpack.c.b16 %v695, %v694
      %v727 = vpack.c.b16 %v697, %v696
      %v728 = vpack.c.b16 %v699, %v698
      %v729 = vpack.c.b16 %v701, %v700
      %v730 = vpack.c.b16 %v703, %v702
      %v731 = vpack.c.b16 %v705, %v704
      %v732 = vpack.c.b16 %v707, %v706
      %v733 = vpack.c.b16 %v709, %v708
      %v734 = vpack.c.b16 %v711, %v710
      %v735 = vpack.c.b16 %v713, %v712
      %v736 = vpack.c.b16 %v715, %v714
      %v737 = vpack.c.b16 %v717, %v716
      %v738 = vpack.c.b16 %v719, %v718
      %v739 = vpack.c.b16 %v721, %v720
      %v740 = vpack.c.b16 %v723, %v722
      %v741 = vpack.c.b16 %v725, %v724
      %v774 = vunpack.c.l.b16 %v678
      %v775 = vunpack.c.l.b16 %v679
      %v776 = vunpack.c.l.b16 %v680
      %v777 = vunpack.c.l.b16 %v681
      %v778 = vunpack.c.l.b16 %v682
      %v779 = vunpack.c.l.b16 %v683
      %v780 = vunpack.c.l.b16 %v684
      %v781 = vunpack.c.l.b16 %v685
      %v782 = vunpack.c.l.b16 %v686
      %v783 = vunpack.c.l.b16 %v687
      %v784 = vunpack.c.l.b16 %v688
      %v785 = vunpack.c.l.b16 %v689
      %v786 = vunpack.c.l.b16 %v690
      %v787 = vunpack.c.l.b16 %v691
      %v788 = vunpack.c.l.b16 %v692
      %v789 = vunpack.c.l.b16 %v693
      %v790 = vpack.c.b16 %v775, %v774
      %v791 = vpack.c.b16 %v777, %v776
      %v792 = vpack.c.b16 %v779, %v778
      %v793 = vpack.c.b16 %v781, %v780
      %v794 = vpack.c.b16 %v783, %v782
      %v795 = vpack.c.b16 %v785, %v784
      %v796 = vpack.c.b16 %v787, %v786
      %v797 = vpack.c.b16 %v789, %v788
      %806 = vmatprep.subr.bf16.mxu0 0
      %807 = vmatpush1.bf16.msra.mxu0 %v797
      %808 = vmatprep.subr.bf16.mxu0 0
      %809 = vmatpush1.bf16.msra.mxu0 %v796
      %810 = vmatprep.subr.bf16.mxu0 0
      %811 = vmatpush1.bf16.msra.mxu0 %v795
      %812 = vmatprep.subr.bf16.mxu0 0
      %813 = vmatpush1.bf16.msra.mxu0 %v794
      %814 = vmatprep.subr.bf16.mxu0 0
      %815 = vmatpush1.bf16.msra.mxu0 %v793
      %816 = vmatprep.subr.bf16.mxu0 0
      %817 = vmatpush1.bf16.msra.mxu0 %v792
      %818 = vmatprep.subr.bf16.mxu0 0
      %819 = vmatpush1.bf16.msra.mxu0 %v791
      %820 = vmatprep.subr.bf16.mxu0 0
      %821 = vmatpush1.bf16.msra.mxu0 %v790
      %822 = vmatprep.subr.bf16.mxu0 0
      %823 = vmatpush2.bf16.msra.mxu0 0
      %824 = vmatprep.subr.bf16.mxu0 0
      %825 = vmatpush2.bf16.msra.mxu0 0
      %826 = vmatprep.subr.bf16.mxu0 0
      %827 = vmatpush2.bf16.msra.mxu0 0
      %828 = vmatprep.subr.bf16.mxu0 0
      %829 = vmatpush2.bf16.msra.mxu0 0
      %830 = vmatprep.subr.bf16.mxu0 0
      %831 = vmatpush2.bf16.msra.mxu0 0
      %832 = vmatprep.subr.bf16.mxu0 0
      %833 = vmatpush2.bf16.msra.mxu0 0
      %834 = vmatprep.subr.bf16.mxu0 0
      %835 = vmatpush2.bf16.msra.mxu0 0
      %836 = vmatprep.subr.bf16.mxu0 0
      %837 = vmatpush2.bf16.msra.mxu0 0
      %838 = vmatprep.mubr.bf16.mxu0 0
      %839 = vmatmul.mubr.bf16.gmra.mxu0 %v726
      %v840 = vpop.f32.mrf.mxu0
      %v841 = vadd.f32 0.0, %v840
      %v842 = vpop.f32.mrf.mxu0
      %v843 = vpop.f32.mrf.mxu0
      %v844 = vadd.f32 0.0, %v843
      %v845 = vpop.f32.mrf.mxu0
      %846 = vmatprep.mubr.bf16.mxu0 0
      %847 = vmatmul.mubr.bf16.gmra.mxu0 %v727
      %v848 = vpop.f32.mrf.mxu0
      %v849 = vadd.f32 0.0, %v848
      %v850 = vpop.f32.mrf.mxu0
      %v851 = vpop.f32.mrf.mxu0
      %v852 = vadd.f32 0.0, %v851
      %v853 = vpop.f32.mrf.mxu0
      %854 = vmatprep.mubr.bf16.mxu0 0
      %855 = vmatmul.mubr.bf16.gmra.mxu0 %v728
      %v856 = vpop.f32.mrf.mxu0
      %v857 = vadd.f32 0.0, %v856
      %v858 = vpop.f32.mrf.mxu0
      %v859 = vpop.f32.mrf.mxu0
      %v860 = vadd.f32 0.0, %v859
      %v861 = vpop.f32.mrf.mxu0
      %862 = vmatprep.mubr.bf16.mxu0 0
      %863 = vmatmul.mubr.bf16.gmra.mxu0 %v729
      %v864 = vpop.f32.mrf.mxu0
      %v865 = vadd.f32 0.0, %v864
      %v866 = vpop.f32.mrf.mxu0
      %v867 = vpop.f32.mrf.mxu0
      %v868 = vadd.f32 0.0, %v867
      %v869 = vpop.f32.mrf.mxu0
      %870 = vmatprep.mubr.bf16.mxu0 0
      %871 = vmatmul.mubr.bf16.gmra.mxu0 %v730
      %v872 = vpop.f32.mrf.mxu0
      %v873 = vadd.f32 0.0, %v872
      %v874 = vpop.f32.mrf.mxu0
      %v875 = vpop.f32.mrf.mxu0
      %v876 = vadd.f32 0.0, %v875
      %v877 = vpop.f32.mrf.mxu0
      %878 = vmatprep.mubr.bf16.mxu0 0
      %879 = vmatmul.mubr.bf16.gmra.mxu0 %v731
      %v880 = vpop.f32.mrf.mxu0
      %v881 = vadd.f32 0.0, %v880
      %v882 = vpop.f32.mrf.mxu0
      %v883 = vpop.f32.mrf.mxu0
      %v884 = vadd.f32 0.0, %v883
      %v885 = vpop.f32.mrf.mxu0
      %886 = vmatprep.mubr.bf16.mxu0 0
      %887 = vmatmul.mubr.bf16.gmra.mxu0 %v732
      %v888 = vpop.f32.mrf.mxu0
      %v889 = vadd.f32 0.0, %v888
      %v890 = vpop.f32.mrf.mxu0
      %v891 = vpop.f32.mrf.mxu0
      %v892 = vadd.f32 0.0, %v891
      %v893 = vpop.f32.mrf.mxu0
      %894 = vmatprep.mubr.bf16.mxu0 0
      %895 = vmatmul.mubr.bf16.gmra.mxu0 %v733
      %v896 = vpop.f32.mrf.mxu0
      %v897 = vadd.f32 0.0, %v896
      %v898 = vpop.f32.mrf.mxu0
      %v899 = vpop.f32.mrf.mxu0
      %v900 = vadd.f32 0.0, %v899
      %v901 = vpop.f32.mrf.mxu0
      %902 = vmatprep.mubr.bf16.mxu0 0
      %903 = vmatmul.mubr.bf16.gmra.mxu0 %v734
      %v904 = vpop.f32.mrf.mxu0
      %v905 = vadd.f32 0.0, %v904
      %v906 = vpop.f32.mrf.mxu0
      %v907 = vpop.f32.mrf.mxu0
      %v908 = vadd.f32 0.0, %v907
      %v909 = vpop.f32.mrf.mxu0
      %910 = vmatprep.mubr.bf16.mxu0 0
      %911 = vmatmul.mubr.bf16.gmra.mxu0 %v735
      %v912 = vpop.f32.mrf.mxu0
      %v913 = vadd.f32 0.0, %v912
      %v914 = vpop.f32.mrf.mxu0
      %v915 = vpop.f32.mrf.mxu0
      %v916 = vadd.f32 0.0, %v915
      %v917 = vpop.f32.mrf.mxu0
      %918 = vmatprep.mubr.bf16.mxu0 0
      %919 = vmatmul.mubr.bf16.gmra.mxu0 %v736
      %v920 = vpop.f32.mrf.mxu0
      %v921 = vadd.f32 0.0, %v920
      %v922 = vpop.f32.mrf.mxu0
      %v923 = vpop.f32.mrf.mxu0
      %v924 = vadd.f32 0.0, %v923
      %v925 = vpop.f32.mrf.mxu0
      %926 = vmatprep.mubr.bf16.mxu0 0
      %927 = vmatmul.mubr.bf16.gmra.mxu0 %v737
      %v928 = vpop.f32.mrf.mxu0
      %v929 = vadd.f32 0.0, %v928
      %v930 = vpop.f32.mrf.mxu0
      %v931 = vpop.f32.mrf.mxu0
      %v932 = vadd.f32 0.0, %v931
      %v933 = vpop.f32.mrf.mxu0
      %934 = vmatprep.mubr.bf16.mxu0 0
      %935 = vmatmul.mubr.bf16.gmra.mxu0 %v738
      %v936 = vpop.f32.mrf.mxu0
      %v937 = vadd.f32 0.0, %v936
      %v938 = vpop.f32.mrf.mxu0
      %v939 = vpop.f32.mrf.mxu0
      %v940 = vadd.f32 0.0, %v939
      %v941 = vpop.f32.mrf.mxu0
      %942 = vmatprep.mubr.bf16.mxu0 0
      %943 = vmatmul.mubr.bf16.gmra.mxu0 %v739
      %v944 = vpop.f32.mrf.mxu0
      %v945 = vadd.f32 0.0, %v944
      %v946 = vpop.f32.mrf.mxu0
      %v947 = vpop.f32.mrf.mxu0
      %v948 = vadd.f32 0.0, %v947
      %v949 = vpop.f32.mrf.mxu0
      %950 = vmatprep.mubr.bf16.mxu0 0
      %951 = vmatmul.mubr.bf16.gmra.mxu0 %v740
      %v952 = vpop.f32.mrf.mxu0
      %v953 = vadd.f32 0.0, %v952
      %v954 = vpop.f32.mrf.mxu0
      %v955 = vpop.f32.mrf.mxu0
      %v956 = vadd.f32 0.0, %v955
      %v957 = vpop.f32.mrf.mxu0
      %958 = vmatprep.mubr.bf16.mxu0 0
      %959 = vmatmul.mubr.bf16.gmra.mxu0 %v741
      %v960 = vpop.f32.mrf.mxu0
      %v961 = vadd.f32 0.0, %v960
      %v962 = vpop.f32.mrf.mxu0
      %v963 = vpop.f32.mrf.mxu0
      %v964 = vadd.f32 0.0, %v963
      %v965 = vpop.f32.mrf.mxu0
      %966 = vdwg.mxu0
      %v999 = vunpack.c.l.b16 %v226
      %v1000 = vunpack.c.l.b16 %v227
      %v1001 = vunpack.c.l.b16 %v228
      %v1002 = vunpack.c.l.b16 %v229
      %v1003 = vunpack.c.l.b16 %v230
      %v1004 = vunpack.c.l.b16 %v231
      %v1005 = vunpack.c.l.b16 %v232
      %v1006 = vunpack.c.l.b16 %v233
      %v1007 = vunpack.c.l.b16 %v234
      %v1008 = vunpack.c.l.b16 %v235
      %v1009 = vunpack.c.l.b16 %v236
      %v1010 = vunpack.c.l.b16 %v237
      %v1011 = vunpack.c.l.b16 %v238
      %v1012 = vunpack.c.l.b16 %v239
      %v1013 = vunpack.c.l.b16 %v240
      %v1014 = vunpack.c.l.b16 %v241
      %v1015 = vunpack.c.l.b16 %v242
      %v1016 = vunpack.c.l.b16 %v243
      %v1017 = vunpack.c.l.b16 %v244
      %v1018 = vunpack.c.l.b16 %v245
      %v1019 = vunpack.c.l.b16 %v246
      %v1020 = vunpack.c.l.b16 %v247
      %v1021 = vunpack.c.l.b16 %v248
      %v1022 = vunpack.c.l.b16 %v249
      %v1023 = vunpack.c.l.b16 %v250
      %v1024 = vunpack.c.l.b16 %v251
      %v1025 = vunpack.c.l.b16 %v252
      %v1026 = vunpack.c.l.b16 %v253
      %v1027 = vunpack.c.l.b16 %v254
      %v1028 = vunpack.c.l.b16 %v255
      %v1029 = vunpack.c.l.b16 %v256
      %v1030 = vunpack.c.l.b16 %v257
      %v1031 = vpack.c.b16 %v1000, %v999
      %v1032 = vpack.c.b16 %v1002, %v1001
      %v1033 = vpack.c.b16 %v1004, %v1003
      %v1034 = vpack.c.b16 %v1006, %v1005
      %v1035 = vpack.c.b16 %v1008, %v1007
      %v1036 = vpack.c.b16 %v1010, %v1009
      %v1037 = vpack.c.b16 %v1012, %v1011
      %v1038 = vpack.c.b16 %v1014, %v1013
      %v1039 = vpack.c.b16 %v1016, %v1015
      %v1040 = vpack.c.b16 %v1018, %v1017
      %v1041 = vpack.c.b16 %v1020, %v1019
      %v1042 = vpack.c.b16 %v1022, %v1021
      %v1043 = vpack.c.b16 %v1024, %v1023
      %v1044 = vpack.c.b16 %v1026, %v1025
      %v1045 = vpack.c.b16 %v1028, %v1027
      %v1046 = vpack.c.b16 %v1030, %v1029
      %v1079 = vunpack.c.l.b16 %v258
      %v1080 = vunpack.c.l.b16 %v259
      %v1081 = vunpack.c.l.b16 %v260
      %v1082 = vunpack.c.l.b16 %v261
      %v1083 = vunpack.c.l.b16 %v262
      %v1084 = vunpack.c.l.b16 %v263
      %v1085 = vunpack.c.l.b16 %v264
      %v1086 = vunpack.c.l.b16 %v265
      %v1087 = vunpack.c.l.b16 %v266
      %v1088 = vunpack.c.l.b16 %v267
      %v1089 = vunpack.c.l.b16 %v268
      %v1090 = vunpack.c.l.b16 %v269
      %v1091 = vunpack.c.l.b16 %v270
      %v1092 = vunpack.c.l.b16 %v271
      %v1093 = vunpack.c.l.b16 %v272
      %v1094 = vunpack.c.l.b16 %v273
      %v1095 = vpack.c.b16 %v1080, %v1079
      %v1096 = vpack.c.b16 %v1082, %v1081
      %v1097 = vpack.c.b16 %v1084, %v1083
      %v1098 = vpack.c.b16 %v1086, %v1085
      %v1099 = vpack.c.b16 %v1088, %v1087
      %v1100 = vpack.c.b16 %v1090, %v1089
      %v1101 = vpack.c.b16 %v1092, %v1091
      %v1102 = vpack.c.b16 %v1094, %v1093
      %1111 = vmatprep.subr.bf16.mxu0 0
      %1112 = vmatpush1.bf16.msra.mxu0 %v1102
      %1113 = vmatprep.subr.bf16.mxu0 0
      %1114 = vmatpush1.bf16.msra.mxu0 %v1101
      %1115 = vmatprep.subr.bf16.mxu0 0
      %1116 = vmatpush1.bf16.msra.mxu0 %v1100
      %1117 = vmatprep.subr.bf16.mxu0 0
      %1118 = vmatpush1.bf16.msra.mxu0 %v1099
      %1119 = vmatprep.subr.bf16.mxu0 0
      %1120 = vmatpush1.bf16.msra.mxu0 %v1098
      %1121 = vmatprep.subr.bf16.mxu0 0
      %1122 = vmatpush1.bf16.msra.mxu0 %v1097
      %1123 = vmatprep.subr.bf16.mxu0 0
      %1124 = vmatpush1.bf16.msra.mxu0 %v1096
      %1125 = vmatprep.subr.bf16.mxu0 0
      %1126 = vmatpush1.bf16.msra.mxu0 %v1095
      %1127 = vmatprep.subr.bf16.mxu0 0
      %1128 = vmatpush2.bf16.msra.mxu0 0
      %1129 = vmatprep.subr.bf16.mxu0 0
      %1130 = vmatpush2.bf16.msra.mxu0 0
      %1131 = vmatprep.subr.bf16.mxu0 0
      %1132 = vmatpush2.bf16.msra.mxu0 0
      %1133 = vmatprep.subr.bf16.mxu0 0
      %1134 = vmatpush2.bf16.msra.mxu0 0
      %1135 = vmatprep.subr.bf16.mxu0 0
      %1136 = vmatpush2.bf16.msra.mxu0 0
      %1137 = vmatprep.subr.bf16.mxu0 0
      %1138 = vmatpush2.bf16.msra.mxu0 0
      %1139 = vmatprep.subr.bf16.mxu0 0
      %1140 = vmatpush2.bf16.msra.mxu0 0
      %1141 = vmatprep.subr.bf16.mxu0 0
      %1142 = vmatpush2.bf16.msra.mxu0 0
      %1143 = vmatprep.mubr.bf16.mxu0 0
      %1144 = vmatmul.mubr.bf16.gmra.mxu0 %v1031
      %v1145 = vpop.f32.mrf.mxu0
      %v1146 = vadd.f32 %v841, %v1145
      %v1147 = vpop.f32.mrf.mxu0
      %v1148 = vpop.f32.mrf.mxu0
      %v1149 = vadd.f32 %v844, %v1148
      %v1150 = vpop.f32.mrf.mxu0
      %1151 = vmatprep.mubr.bf16.mxu0 0
      %1152 = vmatmul.mubr.bf16.gmra.mxu0 %v1032
      %v1153 = vpop.f32.mrf.mxu0
      %v1154 = vadd.f32 %v849, %v1153
      %v1155 = vpop.f32.mrf.mxu0
      %v1156 = vpop.f32.mrf.mxu0
      %v1157 = vadd.f32 %v852, %v1156
      %v1158 = vpop.f32.mrf.mxu0
      %1159 = vmatprep.mubr.bf16.mxu0 0
      %1160 = vmatmul.mubr.bf16.gmra.mxu0 %v1033
      %v1161 = vpop.f32.mrf.mxu0
      %v1162 = vadd.f32 %v857, %v1161
      %v1163 = vpop.f32.mrf.mxu0
      %v1164 = vpop.f32.mrf.mxu0
      %v1165 = vadd.f32 %v860, %v1164
      %v1166 = vpop.f32.mrf.mxu0
      %1167 = vmatprep.mubr.bf16.mxu0 0
      %1168 = vmatmul.mubr.bf16.gmra.mxu0 %v1034
      %v1169 = vpop.f32.mrf.mxu0
      %v1170 = vadd.f32 %v865, %v1169
      %v1171 = vpop.f32.mrf.mxu0
      %v1172 = vpop.f32.mrf.mxu0
      %v1173 = vadd.f32 %v868, %v1172
      %v1174 = vpop.f32.mrf.mxu0
      %1175 = vmatprep.mubr.bf16.mxu0 0
      %1176 = vmatmul.mubr.bf16.gmra.mxu0 %v1035
      %v1177 = vpop.f32.mrf.mxu0
      %v1178 = vadd.f32 %v873, %v1177
      %v1179 = vpop.f32.mrf.mxu0
      %v1180 = vpop.f32.mrf.mxu0
      %v1181 = vadd.f32 %v876, %v1180
      %v1182 = vpop.f32.mrf.mxu0
      %1183 = vmatprep.mubr.bf16.mxu0 0
      %1184 = vmatmul.mubr.bf16.gmra.mxu0 %v1036
      %v1185 = vpop.f32.mrf.mxu0
      %v1186 = vadd.f32 %v881, %v1185
      %v1187 = vpop.f32.mrf.mxu0
      %v1188 = vpop.f32.mrf.mxu0
      %v1189 = vadd.f32 %v884, %v1188
      %v1190 = vpop.f32.mrf.mxu0
      %1191 = vmatprep.mubr.bf16.mxu0 0
      %1192 = vmatmul.mubr.bf16.gmra.mxu0 %v1037
      %v1193 = vpop.f32.mrf.mxu0
      %v1194 = vadd.f32 %v889, %v1193
      %v1195 = vpop.f32.mrf.mxu0
      %v1196 = vpop.f32.mrf.mxu0
      %v1197 = vadd.f32 %v892, %v1196
      %v1198 = vpop.f32.mrf.mxu0
      %1199 = vmatprep.mubr.bf16.mxu0 0
      %1200 = vmatmul.mubr.bf16.gmra.mxu0 %v1038
      %v1201 = vpop.f32.mrf.mxu0
      %v1202 = vadd.f32 %v897, %v1201
      %v1203 = vpop.f32.mrf.mxu0
      %v1204 = vpop.f32.mrf.mxu0
      %v1205 = vadd.f32 %v900, %v1204
      %v1206 = vpop.f32.mrf.mxu0
      %1207 = vmatprep.mubr.bf16.mxu0 0
      %1208 = vmatmul.mubr.bf16.gmra.mxu0 %v1039
      %v1209 = vpop.f32.mrf.mxu0
      %v1210 = vadd.f32 %v905, %v1209
      %v1211 = vpop.f32.mrf.mxu0
      %v1212 = vpop.f32.mrf.mxu0
      %v1213 = vadd.f32 %v908, %v1212
      %v1214 = vpop.f32.mrf.mxu0
      %1215 = vmatprep.mubr.bf16.mxu0 0
      %1216 = vmatmul.mubr.bf16.gmra.mxu0 %v1040
      %v1217 = vpop.f32.mrf.mxu0
      %v1218 = vadd.f32 %v913, %v1217
      %v1219 = vpop.f32.mrf.mxu0
      %v1220 = vpop.f32.mrf.mxu0
      %v1221 = vadd.f32 %v916, %v1220
      %v1222 = vpop.f32.mrf.mxu0
      %1223 = vmatprep.mubr.bf16.mxu0 0
      %1224 = vmatmul.mubr.bf16.gmra.mxu0 %v1041
      %v1225 = vpop.f32.mrf.mxu0
      %v1226 = vadd.f32 %v921, %v1225
      %v1227 = vpop.f32.mrf.mxu0
      %v1228 = vpop.f32.mrf.mxu0
      %v1229 = vadd.f32 %v924, %v1228
      %v1230 = vpop.f32.mrf.mxu0
      %1231 = vmatprep.mubr.bf16.mxu0 0
      %1232 = vmatmul.mubr.bf16.gmra.mxu0 %v1042
      %v1233 = vpop.f32.mrf.mxu0
      %v1234 = vadd.f32 %v929, %v1233
      %v1235 = vpop.f32.mrf.mxu0
      %v1236 = vpop.f32.mrf.mxu0
      %v1237 = vadd.f32 %v932, %v1236
      %v1238 = vpop.f32.mrf.mxu0
      %1239 = vmatprep.mubr.bf16.mxu0 0
      %1240 = vmatmul.mubr.bf16.gmra.mxu0 %v1043
      %v1241 = vpop.f32.mrf.mxu0
      %v1242 = vadd.f32 %v937, %v1241
      %v1243 = vpop.f32.mrf.mxu0
      %v1244 = vpop.f32.mrf.mxu0
      %v1245 = vadd.f32 %v940, %v1244
      %v1246 = vpop.f32.mrf.mxu0
      %1247 = vmatprep.mubr.bf16.mxu0 0
      %1248 = vmatmul.mubr.bf16.gmra.mxu0 %v1044
      %v1249 = vpop.f32.mrf.mxu0
      %v1250 = vadd.f32 %v945, %v1249
      %v1251 = vpop.f32.mrf.mxu0
      %v1252 = vpop.f32.mrf.mxu0
      %v1253 = vadd.f32 %v948, %v1252
      %v1254 = vpop.f32.mrf.mxu0
      %1255 = vmatprep.mubr.bf16.mxu0 0
      %1256 = vmatmul.mubr.bf16.gmra.mxu0 %v1045
      %v1257 = vpop.f32.mrf.mxu0
      %v1258 = vadd.f32 %v953, %v1257
      %v1259 = vpop.f32.mrf.mxu0
      %v1260 = vpop.f32.mrf.mxu0
      %v1261 = vadd.f32 %v956, %v1260
      %v1262 = vpop.f32.mrf.mxu0
      %1263 = vmatprep.mubr.bf16.mxu0 0
      %1264 = vmatmul.mubr.bf16.gmra.mxu0 %v1046
      %v1265 = vpop.f32.mrf.mxu0
      %v1266 = vadd.f32 %v961, %v1265
      %v1267 = vpop.f32.mrf.mxu0
      %v1268 = vpop.f32.mrf.mxu0
      %v1269 = vadd.f32 %v964, %v1268
      %v1270 = vpop.f32.mrf.mxu0
      %1271 = vdwg.mxu0
      %v1272 = vld [vmem:[%s219] sm:$0xe]
      %v1273 = vld [vmem:[%s219 + $0xc] sm:$0xe]
      %v1274 = vld [vmem:[%s219 + $0x18] sm:$0xe]
      %v1275 = vld [vmem:[%s219 + $0x24] sm:$0xe]
      %v1276 = vld [vmem:[%s219 + $0x30] sm:$0xe]
      %v1277 = vld [vmem:[%s219 + $0x3c] sm:$0xe]
      %v1278 = vld [vmem:[%s219 + $0x48] sm:$0xe]
      %v1279 = vld [vmem:[%s219 + $0x54] sm:$0xe]
      %v1280 = vld [vmem:[%s219 + $0x60] sm:$0xe]
      %v1281 = vld [vmem:[%s219 + $0x6c] sm:$0xe]
      %v1282 = vld [vmem:[%s219 + $0x78] sm:$0xe]
      %v1283 = vld [vmem:[%s219 + $0x84] sm:$0xe]
      %v1284 = vld [vmem:[%s219 + $0x90] sm:$0xe]
      %v1285 = vld [vmem:[%s219 + $0x9c] sm:$0xe]
      %v1286 = vld [vmem:[%s219 + $0xa8] sm:$0xe]
      %v1287 = vld [vmem:[%s219 + $0xb4] sm:$0xe]
      %vm1320 = vcmask 1042432
      %vm1321 = vcmask 1046532
      %vm1322 = vmor %vm1320, %vm1321
      %v1323 = vrot.slane %v1272, 5
      %v1324 = vrot.slane %v1323, 4
      %v1325 = vrot.slane %v227, 5
      %v1326 = vsel %vm1322, %v1324, %v1325
      %v1327 = vrot.slane %v1325, 4
      %v1328 = vrot.slane %v274, 5
      %v1329 = vsel %vm1322, %v1327, %v1328
      %v1330 = vrot.slane %v1273, 5
      %v1331 = vrot.slane %v1330, 4
      %v1332 = vrot.slane %v229, 5
      %v1333 = vsel %vm1322, %v1331, %v1332
      %v1334 = vrot.slane %v1332, 4
      %v1335 = vrot.slane %v275, 5
      %v1336 = vsel %vm1322, %v1334, %v1335
      %v1337 = vrot.slane %v1274, 5
      %v1338 = vrot.slane %v1337, 4
      %v1339 = vrot.slane %v231, 5
      %v1340 = vsel %vm1322, %v1338, %v1339
      %v1341 = vrot.slane %v1339, 4
      %v1342 = vrot.slane %v276, 5
      %v1343 = vsel %vm1322, %v1341, %v1342
      %v1344 = vrot.slane %v1275, 5
      %v1345 = vrot.slane %v1344, 4
      %v1346 = vrot.slane %v233, 5
      %v1347 = vsel %vm1322, %v1345, %v1346
      %v1348 = vrot.slane %v1346, 4
      %v1349 = vrot.slane %v277, 5
      %v1350 = vsel %vm1322, %v1348, %v1349
      %v1351 = vrot.slane %v1276, 5
      %v1352 = vrot.slane %v1351, 4
      %v1353 = vrot.slane %v235, 5
      %v1354 = vsel %vm1322, %v1352, %v1353
      %v1355 = vrot.slane %v1353, 4
      %v1356 = vrot.slane %v278, 5
      %v1357 = vsel %vm1322, %v1355, %v1356
      %v1358 = vrot.slane %v1277, 5
      %v1359 = vrot.slane %v1358, 4
      %v1360 = vrot.slane %v237, 5
      %v1361 = vsel %vm1322, %v1359, %v1360
      %v1362 = vrot.slane %v1360, 4
      %v1363 = vrot.slane %v279, 5
      %v1364 = vsel %vm1322, %v1362, %v1363
      %v1365 = vrot.slane %v1278, 5
      %v1366 = vrot.slane %v1365, 4
      %v1367 = vrot.slane %v239, 5
      %v1368 = vsel %vm1322, %v1366, %v1367
      %v1369 = vrot.slane %v1367, 4
      %v1370 = vrot.slane %v280, 5
      %v1371 = vsel %vm1322, %v1369, %v1370
      %v1372 = vrot.slane %v1279, 5
      %v1373 = vrot.slane %v1372, 4
      %v1374 = vrot.slane %v241, 5
      %v1375 = vsel %vm1322, %v1373, %v1374
      %v1376 = vrot.slane %v1374, 4
      %v1377 = vrot.slane %v281, 5
      %v1378 = vsel %vm1322, %v1376, %v1377
      %v1379 = vrot.slane %v1280, 5
      %v1380 = vrot.slane %v1379, 4
      %v1381 = vrot.slane %v243, 5
      %v1382 = vsel %vm1322, %v1380, %v1381
      %v1383 = vrot.slane %v1381, 4
      %v1384 = vrot.slane %v282, 5
      %v1385 = vsel %vm1322, %v1383, %v1384
      %v1386 = vrot.slane %v1281, 5
      %v1387 = vrot.slane %v1386, 4
      %v1388 = vrot.slane %v245, 5
      %v1389 = vsel %vm1322, %v1387, %v1388
      %v1390 = vrot.slane %v1388, 4
      %v1391 = vrot.slane %v283, 5
      %v1392 = vsel %vm1322, %v1390, %v1391
      %v1393 = vrot.slane %v1282, 5
      %v1394 = vrot.slane %v1393, 4
      %v1395 = vrot.slane %v247, 5
      %v1396 = vsel %vm1322, %v1394, %v1395
      %v1397 = vrot.slane %v1395, 4
      %v1398 = vrot.slane %v284, 5
      %v1399 = vsel %vm1322, %v1397, %v1398
      %v1400 = vrot.slane %v1283, 5
      %v1401 = vrot.slane %v1400, 4
      %v1402 = vrot.slane %v249, 5
      %v1403 = vsel %vm1322, %v1401, %v1402
      %v1404 = vrot.slane %v1402, 4
      %v1405 = vrot.slane %v285, 5
      %v1406 = vsel %vm1322, %v1404, %v1405
      %v1407 = vrot.slane %v1284, 5
      %v1408 = vrot.slane %v1407, 4
      %v1409 = vrot.slane %v251, 5
      %v1410 = vsel %vm1322, %v1408, %v1409
      %v1411 = vrot.slane %v1409, 4
      %v1412 = vrot.slane %v286, 5
      %v1413 = vsel %vm1322, %v1411, %v1412
      %v1414 = vrot.slane %v1285, 5
      %v1415 = vrot.slane %v1414, 4
      %v1416 = vrot.slane %v253, 5
      %v1417 = vsel %vm1322, %v1415, %v1416
      %v1418 = vrot.slane %v1416, 4
      %v1419 = vrot.slane %v287, 5
      %v1420 = vsel %vm1322, %v1418, %v1419
      %v1421 = vrot.slane %v1286, 5
      %v1422 = vrot.slane %v1421, 4
      %v1423 = vrot.slane %v255, 5
      %v1424 = vsel %vm1322, %v1422, %v1423
      %v1425 = vrot.slane %v1423, 4
      %v1426 = vrot.slane %v288, 5
      %v1427 = vsel %vm1322, %v1425, %v1426
      %v1428 = vrot.slane %v1287, 5
      %v1429 = vrot.slane %v1428, 4
      %v1430 = vrot.slane %v257, 5
      %v1431 = vsel %vm1322, %v1429, %v1430
      %v1432 = vrot.slane %v1430, 4
      %v1433 = vrot.slane %v289, 5
      %v1434 = vsel %vm1322, %v1432, %v1433
      %s1435 = scalar_lea.vmem %s1, 128
      %v1436 = vld [vmem:[%s1435] sm:$0xf]
      %v1437 = vld [vmem:[%s1435 + $0x4] sm:$0xf]
      %v1438 = vld [vmem:[%s1435 + $0x8] sm:$0xf]
      %v1439 = vld [vmem:[%s1435 + $0xc] sm:$0xf]
      %v1440 = vld [vmem:[%s1435 + $0x10] sm:$0xf]
      %v1441 = vld [vmem:[%s1435 + $0x14] sm:$0xf]
      %v1442 = vld [vmem:[%s1435 + $0x18] sm:$0xf]
      %v1443 = vld [vmem:[%s1435 + $0x1c] sm:$0xf]
      %v1444 = vld [vmem:[%s1435 + $0x20] sm:$0xf]
      %v1445 = vld [vmem:[%s1435 + $0x24] sm:$0xf]
      %v1446 = vld [vmem:[%s1435 + $0x28] sm:$0xf]
      %v1447 = vld [vmem:[%s1435 + $0x2c] sm:$0xf]
      %v1448 = vld [vmem:[%s1435 + $0x30] sm:$0xf]
      %v1449 = vld [vmem:[%s1435 + $0x34] sm:$0xf]
      %v1450 = vld [vmem:[%s1435 + $0x38] sm:$0xf]
      %v1451 = vld [vmem:[%s1435 + $0x3c] sm:$0xf]
      %v1452 = vunpack.c.l.b16 %v1326
      %v1453 = vunpack.c.l.b16 %v1329
      %v1454 = vunpack.c.l.b16 %v1333
      %v1455 = vunpack.c.l.b16 %v1336
      %v1456 = vunpack.c.l.b16 %v1340
      %v1457 = vunpack.c.l.b16 %v1343
      %v1458 = vunpack.c.l.b16 %v1347
      %v1459 = vunpack.c.l.b16 %v1350
      %v1460 = vunpack.c.l.b16 %v1354
      %v1461 = vunpack.c.l.b16 %v1357
      %v1462 = vunpack.c.l.b16 %v1361
      %v1463 = vunpack.c.l.b16 %v1364
      %v1464 = vunpack.c.l.b16 %v1368
      %v1465 = vunpack.c.l.b16 %v1371
      %v1466 = vunpack.c.l.b16 %v1375
      %v1467 = vunpack.c.l.b16 %v1378
      %v1468 = vunpack.c.l.b16 %v1382
      %v1469 = vunpack.c.l.b16 %v1385
      %v1470 = vunpack.c.l.b16 %v1389
      %v1471 = vunpack.c.l.b16 %v1392
      %v1472 = vunpack.c.l.b16 %v1396
      %v1473 = vunpack.c.l.b16 %v1399
      %v1474 = vunpack.c.l.b16 %v1403
      %v1475 = vunpack.c.l.b16 %v1406
      %v1476 = vunpack.c.l.b16 %v1410
      %v1477 = vunpack.c.l.b16 %v1413
      %v1478 = vunpack.c.l.b16 %v1417
      %v1479 = vunpack.c.l.b16 %v1420
      %v1480 = vunpack.c.l.b16 %v1424
      %v1481 = vunpack.c.l.b16 %v1427
      %v1482 = vunpack.c.l.b16 %v1431
      %v1483 = vunpack.c.l.b16 %v1434
      %v1484 = vpack.c.b16 %v1453, %v1452
      %v1485 = vpack.c.b16 %v1455, %v1454
      %v1486 = vpack.c.b16 %v1457, %v1456
      %v1487 = vpack.c.b16 %v1459, %v1458
      %v1488 = vpack.c.b16 %v1461, %v1460
      %v1489 = vpack.c.b16 %v1463, %v1462
      %v1490 = vpack.c.b16 %v1465, %v1464
      %v1491 = vpack.c.b16 %v1467, %v1466
      %v1492 = vpack.c.b16 %v1469, %v1468
      %v1493 = vpack.c.b16 %v1471, %v1470
      %v1494 = vpack.c.b16 %v1473, %v1472
      %v1495 = vpack.c.b16 %v1475, %v1474
      %v1496 = vpack.c.b16 %v1477, %v1476
      %v1497 = vpack.c.b16 %v1479, %v1478
      %v1498 = vpack.c.b16 %v1481, %v1480
      %v1499 = vpack.c.b16 %v1483, %v1482
      %v1532 = vunpack.c.l.b16 %v1436
      %v1533 = vunpack.c.l.b16 %v1437
      %v1534 = vunpack.c.l.b16 %v1438
      %v1535 = vunpack.c.l.b16 %v1439
      %v1536 = vunpack.c.l.b16 %v1440
      %v1537 = vunpack.c.l.b16 %v1441
      %v1538 = vunpack.c.l.b16 %v1442
      %v1539 = vunpack.c.l.b16 %v1443
      %v1540 = vunpack.c.l.b16 %v1444
      %v1541 = vunpack.c.l.b16 %v1445
      %v1542 = vunpack.c.l.b16 %v1446
      %v1543 = vunpack.c.l.b16 %v1447
      %v1544 = vunpack.c.l.b16 %v1448
      %v1545 = vunpack.c.l.b16 %v1449
      %v1546 = vunpack.c.l.b16 %v1450
      %v1547 = vunpack.c.l.b16 %v1451
      %v1548 = vpack.c.b16 %v1533, %v1532
      %v1549 = vpack.c.b16 %v1535, %v1534
      %v1550 = vpack.c.b16 %v1537, %v1536
      %v1551 = vpack.c.b16 %v1539, %v1538
      %v1552 = vpack.c.b16 %v1541, %v1540
      %v1553 = vpack.c.b16 %v1543, %v1542
      %v1554 = vpack.c.b16 %v1545, %v1544
      %v1555 = vpack.c.b16 %v1547, %v1546
      %1564 = vmatprep.subr.bf16.mxu0 0
      %1565 = vmatpush1.bf16.msra.mxu0 %v1555
      %1566 = vmatprep.subr.bf16.mxu0 0
      %1567 = vmatpush1.bf16.msra.mxu0 %v1554
      %1568 = vmatprep.subr.bf16.mxu0 0
      %1569 = vmatpush1.bf16.msra.mxu0 %v1553
      %1570 = vmatprep.subr.bf16.mxu0 0
      %1571 = vmatpush1.bf16.msra.mxu0 %v1552
      %1572 = vmatprep.subr.bf16.mxu0 0
      %1573 = vmatpush1.bf16.msra.mxu0 %v1551
      %1574 = vmatprep.subr.bf16.mxu0 0
      %1575 = vmatpush1.bf16.msra.mxu0 %v1550
      %1576 = vmatprep.subr.bf16.mxu0 0
      %1577 = vmatpush1.bf16.msra.mxu0 %v1549
      %1578 = vmatprep.subr.bf16.mxu0 0
      %1579 = vmatpush1.bf16.msra.mxu0 %v1548
      %1580 = vmatprep.subr.bf16.mxu0 0
      %1581 = vmatpush2.bf16.msra.mxu0 0
      %1582 = vmatprep.subr.bf16.mxu0 0
      %1583 = vmatpush2.bf16.msra.mxu0 0
      %1584 = vmatprep.subr.bf16.mxu0 0
      %1585 = vmatpush2.bf16.msra.mxu0 0
      %1586 = vmatprep.subr.bf16.mxu0 0
      %1587 = vmatpush2.bf16.msra.mxu0 0
      %1588 = vmatprep.subr.bf16.mxu0 0
      %1589 = vmatpush2.bf16.msra.mxu0 0
      %1590 = vmatprep.subr.bf16.mxu0 0
      %1591 = vmatpush2.bf16.msra.mxu0 0
      %1592 = vmatprep.subr.bf16.mxu0 0
      %1593 = vmatpush2.bf16.msra.mxu0 0
      %1594 = vmatprep.subr.bf16.mxu0 0
      %1595 = vmatpush2.bf16.msra.mxu0 0
      %1596 = vmatprep.mubr.bf16.mxu0 0
      %1597 = vmatmul.mubr.bf16.gmra.mxu0 %v1484
      %v1598 = vpop.f32.mrf.mxu0
      %v1599 = vadd.f32 0.0, %v1598
      %v1600 = vpop.f32.mrf.mxu0
      %v1601 = vpop.f32.mrf.mxu0
      %v1602 = vadd.f32 0.0, %v1601
      %v1603 = vpop.f32.mrf.mxu0
      %1604 = vmatprep.mubr.bf16.mxu0 0
      %1605 = vmatmul.mubr.bf16.gmra.mxu0 %v1485
      %v1606 = vpop.f32.mrf.mxu0
      %v1607 = vadd.f32 0.0, %v1606
      %v1608 = vpop.f32.mrf.mxu0
      %v1609 = vpop.f32.mrf.mxu0
      %v1610 = vadd.f32 0.0, %v1609
      %v1611 = vpop.f32.mrf.mxu0
      %1612 = vmatprep.mubr.bf16.mxu0 0
      %1613 = vmatmul.mubr.bf16.gmra.mxu0 %v1486
      %v1614 = vpop.f32.mrf.mxu0
      %v1615 = vadd.f32 0.0, %v1614
      %v1616 = vpop.f32.mrf.mxu0
      %v1617 = vpop.f32.mrf.mxu0
      %v1618 = vadd.f32 0.0, %v1617
      %v1619 = vpop.f32.mrf.mxu0
      %1620 = vmatprep.mubr.bf16.mxu0 0
      %1621 = vmatmul.mubr.bf16.gmra.mxu0 %v1487
      %v1622 = vpop.f32.mrf.mxu0
      %v1623 = vadd.f32 0.0, %v1622
      %v1624 = vpop.f32.mrf.mxu0
      %v1625 = vpop.f32.mrf.mxu0
      %v1626 = vadd.f32 0.0, %v1625
      %v1627 = vpop.f32.mrf.mxu0
      %1628 = vmatprep.mubr.bf16.mxu0 0
      %1629 = vmatmul.mubr.bf16.gmra.mxu0 %v1488
      %v1630 = vpop.f32.mrf.mxu0
      %v1631 = vadd.f32 0.0, %v1630
      %v1632 = vpop.f32.mrf.mxu0
      %v1633 = vpop.f32.mrf.mxu0
      %v1634 = vadd.f32 0.0, %v1633
      %v1635 = vpop.f32.mrf.mxu0
      %1636 = vmatprep.mubr.bf16.mxu0 0
      %1637 = vmatmul.mubr.bf16.gmra.mxu0 %v1489
      %v1638 = vpop.f32.mrf.mxu0
      %v1639 = vadd.f32 0.0, %v1638
      %v1640 = vpop.f32.mrf.mxu0
      %v1641 = vpop.f32.mrf.mxu0
      %v1642 = vadd.f32 0.0, %v1641
      %v1643 = vpop.f32.mrf.mxu0
      %1644 = vmatprep.mubr.bf16.mxu0 0
      %1645 = vmatmul.mubr.bf16.gmra.mxu0 %v1490
      %v1646 = vpop.f32.mrf.mxu0
      %v1647 = vadd.f32 0.0, %v1646
      %v1648 = vpop.f32.mrf.mxu0
      %v1649 = vpop.f32.mrf.mxu0
      %v1650 = vadd.f32 0.0, %v1649
      %v1651 = vpop.f32.mrf.mxu0
      %1652 = vmatprep.mubr.bf16.mxu0 0
      %1653 = vmatmul.mubr.bf16.gmra.mxu0 %v1491
      %v1654 = vpop.f32.mrf.mxu0
      %v1655 = vadd.f32 0.0, %v1654
      %v1656 = vpop.f32.mrf.mxu0
      %v1657 = vpop.f32.mrf.mxu0
      %v1658 = vadd.f32 0.0, %v1657
      %v1659 = vpop.f32.mrf.mxu0
      %1660 = vmatprep.mubr.bf16.mxu0 0
      %1661 = vmatmul.mubr.bf16.gmra.mxu0 %v1492
      %v1662 = vpop.f32.mrf.mxu0
      %v1663 = vadd.f32 0.0, %v1662
      %v1664 = vpop.f32.mrf.mxu0
      %v1665 = vpop.f32.mrf.mxu0
      %v1666 = vadd.f32 0.0, %v1665
      %v1667 = vpop.f32.mrf.mxu0
      %1668 = vmatprep.mubr.bf16.mxu0 0
      %1669 = vmatmul.mubr.bf16.gmra.mxu0 %v1493
      %v1670 = vpop.f32.mrf.mxu0
      %v1671 = vadd.f32 0.0, %v1670
      %v1672 = vpop.f32.mrf.mxu0
      %v1673 = vpop.f32.mrf.mxu0
      %v1674 = vadd.f32 0.0, %v1673
      %v1675 = vpop.f32.mrf.mxu0
      %1676 = vmatprep.mubr.bf16.mxu0 0
      %1677 = vmatmul.mubr.bf16.gmra.mxu0 %v1494
      %v1678 = vpop.f32.mrf.mxu0
      %v1679 = vadd.f32 0.0, %v1678
      %v1680 = vpop.f32.mrf.mxu0
      %v1681 = vpop.f32.mrf.mxu0
      %v1682 = vadd.f32 0.0, %v1681
      %v1683 = vpop.f32.mrf.mxu0
      %1684 = vmatprep.mubr.bf16.mxu0 0
      %1685 = vmatmul.mubr.bf16.gmra.mxu0 %v1495
      %v1686 = vpop.f32.mrf.mxu0
      %v1687 = vadd.f32 0.0, %v1686
      %v1688 = vpop.f32.mrf.mxu0
      %v1689 = vpop.f32.mrf.mxu0
      %v1690 = vadd.f32 0.0, %v1689
      %v1691 = vpop.f32.mrf.mxu0
      %1692 = vmatprep.mubr.bf16.mxu0 0
      %1693 = vmatmul.mubr.bf16.gmra.mxu0 %v1496
      %v1694 = vpop.f32.mrf.mxu0
      %v1695 = vadd.f32 0.0, %v1694
      %v1696 = vpop.f32.mrf.mxu0
      %v1697 = vpop.f32.mrf.mxu0
      %v1698 = vadd.f32 0.0, %v1697
      %v1699 = vpop.f32.mrf.mxu0
      %1700 = vmatprep.mubr.bf16.mxu0 0
      %1701 = vmatmul.mubr.bf16.gmra.mxu0 %v1497
      %v1702 = vpop.f32.mrf.mxu0
      %v1703 = vadd.f32 0.0, %v1702
      %v1704 = vpop.f32.mrf.mxu0
      %v1705 = vpop.f32.mrf.mxu0
      %v1706 = vadd.f32 0.0, %v1705
      %v1707 = vpop.f32.mrf.mxu0
      %1708 = vmatprep.mubr.bf16.mxu0 0
      %1709 = vmatmul.mubr.bf16.gmra.mxu0 %v1498
      %v1710 = vpop.f32.mrf.mxu0
      %v1711 = vadd.f32 0.0, %v1710
      %v1712 = vpop.f32.mrf.mxu0
      %v1713 = vpop.f32.mrf.mxu0
      %v1714 = vadd.f32 0.0, %v1713
      %v1715 = vpop.f32.mrf.mxu0
      %1716 = vmatprep.mubr.bf16.mxu0 0
      %1717 = vmatmul.mubr.bf16.gmra.mxu0 %v1499
      %v1718 = vpop.f32.mrf.mxu0
      %v1719 = vadd.f32 0.0, %v1718
      %v1720 = vpop.f32.mrf.mxu0
      %v1721 = vpop.f32.mrf.mxu0
      %v1722 = vadd.f32 0.0, %v1721
      %v1723 = vpop.f32.mrf.mxu0
      %1724 = vdwg.mxu0
      %v1725 = vadd.f32 %v1146, %v1599
      %v1726 = vadd.f32 %v1149, %v1602
      %v1727 = vadd.f32 %v1154, %v1607
      %v1728 = vadd.f32 %v1157, %v1610
      %v1729 = vadd.f32 %v1162, %v1615
      %v1730 = vadd.f32 %v1165, %v1618
      %v1731 = vadd.f32 %v1170, %v1623
      %v1732 = vadd.f32 %v1173, %v1626
      %v1733 = vadd.f32 %v1178, %v1631
      %v1734 = vadd.f32 %v1181, %v1634
      %v1735 = vadd.f32 %v1186, %v1639
      %v1736 = vadd.f32 %v1189, %v1642
      %v1737 = vadd.f32 %v1194, %v1647
      %v1738 = vadd.f32 %v1197, %v1650
      %v1739 = vadd.f32 %v1202, %v1655
      %v1740 = vadd.f32 %v1205, %v1658
      %v1741 = vadd.f32 %v1210, %v1663
      %v1742 = vadd.f32 %v1213, %v1666
      %v1743 = vadd.f32 %v1218, %v1671
      %v1744 = vadd.f32 %v1221, %v1674
      %v1745 = vadd.f32 %v1226, %v1679
      %v1746 = vadd.f32 %v1229, %v1682
      %v1747 = vadd.f32 %v1234, %v1687
      %v1748 = vadd.f32 %v1237, %v1690
      %v1749 = vadd.f32 %v1242, %v1695
      %v1750 = vadd.f32 %v1245, %v1698
      %v1751 = vadd.f32 %v1250, %v1703
      %v1752 = vadd.f32 %v1253, %v1706
      %v1753 = vadd.f32 %v1258, %v1711
      %v1754 = vadd.f32 %v1261, %v1714
      %v1755 = vadd.f32 %v1266, %v1719
      %v1756 = vadd.f32 %v1269, %v1722
      %s1757 = scalar_lea.vmem %s219, 12
      %v1758 = vld [vmem:[%s1757] sm:$0xf]
      %v1759 = vld [vmem:[%s1757 + $0x4] sm:$0xf]
      %v1760 = vld [vmem:[%s1757 + $0xc] sm:$0xf]
      %v1761 = vld [vmem:[%s1757 + $0x10] sm:$0xf]
      %v1762 = vld [vmem:[%s1757 + $0x18] sm:$0xf]
      %v1763 = vld [vmem:[%s1757 + $0x1c] sm:$0xf]
      %v1764 = vld [vmem:[%s1757 + $0x24] sm:$0xf]
      %v1765 = vld [vmem:[%s1757 + $0x28] sm:$0xf]
      %v1766 = vld [vmem:[%s1757 + $0x30] sm:$0xf]
      %v1767 = vld [vmem:[%s1757 + $0x34] sm:$0xf]
      %v1768 = vld [vmem:[%s1757 + $0x3c] sm:$0xf]
      %v1769 = vld [vmem:[%s1757 + $0x40] sm:$0xf]
      %v1770 = vld [vmem:[%s1757 + $0x48] sm:$0xf]
      %v1771 = vld [vmem:[%s1757 + $0x4c] sm:$0xf]
      %v1772 = vld [vmem:[%s1757 + $0x54] sm:$0xf]
      %v1773 = vld [vmem:[%s1757 + $0x58] sm:$0xf]
      %v1774 = vld [vmem:[%s1757 + $0x60] sm:$0xf]
      %v1775 = vld [vmem:[%s1757 + $0x64] sm:$0xf]
      %v1776 = vld [vmem:[%s1757 + $0x6c] sm:$0xf]
      %v1777 = vld [vmem:[%s1757 + $0x70] sm:$0xf]
      %v1778 = vld [vmem:[%s1757 + $0x78] sm:$0xf]
      %v1779 = vld [vmem:[%s1757 + $0x7c] sm:$0xf]
      %v1780 = vld [vmem:[%s1757 + $0x84] sm:$0xf]
      %v1781 = vld [vmem:[%s1757 + $0x88] sm:$0xf]
      %v1782 = vld [vmem:[%s1757 + $0x90] sm:$0xf]
      %v1783 = vld [vmem:[%s1757 + $0x94] sm:$0xf]
      %v1784 = vld [vmem:[%s1757 + $0x9c] sm:$0xf]
      %v1785 = vld [vmem:[%s1757 + $0xa0] sm:$0xf]
      %v1786 = vld [vmem:[%s1757 + $0xa8] sm:$0xf]
      %v1787 = vld [vmem:[%s1757 + $0xac] sm:$0xf]
      %v1788 = vld [vmem:[%s1757 + $0xb4] sm:$0xf]
      %v1789 = vld [vmem:[%s1757 + $0xb8] sm:$0xf]
      %s1790 = scalar_lea.vmem %s1, 192
      %v1791 = vld [vmem:[%s1790] sm:$0xf]
      %v1792 = vld [vmem:[%s1790 + $0x4] sm:$0xf]
      %v1793 = vld [vmem:[%s1790 + $0x8] sm:$0xf]
      %v1794 = vld [vmem:[%s1790 + $0xc] sm:$0xf]
      %v1795 = vld [vmem:[%s1790 + $0x10] sm:$0xf]
      %v1796 = vld [vmem:[%s1790 + $0x14] sm:$0xf]
      %v1797 = vld [vmem:[%s1790 + $0x18] sm:$0xf]
      %v1798 = vld [vmem:[%s1790 + $0x1c] sm:$0xf]
      %v1799 = vld [vmem:[%s1790 + $0x20] sm:$0xf]
      %v1800 = vld [vmem:[%s1790 + $0x24] sm:$0xf]
      %v1801 = vld [vmem:[%s1790 + $0x28] sm:$0xf]
      %v1802 = vld [vmem:[%s1790 + $0x2c] sm:$0xf]
      %v1803 = vld [vmem:[%s1790 + $0x30] sm:$0xf]
      %v1804 = vld [vmem:[%s1790 + $0x34] sm:$0xf]
      %v1805 = vld [vmem:[%s1790 + $0x38] sm:$0xf]
      %v1806 = vld [vmem:[%s1790 + $0x3c] sm:$0xf]
      %v1839 = vunpack.c.l.b16 %v1758
      %v1840 = vunpack.c.l.b16 %v1759
      %v1841 = vunpack.c.l.b16 %v1760
      %v1842 = vunpack.c.l.b16 %v1761
      %v1843 = vunpack.c.l.b16 %v1762
      %v1844 = vunpack.c.l.b16 %v1763
      %v1845 = vunpack.c.l.b16 %v1764
      %v1846 = vunpack.c.l.b16 %v1765
      %v1847 = vunpack.c.l.b16 %v1766
      %v1848 = vunpack.c.l.b16 %v1767
      %v1849 = vunpack.c.l.b16 %v1768
      %v1850 = vunpack.c.l.b16 %v1769
      %v1851 = vunpack.c.l.b16 %v1770
      %v1852 = vunpack.c.l.b16 %v1771
      %v1853 = vunpack.c.l.b16 %v1772
      %v1854 = vunpack.c.l.b16 %v1773
      %v1855 = vunpack.c.l.b16 %v1774
      %v1856 = vunpack.c.l.b16 %v1775
      %v1857 = vunpack.c.l.b16 %v1776
      %v1858 = vunpack.c.l.b16 %v1777
      %v1859 = vunpack.c.l.b16 %v1778
      %v1860 = vunpack.c.l.b16 %v1779
      %v1861 = vunpack.c.l.b16 %v1780
      %v1862 = vunpack.c.l.b16 %v1781
      %v1863 = vunpack.c.l.b16 %v1782
      %v1864 = vunpack.c.l.b16 %v1783
      %v1865 = vunpack.c.l.b16 %v1784
      %v1866 = vunpack.c.l.b16 %v1785
      %v1867 = vunpack.c.l.b16 %v1786
      %v1868 = vunpack.c.l.b16 %v1787
      %v1869 = vunpack.c.l.b16 %v1788
      %v1870 = vunpack.c.l.b16 %v1789
      %v1871 = vpack.c.b16 %v1840, %v1839
      %v1872 = vpack.c.b16 %v1842, %v1841
      %v1873 = vpack.c.b16 %v1844, %v1843
      %v1874 = vpack.c.b16 %v1846, %v1845
      %v1875 = vpack.c.b16 %v1848, %v1847
      %v1876 = vpack.c.b16 %v1850, %v1849
      %v1877 = vpack.c.b16 %v1852, %v1851
      %v1878 = vpack.c.b16 %v1854, %v1853
      %v1879 = vpack.c.b16 %v1856, %v1855
      %v1880 = vpack.c.b16 %v1858, %v1857
      %v1881 = vpack.c.b16 %v1860, %v1859
      %v1882 = vpack.c.b16 %v1862, %v1861
      %v1883 = vpack.c.b16 %v1864, %v1863
      %v1884 = vpack.c.b16 %v1866, %v1865
      %v1885 = vpack.c.b16 %v1868, %v1867
      %v1886 = vpack.c.b16 %v1870, %v1869
      %v1919 = vunpack.c.l.b16 %v1791
      %v1920 = vunpack.c.l.b16 %v1792
      %v1921 = vunpack.c.l.b16 %v1793
      %v1922 = vunpack.c.l.b16 %v1794
      %v1923 = vunpack.c.l.b16 %v1795
      %v1924 = vunpack.c.l.b16 %v1796
      %v1925 = vunpack.c.l.b16 %v1797
      %v1926 = vunpack.c.l.b16 %v1798
      %v1927 = vunpack.c.l.b16 %v1799
      %v1928 = vunpack.c.l.b16 %v1800
      %v1929 = vunpack.c.l.b16 %v1801
      %v1930 = vunpack.c.l.b16 %v1802
      %v1931 = vunpack.c.l.b16 %v1803
      %v1932 = vunpack.c.l.b16 %v1804
      %v1933 = vunpack.c.l.b16 %v1805
      %v1934 = vunpack.c.l.b16 %v1806
      %v1935 = vpack.c.b16 %v1920, %v1919
      %v1936 = vpack.c.b16 %v1922, %v1921
      %v1937 = vpack.c.b16 %v1924, %v1923
      %v1938 = vpack.c.b16 %v1926, %v1925
      %v1939 = vpack.c.b16 %v1928, %v1927
      %v1940 = vpack.c.b16 %v1930, %v1929
      %v1941 = vpack.c.b16 %v1932, %v1931
      %v1942 = vpack.c.b16 %v1934, %v1933
      %1951 = vmatprep.subr.bf16.mxu0 0
      %1952 = vmatpush1.bf16.msra.mxu0 %v1942
      %1953 = vmatprep.subr.bf16.mxu0 0
      %1954 = vmatpush1.bf16.msra.mxu0 %v1941
      %1955 = vmatprep.subr.bf16.mxu0 0
      %1956 = vmatpush1.bf16.msra.mxu0 %v1940
      %1957 = vmatprep.subr.bf16.mxu0 0
      %1958 = vmatpush1.bf16.msra.mxu0 %v1939
      %1959 = vmatprep.subr.bf16.mxu0 0
      %1960 = vmatpush1.bf16.msra.mxu0 %v1938
      %1961 = vmatprep.subr.bf16.mxu0 0
      %1962 = vmatpush1.bf16.msra.mxu0 %v1937
      %1963 = vmatprep.subr.bf16.mxu0 0
      %1964 = vmatpush1.bf16.msra.mxu0 %v1936
      %1965 = vmatprep.subr.bf16.mxu0 0
      %1966 = vmatpush1.bf16.msra.mxu0 %v1935
      %1967 = vmatprep.subr.bf16.mxu0 0
      %1968 = vmatpush2.bf16.msra.mxu0 0
      %1969 = vmatprep.subr.bf16.mxu0 0
      %1970 = vmatpush2.bf16.msra.mxu0 0
      %1971 = vmatprep.subr.bf16.mxu0 0
      %1972 = vmatpush2.bf16.msra.mxu0 0
      %1973 = vmatprep.subr.bf16.mxu0 0
      %1974 = vmatpush2.bf16.msra.mxu0 0
      %1975 = vmatprep.subr.bf16.mxu0 0
      %1976 = vmatpush2.bf16.msra.mxu0 0
      %1977 = vmatprep.subr.bf16.mxu0 0
      %1978 = vmatpush2.bf16.msra.mxu0 0
      %1979 = vmatprep.subr.bf16.mxu0 0
      %1980 = vmatpush2.bf16.msra.mxu0 0
      %1981 = vmatprep.subr.bf16.mxu0 0
      %1982 = vmatpush2.bf16.msra.mxu0 0
      %1983 = vmatprep.mubr.bf16.mxu0 0
      %1984 = vmatmul.mubr.bf16.gmra.mxu0 %v1871
      %v1985 = vpop.f32.mrf.mxu0
      %v1986 = vadd.f32 0.0, %v1985
      %v1987 = vpop.f32.mrf.mxu0
      %v1988 = vpop.f32.mrf.mxu0
      %v1989 = vadd.f32 0.0, %v1988
      %v1990 = vpop.f32.mrf.mxu0
      %1991 = vmatprep.mubr.bf16.mxu0 0
      %1992 = vmatmul.mubr.bf16.gmra.mxu0 %v1872
      %v1993 = vpop.f32.mrf.mxu0
      %v1994 = vadd.f32 0.0, %v1993
      %v1995 = vpop.f32.mrf.mxu0
      %v1996 = vpop.f32.mrf.mxu0
      %v1997 = vadd.f32 0.0, %v1996
      %v1998 = vpop.f32.mrf.mxu0
      %1999 = vmatprep.mubr.bf16.mxu0 0
      %2000 = vmatmul.mubr.bf16.gmra.mxu0 %v1873
      %v2001 = vpop.f32.mrf.mxu0
      %v2002 = vadd.f32 0.0, %v2001
      %v2003 = vpop.f32.mrf.mxu0
      %v2004 = vpop.f32.mrf.mxu0
      %v2005 = vadd.f32 0.0, %v2004
      %v2006 = vpop.f32.mrf.mxu0
      %2007 = vmatprep.mubr.bf16.mxu0 0
      %2008 = vmatmul.mubr.bf16.gmra.mxu0 %v1874
      %v2009 = vpop.f32.mrf.mxu0
      %v2010 = vadd.f32 0.0, %v2009
      %v2011 = vpop.f32.mrf.mxu0
      %v2012 = vpop.f32.mrf.mxu0
      %v2013 = vadd.f32 0.0, %v2012
      %v2014 = vpop.f32.mrf.mxu0
      %2015 = vmatprep.mubr.bf16.mxu0 0
      %2016 = vmatmul.mubr.bf16.gmra.mxu0 %v1875
      %v2017 = vpop.f32.mrf.mxu0
      %v2018 = vadd.f32 0.0, %v2017
      %v2019 = vpop.f32.mrf.mxu0
      %v2020 = vpop.f32.mrf.mxu0
      %v2021 = vadd.f32 0.0, %v2020
      %v2022 = vpop.f32.mrf.mxu0
      %2023 = vmatprep.mubr.bf16.mxu0 0
      %2024 = vmatmul.mubr.bf16.gmra.mxu0 %v1876
      %v2025 = vpop.f32.mrf.mxu0
      %v2026 = vadd.f32 0.0, %v2025
      %v2027 = vpop.f32.mrf.mxu0
      %v2028 = vpop.f32.mrf.mxu0
      %v2029 = vadd.f32 0.0, %v2028
      %v2030 = vpop.f32.mrf.mxu0
      %2031 = vmatprep.mubr.bf16.mxu0 0
      %2032 = vmatmul.mubr.bf16.gmra.mxu0 %v1877
      %v2033 = vpop.f32.mrf.mxu0
      %v2034 = vadd.f32 0.0, %v2033
      %v2035 = vpop.f32.mrf.mxu0
      %v2036 = vpop.f32.mrf.mxu0
      %v2037 = vadd.f32 0.0, %v2036
      %v2038 = vpop.f32.mrf.mxu0
      %2039 = vmatprep.mubr.bf16.mxu0 0
      %2040 = vmatmul.mubr.bf16.gmra.mxu0 %v1878
      %v2041 = vpop.f32.mrf.mxu0
      %v2042 = vadd.f32 0.0, %v2041
      %v2043 = vpop.f32.mrf.mxu0
      %v2044 = vpop.f32.mrf.mxu0
      %v2045 = vadd.f32 0.0, %v2044
      %v2046 = vpop.f32.mrf.mxu0
      %2047 = vmatprep.mubr.bf16.mxu0 0
      %2048 = vmatmul.mubr.bf16.gmra.mxu0 %v1879
      %v2049 = vpop.f32.mrf.mxu0
      %v2050 = vadd.f32 0.0, %v2049
      %v2051 = vpop.f32.mrf.mxu0
      %v2052 = vpop.f32.mrf.mxu0
      %v2053 = vadd.f32 0.0, %v2052
      %v2054 = vpop.f32.mrf.mxu0
      %2055 = vmatprep.mubr.bf16.mxu0 0
      %2056 = vmatmul.mubr.bf16.gmra.mxu0 %v1880
      %v2057 = vpop.f32.mrf.mxu0
      %v2058 = vadd.f32 0.0, %v2057
      %v2059 = vpop.f32.mrf.mxu0
      %v2060 = vpop.f32.mrf.mxu0
      %v2061 = vadd.f32 0.0, %v2060
      %v2062 = vpop.f32.mrf.mxu0
      %2063 = vmatprep.mubr.bf16.mxu0 0
      %2064 = vmatmul.mubr.bf16.gmra.mxu0 %v1881
      %v2065 = vpop.f32.mrf.mxu0
      %v2066 = vadd.f32 0.0, %v2065
      %v2067 = vpop.f32.mrf.mxu0
      %v2068 = vpop.f32.mrf.mxu0
      %v2069 = vadd.f32 0.0, %v2068
      %v2070 = vpop.f32.mrf.mxu0
      %2071 = vmatprep.mubr.bf16.mxu0 0
      %2072 = vmatmul.mubr.bf16.gmra.mxu0 %v1882
      %v2073 = vpop.f32.mrf.mxu0
      %v2074 = vadd.f32 0.0, %v2073
      %v2075 = vpop.f32.mrf.mxu0
      %v2076 = vpop.f32.mrf.mxu0
      %v2077 = vadd.f32 0.0, %v2076
      %v2078 = vpop.f32.mrf.mxu0
      %2079 = vmatprep.mubr.bf16.mxu0 0
      %2080 = vmatmul.mubr.bf16.gmra.mxu0 %v1883
      %v2081 = vpop.f32.mrf.mxu0
      %v2082 = vadd.f32 0.0, %v2081
      %v2083 = vpop.f32.mrf.mxu0
      %v2084 = vpop.f32.mrf.mxu0
      %v2085 = vadd.f32 0.0, %v2084
      %v2086 = vpop.f32.mrf.mxu0
      %2087 = vmatprep.mubr.bf16.mxu0 0
      %2088 = vmatmul.mubr.bf16.gmra.mxu0 %v1884
      %v2089 = vpop.f32.mrf.mxu0
      %v2090 = vadd.f32 0.0, %v2089
      %v2091 = vpop.f32.mrf.mxu0
      %v2092 = vpop.f32.mrf.mxu0
      %v2093 = vadd.f32 0.0, %v2092
      %v2094 = vpop.f32.mrf.mxu0
      %2095 = vmatprep.mubr.bf16.mxu0 0
      %2096 = vmatmul.mubr.bf16.gmra.mxu0 %v1885
      %v2097 = vpop.f32.mrf.mxu0
      %v2098 = vadd.f32 0.0, %v2097
      %v2099 = vpop.f32.mrf.mxu0
      %v2100 = vpop.f32.mrf.mxu0
      %v2101 = vadd.f32 0.0, %v2100
      %v2102 = vpop.f32.mrf.mxu0
      %2103 = vmatprep.mubr.bf16.mxu0 0
      %2104 = vmatmul.mubr.bf16.gmra.mxu0 %v1886
      %v2105 = vpop.f32.mrf.mxu0
      %v2106 = vadd.f32 0.0, %v2105
      %v2107 = vpop.f32.mrf.mxu0
      %v2108 = vpop.f32.mrf.mxu0
      %v2109 = vadd.f32 0.0, %v2108
      %v2110 = vpop.f32.mrf.mxu0
      %2111 = vdwg.mxu0
      %v2112 = vadd.f32 %v1725, %v1986
      %v2113 = vadd.f32 %v1726, %v1989
      %v2114 = vadd.f32 %v1727, %v1994
      %v2115 = vadd.f32 %v1728, %v1997
      %v2116 = vadd.f32 %v1729, %v2002
      %v2117 = vadd.f32 %v1730, %v2005
      %v2118 = vadd.f32 %v1731, %v2010
      %v2119 = vadd.f32 %v1732, %v2013
      %v2120 = vadd.f32 %v1733, %v2018
      %v2121 = vadd.f32 %v1734, %v2021
      %v2122 = vadd.f32 %v1735, %v2026
      %v2123 = vadd.f32 %v1736, %v2029
      %v2124 = vadd.f32 %v1737, %v2034
      %v2125 = vadd.f32 %v1738, %v2037
      %v2126 = vadd.f32 %v1739, %v2042
      %v2127 = vadd.f32 %v1740, %v2045
      %v2128 = vadd.f32 %v1741, %v2050
      %v2129 = vadd.f32 %v1742, %v2053
      %v2130 = vadd.f32 %v1743, %v2058
      %v2131 = vadd.f32 %v1744, %v2061
      %v2132 = vadd.f32 %v1745, %v2066
      %v2133 = vadd.f32 %v1746, %v2069
      %v2134 = vadd.f32 %v1747, %v2074
      %v2135 = vadd.f32 %v1748, %v2077
      %v2136 = vadd.f32 %v1749, %v2082
      %v2137 = vadd.f32 %v1750, %v2085
      %v2138 = vadd.f32 %v1751, %v2090
      %v2139 = vadd.f32 %v1752, %v2093
      %v2140 = vadd.f32 %v1753, %v2098
      %v2141 = vadd.f32 %v1754, %v2101
      %v2142 = vadd.f32 %v1755, %v2106
      %v2143 = vadd.f32 %v1756, %v2109
      %v2144 = vld [vmem:[%s1757] sm:$0xf]
      %v2145 = vld [vmem:[%s1757 + $0x4] sm:$0xf]
      %v2146 = vld [vmem:[%s1757 + $0x8] sm:$0x1]
      %v2147 = vld [vmem:[%s1757 + $0xc] sm:$0xf]
      %v2148 = vld [vmem:[%s1757 + $0x10] sm:$0xf]
      %v2149 = vld [vmem:[%s1757 + $0x14] sm:$0x1]
      %v2150 = vld [vmem:[%s1757 + $0x18] sm:$0xf]
      %v2151 = vld [vmem:[%s1757 + $0x1c] sm:$0xf]
      %v2152 = vld [vmem:[%s1757 + $0x20] sm:$0x1]
      %v2153 = vld [vmem:[%s1757 + $0x24] sm:$0xf]
      %v2154 = vld [vmem:[%s1757 + $0x28] sm:$0xf]
      %v2155 = vld [vmem:[%s1757 + $0x2c] sm:$0x1]
      %v2156 = vld [vmem:[%s1757 + $0x30] sm:$0xf]
      %v2157 = vld [vmem:[%s1757 + $0x34] sm:$0xf]
      %v2158 = vld [vmem:[%s1757 + $0x38] sm:$0x1]
      %v2159 = vld [vmem:[%s1757 + $0x3c] sm:$0xf]
      %v2160 = vld [vmem:[%s1757 + $0x40] sm:$0xf]
      %v2161 = vld [vmem:[%s1757 + $0x44] sm:$0x1]
      %v2162 = vld [vmem:[%s1757 + $0x48] sm:$0xf]
      %v2163 = vld [vmem:[%s1757 + $0x4c] sm:$0xf]
      %v2164 = vld [vmem:[%s1757 + $0x50] sm:$0x1]
      %v2165 = vld [vmem:[%s1757 + $0x54] sm:$0xf]
      %v2166 = vld [vmem:[%s1757 + $0x58] sm:$0xf]
      %v2167 = vld [vmem:[%s1757 + $0x5c] sm:$0x1]
      %v2168 = vld [vmem:[%s1757 + $0x60] sm:$0xf]
      %v2169 = vld [vmem:[%s1757 + $0x64] sm:$0xf]
      %v2170 = vld [vmem:[%s1757 + $0x68] sm:$0x1]
      %v2171 = vld [vmem:[%s1757 + $0x6c] sm:$0xf]
      %v2172 = vld [vmem:[%s1757 + $0x70] sm:$0xf]
      %v2173 = vld [vmem:[%s1757 + $0x74] sm:$0x1]
      %v2174 = vld [vmem:[%s1757 + $0x78] sm:$0xf]
      %v2175 = vld [vmem:[%s1757 + $0x7c] sm:$0xf]
      %v2176 = vld [vmem:[%s1757 + $0x80] sm:$0x1]
      %v2177 = vld [vmem:[%s1757 + $0x84] sm:$0xf]
      %v2178 = vld [vmem:[%s1757 + $0x88] sm:$0xf]
      %v2179 = vld [vmem:[%s1757 + $0x8c] sm:$0x1]
      %v2180 = vld [vmem:[%s1757 + $0x90] sm:$0xf]
      %v2181 = vld [vmem:[%s1757 + $0x94] sm:$0xf]
      %v2182 = vld [vmem:[%s1757 + $0x98] sm:$0x1]
      %v2183 = vld [vmem:[%s1757 + $0x9c] sm:$0xf]
      %v2184 = vld [vmem:[%s1757 + $0xa0] sm:$0xf]
      %v2185 = vld [vmem:[%s1757 + $0xa4] sm:$0x1]
      %v2186 = vld [vmem:[%s1757 + $0xa8] sm:$0xf]
      %v2187 = vld [vmem:[%s1757 + $0xac] sm:$0xf]
      %v2188 = vld [vmem:[%s1757 + $0xb0] sm:$0x1]
      %v2189 = vld [vmem:[%s1757 + $0xb4] sm:$0xf]
      %v2190 = vld [vmem:[%s1757 + $0xb8] sm:$0xf]
      %v2191 = vld [vmem:[%s1757 + $0xbc] sm:$0x1]
      %v2193 = vshrl.u32 %v2144, 16
      %v2195 = vrot.slane %v2193, 4
      %v2196 = vshll.u32 %v2144, 16
      %v2198 = vrot.slane %v2196, 5
      %v2199 = vor.u32 %v2195, %v2198
      %v2200 = vrot.slane %v2199, 4
      %v2202 = vshll.u32 %v2145, 16
      %v2204 = vrot.slane %v2202, 5
      %v2205 = vsel %vm292, %v2200, %v2204
      %v2206 = vshrl.u32 %v2145, 16
      %v2208 = vrot.slane %v2206, 4
      %v2209 = vor.u32 %v2208, %v2204
      %v2210 = vrot.slane %v2209, 4
      %v2212 = vshll.u32 %v2146, 16
      %v2214 = vrot.slane %v2212, 5
      %v2215 = vsel %vm292, %v2210, %v2214
      %v2217 = vshrl.u32 %v2147, 16
      %v2219 = vrot.slane %v2217, 4
      %v2220 = vshll.u32 %v2147, 16
      %v2222 = vrot.slane %v2220, 5
      %v2223 = vor.u32 %v2219, %v2222
      %v2224 = vrot.slane %v2223, 4
      %v2226 = vshll.u32 %v2148, 16
      %v2228 = vrot.slane %v2226, 5
      %v2229 = vsel %vm292, %v2224, %v2228
      %v2230 = vshrl.u32 %v2148, 16
      %v2232 = vrot.slane %v2230, 4
      %v2233 = vor.u32 %v2232, %v2228
      %v2234 = vrot.slane %v2233, 4
      %v2236 = vshll.u32 %v2149, 16
      %v2238 = vrot.slane %v2236, 5
      %v2239 = vsel %vm292, %v2234, %v2238
      %v2241 = vshrl.u32 %v2150, 16
      %v2243 = vrot.slane %v2241, 4
      %v2244 = vshll.u32 %v2150, 16
      %v2246 = vrot.slane %v2244, 5
      %v2247 = vor.u32 %v2243, %v2246
      %v2248 = vrot.slane %v2247, 4
      %v2250 = vshll.u32 %v2151, 16
      %v2252 = vrot.slane %v2250, 5
      %v2253 = vsel %vm292, %v2248, %v2252
      %v2254 = vshrl.u32 %v2151, 16
      %v2256 = vrot.slane %v2254, 4
      %v2257 = vor.u32 %v2256, %v2252
      %v2258 = vrot.slane %v2257, 4
      %v2260 = vshll.u32 %v2152, 16
      %v2262 = vrot.slane %v2260, 5
      %v2263 = vsel %vm292, %v2258, %v2262
      %v2265 = vshrl.u32 %v2153, 16
      %v2267 = vrot.slane %v2265, 4
      %v2268 = vshll.u32 %v2153, 16
      %v2270 = vrot.slane %v2268, 5
      %v2271 = vor.u32 %v2267, %v2270
      %v2272 = vrot.slane %v2271, 4
      %v2274 = vshll.u32 %v2154, 16
      %v2276 = vrot.slane %v2274, 5
      %v2277 = vsel %vm292, %v2272, %v2276
      %v2278 = vshrl.u32 %v2154, 16
      %v2280 = vrot.slane %v2278, 4
      %v2281 = vor.u32 %v2280, %v2276
      %v2282 = vrot.slane %v2281, 4
      %v2284 = vshll.u32 %v2155, 16
      %v2286 = vrot.slane %v2284, 5
      %v2287 = vsel %vm292, %v2282, %v2286
      %v2289 = vshrl.u32 %v2156, 16
      %v2291 = vrot.slane %v2289, 4
      %v2292 = vshll.u32 %v2156, 16
      %v2294 = vrot.slane %v2292, 5
      %v2295 = vor.u32 %v2291, %v2294
      %v2296 = vrot.slane %v2295, 4
      %v2298 = vshll.u32 %v2157, 16
      %v2300 = vrot.slane %v2298, 5
      %v2301 = vsel %vm292, %v2296, %v2300
      %v2302 = vshrl.u32 %v2157, 16
      %v2304 = vrot.slane %v2302, 4
      %v2305 = vor.u32 %v2304, %v2300
      %v2306 = vrot.slane %v2305, 4
      %v2308 = vshll.u32 %v2158, 16
      %v2310 = vrot.slane %v2308, 5
      %v2311 = vsel %vm292, %v2306, %v2310
      %v2313 = vshrl.u32 %v2159, 16
      %v2315 = vrot.slane %v2313, 4
      %v2316 = vshll.u32 %v2159, 16
      %v2318 = vrot.slane %v2316, 5
      %v2319 = vor.u32 %v2315, %v2318
      %v2320 = vrot.slane %v2319, 4
      %v2322 = vshll.u32 %v2160, 16
      %v2324 = vrot.slane %v2322, 5
      %v2325 = vsel %vm292, %v2320, %v2324
      %v2326 = vshrl.u32 %v2160, 16
      %v2328 = vrot.slane %v2326, 4
      %v2329 = vor.u32 %v2328, %v2324
      %v2330 = vrot.slane %v2329, 4
      %v2332 = vshll.u32 %v2161, 16
      %v2334 = vrot.slane %v2332, 5
      %v2335 = vsel %vm292, %v2330, %v2334
      %v2337 = vshrl.u32 %v2162, 16
      %v2339 = vrot.slane %v2337, 4
      %v2340 = vshll.u32 %v2162, 16
      %v2342 = vrot.slane %v2340, 5
      %v2343 = vor.u32 %v2339, %v2342
      %v2344 = vrot.slane %v2343, 4
      %v2346 = vshll.u32 %v2163, 16
      %v2348 = vrot.slane %v2346, 5
      %v2349 = vsel %vm292, %v2344, %v2348
      %v2350 = vshrl.u32 %v2163, 16
      %v2352 = vrot.slane %v2350, 4
      %v2353 = vor.u32 %v2352, %v2348
      %v2354 = vrot.slane %v2353, 4
      %v2356 = vshll.u32 %v2164, 16
      %v2358 = vrot.slane %v2356, 5
      %v2359 = vsel %vm292, %v2354, %v2358
      %v2361 = vshrl.u32 %v2165, 16
      %v2363 = vrot.slane %v2361, 4
      %v2364 = vshll.u32 %v2165, 16
      %v2366 = vrot.slane %v2364, 5
      %v2367 = vor.u32 %v2363, %v2366
      %v2368 = vrot.slane %v2367, 4
      %v2370 = vshll.u32 %v2166, 16
      %v2372 = vrot.slane %v2370, 5
      %v2373 = vsel %vm292, %v2368, %v2372
      %v2374 = vshrl.u32 %v2166, 16
      %v2376 = vrot.slane %v2374, 4
      %v2377 = vor.u32 %v2376, %v2372
      %v2378 = vrot.slane %v2377, 4
      %v2380 = vshll.u32 %v2167, 16
      %v2382 = vrot.slane %v2380, 5
      %v2383 = vsel %vm292, %v2378, %v2382
      %v2385 = vshrl.u32 %v2168, 16
      %v2387 = vrot.slane %v2385, 4
      %v2388 = vshll.u32 %v2168, 16
      %v2390 = vrot.slane %v2388, 5
      %v2391 = vor.u32 %v2387, %v2390
      %v2392 = vrot.slane %v2391, 4
      %v2394 = vshll.u32 %v2169, 16
      %v2396 = vrot.slane %v2394, 5
      %v2397 = vsel %vm292, %v2392, %v2396
      %v2398 = vshrl.u32 %v2169, 16
      %v2400 = vrot.slane %v2398, 4
      %v2401 = vor.u32 %v2400, %v2396
      %v2402 = vrot.slane %v2401, 4
      %v2404 = vshll.u32 %v2170, 16
      %v2406 = vrot.slane %v2404, 5
      %v2407 = vsel %vm292, %v2402, %v2406
      %v2409 = vshrl.u32 %v2171, 16
      %v2411 = vrot.slane %v2409, 4
      %v2412 = vshll.u32 %v2171, 16
      %v2414 = vrot.slane %v2412, 5
      %v2415 = vor.u32 %v2411, %v2414
      %v2416 = vrot.slane %v2415, 4
      %v2418 = vshll.u32 %v2172, 16
      %v2420 = vrot.slane %v2418, 5
      %v2421 = vsel %vm292, %v2416, %v2420
      %v2422 = vshrl.u32 %v2172, 16
      %v2424 = vrot.slane %v2422, 4
      %v2425 = vor.u32 %v2424, %v2420
      %v2426 = vrot.slane %v2425, 4
      %v2428 = vshll.u32 %v2173, 16
      %v2430 = vrot.slane %v2428, 5
      %v2431 = vsel %vm292, %v2426, %v2430
      %v2433 = vshrl.u32 %v2174, 16
      %v2435 = vrot.slane %v2433, 4
      %v2436 = vshll.u32 %v2174, 16
      %v2438 = vrot.slane %v2436, 5
      %v2439 = vor.u32 %v2435, %v2438
      %v2440 = vrot.slane %v2439, 4
      %v2442 = vshll.u32 %v2175, 16
      %v2444 = vrot.slane %v2442, 5
      %v2445 = vsel %vm292, %v2440, %v2444
      %v2446 = vshrl.u32 %v2175, 16
      %v2448 = vrot.slane %v2446, 4
      %v2449 = vor.u32 %v2448, %v2444
      %v2450 = vrot.slane %v2449, 4
      %v2452 = vshll.u32 %v2176, 16
      %v2454 = vrot.slane %v2452, 5
      %v2455 = vsel %vm292, %v2450, %v2454
      %v2457 = vshrl.u32 %v2177, 16
      %v2459 = vrot.slane %v2457, 4
      %v2460 = vshll.u32 %v2177, 16
      %v2462 = vrot.slane %v2460, 5
      %v2463 = vor.u32 %v2459, %v2462
      %v2464 = vrot.slane %v2463, 4
      %v2466 = vshll.u32 %v2178, 16
      %v2468 = vrot.slane %v2466, 5
      %v2469 = vsel %vm292, %v2464, %v2468
      %v2470 = vshrl.u32 %v2178, 16
      %v2472 = vrot.slane %v2470, 4
      %v2473 = vor.u32 %v2472, %v2468
      %v2474 = vrot.slane %v2473, 4
      %v2476 = vshll.u32 %v2179, 16
      %v2478 = vrot.slane %v2476, 5
      %v2479 = vsel %vm292, %v2474, %v2478
      %v2481 = vshrl.u32 %v2180, 16
      %v2483 = vrot.slane %v2481, 4
      %v2484 = vshll.u32 %v2180, 16
      %v2486 = vrot.slane %v2484, 5
      %v2487 = vor.u32 %v2483, %v2486
      %v2488 = vrot.slane %v2487, 4
      %v2490 = vshll.u32 %v2181, 16
      %v2492 = vrot.slane %v2490, 5
      %v2493 = vsel %vm292, %v2488, %v2492
      %v2494 = vshrl.u32 %v2181, 16
      %v2496 = vrot.slane %v2494, 4
      %v2497 = vor.u32 %v2496, %v2492
      %v2498 = vrot.slane %v2497, 4
      %v2500 = vshll.u32 %v2182, 16
      %v2502 = vrot.slane %v2500, 5
      %v2503 = vsel %vm292, %v2498, %v2502
      %v2505 = vshrl.u32 %v2183, 16
      %v2507 = vrot.slane %v2505, 4
      %v2508 = vshll.u32 %v2183, 16
      %v2510 = vrot.slane %v2508, 5
      %v2511 = vor.u32 %v2507, %v2510
      %v2512 = vrot.slane %v2511, 4
      %v2514 = vshll.u32 %v2184, 16
      %v2516 = vrot.slane %v2514, 5
      %v2517 = vsel %vm292, %v2512, %v2516
      %v2518 = vshrl.u32 %v2184, 16
      %v2520 = vrot.slane %v2518, 4
      %v2521 = vor.u32 %v2520, %v2516
      %v2522 = vrot.slane %v2521, 4
      %v2524 = vshll.u32 %v2185, 16
      %v2526 = vrot.slane %v2524, 5
      %v2527 = vsel %vm292, %v2522, %v2526
      %v2529 = vshrl.u32 %v2186, 16
      %v2531 = vrot.slane %v2529, 4
      %v2532 = vshll.u32 %v2186, 16
      %v2534 = vrot.slane %v2532, 5
      %v2535 = vor.u32 %v2531, %v2534
      %v2536 = vrot.slane %v2535, 4
      %v2538 = vshll.u32 %v2187, 16
      %v2540 = vrot.slane %v2538, 5
      %v2541 = vsel %vm292, %v2536, %v2540
      %v2542 = vshrl.u32 %v2187, 16
      %v2544 = vrot.slane %v2542, 4
      %v2545 = vor.u32 %v2544, %v2540
      %v2546 = vrot.slane %v2545, 4
      %v2548 = vshll.u32 %v2188, 16
      %v2550 = vrot.slane %v2548, 5
      %v2551 = vsel %vm292, %v2546, %v2550
      %v2553 = vshrl.u32 %v2189, 16
      %v2555 = vrot.slane %v2553, 4
      %v2556 = vshll.u32 %v2189, 16
      %v2558 = vrot.slane %v2556, 5
      %v2559 = vor.u32 %v2555, %v2558
      %v2560 = vrot.slane %v2559, 4
      %v2562 = vshll.u32 %v2190, 16
      %v2564 = vrot.slane %v2562, 5
      %v2565 = vsel %vm292, %v2560, %v2564
      %v2566 = vshrl.u32 %v2190, 16
      %v2568 = vrot.slane %v2566, 4
      %v2569 = vor.u32 %v2568, %v2564
      %v2570 = vrot.slane %v2569, 4
      %v2572 = vshll.u32 %v2191, 16
      %v2574 = vrot.slane %v2572, 5
      %v2575 = vsel %vm292, %v2570, %v2574
      %s2576 = scalar_lea.vmem %s1, 256
      %v2577 = vld [vmem:[%s2576] sm:$0xf]
      %v2578 = vld [vmem:[%s2576 + $0x4] sm:$0xf]
      %v2579 = vld [vmem:[%s2576 + $0x8] sm:$0xf]
      %v2580 = vld [vmem:[%s2576 + $0xc] sm:$0xf]
      %v2581 = vld [vmem:[%s2576 + $0x10] sm:$0xf]
      %v2582 = vld [vmem:[%s2576 + $0x14] sm:$0xf]
      %v2583 = vld [vmem:[%s2576 + $0x18] sm:$0xf]
      %v2584 = vld [vmem:[%s2576 + $0x1c] sm:$0xf]
      %v2585 = vld [vmem:[%s2576 + $0x20] sm:$0xf]
      %v2586 = vld [vmem:[%s2576 + $0x24] sm:$0xf]
      %v2587 = vld [vmem:[%s2576 + $0x28] sm:$0xf]
      %v2588 = vld [vmem:[%s2576 + $0x2c] sm:$0xf]
      %v2589 = vld [vmem:[%s2576 + $0x30] sm:$0xf]
      %v2590 = vld [vmem:[%s2576 + $0x34] sm:$0xf]
      %v2591 = vld [vmem:[%s2576 + $0x38] sm:$0xf]
      %v2592 = vld [vmem:[%s2576 + $0x3c] sm:$0xf]
      %v2593 = vunpack.c.l.b16 %v2205
      %v2594 = vunpack.c.l.b16 %v2215
      %v2595 = vunpack.c.l.b16 %v2229
      %v2596 = vunpack.c.l.b16 %v2239
      %v2597 = vunpack.c.l.b16 %v2253
      %v2598 = vunpack.c.l.b16 %v2263
      %v2599 = vunpack.c.l.b16 %v2277
      %v2600 = vunpack.c.l.b16 %v2287
      %v2601 = vunpack.c.l.b16 %v2301
      %v2602 = vunpack.c.l.b16 %v2311
      %v2603 = vunpack.c.l.b16 %v2325
      %v2604 = vunpack.c.l.b16 %v2335
      %v2605 = vunpack.c.l.b16 %v2349
      %v2606 = vunpack.c.l.b16 %v2359
      %v2607 = vunpack.c.l.b16 %v2373
      %v2608 = vunpack.c.l.b16 %v2383
      %v2609 = vunpack.c.l.b16 %v2397
      %v2610 = vunpack.c.l.b16 %v2407
      %v2611 = vunpack.c.l.b16 %v2421
      %v2612 = vunpack.c.l.b16 %v2431
      %v2613 = vunpack.c.l.b16 %v2445
      %v2614 = vunpack.c.l.b16 %v2455
      %v2615 = vunpack.c.l.b16 %v2469
      %v2616 = vunpack.c.l.b16 %v2479
      %v2617 = vunpack.c.l.b16 %v2493
      %v2618 = vunpack.c.l.b16 %v2503
      %v2619 = vunpack.c.l.b16 %v2517
      %v2620 = vunpack.c.l.b16 %v2527
      %v2621 = vunpack.c.l.b16 %v2541
      %v2622 = vunpack.c.l.b16 %v2551
      %v2623 = vunpack.c.l.b16 %v2565
      %v2624 = vunpack.c.l.b16 %v2575
      %v2625 = vpack.c.b16 %v2594, %v2593
      %v2626 = vpack.c.b16 %v2596, %v2595
      %v2627 = vpack.c.b16 %v2598, %v2597
      %v2628 = vpack.c.b16 %v2600, %v2599
      %v2629 = vpack.c.b16 %v2602, %v2601
      %v2630 = vpack.c.b16 %v2604, %v2603
      %v2631 = vpack.c.b16 %v2606, %v2605
      %v2632 = vpack.c.b16 %v2608, %v2607
      %v2633 = vpack.c.b16 %v2610, %v2609
      %v2634 = vpack.c.b16 %v2612, %v2611
      %v2635 = vpack.c.b16 %v2614, %v2613
      %v2636 = vpack.c.b16 %v2616, %v2615
      %v2637 = vpack.c.b16 %v2618, %v2617
      %v2638 = vpack.c.b16 %v2620, %v2619
      %v2639 = vpack.c.b16 %v2622, %v2621
      %v2640 = vpack.c.b16 %v2624, %v2623
      %v2673 = vunpack.c.l.b16 %v2577
      %v2674 = vunpack.c.l.b16 %v2578
      %v2675 = vunpack.c.l.b16 %v2579
      %v2676 = vunpack.c.l.b16 %v2580
      %v2677 = vunpack.c.l.b16 %v2581
      %v2678 = vunpack.c.l.b16 %v2582
      %v2679 = vunpack.c.l.b16 %v2583
      %v2680 = vunpack.c.l.b16 %v2584
      %v2681 = vunpack.c.l.b16 %v2585
      %v2682 = vunpack.c.l.b16 %v2586
      %v2683 = vunpack.c.l.b16 %v2587
      %v2684 = vunpack.c.l.b16 %v2588
      %v2685 = vunpack.c.l.b16 %v2589
      %v2686 = vunpack.c.l.b16 %v2590
      %v2687 = vunpack.c.l.b16 %v2591
      %v2688 = vunpack.c.l.b16 %v2592
      %v2689 = vpack.c.b16 %v2674, %v2673
      %v2690 = vpack.c.b16 %v2676, %v2675
      %v2691 = vpack.c.b16 %v2678, %v2677
      %v2692 = vpack.c.b16 %v2680, %v2679
      %v2693 = vpack.c.b16 %v2682, %v2681
      %v2694 = vpack.c.b16 %v2684, %v2683
      %v2695 = vpack.c.b16 %v2686, %v2685
      %v2696 = vpack.c.b16 %v2688, %v2687
      %2705 = vmatprep.subr.bf16.mxu0 0
      %2706 = vmatpush1.bf16.msra.mxu0 %v2696
      %2707 = vmatprep.subr.bf16.mxu0 0
      %2708 = vmatpush1.bf16.msra.mxu0 %v2695
      %2709 = vmatprep.subr.bf16.mxu0 0
      %2710 = vmatpush1.bf16.msra.mxu0 %v2694
      %2711 = vmatprep.subr.bf16.mxu0 0
      %2712 = vmatpush1.bf16.msra.mxu0 %v2693
      %2713 = vmatprep.subr.bf16.mxu0 0
      %2714 = vmatpush1.bf16.msra.mxu0 %v2692
      %2715 = vmatprep.subr.bf16.mxu0 0
      %2716 = vmatpush1.bf16.msra.mxu0 %v2691
      %2717 = vmatprep.subr.bf16.mxu0 0
      %2718 = vmatpush1.bf16.msra.mxu0 %v2690
      %2719 = vmatprep.subr.bf16.mxu0 0
      %2720 = vmatpush1.bf16.msra.mxu0 %v2689
      %2721 = vmatprep.subr.bf16.mxu0 0
      %2722 = vmatpush2.bf16.msra.mxu0 0
      %2723 = vmatprep.subr.bf16.mxu0 0
      %2724 = vmatpush2.bf16.msra.mxu0 0
      %2725 = vmatprep.subr.bf16.mxu0 0
      %2726 = vmatpush2.bf16.msra.mxu0 0
      %2727 = vmatprep.subr.bf16.mxu0 0
      %2728 = vmatpush2.bf16.msra.mxu0 0
      %2729 = vmatprep.subr.bf16.mxu0 0
      %2730 = vmatpush2.bf16.msra.mxu0 0
      %2731 = vmatprep.subr.bf16.mxu0 0
      %2732 = vmatpush2.bf16.msra.mxu0 0
      %2733 = vmatprep.subr.bf16.mxu0 0
      %2734 = vmatpush2.bf16.msra.mxu0 0
      %2735 = vmatprep.subr.bf16.mxu0 0
      %2736 = vmatpush2.bf16.msra.mxu0 0
      %2737 = vmatprep.mubr.bf16.mxu0 0
      %2738 = vmatmul.mubr.bf16.gmra.mxu0 %v2625
      %v2739 = vpop.f32.mrf.mxu0
      %v2740 = vadd.f32 0.0, %v2739
      %v2741 = vpop.f32.mrf.mxu0
      %v2742 = vpop.f32.mrf.mxu0
      %v2743 = vadd.f32 0.0, %v2742
      %v2744 = vpop.f32.mrf.mxu0
      %2745 = vmatprep.mubr.bf16.mxu0 0
      %2746 = vmatmul.mubr.bf16.gmra.mxu0 %v2626
      %v2747 = vpop.f32.mrf.mxu0
      %v2748 = vadd.f32 0.0, %v2747
      %v2749 = vpop.f32.mrf.mxu0
      %v2750 = vpop.f32.mrf.mxu0
      %v2751 = vadd.f32 0.0, %v2750
      %v2752 = vpop.f32.mrf.mxu0
      %2753 = vmatprep.mubr.bf16.mxu0 0
      %2754 = vmatmul.mubr.bf16.gmra.mxu0 %v2627
      %v2755 = vpop.f32.mrf.mxu0
      %v2756 = vadd.f32 0.0, %v2755
      %v2757 = vpop.f32.mrf.mxu0
      %v2758 = vpop.f32.mrf.mxu0
      %v2759 = vadd.f32 0.0, %v2758
      %v2760 = vpop.f32.mrf.mxu0
      %2761 = vmatprep.mubr.bf16.mxu0 0
      %2762 = vmatmul.mubr.bf16.gmra.mxu0 %v2628
      %v2763 = vpop.f32.mrf.mxu0
      %v2764 = vadd.f32 0.0, %v2763
      %v2765 = vpop.f32.mrf.mxu0
      %v2766 = vpop.f32.mrf.mxu0
      %v2767 = vadd.f32 0.0, %v2766
      %v2768 = vpop.f32.mrf.mxu0
      %2769 = vmatprep.mubr.bf16.mxu0 0
      %2770 = vmatmul.mubr.bf16.gmra.mxu0 %v2629
      %v2771 = vpop.f32.mrf.mxu0
      %v2772 = vadd.f32 0.0, %v2771
      %v2773 = vpop.f32.mrf.mxu0
      %v2774 = vpop.f32.mrf.mxu0
      %v2775 = vadd.f32 0.0, %v2774
      %v2776 = vpop.f32.mrf.mxu0
      %2777 = vmatprep.mubr.bf16.mxu0 0
      %2778 = vmatmul.mubr.bf16.gmra.mxu0 %v2630
      %v2779 = vpop.f32.mrf.mxu0
      %v2780 = vadd.f32 0.0, %v2779
      %v2781 = vpop.f32.mrf.mxu0
      %v2782 = vpop.f32.mrf.mxu0
      %v2783 = vadd.f32 0.0, %v2782
      %v2784 = vpop.f32.mrf.mxu0
      %2785 = vmatprep.mubr.bf16.mxu0 0
      %2786 = vmatmul.mubr.bf16.gmra.mxu0 %v2631
      %v2787 = vpop.f32.mrf.mxu0
      %v2788 = vadd.f32 0.0, %v2787
      %v2789 = vpop.f32.mrf.mxu0
      %v2790 = vpop.f32.mrf.mxu0
      %v2791 = vadd.f32 0.0, %v2790
      %v2792 = vpop.f32.mrf.mxu0
      %2793 = vmatprep.mubr.bf16.mxu0 0
      %2794 = vmatmul.mubr.bf16.gmra.mxu0 %v2632
      %v2795 = vpop.f32.mrf.mxu0
      %v2796 = vadd.f32 0.0, %v2795
      %v2797 = vpop.f32.mrf.mxu0
      %v2798 = vpop.f32.mrf.mxu0
      %v2799 = vadd.f32 0.0, %v2798
      %v2800 = vpop.f32.mrf.mxu0
      %2801 = vmatprep.mubr.bf16.mxu0 0
      %2802 = vmatmul.mubr.bf16.gmra.mxu0 %v2633
      %v2803 = vpop.f32.mrf.mxu0
      %v2804 = vadd.f32 0.0, %v2803
      %v2805 = vpop.f32.mrf.mxu0
      %v2806 = vpop.f32.mrf.mxu0
      %v2807 = vadd.f32 0.0, %v2806
      %v2808 = vpop.f32.mrf.mxu0
      %2809 = vmatprep.mubr.bf16.mxu0 0
      %2810 = vmatmul.mubr.bf16.gmra.mxu0 %v2634
      %v2811 = vpop.f32.mrf.mxu0
      %v2812 = vadd.f32 0.0, %v2811
      %v2813 = vpop.f32.mrf.mxu0
      %v2814 = vpop.f32.mrf.mxu0
      %v2815 = vadd.f32 0.0, %v2814
      %v2816 = vpop.f32.mrf.mxu0
      %2817 = vmatprep.mubr.bf16.mxu0 0
      %2818 = vmatmul.mubr.bf16.gmra.mxu0 %v2635
      %v2819 = vpop.f32.mrf.mxu0
      %v2820 = vadd.f32 0.0, %v2819
      %v2821 = vpop.f32.mrf.mxu0
      %v2822 = vpop.f32.mrf.mxu0
      %v2823 = vadd.f32 0.0, %v2822
      %v2824 = vpop.f32.mrf.mxu0
      %2825 = vmatprep.mubr.bf16.mxu0 0
      %2826 = vmatmul.mubr.bf16.gmra.mxu0 %v2636
      %v2827 = vpop.f32.mrf.mxu0
      %v2828 = vadd.f32 0.0, %v2827
      %v2829 = vpop.f32.mrf.mxu0
      %v2830 = vpop.f32.mrf.mxu0
      %v2831 = vadd.f32 0.0, %v2830
      %v2832 = vpop.f32.mrf.mxu0
      %2833 = vmatprep.mubr.bf16.mxu0 0
      %2834 = vmatmul.mubr.bf16.gmra.mxu0 %v2637
      %v2835 = vpop.f32.mrf.mxu0
      %v2836 = vadd.f32 0.0, %v2835
      %v2837 = vpop.f32.mrf.mxu0
      %v2838 = vpop.f32.mrf.mxu0
      %v2839 = vadd.f32 0.0, %v2838
      %v2840 = vpop.f32.mrf.mxu0
      %2841 = vmatprep.mubr.bf16.mxu0 0
      %2842 = vmatmul.mubr.bf16.gmra.mxu0 %v2638
      %v2843 = vpop.f32.mrf.mxu0
      %v2844 = vadd.f32 0.0, %v2843
      %v2845 = vpop.f32.mrf.mxu0
      %v2846 = vpop.f32.mrf.mxu0
      %v2847 = vadd.f32 0.0, %v2846
      %v2848 = vpop.f32.mrf.mxu0
      %2849 = vmatprep.mubr.bf16.mxu0 0
      %2850 = vmatmul.mubr.bf16.gmra.mxu0 %v2639
      %v2851 = vpop.f32.mrf.mxu0
      %v2852 = vadd.f32 0.0, %v2851
      %v2853 = vpop.f32.mrf.mxu0
      %v2854 = vpop.f32.mrf.mxu0
      %v2855 = vadd.f32 0.0, %v2854
      %v2856 = vpop.f32.mrf.mxu0
      %2857 = vmatprep.mubr.bf16.mxu0 0
      %2858 = vmatmul.mubr.bf16.gmra.mxu0 %v2640
      %v2859 = vpop.f32.mrf.mxu0
      %v2860 = vadd.f32 0.0, %v2859
      %v2861 = vpop.f32.mrf.mxu0
      %v2862 = vpop.f32.mrf.mxu0
      %v2863 = vadd.f32 0.0, %v2862
      %v2864 = vpop.f32.mrf.mxu0
      %2865 = vdwg.mxu0
      %v2866 = vadd.f32 %v2112, %v2740
      %v2867 = vadd.f32 %v2113, %v2743
      %v2868 = vadd.f32 %v2114, %v2748
      %v2869 = vadd.f32 %v2115, %v2751
      %v2870 = vadd.f32 %v2116, %v2756
      %v2871 = vadd.f32 %v2117, %v2759
      %v2872 = vadd.f32 %v2118, %v2764
      %v2873 = vadd.f32 %v2119, %v2767
      %v2874 = vadd.f32 %v2120, %v2772
      %v2875 = vadd.f32 %v2121, %v2775
      %v2876 = vadd.f32 %v2122, %v2780
      %v2877 = vadd.f32 %v2123, %v2783
      %v2878 = vadd.f32 %v2124, %v2788
      %v2879 = vadd.f32 %v2125, %v2791
      %v2880 = vadd.f32 %v2126, %v2796
      %v2881 = vadd.f32 %v2127, %v2799
      %v2882 = vadd.f32 %v2128, %v2804
      %v2883 = vadd.f32 %v2129, %v2807
      %v2884 = vadd.f32 %v2130, %v2812
      %v2885 = vadd.f32 %v2131, %v2815
      %v2886 = vadd.f32 %v2132, %v2820
      %v2887 = vadd.f32 %v2133, %v2823
      %v2888 = vadd.f32 %v2134, %v2828
      %v2889 = vadd.f32 %v2135, %v2831
      %v2890 = vadd.f32 %v2136, %v2836
      %v2891 = vadd.f32 %v2137, %v2839
      %v2892 = vadd.f32 %v2138, %v2844
      %v2893 = vadd.f32 %v2139, %v2847
      %v2894 = vadd.f32 %v2140, %v2852
      %v2895 = vadd.f32 %v2141, %v2855
      %v2896 = vadd.f32 %v2142, %v2860
      %v2897 = vadd.f32 %v2143, %v2863
      %v2898 = vld [vmem:[%s1757] sm:$0xe]
      %v2899 = vld [vmem:[%s1757 + $0xc] sm:$0xe]
      %v2900 = vld [vmem:[%s1757 + $0x18] sm:$0xe]
      %v2901 = vld [vmem:[%s1757 + $0x24] sm:$0xe]
      %v2902 = vld [vmem:[%s1757 + $0x30] sm:$0xe]
      %v2903 = vld [vmem:[%s1757 + $0x3c] sm:$0xe]
      %v2904 = vld [vmem:[%s1757 + $0x48] sm:$0xe]
      %v2905 = vld [vmem:[%s1757 + $0x54] sm:$0xe]
      %v2906 = vld [vmem:[%s1757 + $0x60] sm:$0xe]
      %v2907 = vld [vmem:[%s1757 + $0x6c] sm:$0xe]
      %v2908 = vld [vmem:[%s1757 + $0x78] sm:$0xe]
      %v2909 = vld [vmem:[%s1757 + $0x84] sm:$0xe]
      %v2910 = vld [vmem:[%s1757 + $0x90] sm:$0xe]
      %v2911 = vld [vmem:[%s1757 + $0x9c] sm:$0xe]
      %v2912 = vld [vmem:[%s1757 + $0xa8] sm:$0xe]
      %v2913 = vld [vmem:[%s1757 + $0xb4] sm:$0xe]
      %v2962 = vrot.slane %v2898, 5
      %v2963 = vrot.slane %v2962, 4
      %v2964 = vrot.slane %v2145, 5
      %v2965 = vsel %vm1322, %v2963, %v2964
      %v2966 = vrot.slane %v2964, 4
      %v2967 = vrot.slane %v2146, 5
      %v2968 = vsel %vm1322, %v2966, %v2967
      %v2969 = vrot.slane %v2899, 5
      %v2970 = vrot.slane %v2969, 4
      %v2971 = vrot.slane %v2148, 5
      %v2972 = vsel %vm1322, %v2970, %v2971
      %v2973 = vrot.slane %v2971, 4
      %v2974 = vrot.slane %v2149, 5
      %v2975 = vsel %vm1322, %v2973, %v2974
      %v2976 = vrot.slane %v2900, 5
      %v2977 = vrot.slane %v2976, 4
      %v2978 = vrot.slane %v2151, 5
      %v2979 = vsel %vm1322, %v2977, %v2978
      %v2980 = vrot.slane %v2978, 4
      %v2981 = vrot.slane %v2152, 5
      %v2982 = vsel %vm1322, %v2980, %v2981
      %v2983 = vrot.slane %v2901, 5
      %v2984 = vrot.slane %v2983, 4
      %v2985 = vrot.slane %v2154, 5
      %v2986 = vsel %vm1322, %v2984, %v2985
      %v2987 = vrot.slane %v2985, 4
      %v2988 = vrot.slane %v2155, 5
      %v2989 = vsel %vm1322, %v2987, %v2988
      %v2990 = vrot.slane %v2902, 5
      %v2991 = vrot.slane %v2990, 4
      %v2992 = vrot.slane %v2157, 5
      %v2993 = vsel %vm1322, %v2991, %v2992
      %v2994 = vrot.slane %v2992, 4
      %v2995 = vrot.slane %v2158, 5
      %v2996 = vsel %vm1322, %v2994, %v2995
      %v2997 = vrot.slane %v2903, 5
      %v2998 = vrot.slane %v2997, 4
      %v2999 = vrot.slane %v2160, 5
      %v3000 = vsel %vm1322, %v2998, %v2999
      %v3001 = vrot.slane %v2999, 4
      %v3002 = vrot.slane %v2161, 5
      %v3003 = vsel %vm1322, %v3001, %v3002
      %v3004 = vrot.slane %v2904, 5
      %v3005 = vrot.slane %v3004, 4
      %v3006 = vrot.slane %v2163, 5
      %v3007 = vsel %vm1322, %v3005, %v3006
      %v3008 = vrot.slane %v3006, 4
      %v3009 = vrot.slane %v2164, 5
      %v3010 = vsel %vm1322, %v3008, %v3009
      %v3011 = vrot.slane %v2905, 5
      %v3012 = vrot.slane %v3011, 4
      %v3013 = vrot.slane %v2166, 5
      %v3014 = vsel %vm1322, %v3012, %v3013
      %v3015 = vrot.slane %v3013, 4
      %v3016 = vrot.slane %v2167, 5
      %v3017 = vsel %vm1322, %v3015, %v3016
      %v3018 = vrot.slane %v2906, 5
      %v3019 = vrot.slane %v3018, 4
      %v3020 = vrot.slane %v2169, 5
      %v3021 = vsel %vm1322, %v3019, %v3020
      %v3022 = vrot.slane %v3020, 4
      %v3023 = vrot.slane %v2170, 5
      %v3024 = vsel %vm1322, %v3022, %v3023
      %v3025 = vrot.slane %v2907, 5
      %v3026 = vrot.slane %v3025, 4
      %v3027 = vrot.slane %v2172, 5
      %v3028 = vsel %vm1322, %v3026, %v3027
      %v3029 = vrot.slane %v3027, 4
      %v3030 = vrot.slane %v2173, 5
      %v3031 = vsel %vm1322, %v3029, %v3030
      %v3032 = vrot.slane %v2908, 5
      %v3033 = vrot.slane %v3032, 4
      %v3034 = vrot.slane %v2175, 5
      %v3035 = vsel %vm1322, %v3033, %v3034
      %v3036 = vrot.slane %v3034, 4
      %v3037 = vrot.slane %v2176, 5
      %v3038 = vsel %vm1322, %v3036, %v3037
      %v3039 = vrot.slane %v2909, 5
      %v3040 = vrot.slane %v3039, 4
      %v3041 = vrot.slane %v2178, 5
      %v3042 = vsel %vm1322, %v3040, %v3041
      %v3043 = vrot.slane %v3041, 4
      %v3044 = vrot.slane %v2179, 5
      %v3045 = vsel %vm1322, %v3043, %v3044
      %v3046 = vrot.slane %v2910, 5
      %v3047 = vrot.slane %v3046, 4
      %v3048 = vrot.slane %v2181, 5
      %v3049 = vsel %vm1322, %v3047, %v3048
      %v3050 = vrot.slane %v3048, 4
      %v3051 = vrot.slane %v2182, 5
      %v3052 = vsel %vm1322, %v3050, %v3051
      %v3053 = vrot.slane %v2911, 5
      %v3054 = vrot.slane %v3053, 4
      %v3055 = vrot.slane %v2184, 5
      %v3056 = vsel %vm1322, %v3054, %v3055
      %v3057 = vrot.slane %v3055, 4
      %v3058 = vrot.slane %v2185, 5
      %v3059 = vsel %vm1322, %v3057, %v3058
      %v3060 = vrot.slane %v2912, 5
      %v3061 = vrot.slane %v3060, 4
      %v3062 = vrot.slane %v2187, 5
      %v3063 = vsel %vm1322, %v3061, %v3062
      %v3064 = vrot.slane %v3062, 4
      %v3065 = vrot.slane %v2188, 5
      %v3066 = vsel %vm1322, %v3064, %v3065
      %v3067 = vrot.slane %v2913, 5
      %v3068 = vrot.slane %v3067, 4
      %v3069 = vrot.slane %v2190, 5
      %v3070 = vsel %vm1322, %v3068, %v3069
      %v3071 = vrot.slane %v3069, 4
      %v3072 = vrot.slane %v2191, 5
      %v3073 = vsel %vm1322, %v3071, %v3072
      %s3074 = scalar_lea.vmem %s1, 320
      %v3075 = vld [vmem:[%s3074] sm:$0xf]
      %v3076 = vld [vmem:[%s3074 + $0x4] sm:$0xf]
      %v3077 = vld [vmem:[%s3074 + $0x8] sm:$0xf]
      %v3078 = vld [vmem:[%s3074 + $0xc] sm:$0xf]
      %v3079 = vld [vmem:[%s3074 + $0x10] sm:$0xf]
      %v3080 = vld [vmem:[%s3074 + $0x14] sm:$0xf]
      %v3081 = vld [vmem:[%s3074 + $0x18] sm:$0xf]
      %v3082 = vld [vmem:[%s3074 + $0x1c] sm:$0xf]
      %v3083 = vld [vmem:[%s3074 + $0x20] sm:$0xf]
      %v3084 = vld [vmem:[%s3074 + $0x24] sm:$0xf]
      %v3085 = vld [vmem:[%s3074 + $0x28] sm:$0xf]
      %v3086 = vld [vmem:[%s3074 + $0x2c] sm:$0xf]
      %v3087 = vld [vmem:[%s3074 + $0x30] sm:$0xf]
      %v3088 = vld [vmem:[%s3074 + $0x34] sm:$0xf]
      %v3089 = vld [vmem:[%s3074 + $0x38] sm:$0xf]
      %v3090 = vld [vmem:[%s3074 + $0x3c] sm:$0xf]
      %v3091 = vunpack.c.l.b16 %v2965
      %v3092 = vunpack.c.l.b16 %v2968
      %v3093 = vunpack.c.l.b16 %v2972
      %v3094 = vunpack.c.l.b16 %v2975
      %v3095 = vunpack.c.l.b16 %v2979
      %v3096 = vunpack.c.l.b16 %v2982
      %v3097 = vunpack.c.l.b16 %v2986
      %v3098 = vunpack.c.l.b16 %v2989
      %v3099 = vunpack.c.l.b16 %v2993
      %v3100 = vunpack.c.l.b16 %v2996
      %v3101 = vunpack.c.l.b16 %v3000
      %v3102 = vunpack.c.l.b16 %v3003
      %v3103 = vunpack.c.l.b16 %v3007
      %v3104 = vunpack.c.l.b16 %v3010
      %v3105 = vunpack.c.l.b16 %v3014
      %v3106 = vunpack.c.l.b16 %v3017
      %v3107 = vunpack.c.l.b16 %v3021
      %v3108 = vunpack.c.l.b16 %v3024
      %v3109 = vunpack.c.l.b16 %v3028
      %v3110 = vunpack.c.l.b16 %v3031
      %v3111 = vunpack.c.l.b16 %v3035
      %v3112 = vunpack.c.l.b16 %v3038
      %v3113 = vunpack.c.l.b16 %v3042
      %v3114 = vunpack.c.l.b16 %v3045
      %v3115 = vunpack.c.l.b16 %v3049
      %v3116 = vunpack.c.l.b16 %v3052
      %v3117 = vunpack.c.l.b16 %v3056
      %v3118 = vunpack.c.l.b16 %v3059
      %v3119 = vunpack.c.l.b16 %v3063
      %v3120 = vunpack.c.l.b16 %v3066
      %v3121 = vunpack.c.l.b16 %v3070
      %v3122 = vunpack.c.l.b16 %v3073
      %v3123 = vpack.c.b16 %v3092, %v3091
      %v3124 = vpack.c.b16 %v3094, %v3093
      %v3125 = vpack.c.b16 %v3096, %v3095
      %v3126 = vpack.c.b16 %v3098, %v3097
      %v3127 = vpack.c.b16 %v3100, %v3099
      %v3128 = vpack.c.b16 %v3102, %v3101
      %v3129 = vpack.c.b16 %v3104, %v3103
      %v3130 = vpack.c.b16 %v3106, %v3105
      %v3131 = vpack.c.b16 %v3108, %v3107
      %v3132 = vpack.c.b16 %v3110, %v3109
      %v3133 = vpack.c.b16 %v3112, %v3111
      %v3134 = vpack.c.b16 %v3114, %v3113
      %v3135 = vpack.c.b16 %v3116, %v3115
      %v3136 = vpack.c.b16 %v3118, %v3117
      %v3137 = vpack.c.b16 %v3120, %v3119
      %v3138 = vpack.c.b16 %v3122, %v3121
      %v3171 = vunpack.c.l.b16 %v3075
      %v3172 = vunpack.c.l.b16 %v3076
      %v3173 = vunpack.c.l.b16 %v3077
      %v3174 = vunpack.c.l.b16 %v3078
      %v3175 = vunpack.c.l.b16 %v3079
      %v3176 = vunpack.c.l.b16 %v3080
      %v3177 = vunpack.c.l.b16 %v3081
      %v3178 = vunpack.c.l.b16 %v3082
      %v3179 = vunpack.c.l.b16 %v3083
      %v3180 = vunpack.c.l.b16 %v3084
      %v3181 = vunpack.c.l.b16 %v3085
      %v3182 = vunpack.c.l.b16 %v3086
      %v3183 = vunpack.c.l.b16 %v3087
      %v3184 = vunpack.c.l.b16 %v3088
      %v3185 = vunpack.c.l.b16 %v3089
      %v3186 = vunpack.c.l.b16 %v3090
      %v3187 = vpack.c.b16 %v3172, %v3171
      %v3188 = vpack.c.b16 %v3174, %v3173
      %v3189 = vpack.c.b16 %v3176, %v3175
      %v3190 = vpack.c.b16 %v3178, %v3177
      %v3191 = vpack.c.b16 %v3180, %v3179
      %v3192 = vpack.c.b16 %v3182, %v3181
      %v3193 = vpack.c.b16 %v3184, %v3183
      %v3194 = vpack.c.b16 %v3186, %v3185
      %3203 = vmatprep.subr.bf16.mxu0 0
      %3204 = vmatpush1.bf16.msra.mxu0 %v3194
      %3205 = vmatprep.subr.bf16.mxu0 0
      %3206 = vmatpush1.bf16.msra.mxu0 %v3193
      %3207 = vmatprep.subr.bf16.mxu0 0
      %3208 = vmatpush1.bf16.msra.mxu0 %v3192
      %3209 = vmatprep.subr.bf16.mxu0 0
      %3210 = vmatpush1.bf16.msra.mxu0 %v3191
      %3211 = vmatprep.subr.bf16.mxu0 0
      %3212 = vmatpush1.bf16.msra.mxu0 %v3190
      %3213 = vmatprep.subr.bf16.mxu0 0
      %3214 = vmatpush1.bf16.msra.mxu0 %v3189
      %3215 = vmatprep.subr.bf16.mxu0 0
      %3216 = vmatpush1.bf16.msra.mxu0 %v3188
      %3217 = vmatprep.subr.bf16.mxu0 0
      %3218 = vmatpush1.bf16.msra.mxu0 %v3187
      %3219 = vmatprep.subr.bf16.mxu0 0
      %3220 = vmatpush2.bf16.msra.mxu0 0
      %3221 = vmatprep.subr.bf16.mxu0 0
      %3222 = vmatpush2.bf16.msra.mxu0 0
      %3223 = vmatprep.subr.bf16.mxu0 0
      %3224 = vmatpush2.bf16.msra.mxu0 0
      %3225 = vmatprep.subr.bf16.mxu0 0
      %3226 = vmatpush2.bf16.msra.mxu0 0
      %3227 = vmatprep.subr.bf16.mxu0 0
      %3228 = vmatpush2.bf16.msra.mxu0 0
      %3229 = vmatprep.subr.bf16.mxu0 0
      %3230 = vmatpush2.bf16.msra.mxu0 0
      %3231 = vmatprep.subr.bf16.mxu0 0
      %3232 = vmatpush2.bf16.msra.mxu0 0
      %3233 = vmatprep.subr.bf16.mxu0 0
      %3234 = vmatpush2.bf16.msra.mxu0 0
      %3235 = vmatprep.mubr.bf16.mxu0 0
      %3236 = vmatmul.mubr.bf16.gmra.mxu0 %v3123
      %v3237 = vpop.f32.mrf.mxu0
      %v3238 = vadd.f32 0.0, %v3237
      %v3239 = vpop.f32.mrf.mxu0
      %v3240 = vpop.f32.mrf.mxu0
      %v3241 = vadd.f32 0.0, %v3240
      %v3242 = vpop.f32.mrf.mxu0
      %3243 = vmatprep.mubr.bf16.mxu0 0
      %3244 = vmatmul.mubr.bf16.gmra.mxu0 %v3124
      %v3245 = vpop.f32.mrf.mxu0
      %v3246 = vadd.f32 0.0, %v3245
      %v3247 = vpop.f32.mrf.mxu0
      %v3248 = vpop.f32.mrf.mxu0
      %v3249 = vadd.f32 0.0, %v3248
      %v3250 = vpop.f32.mrf.mxu0
      %3251 = vmatprep.mubr.bf16.mxu0 0
      %3252 = vmatmul.mubr.bf16.gmra.mxu0 %v3125
      %v3253 = vpop.f32.mrf.mxu0
      %v3254 = vadd.f32 0.0, %v3253
      %v3255 = vpop.f32.mrf.mxu0
      %v3256 = vpop.f32.mrf.mxu0
      %v3257 = vadd.f32 0.0, %v3256
      %v3258 = vpop.f32.mrf.mxu0
      %3259 = vmatprep.mubr.bf16.mxu0 0
      %3260 = vmatmul.mubr.bf16.gmra.mxu0 %v3126
      %v3261 = vpop.f32.mrf.mxu0
      %v3262 = vadd.f32 0.0, %v3261
      %v3263 = vpop.f32.mrf.mxu0
      %v3264 = vpop.f32.mrf.mxu0
      %v3265 = vadd.f32 0.0, %v3264
      %v3266 = vpop.f32.mrf.mxu0
      %3267 = vmatprep.mubr.bf16.mxu0 0
      %3268 = vmatmul.mubr.bf16.gmra.mxu0 %v3127
      %v3269 = vpop.f32.mrf.mxu0
      %v3270 = vadd.f32 0.0, %v3269
      %v3271 = vpop.f32.mrf.mxu0
      %v3272 = vpop.f32.mrf.mxu0
      %v3273 = vadd.f32 0.0, %v3272
      %v3274 = vpop.f32.mrf.mxu0
      %3275 = vmatprep.mubr.bf16.mxu0 0
      %3276 = vmatmul.mubr.bf16.gmra.mxu0 %v3128
      %v3277 = vpop.f32.mrf.mxu0
      %v3278 = vadd.f32 0.0, %v3277
      %v3279 = vpop.f32.mrf.mxu0
      %v3280 = vpop.f32.mrf.mxu0
      %v3281 = vadd.f32 0.0, %v3280
      %v3282 = vpop.f32.mrf.mxu0
      %3283 = vmatprep.mubr.bf16.mxu0 0
      %3284 = vmatmul.mubr.bf16.gmra.mxu0 %v3129
      %v3285 = vpop.f32.mrf.mxu0
      %v3286 = vadd.f32 0.0, %v3285
      %v3287 = vpop.f32.mrf.mxu0
      %v3288 = vpop.f32.mrf.mxu0
      %v3289 = vadd.f32 0.0, %v3288
      %v3290 = vpop.f32.mrf.mxu0
      %3291 = vmatprep.mubr.bf16.mxu0 0
      %3292 = vmatmul.mubr.bf16.gmra.mxu0 %v3130
      %v3293 = vpop.f32.mrf.mxu0
      %v3294 = vadd.f32 0.0, %v3293
      %v3295 = vpop.f32.mrf.mxu0
      %v3296 = vpop.f32.mrf.mxu0
      %v3297 = vadd.f32 0.0, %v3296
      %v3298 = vpop.f32.mrf.mxu0
      %3299 = vmatprep.mubr.bf16.mxu0 0
      %3300 = vmatmul.mubr.bf16.gmra.mxu0 %v3131
      %v3301 = vpop.f32.mrf.mxu0
      %v3302 = vadd.f32 0.0, %v3301
      %v3303 = vpop.f32.mrf.mxu0
      %v3304 = vpop.f32.mrf.mxu0
      %v3305 = vadd.f32 0.0, %v3304
      %v3306 = vpop.f32.mrf.mxu0
      %3307 = vmatprep.mubr.bf16.mxu0 0
      %3308 = vmatmul.mubr.bf16.gmra.mxu0 %v3132
      %v3309 = vpop.f32.mrf.mxu0
      %v3310 = vadd.f32 0.0, %v3309
      %v3311 = vpop.f32.mrf.mxu0
      %v3312 = vpop.f32.mrf.mxu0
      %v3313 = vadd.f32 0.0, %v3312
      %v3314 = vpop.f32.mrf.mxu0
      %3315 = vmatprep.mubr.bf16.mxu0 0
      %3316 = vmatmul.mubr.bf16.gmra.mxu0 %v3133
      %v3317 = vpop.f32.mrf.mxu0
      %v3318 = vadd.f32 0.0, %v3317
      %v3319 = vpop.f32.mrf.mxu0
      %v3320 = vpop.f32.mrf.mxu0
      %v3321 = vadd.f32 0.0, %v3320
      %v3322 = vpop.f32.mrf.mxu0
      %3323 = vmatprep.mubr.bf16.mxu0 0
      %3324 = vmatmul.mubr.bf16.gmra.mxu0 %v3134
      %v3325 = vpop.f32.mrf.mxu0
      %v3326 = vadd.f32 0.0, %v3325
      %v3327 = vpop.f32.mrf.mxu0
      %v3328 = vpop.f32.mrf.mxu0
      %v3329 = vadd.f32 0.0, %v3328
      %v3330 = vpop.f32.mrf.mxu0
      %3331 = vmatprep.mubr.bf16.mxu0 0
      %3332 = vmatmul.mubr.bf16.gmra.mxu0 %v3135
      %v3333 = vpop.f32.mrf.mxu0
      %v3334 = vadd.f32 0.0, %v3333
      %v3335 = vpop.f32.mrf.mxu0
      %v3336 = vpop.f32.mrf.mxu0
      %v3337 = vadd.f32 0.0, %v3336
      %v3338 = vpop.f32.mrf.mxu0
      %3339 = vmatprep.mubr.bf16.mxu0 0
      %3340 = vmatmul.mubr.bf16.gmra.mxu0 %v3136
      %v3341 = vpop.f32.mrf.mxu0
      %v3342 = vadd.f32 0.0, %v3341
      %v3343 = vpop.f32.mrf.mxu0
      %v3344 = vpop.f32.mrf.mxu0
      %v3345 = vadd.f32 0.0, %v3344
      %v3346 = vpop.f32.mrf.mxu0
      %3347 = vmatprep.mubr.bf16.mxu0 0
      %3348 = vmatmul.mubr.bf16.gmra.mxu0 %v3137
      %v3349 = vpop.f32.mrf.mxu0
      %v3350 = vadd.f32 0.0, %v3349
      %v3351 = vpop.f32.mrf.mxu0
      %v3352 = vpop.f32.mrf.mxu0
      %v3353 = vadd.f32 0.0, %v3352
      %v3354 = vpop.f32.mrf.mxu0
      %3355 = vmatprep.mubr.bf16.mxu0 0
      %3356 = vmatmul.mubr.bf16.gmra.mxu0 %v3138
      %v3357 = vpop.f32.mrf.mxu0
      %v3358 = vadd.f32 0.0, %v3357
      %v3359 = vpop.f32.mrf.mxu0
      %v3360 = vpop.f32.mrf.mxu0
      %v3361 = vadd.f32 0.0, %v3360
      %v3362 = vpop.f32.mrf.mxu0
      %3363 = vdwg.mxu0
      %v3364 = vadd.f32 %v2866, %v3238
      %v3365 = vadd.f32 %v2867, %v3241
      %v3366 = vadd.f32 %v2868, %v3246
      %v3367 = vadd.f32 %v2869, %v3249
      %v3368 = vadd.f32 %v2870, %v3254
      %v3369 = vadd.f32 %v2871, %v3257
      %v3370 = vadd.f32 %v2872, %v3262
      %v3371 = vadd.f32 %v2873, %v3265
      %v3372 = vadd.f32 %v2874, %v3270
      %v3373 = vadd.f32 %v2875, %v3273
      %v3374 = vadd.f32 %v2876, %v3278
      %v3375 = vadd.f32 %v2877, %v3281
      %v3376 = vadd.f32 %v2878, %v3286
      %v3377 = vadd.f32 %v2879, %v3289
      %v3378 = vadd.f32 %v2880, %v3294
      %v3379 = vadd.f32 %v2881, %v3297
      %v3380 = vadd.f32 %v2882, %v3302
      %v3381 = vadd.f32 %v2883, %v3305
      %v3382 = vadd.f32 %v2884, %v3310
      %v3383 = vadd.f32 %v2885, %v3313
      %v3384 = vadd.f32 %v2886, %v3318
      %v3385 = vadd.f32 %v2887, %v3321
      %v3386 = vadd.f32 %v2888, %v3326
      %v3387 = vadd.f32 %v2889, %v3329
      %v3388 = vadd.f32 %v2890, %v3334
      %v3389 = vadd.f32 %v2891, %v3337
      %v3390 = vadd.f32 %v2892, %v3342
      %v3391 = vadd.f32 %v2893, %v3345
      %v3392 = vadd.f32 %v2894, %v3350
      %v3393 = vadd.f32 %v2895, %v3353
      %v3394 = vadd.f32 %v2896, %v3358
      %v3395 = vadd.f32 %v2897, %v3361
      %s3396 = scalar_lea.vmem %s219, 24
      %v3397 = vld [vmem:[%s3396] sm:$0xf]
      %v3398 = vld [vmem:[%s3396 + $0x4] sm:$0xf]
      %v3399 = vld [vmem:[%s3396 + $0xc] sm:$0xf]
      %v3400 = vld [vmem:[%s3396 + $0x10] sm:$0xf]
      %v3401 = vld [vmem:[%s3396 + $0x18] sm:$0xf]
      %v3402 = vld [vmem:[%s3396 + $0x1c] sm:$0xf]
      %v3403 = vld [vmem:[%s3396 + $0x24] sm:$0xf]
      %v3404 = vld [vmem:[%s3396 + $0x28] sm:$0xf]
      %v3405 = vld [vmem:[%s3396 + $0x30] sm:$0xf]
      %v3406 = vld [vmem:[%s3396 + $0x34] sm:$0xf]
      %v3407 = vld [vmem:[%s3396 + $0x3c] sm:$0xf]
      %v3408 = vld [vmem:[%s3396 + $0x40] sm:$0xf]
      %v3409 = vld [vmem:[%s3396 + $0x48] sm:$0xf]
      %v3410 = vld [vmem:[%s3396 + $0x4c] sm:$0xf]
      %v3411 = vld [vmem:[%s3396 + $0x54] sm:$0xf]
      %v3412 = vld [vmem:[%s3396 + $0x58] sm:$0xf]
      %v3413 = vld [vmem:[%s3396 + $0x60] sm:$0xf]
      %v3414 = vld [vmem:[%s3396 + $0x64] sm:$0xf]
      %v3415 = vld [vmem:[%s3396 + $0x6c] sm:$0xf]
      %v3416 = vld [vmem:[%s3396 + $0x70] sm:$0xf]
      %v3417 = vld [vmem:[%s3396 + $0x78] sm:$0xf]
      %v3418 = vld [vmem:[%s3396 + $0x7c] sm:$0xf]
      %v3419 = vld [vmem:[%s3396 + $0x84] sm:$0xf]
      %v3420 = vld [vmem:[%s3396 + $0x88] sm:$0xf]
      %v3421 = vld [vmem:[%s3396 + $0x90] sm:$0xf]
      %v3422 = vld [vmem:[%s3396 + $0x94] sm:$0xf]
      %v3423 = vld [vmem:[%s3396 + $0x9c] sm:$0xf]
      %v3424 = vld [vmem:[%s3396 + $0xa0] sm:$0xf]
      %v3425 = vld [vmem:[%s3396 + $0xa8] sm:$0xf]
      %v3426 = vld [vmem:[%s3396 + $0xac] sm:$0xf]
      %v3427 = vld [vmem:[%s3396 + $0xb4] sm:$0xf]
      %v3428 = vld [vmem:[%s3396 + $0xb8] sm:$0xf]
      %s3429 = scalar_lea.vmem %s1, 384
      %v3430 = vld [vmem:[%s3429] sm:$0xf]
      %v3431 = vld [vmem:[%s3429 + $0x4] sm:$0xf]
      %v3432 = vld [vmem:[%s3429 + $0x8] sm:$0xf]
      %v3433 = vld [vmem:[%s3429 + $0xc] sm:$0xf]
      %v3434 = vld [vmem:[%s3429 + $0x10] sm:$0xf]
      %v3435 = vld [vmem:[%s3429 + $0x14] sm:$0xf]
      %v3436 = vld [vmem:[%s3429 + $0x18] sm:$0xf]
      %v3437 = vld [vmem:[%s3429 + $0x1c] sm:$0xf]
      %v3438 = vld [vmem:[%s3429 + $0x20] sm:$0xf]
      %v3439 = vld [vmem:[%s3429 + $0x24] sm:$0xf]
      %v3440 = vld [vmem:[%s3429 + $0x28] sm:$0xf]
      %v3441 = vld [vmem:[%s3429 + $0x2c] sm:$0xf]
      %v3442 = vld [vmem:[%s3429 + $0x30] sm:$0xf]
      %v3443 = vld [vmem:[%s3429 + $0x34] sm:$0xf]
      %v3444 = vld [vmem:[%s3429 + $0x38] sm:$0xf]
      %v3445 = vld [vmem:[%s3429 + $0x3c] sm:$0xf]
      %v3478 = vunpack.c.l.b16 %v3397
      %v3479 = vunpack.c.l.b16 %v3398
      %v3480 = vunpack.c.l.b16 %v3399
      %v3481 = vunpack.c.l.b16 %v3400
      %v3482 = vunpack.c.l.b16 %v3401
      %v3483 = vunpack.c.l.b16 %v3402
      %v3484 = vunpack.c.l.b16 %v3403
      %v3485 = vunpack.c.l.b16 %v3404
      %v3486 = vunpack.c.l.b16 %v3405
      %v3487 = vunpack.c.l.b16 %v3406
      %v3488 = vunpack.c.l.b16 %v3407
      %v3489 = vunpack.c.l.b16 %v3408
      %v3490 = vunpack.c.l.b16 %v3409
      %v3491 = vunpack.c.l.b16 %v3410
      %v3492 = vunpack.c.l.b16 %v3411
      %v3493 = vunpack.c.l.b16 %v3412
      %v3494 = vunpack.c.l.b16 %v3413
      %v3495 = vunpack.c.l.b16 %v3414
      %v3496 = vunpack.c.l.b16 %v3415
      %v3497 = vunpack.c.l.b16 %v3416
      %v3498 = vunpack.c.l.b16 %v3417
      %v3499 = vunpack.c.l.b16 %v3418
      %v3500 = vunpack.c.l.b16 %v3419
      %v3501 = vunpack.c.l.b16 %v3420
      %v3502 = vunpack.c.l.b16 %v3421
      %v3503 = vunpack.c.l.b16 %v3422
      %v3504 = vunpack.c.l.b16 %v3423
      %v3505 = vunpack.c.l.b16 %v3424
      %v3506 = vunpack.c.l.b16 %v3425
      %v3507 = vunpack.c.l.b16 %v3426
      %v3508 = vunpack.c.l.b16 %v3427
      %v3509 = vunpack.c.l.b16 %v3428
      %v3510 = vpack.c.b16 %v3479, %v3478
      %v3511 = vpack.c.b16 %v3481, %v3480
      %v3512 = vpack.c.b16 %v3483, %v3482
      %v3513 = vpack.c.b16 %v3485, %v3484
      %v3514 = vpack.c.b16 %v3487, %v3486
      %v3515 = vpack.c.b16 %v3489, %v3488
      %v3516 = vpack.c.b16 %v3491, %v3490
      %v3517 = vpack.c.b16 %v3493, %v3492
      %v3518 = vpack.c.b16 %v3495, %v3494
      %v3519 = vpack.c.b16 %v3497, %v3496
      %v3520 = vpack.c.b16 %v3499, %v3498
      %v3521 = vpack.c.b16 %v3501, %v3500
      %v3522 = vpack.c.b16 %v3503, %v3502
      %v3523 = vpack.c.b16 %v3505, %v3504
      %v3524 = vpack.c.b16 %v3507, %v3506
      %v3525 = vpack.c.b16 %v3509, %v3508
      %v3558 = vunpack.c.l.b16 %v3430
      %v3559 = vunpack.c.l.b16 %v3431
      %v3560 = vunpack.c.l.b16 %v3432
      %v3561 = vunpack.c.l.b16 %v3433
      %v3562 = vunpack.c.l.b16 %v3434
      %v3563 = vunpack.c.l.b16 %v3435
      %v3564 = vunpack.c.l.b16 %v3436
      %v3565 = vunpack.c.l.b16 %v3437
      %v3566 = vunpack.c.l.b16 %v3438
      %v3567 = vunpack.c.l.b16 %v3439
      %v3568 = vunpack.c.l.b16 %v3440
      %v3569 = vunpack.c.l.b16 %v3441
      %v3570 = vunpack.c.l.b16 %v3442
      %v3571 = vunpack.c.l.b16 %v3443
      %v3572 = vunpack.c.l.b16 %v3444
      %v3573 = vunpack.c.l.b16 %v3445
      %v3574 = vpack.c.b16 %v3559, %v3558
      %v3575 = vpack.c.b16 %v3561, %v3560
      %v3576 = vpack.c.b16 %v3563, %v3562
      %v3577 = vpack.c.b16 %v3565, %v3564
      %v3578 = vpack.c.b16 %v3567, %v3566
      %v3579 = vpack.c.b16 %v3569, %v3568
      %v3580 = vpack.c.b16 %v3571, %v3570
      %v3581 = vpack.c.b16 %v3573, %v3572
      %3590 = vmatprep.subr.bf16.mxu0 0
      %3591 = vmatpush1.bf16.msra.mxu0 %v3581
      %3592 = vmatprep.subr.bf16.mxu0 0
      %3593 = vmatpush1.bf16.msra.mxu0 %v3580
      %3594 = vmatprep.subr.bf16.mxu0 0
      %3595 = vmatpush1.bf16.msra.mxu0 %v3579
      %3596 = vmatprep.subr.bf16.mxu0 0
      %3597 = vmatpush1.bf16.msra.mxu0 %v3578
      %3598 = vmatprep.subr.bf16.mxu0 0
      %3599 = vmatpush1.bf16.msra.mxu0 %v3577
      %3600 = vmatprep.subr.bf16.mxu0 0
      %3601 = vmatpush1.bf16.msra.mxu0 %v3576
      %3602 = vmatprep.subr.bf16.mxu0 0
      %3603 = vmatpush1.bf16.msra.mxu0 %v3575
      %3604 = vmatprep.subr.bf16.mxu0 0
      %3605 = vmatpush1.bf16.msra.mxu0 %v3574
      %3606 = vmatprep.subr.bf16.mxu0 0
      %3607 = vmatpush2.bf16.msra.mxu0 0
      %3608 = vmatprep.subr.bf16.mxu0 0
      %3609 = vmatpush2.bf16.msra.mxu0 0
      %3610 = vmatprep.subr.bf16.mxu0 0
      %3611 = vmatpush2.bf16.msra.mxu0 0
      %3612 = vmatprep.subr.bf16.mxu0 0
      %3613 = vmatpush2.bf16.msra.mxu0 0
      %3614 = vmatprep.subr.bf16.mxu0 0
      %3615 = vmatpush2.bf16.msra.mxu0 0
      %3616 = vmatprep.subr.bf16.mxu0 0
      %3617 = vmatpush2.bf16.msra.mxu0 0
      %3618 = vmatprep.subr.bf16.mxu0 0
      %3619 = vmatpush2.bf16.msra.mxu0 0
      %3620 = vmatprep.subr.bf16.mxu0 0
      %3621 = vmatpush2.bf16.msra.mxu0 0
      %3622 = vmatprep.mubr.bf16.mxu0 0
      %3623 = vmatmul.mubr.bf16.gmra.mxu0 %v3510
      %v3624 = vpop.f32.mrf.mxu0
      %v3625 = vadd.f32 0.0, %v3624
      %v3626 = vpop.f32.mrf.mxu0
      %v3627 = vpop.f32.mrf.mxu0
      %v3628 = vadd.f32 0.0, %v3627
      %v3629 = vpop.f32.mrf.mxu0
      %3630 = vmatprep.mubr.bf16.mxu0 0
      %3631 = vmatmul.mubr.bf16.gmra.mxu0 %v3511
      %v3632 = vpop.f32.mrf.mxu0
      %v3633 = vadd.f32 0.0, %v3632
      %v3634 = vpop.f32.mrf.mxu0
      %v3635 = vpop.f32.mrf.mxu0
      %v3636 = vadd.f32 0.0, %v3635
      %v3637 = vpop.f32.mrf.mxu0
      %3638 = vmatprep.mubr.bf16.mxu0 0
      %3639 = vmatmul.mubr.bf16.gmra.mxu0 %v3512
      %v3640 = vpop.f32.mrf.mxu0
      %v3641 = vadd.f32 0.0, %v3640
      %v3642 = vpop.f32.mrf.mxu0
      %v3643 = vpop.f32.mrf.mxu0
      %v3644 = vadd.f32 0.0, %v3643
      %v3645 = vpop.f32.mrf.mxu0
      %3646 = vmatprep.mubr.bf16.mxu0 0
      %3647 = vmatmul.mubr.bf16.gmra.mxu0 %v3513
      %v3648 = vpop.f32.mrf.mxu0
      %v3649 = vadd.f32 0.0, %v3648
      %v3650 = vpop.f32.mrf.mxu0
      %v3651 = vpop.f32.mrf.mxu0
      %v3652 = vadd.f32 0.0, %v3651
      %v3653 = vpop.f32.mrf.mxu0
      %3654 = vmatprep.mubr.bf16.mxu0 0
      %3655 = vmatmul.mubr.bf16.gmra.mxu0 %v3514
      %v3656 = vpop.f32.mrf.mxu0
      %v3657 = vadd.f32 0.0, %v3656
      %v3658 = vpop.f32.mrf.mxu0
      %v3659 = vpop.f32.mrf.mxu0
      %v3660 = vadd.f32 0.0, %v3659
      %v3661 = vpop.f32.mrf.mxu0
      %3662 = vmatprep.mubr.bf16.mxu0 0
      %3663 = vmatmul.mubr.bf16.gmra.mxu0 %v3515
      %v3664 = vpop.f32.mrf.mxu0
      %v3665 = vadd.f32 0.0, %v3664
      %v3666 = vpop.f32.mrf.mxu0
      %v3667 = vpop.f32.mrf.mxu0
      %v3668 = vadd.f32 0.0, %v3667
      %v3669 = vpop.f32.mrf.mxu0
      %3670 = vmatprep.mubr.bf16.mxu0 0
      %3671 = vmatmul.mubr.bf16.gmra.mxu0 %v3516
      %v3672 = vpop.f32.mrf.mxu0
      %v3673 = vadd.f32 0.0, %v3672
      %v3674 = vpop.f32.mrf.mxu0
      %v3675 = vpop.f32.mrf.mxu0
      %v3676 = vadd.f32 0.0, %v3675
      %v3677 = vpop.f32.mrf.mxu0
      %3678 = vmatprep.mubr.bf16.mxu0 0
      %3679 = vmatmul.mubr.bf16.gmra.mxu0 %v3517
      %v3680 = vpop.f32.mrf.mxu0
      %v3681 = vadd.f32 0.0, %v3680
      %v3682 = vpop.f32.mrf.mxu0
      %v3683 = vpop.f32.mrf.mxu0
      %v3684 = vadd.f32 0.0, %v3683
      %v3685 = vpop.f32.mrf.mxu0
      %3686 = vmatprep.mubr.bf16.mxu0 0
      %3687 = vmatmul.mubr.bf16.gmra.mxu0 %v3518
      %v3688 = vpop.f32.mrf.mxu0
      %v3689 = vadd.f32 0.0, %v3688
      %v3690 = vpop.f32.mrf.mxu0
      %v3691 = vpop.f32.mrf.mxu0
      %v3692 = vadd.f32 0.0, %v3691
      %v3693 = vpop.f32.mrf.mxu0
      %3694 = vmatprep.mubr.bf16.mxu0 0
      %3695 = vmatmul.mubr.bf16.gmra.mxu0 %v3519
      %v3696 = vpop.f32.mrf.mxu0
      %v3697 = vadd.f32 0.0, %v3696
      %v3698 = vpop.f32.mrf.mxu0
      %v3699 = vpop.f32.mrf.mxu0
      %v3700 = vadd.f32 0.0, %v3699
      %v3701 = vpop.f32.mrf.mxu0
      %3702 = vmatprep.mubr.bf16.mxu0 0
      %3703 = vmatmul.mubr.bf16.gmra.mxu0 %v3520
      %v3704 = vpop.f32.mrf.mxu0
      %v3705 = vadd.f32 0.0, %v3704
      %v3706 = vpop.f32.mrf.mxu0
      %v3707 = vpop.f32.mrf.mxu0
      %v3708 = vadd.f32 0.0, %v3707
      %v3709 = vpop.f32.mrf.mxu0
      %3710 = vmatprep.mubr.bf16.mxu0 0
      %3711 = vmatmul.mubr.bf16.gmra.mxu0 %v3521
      %v3712 = vpop.f32.mrf.mxu0
      %v3713 = vadd.f32 0.0, %v3712
      %v3714 = vpop.f32.mrf.mxu0
      %v3715 = vpop.f32.mrf.mxu0
      %v3716 = vadd.f32 0.0, %v3715
      %v3717 = vpop.f32.mrf.mxu0
      %3718 = vmatprep.mubr.bf16.mxu0 0
      %3719 = vmatmul.mubr.bf16.gmra.mxu0 %v3522
      %v3720 = vpop.f32.mrf.mxu0
      %v3721 = vadd.f32 0.0, %v3720
      %v3722 = vpop.f32.mrf.mxu0
      %v3723 = vpop.f32.mrf.mxu0
      %v3724 = vadd.f32 0.0, %v3723
      %v3725 = vpop.f32.mrf.mxu0
      %3726 = vmatprep.mubr.bf16.mxu0 0
      %3727 = vmatmul.mubr.bf16.gmra.mxu0 %v3523
      %v3728 = vpop.f32.mrf.mxu0
      %v3729 = vadd.f32 0.0, %v3728
      %v3730 = vpop.f32.mrf.mxu0
      %v3731 = vpop.f32.mrf.mxu0
      %v3732 = vadd.f32 0.0, %v3731
      %v3733 = vpop.f32.mrf.mxu0
      %3734 = vmatprep.mubr.bf16.mxu0 0
      %3735 = vmatmul.mubr.bf16.gmra.mxu0 %v3524
      %v3736 = vpop.f32.mrf.mxu0
      %v3737 = vadd.f32 0.0, %v3736
      %v3738 = vpop.f32.mrf.mxu0
      %v3739 = vpop.f32.mrf.mxu0
      %v3740 = vadd.f32 0.0, %v3739
      %v3741 = vpop.f32.mrf.mxu0
      %3742 = vmatprep.mubr.bf16.mxu0 0
      %3743 = vmatmul.mubr.bf16.gmra.mxu0 %v3525
      %v3744 = vpop.f32.mrf.mxu0
      %v3745 = vadd.f32 0.0, %v3744
      %v3746 = vpop.f32.mrf.mxu0
      %v3747 = vpop.f32.mrf.mxu0
      %v3748 = vadd.f32 0.0, %v3747
      %v3749 = vpop.f32.mrf.mxu0
      %3750 = vdwg.mxu0
      %v3751 = vadd.f32 %v3364, %v3625
      %v3752 = vadd.f32 %v3365, %v3628
      %v3753 = vadd.f32 %v3366, %v3633
      %v3754 = vadd.f32 %v3367, %v3636
      %v3755 = vadd.f32 %v3368, %v3641
      %v3756 = vadd.f32 %v3369, %v3644
      %v3757 = vadd.f32 %v3370, %v3649
      %v3758 = vadd.f32 %v3371, %v3652
      %v3759 = vadd.f32 %v3372, %v3657
      %v3760 = vadd.f32 %v3373, %v3660
      %v3761 = vadd.f32 %v3374, %v3665
      %v3762 = vadd.f32 %v3375, %v3668
      %v3763 = vadd.f32 %v3376, %v3673
      %v3764 = vadd.f32 %v3377, %v3676
      %v3765 = vadd.f32 %v3378, %v3681
      %v3766 = vadd.f32 %v3379, %v3684
      %v3767 = vadd.f32 %v3380, %v3689
      %v3768 = vadd.f32 %v3381, %v3692
      %v3769 = vadd.f32 %v3382, %v3697
      %v3770 = vadd.f32 %v3383, %v3700
      %v3771 = vadd.f32 %v3384, %v3705
      %v3772 = vadd.f32 %v3385, %v3708
      %v3773 = vadd.f32 %v3386, %v3713
      %v3774 = vadd.f32 %v3387, %v3716
      %v3775 = vadd.f32 %v3388, %v3721
      %v3776 = vadd.f32 %v3389, %v3724
      %v3777 = vadd.f32 %v3390, %v3729
      %v3778 = vadd.f32 %v3391, %v3732
      %v3779 = vadd.f32 %v3392, %v3737
      %v3780 = vadd.f32 %v3393, %v3740
      %v3781 = vadd.f32 %v3394, %v3745
      %v3782 = vadd.f32 %v3395, %v3748
      %v3783 = vld [vmem:[%s3396] sm:$0xf]
      %v3784 = vld [vmem:[%s3396 + $0x4] sm:$0xf]
      %v3785 = vld [vmem:[%s3396 + $0x8] sm:$0x1]
      %v3786 = vld [vmem:[%s3396 + $0xc] sm:$0xf]
      %v3787 = vld [vmem:[%s3396 + $0x10] sm:$0xf]
      %v3788 = vld [vmem:[%s3396 + $0x14] sm:$0x1]
      %v3789 = vld [vmem:[%s3396 + $0x18] sm:$0xf]
      %v3790 = vld [vmem:[%s3396 + $0x1c] sm:$0xf]
      %v3791 = vld [vmem:[%s3396 + $0x20] sm:$0x1]
      %v3792 = vld [vmem:[%s3396 + $0x24] sm:$0xf]
      %v3793 = vld [vmem:[%s3396 + $0x28] sm:$0xf]
      %v3794 = vld [vmem:[%s3396 + $0x2c] sm:$0x1]
      %v3795 = vld [vmem:[%s3396 + $0x30] sm:$0xf]
      %v3796 = vld [vmem:[%s3396 + $0x34] sm:$0xf]
      %v3797 = vld [vmem:[%s3396 + $0x38] sm:$0x1]
      %v3798 = vld [vmem:[%s3396 + $0x3c] sm:$0xf]
      %v3799 = vld [vmem:[%s3396 + $0x40] sm:$0xf]
      %v3800 = vld [vmem:[%s3396 + $0x44] sm:$0x1]
      %v3801 = vld [vmem:[%s3396 + $0x48] sm:$0xf]
      %v3802 = vld [vmem:[%s3396 + $0x4c] sm:$0xf]
      %v3803 = vld [vmem:[%s3396 + $0x50] sm:$0x1]
      %v3804 = vld [vmem:[%s3396 + $0x54] sm:$0xf]
      %v3805 = vld [vmem:[%s3396 + $0x58] sm:$0xf]
      %v3806 = vld [vmem:[%s3396 + $0x5c] sm:$0x1]
      %v3807 = vld [vmem:[%s3396 + $0x60] sm:$0xf]
      %v3808 = vld [vmem:[%s3396 + $0x64] sm:$0xf]
      %v3809 = vld [vmem:[%s3396 + $0x68] sm:$0x1]
      %v3810 = vld [vmem:[%s3396 + $0x6c] sm:$0xf]
      %v3811 = vld [vmem:[%s3396 + $0x70] sm:$0xf]
      %v3812 = vld [vmem:[%s3396 + $0x74] sm:$0x1]
      %v3813 = vld [vmem:[%s3396 + $0x78] sm:$0xf]
      %v3814 = vld [vmem:[%s3396 + $0x7c] sm:$0xf]
      %v3815 = vld [vmem:[%s3396 + $0x80] sm:$0x1]
      %v3816 = vld [vmem:[%s3396 + $0x84] sm:$0xf]
      %v3817 = vld [vmem:[%s3396 + $0x88] sm:$0xf]
      %v3818 = vld [vmem:[%s3396 + $0x8c] sm:$0x1]
      %v3819 = vld [vmem:[%s3396 + $0x90] sm:$0xf]
      %v3820 = vld [vmem:[%s3396 + $0x94] sm:$0xf]
      %v3821 = vld [vmem:[%s3396 + $0x98] sm:$0x1]
      %v3822 = vld [vmem:[%s3396 + $0x9c] sm:$0xf]
      %v3823 = vld [vmem:[%s3396 + $0xa0] sm:$0xf]
      %v3824 = vld [vmem:[%s3396 + $0xa4] sm:$0x1]
      %v3825 = vld [vmem:[%s3396 + $0xa8] sm:$0xf]
      %v3826 = vld [vmem:[%s3396 + $0xac] sm:$0xf]
      %v3827 = vld [vmem:[%s3396 + $0xb0] sm:$0x1]
      %v3828 = vld [vmem:[%s3396 + $0xb4] sm:$0xf]
      %v3829 = vld [vmem:[%s3396 + $0xb8] sm:$0xf]
      %v3830 = vld [vmem:[%s3396 + $0xbc] sm:$0x1]
      %v3832 = vshrl.u32 %v3783, 16
      %v3834 = vrot.slane %v3832, 4
      %v3835 = vshll.u32 %v3783, 16
      %v3837 = vrot.slane %v3835, 5
      %v3838 = vor.u32 %v3834, %v3837
      %v3839 = vrot.slane %v3838, 4
      %v3841 = vshll.u32 %v3784, 16
      %v3843 = vrot.slane %v3841, 5
      %v3844 = vsel %vm292, %v3839, %v3843
      %v3845 = vshrl.u32 %v3784, 16
      %v3847 = vrot.slane %v3845, 4
      %v3848 = vor.u32 %v3847, %v3843
      %v3849 = vrot.slane %v3848, 4
      %v3851 = vshll.u32 %v3785, 16
      %v3853 = vrot.slane %v3851, 5
      %v3854 = vsel %vm292, %v3849, %v3853
      %v3856 = vshrl.u32 %v3786, 16
      %v3858 = vrot.slane %v3856, 4
      %v3859 = vshll.u32 %v3786, 16
      %v3861 = vrot.slane %v3859, 5
      %v3862 = vor.u32 %v3858, %v3861
      %v3863 = vrot.slane %v3862, 4
      %v3865 = vshll.u32 %v3787, 16
      %v3867 = vrot.slane %v3865, 5
      %v3868 = vsel %vm292, %v3863, %v3867
      %v3869 = vshrl.u32 %v3787, 16
      %v3871 = vrot.slane %v3869, 4
      %v3872 = vor.u32 %v3871, %v3867
      %v3873 = vrot.slane %v3872, 4
      %v3875 = vshll.u32 %v3788, 16
      %v3877 = vrot.slane %v3875, 5
      %v3878 = vsel %vm292, %v3873, %v3877
      %v3880 = vshrl.u32 %v3789, 16
      %v3882 = vrot.slane %v3880, 4
      %v3883 = vshll.u32 %v3789, 16
      %v3885 = vrot.slane %v3883, 5
      %v3886 = vor.u32 %v3882, %v3885
      %v3887 = vrot.slane %v3886, 4
      %v3889 = vshll.u32 %v3790, 16
      %v3891 = vrot.slane %v3889, 5
      %v3892 = vsel %vm292, %v3887, %v3891
      %v3893 = vshrl.u32 %v3790, 16
      %v3895 = vrot.slane %v3893, 4
      %v3896 = vor.u32 %v3895, %v3891
      %v3897 = vrot.slane %v3896, 4
      %v3899 = vshll.u32 %v3791, 16
      %v3901 = vrot.slane %v3899, 5
      %v3902 = vsel %vm292, %v3897, %v3901
      %v3904 = vshrl.u32 %v3792, 16
      %v3906 = vrot.slane %v3904, 4
      %v3907 = vshll.u32 %v3792, 16
      %v3909 = vrot.slane %v3907, 5
      %v3910 = vor.u32 %v3906, %v3909
      %v3911 = vrot.slane %v3910, 4
      %v3913 = vshll.u32 %v3793, 16
      %v3915 = vrot.slane %v3913, 5
      %v3916 = vsel %vm292, %v3911, %v3915
      %v3917 = vshrl.u32 %v3793, 16
      %v3919 = vrot.slane %v3917, 4
      %v3920 = vor.u32 %v3919, %v3915
      %v3921 = vrot.slane %v3920, 4
      %v3923 = vshll.u32 %v3794, 16
      %v3925 = vrot.slane %v3923, 5
      %v3926 = vsel %vm292, %v3921, %v3925
      %v3928 = vshrl.u32 %v3795, 16
      %v3930 = vrot.slane %v3928, 4
      %v3931 = vshll.u32 %v3795, 16
      %v3933 = vrot.slane %v3931, 5
      %v3934 = vor.u32 %v3930, %v3933
      %v3935 = vrot.slane %v3934, 4
      %v3937 = vshll.u32 %v3796, 16
      %v3939 = vrot.slane %v3937, 5
      %v3940 = vsel %vm292, %v3935, %v3939
      %v3941 = vshrl.u32 %v3796, 16
      %v3943 = vrot.slane %v3941, 4
      %v3944 = vor.u32 %v3943, %v3939
      %v3945 = vrot.slane %v3944, 4
      %v3947 = vshll.u32 %v3797, 16
      %v3949 = vrot.slane %v3947, 5
      %v3950 = vsel %vm292, %v3945, %v3949
      %v3952 = vshrl.u32 %v3798, 16
      %v3954 = vrot.slane %v3952, 4
      %v3955 = vshll.u32 %v3798, 16
      %v3957 = vrot.slane %v3955, 5
      %v3958 = vor.u32 %v3954, %v3957
      %v3959 = vrot.slane %v3958, 4
      %v3961 = vshll.u32 %v3799, 16
      %v3963 = vrot.slane %v3961, 5
      %v3964 = vsel %vm292, %v3959, %v3963
      %v3965 = vshrl.u32 %v3799, 16
      %v3967 = vrot.slane %v3965, 4
      %v3968 = vor.u32 %v3967, %v3963
      %v3969 = vrot.slane %v3968, 4
      %v3971 = vshll.u32 %v3800, 16
      %v3973 = vrot.slane %v3971, 5
      %v3974 = vsel %vm292, %v3969, %v3973
      %v3976 = vshrl.u32 %v3801, 16
      %v3978 = vrot.slane %v3976, 4
      %v3979 = vshll.u32 %v3801, 16
      %v3981 = vrot.slane %v3979, 5
      %v3982 = vor.u32 %v3978, %v3981
      %v3983 = vrot.slane %v3982, 4
      %v3985 = vshll.u32 %v3802, 16
      %v3987 = vrot.slane %v3985, 5
      %v3988 = vsel %vm292, %v3983, %v3987
      %v3989 = vshrl.u32 %v3802, 16
      %v3991 = vrot.slane %v3989, 4
      %v3992 = vor.u32 %v3991, %v3987
      %v3993 = vrot.slane %v3992, 4
      %v3995 = vshll.u32 %v3803, 16
      %v3997 = vrot.slane %v3995, 5
      %v3998 = vsel %vm292, %v3993, %v3997
      %v4000 = vshrl.u32 %v3804, 16
      %v4002 = vrot.slane %v4000, 4
      %v4003 = vshll.u32 %v3804, 16
      %v4005 = vrot.slane %v4003, 5
      %v4006 = vor.u32 %v4002, %v4005
      %v4007 = vrot.slane %v4006, 4
      %v4009 = vshll.u32 %v3805, 16
      %v4011 = vrot.slane %v4009, 5
      %v4012 = vsel %vm292, %v4007, %v4011
      %v4013 = vshrl.u32 %v3805, 16
      %v4015 = vrot.slane %v4013, 4
      %v4016 = vor.u32 %v4015, %v4011
      %v4017 = vrot.slane %v4016, 4
      %v4019 = vshll.u32 %v3806, 16
      %v4021 = vrot.slane %v4019, 5
      %v4022 = vsel %vm292, %v4017, %v4021
      %v4024 = vshrl.u32 %v3807, 16
      %v4026 = vrot.slane %v4024, 4
      %v4027 = vshll.u32 %v3807, 16
      %v4029 = vrot.slane %v4027, 5
      %v4030 = vor.u32 %v4026, %v4029
      %v4031 = vrot.slane %v4030, 4
      %v4033 = vshll.u32 %v3808, 16
      %v4035 = vrot.slane %v4033, 5
      %v4036 = vsel %vm292, %v4031, %v4035
      %v4037 = vshrl.u32 %v3808, 16
      %v4039 = vrot.slane %v4037, 4
      %v4040 = vor.u32 %v4039, %v4035
      %v4041 = vrot.slane %v4040, 4
      %v4043 = vshll.u32 %v3809, 16
      %v4045 = vrot.slane %v4043, 5
      %v4046 = vsel %vm292, %v4041, %v4045
      %v4048 = vshrl.u32 %v3810, 16
      %v4050 = vrot.slane %v4048, 4
      %v4051 = vshll.u32 %v3810, 16
      %v4053 = vrot.slane %v4051, 5
      %v4054 = vor.u32 %v4050, %v4053
      %v4055 = vrot.slane %v4054, 4
      %v4057 = vshll.u32 %v3811, 16
      %v4059 = vrot.slane %v4057, 5
      %v4060 = vsel %vm292, %v4055, %v4059
      %v4061 = vshrl.u32 %v3811, 16
      %v4063 = vrot.slane %v4061, 4
      %v4064 = vor.u32 %v4063, %v4059
      %v4065 = vrot.slane %v4064, 4
      %v4067 = vshll.u32 %v3812, 16
      %v4069 = vrot.slane %v4067, 5
      %v4070 = vsel %vm292, %v4065, %v4069
      %v4072 = vshrl.u32 %v3813, 16
      %v4074 = vrot.slane %v4072, 4
      %v4075 = vshll.u32 %v3813, 16
      %v4077 = vrot.slane %v4075, 5
      %v4078 = vor.u32 %v4074, %v4077
      %v4079 = vrot.slane %v4078, 4
      %v4081 = vshll.u32 %v3814, 16
      %v4083 = vrot.slane %v4081, 5
      %v4084 = vsel %vm292, %v4079, %v4083
      %v4085 = vshrl.u32 %v3814, 16
      %v4087 = vrot.slane %v4085, 4
      %v4088 = vor.u32 %v4087, %v4083
      %v4089 = vrot.slane %v4088, 4
      %v4091 = vshll.u32 %v3815, 16
      %v4093 = vrot.slane %v4091, 5
      %v4094 = vsel %vm292, %v4089, %v4093
      %v4096 = vshrl.u32 %v3816, 16
      %v4098 = vrot.slane %v4096, 4
      %v4099 = vshll.u32 %v3816, 16
      %v4101 = vrot.slane %v4099, 5
      %v4102 = vor.u32 %v4098, %v4101
      %v4103 = vrot.slane %v4102, 4
      %v4105 = vshll.u32 %v3817, 16
      %v4107 = vrot.slane %v4105, 5
      %v4108 = vsel %vm292, %v4103, %v4107
      %v4109 = vshrl.u32 %v3817, 16
      %v4111 = vrot.slane %v4109, 4
      %v4112 = vor.u32 %v4111, %v4107
      %v4113 = vrot.slane %v4112, 4
      %v4115 = vshll.u32 %v3818, 16
      %v4117 = vrot.slane %v4115, 5
      %v4118 = vsel %vm292, %v4113, %v4117
      %v4120 = vshrl.u32 %v3819, 16
      %v4122 = vrot.slane %v4120, 4
      %v4123 = vshll.u32 %v3819, 16
      %v4125 = vrot.slane %v4123, 5
      %v4126 = vor.u32 %v4122, %v4125
      %v4127 = vrot.slane %v4126, 4
      %v4129 = vshll.u32 %v3820, 16
      %v4131 = vrot.slane %v4129, 5
      %v4132 = vsel %vm292, %v4127, %v4131
      %v4133 = vshrl.u32 %v3820, 16
      %v4135 = vrot.slane %v4133, 4
      %v4136 = vor.u32 %v4135, %v4131
      %v4137 = vrot.slane %v4136, 4
      %v4139 = vshll.u32 %v3821, 16
      %v4141 = vrot.slane %v4139, 5
      %v4142 = vsel %vm292, %v4137, %v4141
      %v4144 = vshrl.u32 %v3822, 16
      %v4146 = vrot.slane %v4144, 4
      %v4147 = vshll.u32 %v3822, 16
      %v4149 = vrot.slane %v4147, 5
      %v4150 = vor.u32 %v4146, %v4149
      %v4151 = vrot.slane %v4150, 4
      %v4153 = vshll.u32 %v3823, 16
      %v4155 = vrot.slane %v4153, 5
      %v4156 = vsel %vm292, %v4151, %v4155
      %v4157 = vshrl.u32 %v3823, 16
      %v4159 = vrot.slane %v4157, 4
      %v4160 = vor.u32 %v4159, %v4155
      %v4161 = vrot.slane %v4160, 4
      %v4163 = vshll.u32 %v3824, 16
      %v4165 = vrot.slane %v4163, 5
      %v4166 = vsel %vm292, %v4161, %v4165
      %v4168 = vshrl.u32 %v3825, 16
      %v4170 = vrot.slane %v4168, 4
      %v4171 = vshll.u32 %v3825, 16
      %v4173 = vrot.slane %v4171, 5
      %v4174 = vor.u32 %v4170, %v4173
      %v4175 = vrot.slane %v4174, 4
      %v4177 = vshll.u32 %v3826, 16
      %v4179 = vrot.slane %v4177, 5
      %v4180 = vsel %vm292, %v4175, %v4179
      %v4181 = vshrl.u32 %v3826, 16
      %v4183 = vrot.slane %v4181, 4
      %v4184 = vor.u32 %v4183, %v4179
      %v4185 = vrot.slane %v4184, 4
      %v4187 = vshll.u32 %v3827, 16
      %v4189 = vrot.slane %v4187, 5
      %v4190 = vsel %vm292, %v4185, %v4189
      %v4192 = vshrl.u32 %v3828, 16
      %v4194 = vrot.slane %v4192, 4
      %v4195 = vshll.u32 %v3828, 16
      %v4197 = vrot.slane %v4195, 5
      %v4198 = vor.u32 %v4194, %v4197
      %v4199 = vrot.slane %v4198, 4
      %v4201 = vshll.u32 %v3829, 16
      %v4203 = vrot.slane %v4201, 5
      %v4204 = vsel %vm292, %v4199, %v4203
      %v4205 = vshrl.u32 %v3829, 16
      %v4207 = vrot.slane %v4205, 4
      %v4208 = vor.u32 %v4207, %v4203
      %v4209 = vrot.slane %v4208, 4
      %v4211 = vshll.u32 %v3830, 16
      %v4213 = vrot.slane %v4211, 5
      %v4214 = vsel %vm292, %v4209, %v4213
      %s4215 = scalar_lea.vmem %s1, 448
      %v4216 = vld [vmem:[%s4215] sm:$0xf]
      %v4217 = vld [vmem:[%s4215 + $0x4] sm:$0xf]
      %v4218 = vld [vmem:[%s4215 + $0x8] sm:$0xf]
      %v4219 = vld [vmem:[%s4215 + $0xc] sm:$0xf]
      %v4220 = vld [vmem:[%s4215 + $0x10] sm:$0xf]
      %v4221 = vld [vmem:[%s4215 + $0x14] sm:$0xf]
      %v4222 = vld [vmem:[%s4215 + $0x18] sm:$0xf]
      %v4223 = vld [vmem:[%s4215 + $0x1c] sm:$0xf]
      %v4224 = vld [vmem:[%s4215 + $0x20] sm:$0xf]
      %v4225 = vld [vmem:[%s4215 + $0x24] sm:$0xf]
      %v4226 = vld [vmem:[%s4215 + $0x28] sm:$0xf]
      %v4227 = vld [vmem:[%s4215 + $0x2c] sm:$0xf]
      %v4228 = vld [vmem:[%s4215 + $0x30] sm:$0xf]
      %v4229 = vld [vmem:[%s4215 + $0x34] sm:$0xf]
      %v4230 = vld [vmem:[%s4215 + $0x38] sm:$0xf]
      %v4231 = vld [vmem:[%s4215 + $0x3c] sm:$0xf]
      %v4232 = vunpack.c.l.b16 %v3844
      %v4233 = vunpack.c.l.b16 %v3854
      %v4234 = vunpack.c.l.b16 %v3868
      %v4235 = vunpack.c.l.b16 %v3878
      %v4236 = vunpack.c.l.b16 %v3892
      %v4237 = vunpack.c.l.b16 %v3902
      %v4238 = vunpack.c.l.b16 %v3916
      %v4239 = vunpack.c.l.b16 %v3926
      %v4240 = vunpack.c.l.b16 %v3940
      %v4241 = vunpack.c.l.b16 %v3950
      %v4242 = vunpack.c.l.b16 %v3964
      %v4243 = vunpack.c.l.b16 %v3974
      %v4244 = vunpack.c.l.b16 %v3988
      %v4245 = vunpack.c.l.b16 %v3998
      %v4246 = vunpack.c.l.b16 %v4012
      %v4247 = vunpack.c.l.b16 %v4022
      %v4248 = vunpack.c.l.b16 %v4036
      %v4249 = vunpack.c.l.b16 %v4046
      %v4250 = vunpack.c.l.b16 %v4060
      %v4251 = vunpack.c.l.b16 %v4070
      %v4252 = vunpack.c.l.b16 %v4084
      %v4253 = vunpack.c.l.b16 %v4094
      %v4254 = vunpack.c.l.b16 %v4108
      %v4255 = vunpack.c.l.b16 %v4118
      %v4256 = vunpack.c.l.b16 %v4132
      %v4257 = vunpack.c.l.b16 %v4142
      %v4258 = vunpack.c.l.b16 %v4156
      %v4259 = vunpack.c.l.b16 %v4166
      %v4260 = vunpack.c.l.b16 %v4180
      %v4261 = vunpack.c.l.b16 %v4190
      %v4262 = vunpack.c.l.b16 %v4204
      %v4263 = vunpack.c.l.b16 %v4214
      %v4264 = vpack.c.b16 %v4233, %v4232
      %v4265 = vpack.c.b16 %v4235, %v4234
      %v4266 = vpack.c.b16 %v4237, %v4236
      %v4267 = vpack.c.b16 %v4239, %v4238
      %v4268 = vpack.c.b16 %v4241, %v4240
      %v4269 = vpack.c.b16 %v4243, %v4242
      %v4270 = vpack.c.b16 %v4245, %v4244
      %v4271 = vpack.c.b16 %v4247, %v4246
      %v4272 = vpack.c.b16 %v4249, %v4248
      %v4273 = vpack.c.b16 %v4251, %v4250
      %v4274 = vpack.c.b16 %v4253, %v4252
      %v4275 = vpack.c.b16 %v4255, %v4254
      %v4276 = vpack.c.b16 %v4257, %v4256
      %v4277 = vpack.c.b16 %v4259, %v4258
      %v4278 = vpack.c.b16 %v4261, %v4260
      %v4279 = vpack.c.b16 %v4263, %v4262
      %v4312 = vunpack.c.l.b16 %v4216
      %v4313 = vunpack.c.l.b16 %v4217
      %v4314 = vunpack.c.l.b16 %v4218
      %v4315 = vunpack.c.l.b16 %v4219
      %v4316 = vunpack.c.l.b16 %v4220
      %v4317 = vunpack.c.l.b16 %v4221
      %v4318 = vunpack.c.l.b16 %v4222
      %v4319 = vunpack.c.l.b16 %v4223
      %v4320 = vunpack.c.l.b16 %v4224
      %v4321 = vunpack.c.l.b16 %v4225
      %v4322 = vunpack.c.l.b16 %v4226
      %v4323 = vunpack.c.l.b16 %v4227
      %v4324 = vunpack.c.l.b16 %v4228
      %v4325 = vunpack.c.l.b16 %v4229
      %v4326 = vunpack.c.l.b16 %v4230
      %v4327 = vunpack.c.l.b16 %v4231
      %v4328 = vpack.c.b16 %v4313, %v4312
      %v4329 = vpack.c.b16 %v4315, %v4314
      %v4330 = vpack.c.b16 %v4317, %v4316
      %v4331 = vpack.c.b16 %v4319, %v4318
      %v4332 = vpack.c.b16 %v4321, %v4320
      %v4333 = vpack.c.b16 %v4323, %v4322
      %v4334 = vpack.c.b16 %v4325, %v4324
      %v4335 = vpack.c.b16 %v4327, %v4326
      %4344 = vmatprep.subr.bf16.mxu0 0
      %4345 = vmatpush1.bf16.msra.mxu0 %v4335
      %4346 = vmatprep.subr.bf16.mxu0 0
      %4347 = vmatpush1.bf16.msra.mxu0 %v4334
      %4348 = vmatprep.subr.bf16.mxu0 0
      %4349 = vmatpush1.bf16.msra.mxu0 %v4333
      %4350 = vmatprep.subr.bf16.mxu0 0
      %4351 = vmatpush1.bf16.msra.mxu0 %v4332
      %4352 = vmatprep.subr.bf16.mxu0 0
      %4353 = vmatpush1.bf16.msra.mxu0 %v4331
      %4354 = vmatprep.subr.bf16.mxu0 0
      %4355 = vmatpush1.bf16.msra.mxu0 %v4330
      %4356 = vmatprep.subr.bf16.mxu0 0
      %4357 = vmatpush1.bf16.msra.mxu0 %v4329
      %4358 = vmatprep.subr.bf16.mxu0 0
      %4359 = vmatpush1.bf16.msra.mxu0 %v4328
      %4360 = vmatprep.subr.bf16.mxu0 0
      %4361 = vmatpush2.bf16.msra.mxu0 0
      %4362 = vmatprep.subr.bf16.mxu0 0
      %4363 = vmatpush2.bf16.msra.mxu0 0
      %4364 = vmatprep.subr.bf16.mxu0 0
      %4365 = vmatpush2.bf16.msra.mxu0 0
      %4366 = vmatprep.subr.bf16.mxu0 0
      %4367 = vmatpush2.bf16.msra.mxu0 0
      %4368 = vmatprep.subr.bf16.mxu0 0
      %4369 = vmatpush2.bf16.msra.mxu0 0
      %4370 = vmatprep.subr.bf16.mxu0 0
      %4371 = vmatpush2.bf16.msra.mxu0 0
      %4372 = vmatprep.subr.bf16.mxu0 0
      %4373 = vmatpush2.bf16.msra.mxu0 0
      %4374 = vmatprep.subr.bf16.mxu0 0
      %4375 = vmatpush2.bf16.msra.mxu0 0
      %4376 = vmatprep.mubr.bf16.mxu0 0
      %4377 = vmatmul.mubr.bf16.gmra.mxu0 %v4264
      %v4378 = vpop.f32.mrf.mxu0
      %v4379 = vadd.f32 0.0, %v4378
      %v4380 = vpop.f32.mrf.mxu0
      %v4381 = vpop.f32.mrf.mxu0
      %v4382 = vadd.f32 0.0, %v4381
      %v4383 = vpop.f32.mrf.mxu0
      %4384 = vmatprep.mubr.bf16.mxu0 0
      %4385 = vmatmul.mubr.bf16.gmra.mxu0 %v4265
      %v4386 = vpop.f32.mrf.mxu0
      %v4387 = vadd.f32 0.0, %v4386
      %v4388 = vpop.f32.mrf.mxu0
      %v4389 = vpop.f32.mrf.mxu0
      %v4390 = vadd.f32 0.0, %v4389
      %v4391 = vpop.f32.mrf.mxu0
      %4392 = vmatprep.mubr.bf16.mxu0 0
      %4393 = vmatmul.mubr.bf16.gmra.mxu0 %v4266
      %v4394 = vpop.f32.mrf.mxu0
      %v4395 = vadd.f32 0.0, %v4394
      %v4396 = vpop.f32.mrf.mxu0
      %v4397 = vpop.f32.mrf.mxu0
      %v4398 = vadd.f32 0.0, %v4397
      %v4399 = vpop.f32.mrf.mxu0
      %4400 = vmatprep.mubr.bf16.mxu0 0
      %4401 = vmatmul.mubr.bf16.gmra.mxu0 %v4267
      %v4402 = vpop.f32.mrf.mxu0
      %v4403 = vadd.f32 0.0, %v4402
      %v4404 = vpop.f32.mrf.mxu0
      %v4405 = vpop.f32.mrf.mxu0
      %v4406 = vadd.f32 0.0, %v4405
      %v4407 = vpop.f32.mrf.mxu0
      %4408 = vmatprep.mubr.bf16.mxu0 0
      %4409 = vmatmul.mubr.bf16.gmra.mxu0 %v4268
      %v4410 = vpop.f32.mrf.mxu0
      %v4411 = vadd.f32 0.0, %v4410
      %v4412 = vpop.f32.mrf.mxu0
      %v4413 = vpop.f32.mrf.mxu0
      %v4414 = vadd.f32 0.0, %v4413
      %v4415 = vpop.f32.mrf.mxu0
      %4416 = vmatprep.mubr.bf16.mxu0 0
      %4417 = vmatmul.mubr.bf16.gmra.mxu0 %v4269
      %v4418 = vpop.f32.mrf.mxu0
      %v4419 = vadd.f32 0.0, %v4418
      %v4420 = vpop.f32.mrf.mxu0
      %v4421 = vpop.f32.mrf.mxu0
      %v4422 = vadd.f32 0.0, %v4421
      %v4423 = vpop.f32.mrf.mxu0
      %4424 = vmatprep.mubr.bf16.mxu0 0
      %4425 = vmatmul.mubr.bf16.gmra.mxu0 %v4270
      %v4426 = vpop.f32.mrf.mxu0
      %v4427 = vadd.f32 0.0, %v4426
      %v4428 = vpop.f32.mrf.mxu0
      %v4429 = vpop.f32.mrf.mxu0
      %v4430 = vadd.f32 0.0, %v4429
      %v4431 = vpop.f32.mrf.mxu0
      %4432 = vmatprep.mubr.bf16.mxu0 0
      %4433 = vmatmul.mubr.bf16.gmra.mxu0 %v4271
      %v4434 = vpop.f32.mrf.mxu0
      %v4435 = vadd.f32 0.0, %v4434
      %v4436 = vpop.f32.mrf.mxu0
      %v4437 = vpop.f32.mrf.mxu0
      %v4438 = vadd.f32 0.0, %v4437
      %v4439 = vpop.f32.mrf.mxu0
      %4440 = vmatprep.mubr.bf16.mxu0 0
      %4441 = vmatmul.mubr.bf16.gmra.mxu0 %v4272
      %v4442 = vpop.f32.mrf.mxu0
      %v4443 = vadd.f32 0.0, %v4442
      %v4444 = vpop.f32.mrf.mxu0
      %v4445 = vpop.f32.mrf.mxu0
      %v4446 = vadd.f32 0.0, %v4445
      %v4447 = vpop.f32.mrf.mxu0
      %4448 = vmatprep.mubr.bf16.mxu0 0
      %4449 = vmatmul.mubr.bf16.gmra.mxu0 %v4273
      %v4450 = vpop.f32.mrf.mxu0
      %v4451 = vadd.f32 0.0, %v4450
      %v4452 = vpop.f32.mrf.mxu0
      %v4453 = vpop.f32.mrf.mxu0
      %v4454 = vadd.f32 0.0, %v4453
      %v4455 = vpop.f32.mrf.mxu0
      %4456 = vmatprep.mubr.bf16.mxu0 0
      %4457 = vmatmul.mubr.bf16.gmra.mxu0 %v4274
      %v4458 = vpop.f32.mrf.mxu0
      %v4459 = vadd.f32 0.0, %v4458
      %v4460 = vpop.f32.mrf.mxu0
      %v4461 = vpop.f32.mrf.mxu0
      %v4462 = vadd.f32 0.0, %v4461
      %v4463 = vpop.f32.mrf.mxu0
      %4464 = vmatprep.mubr.bf16.mxu0 0
      %4465 = vmatmul.mubr.bf16.gmra.mxu0 %v4275
      %v4466 = vpop.f32.mrf.mxu0
      %v4467 = vadd.f32 0.0, %v4466
      %v4468 = vpop.f32.mrf.mxu0
      %v4469 = vpop.f32.mrf.mxu0
      %v4470 = vadd.f32 0.0, %v4469
      %v4471 = vpop.f32.mrf.mxu0
      %4472 = vmatprep.mubr.bf16.mxu0 0
      %4473 = vmatmul.mubr.bf16.gmra.mxu0 %v4276
      %v4474 = vpop.f32.mrf.mxu0
      %v4475 = vadd.f32 0.0, %v4474
      %v4476 = vpop.f32.mrf.mxu0
      %v4477 = vpop.f32.mrf.mxu0
      %v4478 = vadd.f32 0.0, %v4477
      %v4479 = vpop.f32.mrf.mxu0
      %4480 = vmatprep.mubr.bf16.mxu0 0
      %4481 = vmatmul.mubr.bf16.gmra.mxu0 %v4277
      %v4482 = vpop.f32.mrf.mxu0
      %v4483 = vadd.f32 0.0, %v4482
      %v4484 = vpop.f32.mrf.mxu0
      %v4485 = vpop.f32.mrf.mxu0
      %v4486 = vadd.f32 0.0, %v4485
      %v4487 = vpop.f32.mrf.mxu0
      %4488 = vmatprep.mubr.bf16.mxu0 0
      %4489 = vmatmul.mubr.bf16.gmra.mxu0 %v4278
      %v4490 = vpop.f32.mrf.mxu0
      %v4491 = vadd.f32 0.0, %v4490
      %v4492 = vpop.f32.mrf.mxu0
      %v4493 = vpop.f32.mrf.mxu0
      %v4494 = vadd.f32 0.0, %v4493
      %v4495 = vpop.f32.mrf.mxu0
      %4496 = vmatprep.mubr.bf16.mxu0 0
      %4497 = vmatmul.mubr.bf16.gmra.mxu0 %v4279
      %v4498 = vpop.f32.mrf.mxu0
      %v4499 = vadd.f32 0.0, %v4498
      %v4500 = vpop.f32.mrf.mxu0
      %v4501 = vpop.f32.mrf.mxu0
      %v4502 = vadd.f32 0.0, %v4501
      %v4503 = vpop.f32.mrf.mxu0
      %4504 = vdwg.mxu0
      %v4505 = vadd.f32 %v3751, %v4379
      %v4506 = vadd.f32 %v3752, %v4382
      %v4507 = vadd.f32 %v3753, %v4387
      %v4508 = vadd.f32 %v3754, %v4390
      %v4509 = vadd.f32 %v3755, %v4395
      %v4510 = vadd.f32 %v3756, %v4398
      %v4511 = vadd.f32 %v3757, %v4403
      %v4512 = vadd.f32 %v3758, %v4406
      %v4513 = vadd.f32 %v3759, %v4411
      %v4514 = vadd.f32 %v3760, %v4414
      %v4515 = vadd.f32 %v3761, %v4419
      %v4516 = vadd.f32 %v3762, %v4422
      %v4517 = vadd.f32 %v3763, %v4427
      %v4518 = vadd.f32 %v3764, %v4430
      %v4519 = vadd.f32 %v3765, %v4435
      %v4520 = vadd.f32 %v3766, %v4438
      %v4521 = vadd.f32 %v3767, %v4443
      %v4522 = vadd.f32 %v3768, %v4446
      %v4523 = vadd.f32 %v3769, %v4451
      %v4524 = vadd.f32 %v3770, %v4454
      %v4525 = vadd.f32 %v3771, %v4459
      %v4526 = vadd.f32 %v3772, %v4462
      %v4527 = vadd.f32 %v3773, %v4467
      %v4528 = vadd.f32 %v3774, %v4470
      %v4529 = vadd.f32 %v3775, %v4475
      %v4530 = vadd.f32 %v3776, %v4478
      %v4531 = vadd.f32 %v3777, %v4483
      %v4532 = vadd.f32 %v3778, %v4486
      %v4533 = vadd.f32 %v3779, %v4491
      %v4534 = vadd.f32 %v3780, %v4494
      %v4535 = vadd.f32 %v3781, %v4499
      %v4536 = vadd.f32 %v3782, %v4502
      %v4537 = vld [vmem:[%s3396] sm:$0xe]
      %v4538 = vld [vmem:[%s3396 + $0xc] sm:$0xe]
      %v4539 = vld [vmem:[%s3396 + $0x18] sm:$0xe]
      %v4540 = vld [vmem:[%s3396 + $0x24] sm:$0xe]
      %v4541 = vld [vmem:[%s3396 + $0x30] sm:$0xe]
      %v4542 = vld [vmem:[%s3396 + $0x3c] sm:$0xe]
      %v4543 = vld [vmem:[%s3396 + $0x48] sm:$0xe]
      %v4544 = vld [vmem:[%s3396 + $0x54] sm:$0xe]
      %v4545 = vld [vmem:[%s3396 + $0x60] sm:$0xe]
      %v4546 = vld [vmem:[%s3396 + $0x6c] sm:$0xe]
      %v4547 = vld [vmem:[%s3396 + $0x78] sm:$0xe]
      %v4548 = vld [vmem:[%s3396 + $0x84] sm:$0xe]
      %v4549 = vld [vmem:[%s3396 + $0x90] sm:$0xe]
      %v4550 = vld [vmem:[%s3396 + $0x9c] sm:$0xe]
      %v4551 = vld [vmem:[%s3396 + $0xa8] sm:$0xe]
      %v4552 = vld [vmem:[%s3396 + $0xb4] sm:$0xe]
      %v4601 = vrot.slane %v4537, 5
      %v4602 = vrot.slane %v4601, 4
      %v4603 = vrot.slane %v3784, 5
      %v4604 = vsel %vm1322, %v4602, %v4603
      %v4605 = vrot.slane %v4603, 4
      %v4606 = vrot.slane %v3785, 5
      %v4607 = vsel %vm1322, %v4605, %v4606
      %v4608 = vrot.slane %v4538, 5
      %v4609 = vrot.slane %v4608, 4
      %v4610 = vrot.slane %v3787, 5
      %v4611 = vsel %vm1322, %v4609, %v4610
      %v4612 = vrot.slane %v4610, 4
      %v4613 = vrot.slane %v3788, 5
      %v4614 = vsel %vm1322, %v4612, %v4613
      %v4615 = vrot.slane %v4539, 5
      %v4616 = vrot.slane %v4615, 4
      %v4617 = vrot.slane %v3790, 5
      %v4618 = vsel %vm1322, %v4616, %v4617
      %v4619 = vrot.slane %v4617, 4
      %v4620 = vrot.slane %v3791, 5
      %v4621 = vsel %vm1322, %v4619, %v4620
      %v4622 = vrot.slane %v4540, 5
      %v4623 = vrot.slane %v4622, 4
      %v4624 = vrot.slane %v3793, 5
      %v4625 = vsel %vm1322, %v4623, %v4624
      %v4626 = vrot.slane %v4624, 4
      %v4627 = vrot.slane %v3794, 5
      %v4628 = vsel %vm1322, %v4626, %v4627
      %v4629 = vrot.slane %v4541, 5
      %v4630 = vrot.slane %v4629, 4
      %v4631 = vrot.slane %v3796, 5
      %v4632 = vsel %vm1322, %v4630, %v4631
      %v4633 = vrot.slane %v4631, 4
      %v4634 = vrot.slane %v3797, 5
      %v4635 = vsel %vm1322, %v4633, %v4634
      %v4636 = vrot.slane %v4542, 5
      %v4637 = vrot.slane %v4636, 4
      %v4638 = vrot.slane %v3799, 5
      %v4639 = vsel %vm1322, %v4637, %v4638
      %v4640 = vrot.slane %v4638, 4
      %v4641 = vrot.slane %v3800, 5
      %v4642 = vsel %vm1322, %v4640, %v4641
      %v4643 = vrot.slane %v4543, 5
      %v4644 = vrot.slane %v4643, 4
      %v4645 = vrot.slane %v3802, 5
      %v4646 = vsel %vm1322, %v4644, %v4645
      %v4647 = vrot.slane %v4645, 4
      %v4648 = vrot.slane %v3803, 5
      %v4649 = vsel %vm1322, %v4647, %v4648
      %v4650 = vrot.slane %v4544, 5
      %v4651 = vrot.slane %v4650, 4
      %v4652 = vrot.slane %v3805, 5
      %v4653 = vsel %vm1322, %v4651, %v4652
      %v4654 = vrot.slane %v4652, 4
      %v4655 = vrot.slane %v3806, 5
      %v4656 = vsel %vm1322, %v4654, %v4655
      %v4657 = vrot.slane %v4545, 5
      %v4658 = vrot.slane %v4657, 4
      %v4659 = vrot.slane %v3808, 5
      %v4660 = vsel %vm1322, %v4658, %v4659
      %v4661 = vrot.slane %v4659, 4
      %v4662 = vrot.slane %v3809, 5
      %v4663 = vsel %vm1322, %v4661, %v4662
      %v4664 = vrot.slane %v4546, 5
      %v4665 = vrot.slane %v4664, 4
      %v4666 = vrot.slane %v3811, 5
      %v4667 = vsel %vm1322, %v4665, %v4666
      %v4668 = vrot.slane %v4666, 4
      %v4669 = vrot.slane %v3812, 5
      %v4670 = vsel %vm1322, %v4668, %v4669
      %v4671 = vrot.slane %v4547, 5
      %v4672 = vrot.slane %v4671, 4
      %v4673 = vrot.slane %v3814, 5
      %v4674 = vsel %vm1322, %v4672, %v4673
      %v4675 = vrot.slane %v4673, 4
      %v4676 = vrot.slane %v3815, 5
      %v4677 = vsel %vm1322, %v4675, %v4676
      %v4678 = vrot.slane %v4548, 5
      %v4679 = vrot.slane %v4678, 4
      %v4680 = vrot.slane %v3817, 5
      %v4681 = vsel %vm1322, %v4679, %v4680
      %v4682 = vrot.slane %v4680, 4
      %v4683 = vrot.slane %v3818, 5
      %v4684 = vsel %vm1322, %v4682, %v4683
      %v4685 = vrot.slane %v4549, 5
      %v4686 = vrot.slane %v4685, 4
      %v4687 = vrot.slane %v3820, 5
      %v4688 = vsel %vm1322, %v4686, %v4687
      %v4689 = vrot.slane %v4687, 4
      %v4690 = vrot.slane %v3821, 5
      %v4691 = vsel %vm1322, %v4689, %v4690
      %v4692 = vrot.slane %v4550, 5
      %v4693 = vrot.slane %v4692, 4
      %v4694 = vrot.slane %v3823, 5
      %v4695 = vsel %vm1322, %v4693, %v4694
      %v4696 = vrot.slane %v4694, 4
      %v4697 = vrot.slane %v3824, 5
      %v4698 = vsel %vm1322, %v4696, %v4697
      %v4699 = vrot.slane %v4551, 5
      %v4700 = vrot.slane %v4699, 4
      %v4701 = vrot.slane %v3826, 5
      %v4702 = vsel %vm1322, %v4700, %v4701
      %v4703 = vrot.slane %v4701, 4
      %v4704 = vrot.slane %v3827, 5
      %v4705 = vsel %vm1322, %v4703, %v4704
      %v4706 = vrot.slane %v4552, 5
      %v4707 = vrot.slane %v4706, 4
      %v4708 = vrot.slane %v3829, 5
      %v4709 = vsel %vm1322, %v4707, %v4708
      %v4710 = vrot.slane %v4708, 4
      %v4711 = vrot.slane %v3830, 5
      %v4712 = vsel %vm1322, %v4710, %v4711
      %s4713 = scalar_lea.vmem %s1, 512
      %v4714 = vld [vmem:[%s4713] sm:$0xf]
      %v4715 = vld [vmem:[%s4713 + $0x4] sm:$0xf]
      %v4716 = vld [vmem:[%s4713 + $0x8] sm:$0xf]
      %v4717 = vld [vmem:[%s4713 + $0xc] sm:$0xf]
      %v4718 = vld [vmem:[%s4713 + $0x10] sm:$0xf]
      %v4719 = vld [vmem:[%s4713 + $0x14] sm:$0xf]
      %v4720 = vld [vmem:[%s4713 + $0x18] sm:$0xf]
      %v4721 = vld [vmem:[%s4713 + $0x1c] sm:$0xf]
      %v4722 = vld [vmem:[%s4713 + $0x20] sm:$0xf]
      %v4723 = vld [vmem:[%s4713 + $0x24] sm:$0xf]
      %v4724 = vld [vmem:[%s4713 + $0x28] sm:$0xf]
      %v4725 = vld [vmem:[%s4713 + $0x2c] sm:$0xf]
      %v4726 = vld [vmem:[%s4713 + $0x30] sm:$0xf]
      %v4727 = vld [vmem:[%s4713 + $0x34] sm:$0xf]
      %v4728 = vld [vmem:[%s4713 + $0x38] sm:$0xf]
      %v4729 = vld [vmem:[%s4713 + $0x3c] sm:$0xf]
      %v4730 = vunpack.c.l.b16 %v4604
      %v4731 = vunpack.c.l.b16 %v4607
      %v4732 = vunpack.c.l.b16 %v4611
      %v4733 = vunpack.c.l.b16 %v4614
      %v4734 = vunpack.c.l.b16 %v4618
      %v4735 = vunpack.c.l.b16 %v4621
      %v4736 = vunpack.c.l.b16 %v4625
      %v4737 = vunpack.c.l.b16 %v4628
      %v4738 = vunpack.c.l.b16 %v4632
      %v4739 = vunpack.c.l.b16 %v4635
      %v4740 = vunpack.c.l.b16 %v4639
      %v4741 = vunpack.c.l.b16 %v4642
      %v4742 = vunpack.c.l.b16 %v4646
      %v4743 = vunpack.c.l.b16 %v4649
      %v4744 = vunpack.c.l.b16 %v4653
      %v4745 = vunpack.c.l.b16 %v4656
      %v4746 = vunpack.c.l.b16 %v4660
      %v4747 = vunpack.c.l.b16 %v4663
      %v4748 = vunpack.c.l.b16 %v4667
      %v4749 = vunpack.c.l.b16 %v4670
      %v4750 = vunpack.c.l.b16 %v4674
      %v4751 = vunpack.c.l.b16 %v4677
      %v4752 = vunpack.c.l.b16 %v4681
      %v4753 = vunpack.c.l.b16 %v4684
      %v4754 = vunpack.c.l.b16 %v4688
      %v4755 = vunpack.c.l.b16 %v4691
      %v4756 = vunpack.c.l.b16 %v4695
      %v4757 = vunpack.c.l.b16 %v4698
      %v4758 = vunpack.c.l.b16 %v4702
      %v4759 = vunpack.c.l.b16 %v4705
      %v4760 = vunpack.c.l.b16 %v4709
      %v4761 = vunpack.c.l.b16 %v4712
      %v4762 = vpack.c.b16 %v4731, %v4730
      %v4763 = vpack.c.b16 %v4733, %v4732
      %v4764 = vpack.c.b16 %v4735, %v4734
      %v4765 = vpack.c.b16 %v4737, %v4736
      %v4766 = vpack.c.b16 %v4739, %v4738
      %v4767 = vpack.c.b16 %v4741, %v4740
      %v4768 = vpack.c.b16 %v4743, %v4742
      %v4769 = vpack.c.b16 %v4745, %v4744
      %v4770 = vpack.c.b16 %v4747, %v4746
      %v4771 = vpack.c.b16 %v4749, %v4748
      %v4772 = vpack.c.b16 %v4751, %v4750
      %v4773 = vpack.c.b16 %v4753, %v4752
      %v4774 = vpack.c.b16 %v4755, %v4754
      %v4775 = vpack.c.b16 %v4757, %v4756
      %v4776 = vpack.c.b16 %v4759, %v4758
      %v4777 = vpack.c.b16 %v4761, %v4760
      %v4810 = vunpack.c.l.b16 %v4714
      %v4811 = vunpack.c.l.b16 %v4715
      %v4812 = vunpack.c.l.b16 %v4716
      %v4813 = vunpack.c.l.b16 %v4717
      %v4814 = vunpack.c.l.b16 %v4718
      %v4815 = vunpack.c.l.b16 %v4719
      %v4816 = vunpack.c.l.b16 %v4720
      %v4817 = vunpack.c.l.b16 %v4721
      %v4818 = vunpack.c.l.b16 %v4722
      %v4819 = vunpack.c.l.b16 %v4723
      %v4820 = vunpack.c.l.b16 %v4724
      %v4821 = vunpack.c.l.b16 %v4725
      %v4822 = vunpack.c.l.b16 %v4726
      %v4823 = vunpack.c.l.b16 %v4727
      %v4824 = vunpack.c.l.b16 %v4728
      %v4825 = vunpack.c.l.b16 %v4729
      %v4826 = vpack.c.b16 %v4811, %v4810
      %v4827 = vpack.c.b16 %v4813, %v4812
      %v4828 = vpack.c.b16 %v4815, %v4814
      %v4829 = vpack.c.b16 %v4817, %v4816
      %v4830 = vpack.c.b16 %v4819, %v4818
      %v4831 = vpack.c.b16 %v4821, %v4820
      %v4832 = vpack.c.b16 %v4823, %v4822
      %v4833 = vpack.c.b16 %v4825, %v4824
      %4842 = vmatprep.subr.bf16.mxu0 0
      %4843 = vmatpush1.bf16.msra.mxu0 %v4833
      %4844 = vmatprep.subr.bf16.mxu0 0
      %4845 = vmatpush1.bf16.msra.mxu0 %v4832
      %4846 = vmatprep.subr.bf16.mxu0 0
      %4847 = vmatpush1.bf16.msra.mxu0 %v4831
      %4848 = vmatprep.subr.bf16.mxu0 0
      %4849 = vmatpush1.bf16.msra.mxu0 %v4830
      %4850 = vmatprep.subr.bf16.mxu0 0
      %4851 = vmatpush1.bf16.msra.mxu0 %v4829
      %4852 = vmatprep.subr.bf16.mxu0 0
      %4853 = vmatpush1.bf16.msra.mxu0 %v4828
      %4854 = vmatprep.subr.bf16.mxu0 0
      %4855 = vmatpush1.bf16.msra.mxu0 %v4827
      %4856 = vmatprep.subr.bf16.mxu0 0
      %4857 = vmatpush1.bf16.msra.mxu0 %v4826
      %4858 = vmatprep.subr.bf16.mxu0 0
      %4859 = vmatpush2.bf16.msra.mxu0 0
      %4860 = vmatprep.subr.bf16.mxu0 0
      %4861 = vmatpush2.bf16.msra.mxu0 0
      %4862 = vmatprep.subr.bf16.mxu0 0
      %4863 = vmatpush2.bf16.msra.mxu0 0
      %4864 = vmatprep.subr.bf16.mxu0 0
      %4865 = vmatpush2.bf16.msra.mxu0 0
      %4866 = vmatprep.subr.bf16.mxu0 0
      %4867 = vmatpush2.bf16.msra.mxu0 0
      %4868 = vmatprep.subr.bf16.mxu0 0
      %4869 = vmatpush2.bf16.msra.mxu0 0
      %4870 = vmatprep.subr.bf16.mxu0 0
      %4871 = vmatpush2.bf16.msra.mxu0 0
      %4872 = vmatprep.subr.bf16.mxu0 0
      %4873 = vmatpush2.bf16.msra.mxu0 0
      %4874 = vmatprep.mubr.bf16.mxu0 0
      %4875 = vmatmul.mubr.bf16.gmra.mxu0 %v4762
      %v4876 = vpop.f32.mrf.mxu0
      %v4877 = vadd.f32 0.0, %v4876
      %v4878 = vpop.f32.mrf.mxu0
      %v4879 = vpop.f32.mrf.mxu0
      %v4880 = vadd.f32 0.0, %v4879
      %v4881 = vpop.f32.mrf.mxu0
      %4882 = vmatprep.mubr.bf16.mxu0 0
      %4883 = vmatmul.mubr.bf16.gmra.mxu0 %v4763
      %v4884 = vpop.f32.mrf.mxu0
      %v4885 = vadd.f32 0.0, %v4884
      %v4886 = vpop.f32.mrf.mxu0
      %v4887 = vpop.f32.mrf.mxu0
      %v4888 = vadd.f32 0.0, %v4887
      %v4889 = vpop.f32.mrf.mxu0
      %4890 = vmatprep.mubr.bf16.mxu0 0
      %4891 = vmatmul.mubr.bf16.gmra.mxu0 %v4764
      %v4892 = vpop.f32.mrf.mxu0
      %v4893 = vadd.f32 0.0, %v4892
      %v4894 = vpop.f32.mrf.mxu0
      %v4895 = vpop.f32.mrf.mxu0
      %v4896 = vadd.f32 0.0, %v4895
      %v4897 = vpop.f32.mrf.mxu0
      %4898 = vmatprep.mubr.bf16.mxu0 0
      %4899 = vmatmul.mubr.bf16.gmra.mxu0 %v4765
      %v4900 = vpop.f32.mrf.mxu0
      %v4901 = vadd.f32 0.0, %v4900
      %v4902 = vpop.f32.mrf.mxu0
      %v4903 = vpop.f32.mrf.mxu0
      %v4904 = vadd.f32 0.0, %v4903
      %v4905 = vpop.f32.mrf.mxu0
      %4906 = vmatprep.mubr.bf16.mxu0 0
      %4907 = vmatmul.mubr.bf16.gmra.mxu0 %v4766
      %v4908 = vpop.f32.mrf.mxu0
      %v4909 = vadd.f32 0.0, %v4908
      %v4910 = vpop.f32.mrf.mxu0
      %v4911 = vpop.f32.mrf.mxu0
      %v4912 = vadd.f32 0.0, %v4911
      %v4913 = vpop.f32.mrf.mxu0
      %4914 = vmatprep.mubr.bf16.mxu0 0
      %4915 = vmatmul.mubr.bf16.gmra.mxu0 %v4767
      %v4916 = vpop.f32.mrf.mxu0
      %v4917 = vadd.f32 0.0, %v4916
      %v4918 = vpop.f32.mrf.mxu0
      %v4919 = vpop.f32.mrf.mxu0
      %v4920 = vadd.f32 0.0, %v4919
      %v4921 = vpop.f32.mrf.mxu0
      %4922 = vmatprep.mubr.bf16.mxu0 0
      %4923 = vmatmul.mubr.bf16.gmra.mxu0 %v4768
      %v4924 = vpop.f32.mrf.mxu0
      %v4925 = vadd.f32 0.0, %v4924
      %v4926 = vpop.f32.mrf.mxu0
      %v4927 = vpop.f32.mrf.mxu0
      %v4928 = vadd.f32 0.0, %v4927
      %v4929 = vpop.f32.mrf.mxu0
      %4930 = vmatprep.mubr.bf16.mxu0 0
      %4931 = vmatmul.mubr.bf16.gmra.mxu0 %v4769
      %v4932 = vpop.f32.mrf.mxu0
      %v4933 = vadd.f32 0.0, %v4932
      %v4934 = vpop.f32.mrf.mxu0
      %v4935 = vpop.f32.mrf.mxu0
      %v4936 = vadd.f32 0.0, %v4935
      %v4937 = vpop.f32.mrf.mxu0
      %4938 = vmatprep.mubr.bf16.mxu0 0
      %4939 = vmatmul.mubr.bf16.gmra.mxu0 %v4770
      %v4940 = vpop.f32.mrf.mxu0
      %v4941 = vadd.f32 0.0, %v4940
      %v4942 = vpop.f32.mrf.mxu0
      %v4943 = vpop.f32.mrf.mxu0
      %v4944 = vadd.f32 0.0, %v4943
      %v4945 = vpop.f32.mrf.mxu0
      %4946 = vmatprep.mubr.bf16.mxu0 0
      %4947 = vmatmul.mubr.bf16.gmra.mxu0 %v4771
      %v4948 = vpop.f32.mrf.mxu0
      %v4949 = vadd.f32 0.0, %v4948
      %v4950 = vpop.f32.mrf.mxu0
      %v4951 = vpop.f32.mrf.mxu0
      %v4952 = vadd.f32 0.0, %v4951
      %v4953 = vpop.f32.mrf.mxu0
      %4954 = vmatprep.mubr.bf16.mxu0 0
      %4955 = vmatmul.mubr.bf16.gmra.mxu0 %v4772
      %v4956 = vpop.f32.mrf.mxu0
      %v4957 = vadd.f32 0.0, %v4956
      %v4958 = vpop.f32.mrf.mxu0
      %v4959 = vpop.f32.mrf.mxu0
      %v4960 = vadd.f32 0.0, %v4959
      %v4961 = vpop.f32.mrf.mxu0
      %4962 = vmatprep.mubr.bf16.mxu0 0
      %4963 = vmatmul.mubr.bf16.gmra.mxu0 %v4773
      %v4964 = vpop.f32.mrf.mxu0
      %v4965 = vadd.f32 0.0, %v4964
      %v4966 = vpop.f32.mrf.mxu0
      %v4967 = vpop.f32.mrf.mxu0
      %v4968 = vadd.f32 0.0, %v4967
      %v4969 = vpop.f32.mrf.mxu0
      %4970 = vmatprep.mubr.bf16.mxu0 0
      %4971 = vmatmul.mubr.bf16.gmra.mxu0 %v4774
      %v4972 = vpop.f32.mrf.mxu0
      %v4973 = vadd.f32 0.0, %v4972
      %v4974 = vpop.f32.mrf.mxu0
      %v4975 = vpop.f32.mrf.mxu0
      %v4976 = vadd.f32 0.0, %v4975
      %v4977 = vpop.f32.mrf.mxu0
      %4978 = vmatprep.mubr.bf16.mxu0 0
      %4979 = vmatmul.mubr.bf16.gmra.mxu0 %v4775
      %v4980 = vpop.f32.mrf.mxu0
      %v4981 = vadd.f32 0.0, %v4980
      %v4982 = vpop.f32.mrf.mxu0
      %v4983 = vpop.f32.mrf.mxu0
      %v4984 = vadd.f32 0.0, %v4983
      %v4985 = vpop.f32.mrf.mxu0
      %4986 = vmatprep.mubr.bf16.mxu0 0
      %4987 = vmatmul.mubr.bf16.gmra.mxu0 %v4776
      %v4988 = vpop.f32.mrf.mxu0
      %v4989 = vadd.f32 0.0, %v4988
      %v4990 = vpop.f32.mrf.mxu0
      %v4991 = vpop.f32.mrf.mxu0
      %v4992 = vadd.f32 0.0, %v4991
      %v4993 = vpop.f32.mrf.mxu0
      %4994 = vmatprep.mubr.bf16.mxu0 0
      %4995 = vmatmul.mubr.bf16.gmra.mxu0 %v4777
      %v4996 = vpop.f32.mrf.mxu0
      %v4997 = vadd.f32 0.0, %v4996
      %v4998 = vpop.f32.mrf.mxu0
      %v4999 = vpop.f32.mrf.mxu0
      %v5000 = vadd.f32 0.0, %v4999
      %v5001 = vpop.f32.mrf.mxu0
      %5002 = vdwg.mxu0
      %v5003 = vadd.f32 %v4505, %v4877
      %v5004 = vadd.f32 %v4506, %v4880
      %v5005 = vadd.f32 %v4507, %v4885
      %v5006 = vadd.f32 %v4508, %v4888
      %v5007 = vadd.f32 %v4509, %v4893
      %v5008 = vadd.f32 %v4510, %v4896
      %v5009 = vadd.f32 %v4511, %v4901
      %v5010 = vadd.f32 %v4512, %v4904
      %v5011 = vadd.f32 %v4513, %v4909
      %v5012 = vadd.f32 %v4514, %v4912
      %v5013 = vadd.f32 %v4515, %v4917
      %v5014 = vadd.f32 %v4516, %v4920
      %v5015 = vadd.f32 %v4517, %v4925
      %v5016 = vadd.f32 %v4518, %v4928
      %v5017 = vadd.f32 %v4519, %v4933
      %v5018 = vadd.f32 %v4520, %v4936
      %v5019 = vadd.f32 %v4521, %v4941
      %v5020 = vadd.f32 %v4522, %v4944
      %v5021 = vadd.f32 %v4523, %v4949
      %v5022 = vadd.f32 %v4524, %v4952
      %v5023 = vadd.f32 %v4525, %v4957
      %v5024 = vadd.f32 %v4526, %v4960
      %v5025 = vadd.f32 %v4527, %v4965
      %v5026 = vadd.f32 %v4528, %v4968
      %v5027 = vadd.f32 %v4529, %v4973
      %v5028 = vadd.f32 %v4530, %v4976
      %v5029 = vadd.f32 %v4531, %v4981
      %v5030 = vadd.f32 %v4532, %v4984
      %v5031 = vadd.f32 %v4533, %v4989
      %v5032 = vadd.f32 %v4534, %v4992
      %v5033 = vadd.f32 %v4535, %v4997
      %v5034 = vadd.f32 %v4536, %v5000
      %v5035 = vld [vmem:[%s2] sm:$0x1]
      %v5037 = vlaneseq
      %v5038 = vshrl.u32 %v5037, 7
      %v5039 = vsub.s32 0, %v5038
      %v5040 = vrot.slane %v5035, %v5039
      %v5042 = vadd.f32 %v5003, %v5040
      %v5043 = vadd.f32 %v5004, %v5040
      %v5044 = vadd.f32 %v5005, %v5040
      %v5045 = vadd.f32 %v5006, %v5040
      %v5046 = vadd.f32 %v5007, %v5040
      %v5047 = vadd.f32 %v5008, %v5040
      %v5048 = vadd.f32 %v5009, %v5040
      %v5049 = vadd.f32 %v5010, %v5040
      %v5050 = vadd.f32 %v5011, %v5040
      %v5051 = vadd.f32 %v5012, %v5040
      %v5052 = vadd.f32 %v5013, %v5040
      %v5053 = vadd.f32 %v5014, %v5040
      %v5054 = vadd.f32 %v5015, %v5040
      %v5055 = vadd.f32 %v5016, %v5040
      %v5056 = vadd.f32 %v5017, %v5040
      %v5057 = vadd.f32 %v5018, %v5040
      %v5058 = vadd.f32 %v5019, %v5040
      %v5059 = vadd.f32 %v5020, %v5040
      %v5060 = vadd.f32 %v5021, %v5040
      %v5061 = vadd.f32 %v5022, %v5040
      %v5062 = vadd.f32 %v5023, %v5040
      %v5063 = vadd.f32 %v5024, %v5040
      %v5064 = vadd.f32 %v5025, %v5040
      %v5065 = vadd.f32 %v5026, %v5040
      %v5066 = vadd.f32 %v5027, %v5040
      %v5067 = vadd.f32 %v5028, %v5040
      %v5068 = vadd.f32 %v5029, %v5040
      %v5069 = vadd.f32 %v5030, %v5040
      %v5070 = vadd.f32 %v5031, %v5040
      %v5071 = vadd.f32 %v5032, %v5040
      %v5072 = vadd.f32 %v5033, %v5040
      %v5073 = vadd.f32 %v5034, %v5040
      %vm5074 = vcmp.gt.f32.partialorder %v5042, 0.0
      %vm5075 = vcmp.gt.f32.partialorder %v5043, 0.0
      %vm5076 = vcmp.gt.f32.partialorder %v5044, 0.0
      %vm5077 = vcmp.gt.f32.partialorder %v5045, 0.0
      %vm5078 = vcmp.gt.f32.partialorder %v5046, 0.0
      %vm5079 = vcmp.gt.f32.partialorder %v5047, 0.0
      %vm5080 = vcmp.gt.f32.partialorder %v5048, 0.0
      %vm5081 = vcmp.gt.f32.partialorder %v5049, 0.0
      %vm5082 = vcmp.gt.f32.partialorder %v5050, 0.0
      %vm5083 = vcmp.gt.f32.partialorder %v5051, 0.0
      %vm5084 = vcmp.gt.f32.partialorder %v5052, 0.0
      %vm5085 = vcmp.gt.f32.partialorder %v5053, 0.0
      %vm5086 = vcmp.gt.f32.partialorder %v5054, 0.0
      %vm5087 = vcmp.gt.f32.partialorder %v5055, 0.0
      %vm5088 = vcmp.gt.f32.partialorder %v5056, 0.0
      %vm5089 = vcmp.gt.f32.partialorder %v5057, 0.0
      %vm5090 = vcmp.gt.f32.partialorder %v5058, 0.0
      %vm5091 = vcmp.gt.f32.partialorder %v5059, 0.0
      %vm5092 = vcmp.gt.f32.partialorder %v5060, 0.0
      %vm5093 = vcmp.gt.f32.partialorder %v5061, 0.0
      %vm5094 = vcmp.gt.f32.partialorder %v5062, 0.0
      %vm5095 = vcmp.gt.f32.partialorder %v5063, 0.0
      %vm5096 = vcmp.gt.f32.partialorder %v5064, 0.0
      %vm5097 = vcmp.gt.f32.partialorder %v5065, 0.0
      %vm5098 = vcmp.gt.f32.partialorder %v5066, 0.0
      %vm5099 = vcmp.gt.f32.partialorder %v5067, 0.0
      %vm5100 = vcmp.gt.f32.partialorder %v5068, 0.0
      %vm5101 = vcmp.gt.f32.partialorder %v5069, 0.0
      %vm5102 = vcmp.gt.f32.partialorder %v5070, 0.0
      %vm5103 = vcmp.gt.f32.partialorder %v5071, 0.0
      %vm5104 = vcmp.gt.f32.partialorder %v5072, 0.0
      %vm5105 = vcmp.gt.f32.partialorder %v5073, 0.0
      %v5106 = vmul.f32 %v5042, 0.1
      %v5107 = vmul.f32 %v5043, 0.1
      %v5108 = vmul.f32 %v5044, 0.1
      %v5109 = vmul.f32 %v5045, 0.1
      %v5110 = vmul.f32 %v5046, 0.1
      %v5111 = vmul.f32 %v5047, 0.1
      %v5112 = vmul.f32 %v5048, 0.1
      %v5113 = vmul.f32 %v5049, 0.1
      %v5114 = vmul.f32 %v5050, 0.1
      %v5115 = vmul.f32 %v5051, 0.1
      %v5116 = vmul.f32 %v5052, 0.1
      %v5117 = vmul.f32 %v5053, 0.1
      %v5118 = vmul.f32 %v5054, 0.1
      %v5119 = vmul.f32 %v5055, 0.1
      %v5120 = vmul.f32 %v5056, 0.1
      %v5121 = vmul.f32 %v5057, 0.1
      %v5122 = vmul.f32 %v5058, 0.1
      %v5123 = vmul.f32 %v5059, 0.1
      %v5124 = vmul.f32 %v5060, 0.1
      %v5125 = vmul.f32 %v5061, 0.1
      %v5126 = vmul.f32 %v5062, 0.1
      %v5127 = vmul.f32 %v5063, 0.1
      %v5128 = vmul.f32 %v5064, 0.1
      %v5129 = vmul.f32 %v5065, 0.1
      %v5130 = vmul.f32 %v5066, 0.1
      %v5131 = vmul.f32 %v5067, 0.1
      %v5132 = vmul.f32 %v5068, 0.1
      %v5133 = vmul.f32 %v5069, 0.1
      %v5134 = vmul.f32 %v5070, 0.1
      %v5135 = vmul.f32 %v5071, 0.1
      %v5136 = vmul.f32 %v5072, 0.1
      %v5137 = vmul.f32 %v5073, 0.1
      %v5138 = vsel %vm5074, %v5042, %v5106
      %v5139 = vsel %vm5075, %v5043, %v5107
      %v5140 = vsel %vm5076, %v5044, %v5108
      %v5141 = vsel %vm5077, %v5045, %v5109
      %v5142 = vsel %vm5078, %v5046, %v5110
      %v5143 = vsel %vm5079, %v5047, %v5111
      %v5144 = vsel %vm5080, %v5048, %v5112
      %v5145 = vsel %vm5081, %v5049, %v5113
      %v5146 = vsel %vm5082, %v5050, %v5114
      %v5147 = vsel %vm5083, %v5051, %v5115
      %v5148 = vsel %vm5084, %v5052, %v5116
      %v5149 = vsel %vm5085, %v5053, %v5117
      %v5150 = vsel %vm5086, %v5054, %v5118
      %v5151 = vsel %vm5087, %v5055, %v5119
      %v5152 = vsel %vm5088, %v5056, %v5120
      %v5153 = vsel %vm5089, %v5057, %v5121
      %v5154 = vsel %vm5090, %v5058, %v5122
      %v5155 = vsel %vm5091, %v5059, %v5123
      %v5156 = vsel %vm5092, %v5060, %v5124
      %v5157 = vsel %vm5093, %v5061, %v5125
      %v5158 = vsel %vm5094, %v5062, %v5126
      %v5159 = vsel %vm5095, %v5063, %v5127
      %v5160 = vsel %vm5096, %v5064, %v5128
      %v5161 = vsel %vm5097, %v5065, %v5129
      %v5162 = vsel %vm5098, %v5066, %v5130
      %v5163 = vsel %vm5099, %v5067, %v5131
      %v5164 = vsel %vm5100, %v5068, %v5132
      %v5165 = vsel %vm5101, %v5069, %v5133
      %v5166 = vsel %vm5102, %v5070, %v5134
      %v5167 = vsel %vm5103, %v5071, %v5135
      %v5168 = vsel %vm5104, %v5072, %v5136
      %v5169 = vsel %vm5105, %v5073, %v5137
      %v5170 = vpack.c.bf16 %v5139, %v5138
      %v5171 = vpack.c.bf16 %v5141, %v5140
      %v5172 = vpack.c.bf16 %v5143, %v5142
      %v5173 = vpack.c.bf16 %v5145, %v5144
      %v5174 = vpack.c.bf16 %v5147, %v5146
      %v5175 = vpack.c.bf16 %v5149, %v5148
      %v5176 = vpack.c.bf16 %v5151, %v5150
      %v5177 = vpack.c.bf16 %v5153, %v5152
      %v5178 = vpack.c.bf16 %v5155, %v5154
      %v5179 = vpack.c.bf16 %v5157, %v5156
      %v5180 = vpack.c.bf16 %v5159, %v5158
      %v5181 = vpack.c.bf16 %v5161, %v5160
      %v5182 = vpack.c.bf16 %v5163, %v5162
      %v5183 = vpack.c.bf16 %v5165, %v5164
      %v5184 = vpack.c.bf16 %v5167, %v5166
      %v5185 = vpack.c.bf16 %v5169, %v5168
      %v5186 = vld [vmem:[%s3] sm:$0xf]
      %v5187 = vld [vmem:[%s3 + $0x4] sm:$0xf]
      %v5188 = vld [vmem:[%s3 + $0x8] sm:$0xf]
      %v5189 = vld [vmem:[%s3 + $0xc] sm:$0xf]
      %v5190 = vld [vmem:[%s3 + $0x10] sm:$0xf]
      %v5191 = vld [vmem:[%s3 + $0x14] sm:$0xf]
      %v5192 = vld [vmem:[%s3 + $0x18] sm:$0xf]
      %v5193 = vld [vmem:[%s3 + $0x1c] sm:$0xf]
      %v5194 = vld [vmem:[%s3 + $0x20] sm:$0xf]
      %v5195 = vld [vmem:[%s3 + $0x24] sm:$0xf]
      %v5196 = vld [vmem:[%s3 + $0x28] sm:$0xf]
      %v5197 = vld [vmem:[%s3 + $0x2c] sm:$0xf]
      %v5198 = vld [vmem:[%s3 + $0x30] sm:$0xf]
      %v5199 = vld [vmem:[%s3 + $0x34] sm:$0xf]
      %v5200 = vld [vmem:[%s3 + $0x38] sm:$0xf]
      %v5201 = vld [vmem:[%s3 + $0x3c] sm:$0xf]
      %v5202 = vld [vmem:[%s4] sm:$0x1]
      %v5204 = vlaneseq
      %v5205 = vshrl.u32 %v5204, 7
      %v5206 = vsub.s32 0, %v5205
      %v5207 = vrot.slane %v5202, %v5206
      %v5225 = vunpack.c.l.b16 %v5186
      %v5226 = vunpack.c.l.b16 %v5187
      %v5227 = vunpack.c.l.b16 %v5188
      %v5228 = vunpack.c.l.b16 %v5189
      %v5229 = vunpack.c.l.b16 %v5190
      %v5230 = vunpack.c.l.b16 %v5191
      %v5231 = vunpack.c.l.b16 %v5192
      %v5232 = vunpack.c.l.b16 %v5193
      %v5233 = vunpack.c.l.b16 %v5194
      %v5234 = vunpack.c.l.b16 %v5195
      %v5235 = vunpack.c.l.b16 %v5196
      %v5236 = vunpack.c.l.b16 %v5197
      %v5237 = vunpack.c.l.b16 %v5198
      %v5238 = vunpack.c.l.b16 %v5199
      %v5239 = vunpack.c.l.b16 %v5200
      %v5240 = vunpack.c.l.b16 %v5201
      %v5241 = vpack.c.b16 %v5226, %v5225
      %v5242 = vpack.c.b16 %v5228, %v5227
      %v5243 = vpack.c.b16 %v5230, %v5229
      %v5244 = vpack.c.b16 %v5232, %v5231
      %v5245 = vpack.c.b16 %v5234, %v5233
      %v5246 = vpack.c.b16 %v5236, %v5235
      %v5247 = vpack.c.b16 %v5238, %v5237
      %v5248 = vpack.c.b16 %v5240, %v5239
      %5257 = vmatprep.subr.bf16.mxu0 0
      %5258 = vmatpush1.bf16.msra.mxu0 %v5248
      %5259 = vmatprep.subr.bf16.mxu0 0
      %5260 = vmatpush1.bf16.msra.mxu0 %v5247
      %5261 = vmatprep.subr.bf16.mxu0 0
      %5262 = vmatpush1.bf16.msra.mxu0 %v5246
      %5263 = vmatprep.subr.bf16.mxu0 0
      %5264 = vmatpush1.bf16.msra.mxu0 %v5245
      %5265 = vmatprep.subr.bf16.mxu0 0
      %5266 = vmatpush1.bf16.msra.mxu0 %v5244
      %5267 = vmatprep.subr.bf16.mxu0 0
      %5268 = vmatpush1.bf16.msra.mxu0 %v5243
      %5269 = vmatprep.subr.bf16.mxu0 0
      %5270 = vmatpush1.bf16.msra.mxu0 %v5242
      %5271 = vmatprep.subr.bf16.mxu0 0
      %5272 = vmatpush1.bf16.msra.mxu0 %v5241
      %5273 = vmatprep.subr.bf16.mxu0 0
      %5274 = vmatpush2.bf16.msra.mxu0 0
      %5275 = vmatprep.subr.bf16.mxu0 0
      %5276 = vmatpush2.bf16.msra.mxu0 0
      %5277 = vmatprep.subr.bf16.mxu0 0
      %5278 = vmatpush2.bf16.msra.mxu0 0
      %5279 = vmatprep.subr.bf16.mxu0 0
      %5280 = vmatpush2.bf16.msra.mxu0 0
      %5281 = vmatprep.subr.bf16.mxu0 0
      %5282 = vmatpush2.bf16.msra.mxu0 0
      %5283 = vmatprep.subr.bf16.mxu0 0
      %5284 = vmatpush2.bf16.msra.mxu0 0
      %5285 = vmatprep.subr.bf16.mxu0 0
      %5286 = vmatpush2.bf16.msra.mxu0 0
      %5287 = vmatprep.subr.bf16.mxu0 0
      %5288 = vmatpush2.bf16.msra.mxu0 0
      %5289 = vmatprep.mubr.bf16.mxu0 0
      %5290 = vmatmul.mubr.bf16.gmra.mxu0 %v5170
      %v5291 = vpop.f32.mrf.mxu0
      %v5292 = vadd.f32 %v5207, %v5291
      %v5293 = vpop.f32.mrf.mxu0
      %v5294 = vpop.f32.mrf.mxu0
      %v5295 = vadd.f32 %v5207, %v5294
      %v5296 = vpop.f32.mrf.mxu0
      %5297 = vmatprep.mubr.bf16.mxu0 0
      %5298 = vmatmul.mubr.bf16.gmra.mxu0 %v5171
      %v5299 = vpop.f32.mrf.mxu0
      %v5300 = vadd.f32 %v5207, %v5299
      %v5301 = vpop.f32.mrf.mxu0
      %v5302 = vpop.f32.mrf.mxu0
      %v5303 = vadd.f32 %v5207, %v5302
      %v5304 = vpop.f32.mrf.mxu0
      %5305 = vmatprep.mubr.bf16.mxu0 0
      %5306 = vmatmul.mubr.bf16.gmra.mxu0 %v5172
      %v5307 = vpop.f32.mrf.mxu0
      %v5308 = vadd.f32 %v5207, %v5307
      %v5309 = vpop.f32.mrf.mxu0
      %v5310 = vpop.f32.mrf.mxu0
      %v5311 = vadd.f32 %v5207, %v5310
      %v5312 = vpop.f32.mrf.mxu0
      %5313 = vmatprep.mubr.bf16.mxu0 0
      %5314 = vmatmul.mubr.bf16.gmra.mxu0 %v5173
      %v5315 = vpop.f32.mrf.mxu0
      %v5316 = vadd.f32 %v5207, %v5315
      %v5317 = vpop.f32.mrf.mxu0
      %v5318 = vpop.f32.mrf.mxu0
      %v5319 = vadd.f32 %v5207, %v5318
      %v5320 = vpop.f32.mrf.mxu0
      %5321 = vmatprep.mubr.bf16.mxu0 0
      %5322 = vmatmul.mubr.bf16.gmra.mxu0 %v5174
      %v5323 = vpop.f32.mrf.mxu0
      %v5324 = vadd.f32 %v5207, %v5323
      %v5325 = vpop.f32.mrf.mxu0
      %v5326 = vpop.f32.mrf.mxu0
      %v5327 = vadd.f32 %v5207, %v5326
      %v5328 = vpop.f32.mrf.mxu0
      %5329 = vmatprep.mubr.bf16.mxu0 0
      %5330 = vmatmul.mubr.bf16.gmra.mxu0 %v5175
      %v5331 = vpop.f32.mrf.mxu0
      %v5332 = vadd.f32 %v5207, %v5331
      %v5333 = vpop.f32.mrf.mxu0
      %v5334 = vpop.f32.mrf.mxu0
      %v5335 = vadd.f32 %v5207, %v5334
      %v5336 = vpop.f32.mrf.mxu0
      %5337 = vmatprep.mubr.bf16.mxu0 0
      %5338 = vmatmul.mubr.bf16.gmra.mxu0 %v5176
      %v5339 = vpop.f32.mrf.mxu0
      %v5340 = vadd.f32 %v5207, %v5339
      %v5341 = vpop.f32.mrf.mxu0
      %v5342 = vpop.f32.mrf.mxu0
      %v5343 = vadd.f32 %v5207, %v5342
      %v5344 = vpop.f32.mrf.mxu0
      %5345 = vmatprep.mubr.bf16.mxu0 0
      %5346 = vmatmul.mubr.bf16.gmra.mxu0 %v5177
      %v5347 = vpop.f32.mrf.mxu0
      %v5348 = vadd.f32 %v5207, %v5347
      %v5349 = vpop.f32.mrf.mxu0
      %v5350 = vpop.f32.mrf.mxu0
      %v5351 = vadd.f32 %v5207, %v5350
      %v5352 = vpop.f32.mrf.mxu0
      %5353 = vmatprep.mubr.bf16.mxu0 0
      %5354 = vmatmul.mubr.bf16.gmra.mxu0 %v5178
      %v5355 = vpop.f32.mrf.mxu0
      %v5356 = vadd.f32 %v5207, %v5355
      %v5357 = vpop.f32.mrf.mxu0
      %v5358 = vpop.f32.mrf.mxu0
      %v5359 = vadd.f32 %v5207, %v5358
      %v5360 = vpop.f32.mrf.mxu0
      %5361 = vmatprep.mubr.bf16.mxu0 0
      %5362 = vmatmul.mubr.bf16.gmra.mxu0 %v5179
      %v5363 = vpop.f32.mrf.mxu0
      %v5364 = vadd.f32 %v5207, %v5363
      %v5365 = vpop.f32.mrf.mxu0
      %v5366 = vpop.f32.mrf.mxu0
      %v5367 = vadd.f32 %v5207, %v5366
      %v5368 = vpop.f32.mrf.mxu0
      %5369 = vmatprep.mubr.bf16.mxu0 0
      %5370 = vmatmul.mubr.bf16.gmra.mxu0 %v5180
      %v5371 = vpop.f32.mrf.mxu0
      %v5372 = vadd.f32 %v5207, %v5371
      %v5373 = vpop.f32.mrf.mxu0
      %v5374 = vpop.f32.mrf.mxu0
      %v5375 = vadd.f32 %v5207, %v5374
      %v5376 = vpop.f32.mrf.mxu0
      %5377 = vmatprep.mubr.bf16.mxu0 0
      %5378 = vmatmul.mubr.bf16.gmra.mxu0 %v5181
      %v5379 = vpop.f32.mrf.mxu0
      %v5380 = vadd.f32 %v5207, %v5379
      %v5381 = vpop.f32.mrf.mxu0
      %v5382 = vpop.f32.mrf.mxu0
      %v5383 = vadd.f32 %v5207, %v5382
      %v5384 = vpop.f32.mrf.mxu0
      %5385 = vmatprep.mubr.bf16.mxu0 0
      %5386 = vmatmul.mubr.bf16.gmra.mxu0 %v5182
      %v5387 = vpop.f32.mrf.mxu0
      %v5388 = vadd.f32 %v5207, %v5387
      %v5389 = vpop.f32.mrf.mxu0
      %v5390 = vpop.f32.mrf.mxu0
      %v5391 = vadd.f32 %v5207, %v5390
      %v5392 = vpop.f32.mrf.mxu0
      %5393 = vmatprep.mubr.bf16.mxu0 0
      %5394 = vmatmul.mubr.bf16.gmra.mxu0 %v5183
      %v5395 = vpop.f32.mrf.mxu0
      %v5396 = vadd.f32 %v5207, %v5395
      %v5397 = vpop.f32.mrf.mxu0
      %v5398 = vpop.f32.mrf.mxu0
      %v5399 = vadd.f32 %v5207, %v5398
      %v5400 = vpop.f32.mrf.mxu0
      %5401 = vmatprep.mubr.bf16.mxu0 0
      %5402 = vmatmul.mubr.bf16.gmra.mxu0 %v5184
      %v5403 = vpop.f32.mrf.mxu0
      %v5404 = vadd.f32 %v5207, %v5403
      %v5405 = vpop.f32.mrf.mxu0
      %v5406 = vpop.f32.mrf.mxu0
      %v5407 = vadd.f32 %v5207, %v5406
      %v5408 = vpop.f32.mrf.mxu0
      %5409 = vmatprep.mubr.bf16.mxu0 0
      %5410 = vmatmul.mubr.bf16.gmra.mxu0 %v5185
      %v5411 = vpop.f32.mrf.mxu0
      %v5412 = vadd.f32 %v5207, %v5411
      %v5413 = vpop.f32.mrf.mxu0
      %v5414 = vpop.f32.mrf.mxu0
      %v5415 = vadd.f32 %v5207, %v5414
      %v5416 = vpop.f32.mrf.mxu0
      %5417 = vdwg.mxu0
      %vm5418 = vcmp.gt.f32.partialorder %v5292, 0.0
      %vm5419 = vcmp.gt.f32.partialorder %v5295, 0.0
      %vm5420 = vcmp.gt.f32.partialorder %v5300, 0.0
      %vm5421 = vcmp.gt.f32.partialorder %v5303, 0.0
      %vm5422 = vcmp.gt.f32.partialorder %v5308, 0.0
      %vm5423 = vcmp.gt.f32.partialorder %v5311, 0.0
      %vm5424 = vcmp.gt.f32.partialorder %v5316, 0.0
      %vm5425 = vcmp.gt.f32.partialorder %v5319, 0.0
      %vm5426 = vcmp.gt.f32.partialorder %v5324, 0.0
      %vm5427 = vcmp.gt.f32.partialorder %v5327, 0.0
      %vm5428 = vcmp.gt.f32.partialorder %v5332, 0.0
      %vm5429 = vcmp.gt.f32.partialorder %v5335, 0.0
      %vm5430 = vcmp.gt.f32.partialorder %v5340, 0.0
      %vm5431 = vcmp.gt.f32.partialorder %v5343, 0.0
      %vm5432 = vcmp.gt.f32.partialorder %v5348, 0.0
      %vm5433 = vcmp.gt.f32.partialorder %v5351, 0.0
      %vm5434 = vcmp.gt.f32.partialorder %v5356, 0.0
      %vm5435 = vcmp.gt.f32.partialorder %v5359, 0.0
      %vm5436 = vcmp.gt.f32.partialorder %v5364, 0.0
      %vm5437 = vcmp.gt.f32.partialorder %v5367, 0.0
      %vm5438 = vcmp.gt.f32.partialorder %v5372, 0.0
      %vm5439 = vcmp.gt.f32.partialorder %v5375, 0.0
      %vm5440 = vcmp.gt.f32.partialorder %v5380, 0.0
      %vm5441 = vcmp.gt.f32.partialorder %v5383, 0.0
      %vm5442 = vcmp.gt.f32.partialorder %v5388, 0.0
      %vm5443 = vcmp.gt.f32.partialorder %v5391, 0.0
      %vm5444 = vcmp.gt.f32.partialorder %v5396, 0.0
      %vm5445 = vcmp.gt.f32.partialorder %v5399, 0.0
      %vm5446 = vcmp.gt.f32.partialorder %v5404, 0.0
      %vm5447 = vcmp.gt.f32.partialorder %v5407, 0.0
      %vm5448 = vcmp.gt.f32.partialorder %v5412, 0.0
      %vm5449 = vcmp.gt.f32.partialorder %v5415, 0.0
      %v5450 = vmul.f32 %v5292, 0.1
      %v5451 = vmul.f32 %v5295, 0.1
      %v5452 = vmul.f32 %v5300, 0.1
      %v5453 = vmul.f32 %v5303, 0.1
      %v5454 = vmul.f32 %v5308, 0.1
      %v5455 = vmul.f32 %v5311, 0.1
      %v5456 = vmul.f32 %v5316, 0.1
      %v5457 = vmul.f32 %v5319, 0.1
      %v5458 = vmul.f32 %v5324, 0.1
      %v5459 = vmul.f32 %v5327, 0.1
      %v5460 = vmul.f32 %v5332, 0.1
      %v5461 = vmul.f32 %v5335, 0.1
      %v5462 = vmul.f32 %v5340, 0.1
      %v5463 = vmul.f32 %v5343, 0.1
      %v5464 = vmul.f32 %v5348, 0.1
      %v5465 = vmul.f32 %v5351, 0.1
      %v5466 = vmul.f32 %v5356, 0.1
      %v5467 = vmul.f32 %v5359, 0.1
      %v5468 = vmul.f32 %v5364, 0.1
      %v5469 = vmul.f32 %v5367, 0.1
      %v5470 = vmul.f32 %v5372, 0.1
      %v5471 = vmul.f32 %v5375, 0.1
      %v5472 = vmul.f32 %v5380, 0.1
      %v5473 = vmul.f32 %v5383, 0.1
      %v5474 = vmul.f32 %v5388, 0.1
      %v5475 = vmul.f32 %v5391, 0.1
      %v5476 = vmul.f32 %v5396, 0.1
      %v5477 = vmul.f32 %v5399, 0.1
      %v5478 = vmul.f32 %v5404, 0.1
      %v5479 = vmul.f32 %v5407, 0.1
      %v5480 = vmul.f32 %v5412, 0.1
      %v5481 = vmul.f32 %v5415, 0.1
      %v5482 = vsel %vm5418, %v5292, %v5450
      %v5483 = vsel %vm5419, %v5295, %v5451
      %v5484 = vsel %vm5420, %v5300, %v5452
      %v5485 = vsel %vm5421, %v5303, %v5453
      %v5486 = vsel %vm5422, %v5308, %v5454
      %v5487 = vsel %vm5423, %v5311, %v5455
      %v5488 = vsel %vm5424, %v5316, %v5456
      %v5489 = vsel %vm5425, %v5319, %v5457
      %v5490 = vsel %vm5426, %v5324, %v5458
      %v5491 = vsel %vm5427, %v5327, %v5459
      %v5492 = vsel %vm5428, %v5332, %v5460
      %v5493 = vsel %vm5429, %v5335, %v5461
      %v5494 = vsel %vm5430, %v5340, %v5462
      %v5495 = vsel %vm5431, %v5343, %v5463
      %v5496 = vsel %vm5432, %v5348, %v5464
      %v5497 = vsel %vm5433, %v5351, %v5465
      %v5498 = vsel %vm5434, %v5356, %v5466
      %v5499 = vsel %vm5435, %v5359, %v5467
      %v5500 = vsel %vm5436, %v5364, %v5468
      %v5501 = vsel %vm5437, %v5367, %v5469
      %v5502 = vsel %vm5438, %v5372, %v5470
      %v5503 = vsel %vm5439, %v5375, %v5471
      %v5504 = vsel %vm5440, %v5380, %v5472
      %v5505 = vsel %vm5441, %v5383, %v5473
      %v5506 = vsel %vm5442, %v5388, %v5474
      %v5507 = vsel %vm5443, %v5391, %v5475
      %v5508 = vsel %vm5444, %v5396, %v5476
      %v5509 = vsel %vm5445, %v5399, %v5477
      %v5510 = vsel %vm5446, %v5404, %v5478
      %v5511 = vsel %vm5447, %v5407, %v5479
      %v5512 = vsel %vm5448, %v5412, %v5480
      %v5513 = vsel %vm5449, %v5415, %v5481
      %v5514 = vpack.c.bf16 %v5483, %v5482
      %v5515 = vpack.c.bf16 %v5485, %v5484
      %v5516 = vpack.c.bf16 %v5487, %v5486
      %v5517 = vpack.c.bf16 %v5489, %v5488
      %v5518 = vpack.c.bf16 %v5491, %v5490
      %v5519 = vpack.c.bf16 %v5493, %v5492
      %v5520 = vpack.c.bf16 %v5495, %v5494
      %v5521 = vpack.c.bf16 %v5497, %v5496
      %v5522 = vpack.c.bf16 %v5499, %v5498
      %v5523 = vpack.c.bf16 %v5501, %v5500
      %v5524 = vpack.c.bf16 %v5503, %v5502
      %v5525 = vpack.c.bf16 %v5505, %v5504
      %v5526 = vpack.c.bf16 %v5507, %v5506
      %v5527 = vpack.c.bf16 %v5509, %v5508
      %v5528 = vpack.c.bf16 %v5511, %v5510
      %v5529 = vpack.c.bf16 %v5513, %v5512
      %v5546 = vunpack.c.l.b16 %v5514
      %v5547 = vunpack.c.h.b16 %v5514
      %v5548 = vunpack.c.l.b16 %v5515
      %v5549 = vunpack.c.h.b16 %v5515
      %v5550 = vunpack.c.l.b16 %v5516
      %v5551 = vunpack.c.h.b16 %v5516
      %v5552 = vunpack.c.l.b16 %v5517
      %v5553 = vunpack.c.h.b16 %v5517
      %v5554 = vunpack.c.l.b16 %v5518
      %v5555 = vunpack.c.h.b16 %v5518
      %v5556 = vunpack.c.l.b16 %v5519
      %v5557 = vunpack.c.h.b16 %v5519
      %v5558 = vunpack.c.l.b16 %v5520
      %v5559 = vunpack.c.h.b16 %v5520
      %v5560 = vunpack.c.l.b16 %v5521
      %v5561 = vunpack.c.h.b16 %v5521
      %v5562 = vunpack.c.l.b16 %v5522
      %v5563 = vunpack.c.h.b16 %v5522
      %v5564 = vunpack.c.l.b16 %v5523
      %v5565 = vunpack.c.h.b16 %v5523
      %v5566 = vunpack.c.l.b16 %v5524
      %v5567 = vunpack.c.h.b16 %v5524
      %v5568 = vunpack.c.l.b16 %v5525
      %v5569 = vunpack.c.h.b16 %v5525
      %v5570 = vunpack.c.l.b16 %v5526
      %v5571 = vunpack.c.h.b16 %v5526
      %v5572 = vunpack.c.l.b16 %v5527
      %v5573 = vunpack.c.h.b16 %v5527
      %v5574 = vunpack.c.l.b16 %v5528
      %v5575 = vunpack.c.h.b16 %v5528
      %v5576 = vunpack.c.l.b16 %v5529
      %v5577 = vunpack.c.h.b16 %v5529
      %v5578 = vpack.c.b16 %v5546, %v5546
      %v5579 = vpack.c.b16 %v5547, %v5547
      %v5580 = vpack.c.b16 %v5548, %v5548
      %v5581 = vpack.c.b16 %v5549, %v5549
      %v5582 = vpack.c.b16 %v5550, %v5550
      %v5583 = vpack.c.b16 %v5551, %v5551
      %v5584 = vpack.c.b16 %v5552, %v5552
      %v5585 = vpack.c.b16 %v5553, %v5553
      %v5586 = vpack.c.b16 %v5554, %v5554
      %v5587 = vpack.c.b16 %v5555, %v5555
      %v5588 = vpack.c.b16 %v5556, %v5556
      %v5589 = vpack.c.b16 %v5557, %v5557
      %v5590 = vpack.c.b16 %v5558, %v5558
      %v5591 = vpack.c.b16 %v5559, %v5559
      %v5592 = vpack.c.b16 %v5560, %v5560
      %v5593 = vpack.c.b16 %v5561, %v5561
      %v5594 = vpack.c.b16 %v5562, %v5562
      %v5595 = vpack.c.b16 %v5563, %v5563
      %v5596 = vpack.c.b16 %v5564, %v5564
      %v5597 = vpack.c.b16 %v5565, %v5565
      %v5598 = vpack.c.b16 %v5566, %v5566
      %v5599 = vpack.c.b16 %v5567, %v5567
      %v5600 = vpack.c.b16 %v5568, %v5568
      %v5601 = vpack.c.b16 %v5569, %v5569
      %v5602 = vpack.c.b16 %v5570, %v5570
      %v5603 = vpack.c.b16 %v5571, %v5571
      %v5604 = vpack.c.b16 %v5572, %v5572
      %v5605 = vpack.c.b16 %v5573, %v5573
      %v5606 = vpack.c.b16 %v5574, %v5574
      %v5607 = vpack.c.b16 %v5575, %v5575
      %v5608 = vpack.c.b16 %v5576, %v5576
      %v5609 = vpack.c.b16 %v5577, %v5577
      %5642 = vst [vmem:[%s224] sm:$0xf] %v5578
      %5643 = vst [vmem:[%s224 + $0x4] sm:$0xf] %v5579
      %5644 = vst [vmem:[%s224 + $0x8] sm:$0xf] %v5580
      %5645 = vst [vmem:[%s224 + $0xc] sm:$0xf] %v5581
      %5646 = vst [vmem:[%s224 + $0x10] sm:$0xf] %v5582
      %5647 = vst [vmem:[%s224 + $0x14] sm:$0xf] %v5583
      %5648 = vst [vmem:[%s224 + $0x18] sm:$0xf] %v5584
      %5649 = vst [vmem:[%s224 + $0x1c] sm:$0xf] %v5585
      %5650 = vst [vmem:[%s224 + $0x20] sm:$0xf] %v5586
      %5651 = vst [vmem:[%s224 + $0x24] sm:$0xf] %v5587
      %5652 = vst [vmem:[%s224 + $0x28] sm:$0xf] %v5588
      %5653 = vst [vmem:[%s224 + $0x2c] sm:$0xf] %v5589
      %5654 = vst [vmem:[%s224 + $0x30] sm:$0xf] %v5590
      %5655 = vst [vmem:[%s224 + $0x34] sm:$0xf] %v5591
      %5656 = vst [vmem:[%s224 + $0x38] sm:$0xf] %v5592
      %5657 = vst [vmem:[%s224 + $0x3c] sm:$0xf] %v5593
      %5658 = vst [vmem:[%s224 + $0x40] sm:$0xf] %v5594
      %5659 = vst [vmem:[%s224 + $0x44] sm:$0xf] %v5595
      %5660 = vst [vmem:[%s224 + $0x48] sm:$0xf] %v5596
      %5661 = vst [vmem:[%s224 + $0x4c] sm:$0xf] %v5597
      %5662 = vst [vmem:[%s224 + $0x50] sm:$0xf] %v5598
      %5663 = vst [vmem:[%s224 + $0x54] sm:$0xf] %v5599
      %5664 = vst [vmem:[%s224 + $0x58] sm:$0xf] %v5600
      %5665 = vst [vmem:[%s224 + $0x5c] sm:$0xf] %v5601
      %5666 = vst [vmem:[%s224 + $0x60] sm:$0xf] %v5602
      %5667 = vst [vmem:[%s224 + $0x64] sm:$0xf] %v5603
      %5668 = vst [vmem:[%s224 + $0x68] sm:$0xf] %v5604
      %5669 = vst [vmem:[%s224 + $0x6c] sm:$0xf] %v5605
      %5670 = vst [vmem:[%s224 + $0x70] sm:$0xf] %v5606
      %5671 = vst [vmem:[%s224 + $0x74] sm:$0xf] %v5607
      %5672 = vst [vmem:[%s224 + $0x78] sm:$0xf] %v5608
      %5673 = vst [vmem:[%s224 + $0x7c] sm:$0xf] %v5609
      %p5674 = scmp.lt.s32.totalorder %s16, 1
      %s5675 = scalar_select %p5674, %s16, 1
      %s5676 = smul.addr %s5675, 32
      %s5677 = smul.addr %s5676, 4
      %s5678 = scalar_lea.vmem %s5, %s5677
      // Predicated region
      $region41: #{detection_block_forward.3} parent=39 // pred_check
        %p5679 = pneg %p144
      $region42: #{detection_block_forward.3} parent=39 // pred_check_branch
        %5681 = sbr.rel (%p5679) target = $region44
      $region43: #{detection_block_forward.3} parent=39 // pred_region
        _
      $region44: #{detection_block_forward.3} parent=39 // pred_fallthru
        _
    $region40: #{detection_block_forward.3} parent=5 // pred_fallthru
      _
    %p5682 = scmp.le.s32.totalorder 2, %s11
    // Predicated region
    $region45: #{detection_block_forward.3} parent=5 // pred_check
      %p5683 = pneg %p5682
    $region46: #{detection_block_forward.3} parent=5 // pred_check_branch
      %5685 = sbr.rel (%p5683) target = $region48
    $region47: #{detection_block_forward.3} parent=5 // pred_region
      %s5686 = ssub.s32 %s11, 2
      // Predicated region
      $region49: #{detection_block_forward.3} parent=47 // pred_check
        %p5687 = pneg %p150
      $region50: #{detection_block_forward.3} parent=47 // pred_check_branch
        %5689 = sbr.rel (%p5687) target = $region52
      $region51: #{detection_block_forward.3} parent=47 // pred_region
        %p5690 = scmp.lt.s32.totalorder %s17, 1
        %s5691 = scalar_select %p5690, %s17, 1
        %s5692 = smul.addr %s5691, 32
        %s5693 = smul.addr %s5692, 4
        %s5694 = scalar_lea.vmem %s5, %s5693
      $region52: #{detection_block_forward.3} parent=47 // pred_fallthru
        _
    $region48: #{detection_block_forward.3} parent=5 // pred_fallthru
      _
  $region6: #{detection_block_forward.3} parent=0 // loop_footer
    %s15 = sadd.s32 1, %s11
  $region7: #{detection_block_forward.3} parent=0 // loop_footer_branch
    %10 = sbr.rel target = $region3
  $region8: #{detection_block_forward.3} parent=0 // loop_exit
    _

// kernel: detection_block_forward.2
$region0: #{detection_block_forward.2}
  #allocation0 [shape = 'u32[]', space=smem, size = 0x4, offset = 0x4, fixed_abs, tag = 'smem constant byte address 0x4 - core index']
  #allocation1 [shape = 'u32[144,128]{1,0:T(1,128)}', space=vmem, size = 0x12000, scoped, tag = 'internal scratch']
  #allocation2 [shape = 'bf16[18,18,128]{2,1,0:T(8,128)(2,1)}', space=vmem, size = 0x1b000, scoped, tag = 'scratch operand']
  %s0 = inlined_call_operand.vmem [shape: bf16[2,16,16,8], index: 0, kind: input, shape index: {}]
  %s1 = inlined_call_operand.vmem [shape: bf16[8,128], index: 1, kind: input, shape index: {}]
  %s2 = inlined_call_operand.vmem [shape: f32[1,128], index: 2, kind: input, shape index: {}]
  %s3 = inlined_call_operand.vmem [shape: bf16[9,128,128], index: 3, kind: input, shape index: {}]
  %s4 = inlined_call_operand.vmem [shape: f32[1,128], index: 4, kind: input, shape index: {}]
  %s5 = inlined_call_operand.vmem [shape: bf16[128,128], index: 5, kind: input, shape index: {}]
  %s6 = inlined_call_operand.vmem [shape: f32[1,128], index: 6, kind: input, shape index: {}]
  %s7 = inlined_call_operand.vmem [shape: bf16[2,18,18,128], index: 7, kind: output, shape index: {}]
  %s8 = sld [smem:[#allocation0]]
  $region61: #{detection_block_forward.2} parent=0
    _
  %s10 = ssub.s32 1, %s8
  %s11 = scalar_select 0, %s10, %s8
  loop: start=0, step=1, limit=4
  $region2: #{detection_block_forward.2} parent=0 // loop_pre_header
    _
  $region3: #{detection_block_forward.2} parent=0 // loop_header
    %s13 = sphi 0, %s17
    %p14 = scmp.ge.s32.totalorder %s13, 4
    %s23 = sphi 0, %s25
    %s26 = sphi 0, %s23
    %s27 = sphi 0, %s26
    %s43 = sphi 0, %s27
    %s47 = sphi 0, %s47
    %s49 = sphi 0, %s47
    %s50 = sphi 0, %s49
    %s64 = sphi 0, %s50
    %s68 = sphi 0, %s68
    %s70 = sphi 0, %s68
    %s71 = sphi 0, %s70
    %s85 = sphi 0, %s71
    %s89 = sphi 0, %s89
    %s91 = sphi 0, %s89
    %s92 = sphi 0, %s91
    %s106 = sphi 0, %s92
    %s110 = sphi 0, %s110
    %s112 = sphi 0, %s110
    %s113 = sphi 0, %s112
    %s127 = sphi 0, %s113
    %s131 = sphi 0, %s131
    %s133 = sphi 0, %s131
    %s134 = sphi 0, %s133
    %s148 = sphi 0, %s134
    %s152 = sphi 0, %s152
    %s154 = sphi 0, %s152
    %s155 = sphi 0, %s154
    %s169 = sphi 0, %s155
    %s175 = sphi 0, %s177
    %s178 = sphi 0, %s175
    %s179 = sphi 0, %s178
    %s195 = sphi 0, %s179
  $region4: #{detection_block_forward.2} parent=0 // loop_header_branch
    %16 = sbr.rel (%p14) target = $region8
  $region5: #{detection_block_forward.2} parent=0 // loop_body
    %s18 = ssub.s32 %s13, 1
    %s19 = ssub.s32 %s13, 2
    %s20 = sadd.s32 %s13, 1
    %s21 = ssub.s32 %s13, %s20
    %p22 = scmp.eq.s32.totalorder %s21, 0
    %s24 = sadd.s32 %s23, 1
    %s25 = scalar_select %p22, %s23, %s24
    %p28 = pneg %p22
    %p29 = scmp.eq.s32.totalorder %s13, 1
    %p30 = por %p28, %p29
    %p31 = scmp.ne.s32.totalorder %s23, %s26
    %p32 = scmp.eq.s32.totalorder %s13, 0
    %p33 = por %p31, %p32
    %p34 = scmp.ne.s32.totalorder %s23, %s26
    %p35 = scmp.eq.s32.totalorder %s18, 1
    %p36 = por %p34, %p35
    %p37 = scmp.ne.s32.totalorder %s26, %s27
    %p38 = scmp.eq.s32.totalorder %s18, 0
    %p39 = por %p37, %p38
    %p40 = scmp.ne.s32.totalorder %s26, %s27
    %p41 = scmp.eq.s32.totalorder %s19, 1
    %p42 = por %p40, %p41
    %p44 = scmp.ne.s32.totalorder %s27, %s43
    %p45 = scmp.eq.s32.totalorder %s19, 0
    %p46 = por %p44, %p45
    %s48 = sadd.s32 %s47, 1
    %p51 = scmp.eq.s32.totalorder %s13, 1
    %p52 = scmp.ne.s32.totalorder %s47, %s49
    %p53 = scmp.eq.s32.totalorder %s13, 0
    %p54 = por %p52, %p53
    %p55 = scmp.ne.s32.totalorder %s47, %s49
    %p56 = scmp.eq.s32.totalorder %s18, 1
    %p57 = por %p55, %p56
    %p58 = scmp.ne.s32.totalorder %s49, %s50
    %p59 = scmp.eq.s32.totalorder %s18, 0
    %p60 = por %p58, %p59
    %p61 = scmp.ne.s32.totalorder %s49, %s50
    %p62 = scmp.eq.s32.totalorder %s19, 1
    %p63 = por %p61, %p62
    %p65 = scmp.ne.s32.totalorder %s50, %s64
    %p66 = scmp.eq.s32.totalorder %s19, 0
    %p67 = por %p65, %p66
    %s69 = sadd.s32 %s68, 1
    %p72 = scmp.eq.s32.totalorder %s13, 1
    %p73 = scmp.ne.s32.totalorder %s68, %s70
    %p74 = scmp.eq.s32.totalorder %s13, 0
    %p75 = por %p73, %p74
    %p76 = scmp.ne.s32.totalorder %s68, %s70
    %p77 = scmp.eq.s32.totalorder %s18, 1
    %p78 = por %p76, %p77
    %p79 = scmp.ne.s32.totalorder %s70, %s71
    %p80 = scmp.eq.s32.totalorder %s18, 0
    %p81 = por %p79, %p80
    %p82 = scmp.ne.s32.totalorder %s70, %s71
    %p83 = scmp.eq.s32.totalorder %s19, 1
    %p84 = por %p82, %p83
    %p86 = scmp.ne.s32.totalorder %s71, %s85
    %p87 = scmp.eq.s32.totalorder %s19, 0
    %p88 = por %p86, %p87
    %s90 = sadd.s32 %s89, 1
    %p93 = scmp.eq.s32.totalorder %s13, 1
    %p94 = scmp.ne.s32.totalorder %s89, %s91
    %p95 = scmp.eq.s32.totalorder %s13, 0
    %p96 = por %p94, %p95
    %p97 = scmp.ne.s32.totalorder %s89, %s91
    %p98 = scmp.eq.s32.totalorder %s18, 1
    %p99 = por %p97, %p98
    %p100 = scmp.ne.s32.totalorder %s91, %s92
    %p101 = scmp.eq.s32.totalorder %s18, 0
    %p102 = por %p100, %p101
    %p103 = scmp.ne.s32.totalorder %s91, %s92
    %p104 = scmp.eq.s32.totalorder %s19, 1
    %p105 = por %p103, %p104
    %p107 = scmp.ne.s32.totalorder %s92, %s106
    %p108 = scmp.eq.s32.totalorder %s19, 0
    %p109 = por %p107, %p108
    %s111 = sadd.s32 %s110, 1
    %p114 = scmp.eq.s32.totalorder %s13, 1
    %p115 = scmp.ne.s32.totalorder %s110, %s112
    %p116 = scmp.eq.s32.totalorder %s13, 0
    %p117 = por %p115, %p116
    %p118 = scmp.ne.s32.totalorder %s110, %s112
    %p119 = scmp.eq.s32.totalorder %s18, 1
    %p120 = por %p118, %p119
    %p121 = scmp.ne.s32.totalorder %s112, %s113
    %p122 = scmp.eq.s32.totalorder %s18, 0
    %p123 = por %p121, %p122
    %p124 = scmp.ne.s32.totalorder %s112, %s113
    %p125 = scmp.eq.s32.totalorder %s19, 1
    %p126 = por %p124, %p125
    %p128 = scmp.ne.s32.totalorder %s113, %s127
    %p129 = scmp.eq.s32.totalorder %s19, 0
    %p130 = por %p128, %p129
    %s132 = sadd.s32 %s131, 1
    %p135 = scmp.eq.s32.totalorder %s13, 1
    %p136 = scmp.ne.s32.totalorder %s131, %s133
    %p137 = scmp.eq.s32.totalorder %s13, 0
    %p138 = por %p136, %p137
    %p139 = scmp.ne.s32.totalorder %s131, %s133
    %p140 = scmp.eq.s32.totalorder %s18, 1
    %p141 = por %p139, %p140
    %p142 = scmp.ne.s32.totalorder %s133, %s134
    %p143 = scmp.eq.s32.totalorder %s18, 0
    %p144 = por %p142, %p143
    %p145 = scmp.ne.s32.totalorder %s133, %s134
    %p146 = scmp.eq.s32.totalorder %s19, 1
    %p147 = por %p145, %p146
    %p149 = scmp.ne.s32.totalorder %s134, %s148
    %p150 = scmp.eq.s32.totalorder %s19, 0
    %p151 = por %p149, %p150
    %s153 = sadd.s32 %s152, 1
    %p156 = scmp.eq.s32.totalorder %s13, 1
    %p157 = scmp.ne.s32.totalorder %s152, %s154
    %p158 = scmp.eq.s32.totalorder %s13, 0
    %p159 = por %p157, %p158
    %p160 = scmp.ne.s32.totalorder %s152, %s154
    %p161 = scmp.eq.s32.totalorder %s18, 1
    %p162 = por %p160, %p161
    %p163 = scmp.ne.s32.totalorder %s154, %s155
    %p164 = scmp.eq.s32.totalorder %s18, 0
    %p165 = por %p163, %p164
    %p166 = scmp.ne.s32.totalorder %s154, %s155
    %p167 = scmp.eq.s32.totalorder %s19, 1
    %p168 = por %p166, %p167
    %p170 = scmp.ne.s32.totalorder %s155, %s169
    %p171 = scmp.eq.s32.totalorder %s19, 0
    %p172 = por %p170, %p171
    %s173 = ssub.s32 %s13, %s20
    %p174 = scmp.eq.s32.totalorder %s173, 0
    %s176 = sadd.s32 %s175, 1
    %s177 = scalar_select %p174, %s175, %s176
    %p180 = pneg %p174
    %p181 = scmp.eq.s32.totalorder %s13, 1
    %p182 = por %p180, %p181
    %p183 = scmp.ne.s32.totalorder %s175, %s178
    %p184 = scmp.eq.s32.totalorder %s13, 0
    %p185 = por %p183, %p184
    %p186 = scmp.ne.s32.totalorder %s175, %s178
    %p187 = scmp.eq.s32.totalorder %s18, 1
    %p188 = por %p186, %p187
    %p189 = scmp.ne.s32.totalorder %s178, %s179
    %p190 = scmp.eq.s32.totalorder %s18, 0
    %p191 = por %p189, %p190
    %p192 = scmp.ne.s32.totalorder %s178, %s179
    %p193 = scmp.eq.s32.totalorder %s19, 1
    %p194 = por %p192, %p193
    %p196 = scmp.ne.s32.totalorder %s179, %s195
    %p197 = scmp.eq.s32.totalorder %s19, 0
    %p198 = por %p196, %p197
    %p199 = scmp.le.s32.totalorder 1, %s13
    %p200 = scmp.lt.s32.totalorder %s13, 3
    %p201 = pnand %p199, %p200
    %p202 = pneg %p201
    // Predicated region
    $region9: #{detection_block_forward.2} parent=5 // pred_check
      _
    $region10: #{detection_block_forward.2} parent=5 // pred_check_branch
      %204 = sbr.rel (%p201) target = $region12
    $region11: #{detection_block_forward.2} parent=5 // pred_region
      %s205 = ssub.s32 %s13, 1
      // Predicated region
      $region13: #{detection_block_forward.2} parent=11 // pred_check
        %p206 = pneg %p60
      $region14: #{detection_block_forward.2} parent=11 // pred_check_branch
        %208 = sbr.rel (%p206) target = $region16
      $region15: #{detection_block_forward.2} parent=11 // pred_region
        _
      $region16: #{detection_block_forward.2} parent=11 // pred_fallthru
        _
      // Predicated region
      $region17: #{detection_block_forward.2} parent=11 // pred_check
        %p209 = pneg %p81
      $region18: #{detection_block_forward.2} parent=11 // pred_check_branch
        %211 = sbr.rel (%p209) target = $region20
      $region19: #{detection_block_forward.2} parent=11 // pred_region
        _
      $region20: #{detection_block_forward.2} parent=11 // pred_fallthru
        _
      // Predicated region
      $region21: #{detection_block_forward.2} parent=11 // pred_check
        %p212 = pneg %p102
      $region22: #{detection_block_forward.2} parent=11 // pred_check_branch
        %214 = sbr.rel (%p212) target = $region24
      $region23: #{detection_block_forward.2} parent=11 // pred_region
        _
      $region24: #{detection_block_forward.2} parent=11 // pred_fallthru
        _
      // Predicated region
      $region25: #{detection_block_forward.2} parent=11 // pred_check
        %p215 = pneg %p123
      $region26: #{detection_block_forward.2} parent=11 // pred_check_branch
        %217 = sbr.rel (%p215) target = $region28
      $region27: #{detection_block_forward.2} parent=11 // pred_region
        _
      $region28: #{detection_block_forward.2} parent=11 // pred_fallthru
        _
      // Predicated region
      $region29: #{detection_block_forward.2} parent=11 // pred_check
        %p218 = pneg %p144
      $region30: #{detection_block_forward.2} parent=11 // pred_check_branch
        %220 = sbr.rel (%p218) target = $region32
      $region31: #{detection_block_forward.2} parent=11 // pred_region
        _
      $region32: #{detection_block_forward.2} parent=11 // pred_fallthru
        _
      // Predicated region
      $region33: #{detection_block_forward.2} parent=11 // pred_check
        %p221 = pneg %p165
      $region34: #{detection_block_forward.2} parent=11 // pred_check_branch
        %223 = sbr.rel (%p221) target = $region36
      $region35: #{detection_block_forward.2} parent=11 // pred_region
        _
      $region36: #{detection_block_forward.2} parent=11 // pred_fallthru
        _
    $region12: #{detection_block_forward.2} parent=5 // pred_fallthru
      _
    %p224 = scmp.lt.s32.totalorder %s13, 2
    // Predicated region
    $region37: #{detection_block_forward.2} parent=5 // pred_check
      %p225 = pneg %p224
    $region38: #{detection_block_forward.2} parent=5 // pred_check_branch
      %227 = sbr.rel (%p225) target = $region40
    $region39: #{detection_block_forward.2} parent=5 // pred_region
      // Predicated region
      $region41: #{detection_block_forward.2} parent=39 // pred_check
        %p228 = pneg %p33
      $region42: #{detection_block_forward.2} parent=39 // pred_check_branch
        %230 = sbr.rel (%p228) target = $region44
      $region43: #{detection_block_forward.2} parent=39 // pred_region
        %p231 = scmp.lt.s32.totalorder %s13, 1
        %s232 = scalar_select %p231, %s13, 1
        %s233 = smul.addr %s232, 32
        %s234 = smul.addr %s233, 4
        %s235 = scalar_lea.vmem %s0, %s234
      $region44: #{detection_block_forward.2} parent=39 // pred_fallthru
        _
    $region40: #{detection_block_forward.2} parent=5 // pred_fallthru
      _
    %p236 = scmp.le.s32.totalorder 1, %s13
    %p237 = scmp.lt.s32.totalorder %s13, 3
    %p238 = pnand %p236, %p237
    %p239 = pneg %p238
    // Predicated region
    $region45: #{detection_block_forward.2} parent=5 // pred_check
      _
    $region46: #{detection_block_forward.2} parent=5 // pred_check_branch
      %241 = sbr.rel (%p238) target = $region48
    $region47: #{detection_block_forward.2} parent=5 // pred_region
      %s242 = ssub.s32 %s13, 1
      %p243 = scmp.lt.s32.totalorder %s18, 1
      %s244 = scalar_select %p243, %s18, 1
      %s245 = smul.addr %s244, 32
      %s246 = smul.addr %s245, 4
      %s247 = scalar_lea.vmem %s0, %s246
      %p248 = pneg %p39
      %p249 = pneg %p36
      %p250 = pneg %p60
      %p251 = pneg %p57
      %p252 = pneg %p81
      %p253 = pneg %p78
      %p254 = pneg %p102
      %p255 = pneg %p99
      %p256 = pneg %p123
      %p257 = pneg %p120
      %p258 = pneg %p144
      %p259 = pneg %p141
      %p260 = pneg %p165
      %p261 = pneg %p162
      %p262 = pneg %p191
      %p263 = pneg %p188
      %p264 = scmp.lt.s32.totalorder %s18, 1
      %s265 = scalar_select %p264, %s18, 1
      %s266 = smul.addr %s265, 54
      %s267 = smul.addr %s266, 4
      %s268 = scalar_lea.vmem %s7, %s267
      %p269 = scmp.lt.s32.totalorder %s18, 1
      %s270 = scalar_select %p269, %s18, 1
      %s271 = smul.addr %s270, 32
      %s272 = smul.addr %s271, 4
      %s273 = scalar_lea.vmem %s0, %s272
      %p274 = scmp.lt.s32.totalorder %s18, 1
      %s275 = scalar_select %p274, %s18, 1
      %s276 = smul.addr %s275, 54
      %s277 = smul.addr %s276, 4
      %s278 = scalar_lea.vmem %s7, %s277
      %v280 = vld [vmem:[%s273] sm:$0xf]
      %v281 = vld [vmem:[%s273 + $0x4] sm:$0xf]
      %v282 = vld [vmem:[%s273 + $0x8] sm:$0xf]
      %v283 = vld [vmem:[%s273 + $0xc] sm:$0xf]
      %v284 = vld [vmem:[%s273 + $0x10] sm:$0xf]
      %v285 = vld [vmem:[%s273 + $0x14] sm:$0xf]
      %v286 = vld [vmem:[%s273 + $0x18] sm:$0xf]
      %v287 = vld [vmem:[%s273 + $0x1c] sm:$0xf]
      %v288 = vld [vmem:[%s273 + $0x20] sm:$0xf]
      %v289 = vld [vmem:[%s273 + $0x24] sm:$0xf]
      %v290 = vld [vmem:[%s273 + $0x28] sm:$0xf]
      %v291 = vld [vmem:[%s273 + $0x2c] sm:$0xf]
      %v292 = vld [vmem:[%s273 + $0x30] sm:$0xf]
      %v293 = vld [vmem:[%s273 + $0x34] sm:$0xf]
      %v294 = vld [vmem:[%s273 + $0x38] sm:$0xf]
      %v295 = vld [vmem:[%s273 + $0x3c] sm:$0xf]
      %v296 = vld [vmem:[%s273 + $0x40] sm:$0xf]
      %v297 = vld [vmem:[%s273 + $0x44] sm:$0xf]
      %v298 = vld [vmem:[%s273 + $0x48] sm:$0xf]
      %v299 = vld [vmem:[%s273 + $0x4c] sm:$0xf]
      %v300 = vld [vmem:[%s273 + $0x50] sm:$0xf]
      %v301 = vld [vmem:[%s273 + $0x54] sm:$0xf]
      %v302 = vld [vmem:[%s273 + $0x58] sm:$0xf]
      %v303 = vld [vmem:[%s273 + $0x5c] sm:$0xf]
      %v304 = vld [vmem:[%s273 + $0x60] sm:$0xf]
      %v305 = vld [vmem:[%s273 + $0x64] sm:$0xf]
      %v306 = vld [vmem:[%s273 + $0x68] sm:$0xf]
      %v307 = vld [vmem:[%s273 + $0x6c] sm:$0xf]
      %v308 = vld [vmem:[%s273 + $0x70] sm:$0xf]
      %v309 = vld [vmem:[%s273 + $0x74] sm:$0xf]
      %v310 = vld [vmem:[%s273 + $0x78] sm:$0xf]
      %v311 = vld [vmem:[%s273 + $0x7c] sm:$0xf]
      %v312 = vld [vmem:[%s1] sm:$0xf]
      %v313 = vld [vmem:[%s2] sm:$0x1]
      %v315 = vlaneseq
      %v316 = vshrl.u32 %v315, 7
      %v317 = vsub.s32 0, %v316
      %v318 = vrot.slane %v313, %v317
      %v352 = vunpack.c.l.b16 %v280
      %v353 = vunpack.c.l.b16 %v281
      %v354 = vunpack.c.l.b16 %v282
      %v355 = vunpack.c.l.b16 %v283
      %v356 = vunpack.c.l.b16 %v284
      %v357 = vunpack.c.l.b16 %v285
      %v358 = vunpack.c.l.b16 %v286
      %v359 = vunpack.c.l.b16 %v287
      %v360 = vunpack.c.l.b16 %v288
      %v361 = vunpack.c.l.b16 %v289
      %v362 = vunpack.c.l.b16 %v290
      %v363 = vunpack.c.l.b16 %v291
      %v364 = vunpack.c.l.b16 %v292
      %v365 = vunpack.c.l.b16 %v293
      %v366 = vunpack.c.l.b16 %v294
      %v367 = vunpack.c.l.b16 %v295
      %v368 = vunpack.c.l.b16 %v296
      %v369 = vunpack.c.l.b16 %v297
      %v370 = vunpack.c.l.b16 %v298
      %v371 = vunpack.c.l.b16 %v299
      %v372 = vunpack.c.l.b16 %v300
      %v373 = vunpack.c.l.b16 %v301
      %v374 = vunpack.c.l.b16 %v302
      %v375 = vunpack.c.l.b16 %v303
      %v376 = vunpack.c.l.b16 %v304
      %v377 = vunpack.c.l.b16 %v305
      %v378 = vunpack.c.l.b16 %v306
      %v379 = vunpack.c.l.b16 %v307
      %v380 = vunpack.c.l.b16 %v308
      %v381 = vunpack.c.l.b16 %v309
      %v382 = vunpack.c.l.b16 %v310
      %v383 = vunpack.c.l.b16 %v311
      %v384 = vpack.c.b16 %v353, %v352
      %v385 = vpack.c.b16 %v355, %v354
      %v386 = vpack.c.b16 %v357, %v356
      %v387 = vpack.c.b16 %v359, %v358
      %v388 = vpack.c.b16 %v361, %v360
      %v389 = vpack.c.b16 %v363, %v362
      %v390 = vpack.c.b16 %v365, %v364
      %v391 = vpack.c.b16 %v367, %v366
      %v392 = vpack.c.b16 %v369, %v368
      %v393 = vpack.c.b16 %v371, %v370
      %v394 = vpack.c.b16 %v373, %v372
      %v395 = vpack.c.b16 %v375, %v374
      %v396 = vpack.c.b16 %v377, %v376
      %v397 = vpack.c.b16 %v379, %v378
      %v398 = vpack.c.b16 %v381, %v380
      %v399 = vpack.c.b16 %v383, %v382
      %vm400 = vcmask 64512
      %v402 = vsel %vm400, %v384, 0
      %v405 = vsel %vm400, %v385, 0
      %v408 = vsel %vm400, %v386, 0
      %v411 = vsel %vm400, %v387, 0
      %v414 = vsel %vm400, %v388, 0
      %v417 = vsel %vm400, %v389, 0
      %v420 = vsel %vm400, %v390, 0
      %v423 = vsel %vm400, %v391, 0
      %v426 = vsel %vm400, %v392, 0
      %v429 = vsel %vm400, %v393, 0
      %v432 = vsel %vm400, %v394, 0
      %v435 = vsel %vm400, %v395, 0
      %v438 = vsel %vm400, %v396, 0
      %v441 = vsel %vm400, %v397, 0
      %v444 = vsel %vm400, %v398, 0
      %v447 = vsel %vm400, %v399, 0
      %vm449 = vcmask 1043456
      %v451 = vsel %vm449, %v312, 0
      %453 = vmatprep.subr.bf16.mxu0 0
      %454 = vmatpush1.bf16.msra.mxu0 0
      %455 = vmatprep.subr.bf16.mxu0 0
      %456 = vmatpush1.bf16.msra.mxu0 0
      %457 = vmatprep.subr.bf16.mxu0 0
      %458 = vmatpush1.bf16.msra.mxu0 0
      %459 = vmatprep.subr.bf16.mxu0 0
      %460 = vmatpush1.bf16.msra.mxu0 0
      %461 = vmatprep.subr.bf16.mxu0 0
      %462 = vmatpush1.bf16.msra.mxu0 0
      %463 = vmatprep.subr.bf16.mxu0 0
      %464 = vmatpush1.bf16.msra.mxu0 0
      %465 = vmatprep.subr.bf16.mxu0 0
      %466 = vmatpush1.bf16.msra.mxu0 0
      %467 = vmatprep.subr.bf16.mxu0 0
      %468 = vmatpush1.bf16.msra.mxu0 %v451
      %469 = vmatprep.subr.bf16.mxu0 0
      %470 = vmatpush2.bf16.msra.mxu0 0
      %471 = vmatprep.subr.bf16.mxu0 0
      %472 = vmatpush2.bf16.msra.mxu0 0
      %473 = vmatprep.subr.bf16.mxu0 0
      %474 = vmatpush2.bf16.msra.mxu0 0
      %475 = vmatprep.subr.bf16.mxu0 0
      %476 = vmatpush2.bf16.msra.mxu0 0
      %477 = vmatprep.subr.bf16.mxu0 0
      %478 = vmatpush2.bf16.msra.mxu0 0
      %479 = vmatprep.subr.bf16.mxu0 0
      %480 = vmatpush2.bf16.msra.mxu0 0
      %481 = vmatprep.subr.bf16.mxu0 0
      %482 = vmatpush2.bf16.msra.mxu0 0
      %483 = vmatprep.subr.bf16.mxu0 0
      %484 = vmatpush2.bf16.msra.mxu0 0
      %485 = vmatprep.mubr.bf16.mxu0 0
      %486 = vmatmul.mubr.bf16.gmra.mxu0 %v402
      %v487 = vpop.f32.mrf.mxu0
      %v488 = vadd.f32 %v318, %v487
      %v489 = vpop.f32.mrf.mxu0
      %v490 = vpop.f32.mrf.mxu0
      %v491 = vadd.f32 %v318, %v490
      %v492 = vpop.f32.mrf.mxu0
      %493 = vmatprep.mubr.bf16.mxu0 0
      %494 = vmatmul.mubr.bf16.gmra.mxu0 %v405
      %v495 = vpop.f32.mrf.mxu0
      %v496 = vadd.f32 %v318, %v495
      %v497 = vpop.f32.mrf.mxu0
      %v498 = vpop.f32.mrf.mxu0
      %v499 = vadd.f32 %v318, %v498
      %v500 = vpop.f32.mrf.mxu0
      %501 = vmatprep.mubr.bf16.mxu0 0
      %502 = vmatmul.mubr.bf16.gmra.mxu0 %v408
      %v503 = vpop.f32.mrf.mxu0
      %v504 = vadd.f32 %v318, %v503
      %v505 = vpop.f32.mrf.mxu0
      %v506 = vpop.f32.mrf.mxu0
      %v507 = vadd.f32 %v318, %v506
      %v508 = vpop.f32.mrf.mxu0
      %509 = vmatprep.mubr.bf16.mxu0 0
      %510 = vmatmul.mubr.bf16.gmra.mxu0 %v411
      %v511 = vpop.f32.mrf.mxu0
      %v512 = vadd.f32 %v318, %v511
      %v513 = vpop.f32.mrf.mxu0
      %v514 = vpop.f32.mrf.mxu0
      %v515 = vadd.f32 %v318, %v514
      %v516 = vpop.f32.mrf.mxu0
      %517 = vmatprep.mubr.bf16.mxu0 0
      %518 = vmatmul.mubr.bf16.gmra.mxu0 %v414
      %v519 = vpop.f32.mrf.mxu0
      %v520 = vadd.f32 %v318, %v519
      %v521 = vpop.f32.mrf.mxu0
      %v522 = vpop.f32.mrf.mxu0
      %v523 = vadd.f32 %v318, %v522
      %v524 = vpop.f32.mrf.mxu0
      %525 = vmatprep.mubr.bf16.mxu0 0
      %526 = vmatmul.mubr.bf16.gmra.mxu0 %v417
      %v527 = vpop.f32.mrf.mxu0
      %v528 = vadd.f32 %v318, %v527
      %v529 = vpop.f32.mrf.mxu0
      %v530 = vpop.f32.mrf.mxu0
      %v531 = vadd.f32 %v318, %v530
      %v532 = vpop.f32.mrf.mxu0
      %533 = vmatprep.mubr.bf16.mxu0 0
      %534 = vmatmul.mubr.bf16.gmra.mxu0 %v420
      %v535 = vpop.f32.mrf.mxu0
      %v536 = vadd.f32 %v318, %v535
      %v537 = vpop.f32.mrf.mxu0
      %v538 = vpop.f32.mrf.mxu0
      %v539 = vadd.f32 %v318, %v538
      %v540 = vpop.f32.mrf.mxu0
      %541 = vmatprep.mubr.bf16.mxu0 0
      %542 = vmatmul.mubr.bf16.gmra.mxu0 %v423
      %v543 = vpop.f32.mrf.mxu0
      %v544 = vadd.f32 %v318, %v543
      %v545 = vpop.f32.mrf.mxu0
      %v546 = vpop.f32.mrf.mxu0
      %v547 = vadd.f32 %v318, %v546
      %v548 = vpop.f32.mrf.mxu0
      %549 = vmatprep.mubr.bf16.mxu0 0
      %550 = vmatmul.mubr.bf16.gmra.mxu0 %v426
      %v551 = vpop.f32.mrf.mxu0
      %v552 = vadd.f32 %v318, %v551
      %v553 = vpop.f32.mrf.mxu0
      %v554 = vpop.f32.mrf.mxu0
      %v555 = vadd.f32 %v318, %v554
      %v556 = vpop.f32.mrf.mxu0
      %557 = vmatprep.mubr.bf16.mxu0 0
      %558 = vmatmul.mubr.bf16.gmra.mxu0 %v429
      %v559 = vpop.f32.mrf.mxu0
      %v560 = vadd.f32 %v318, %v559
      %v561 = vpop.f32.mrf.mxu0
      %v562 = vpop.f32.mrf.mxu0
      %v563 = vadd.f32 %v318, %v562
      %v564 = vpop.f32.mrf.mxu0
      %565 = vmatprep.mubr.bf16.mxu0 0
      %566 = vmatmul.mubr.bf16.gmra.mxu0 %v432
      %v567 = vpop.f32.mrf.mxu0
      %v568 = vadd.f32 %v318, %v567
      %v569 = vpop.f32.mrf.mxu0
      %v570 = vpop.f32.mrf.mxu0
      %v571 = vadd.f32 %v318, %v570
      %v572 = vpop.f32.mrf.mxu0
      %573 = vmatprep.mubr.bf16.mxu0 0
      %574 = vmatmul.mubr.bf16.gmra.mxu0 %v435
      %v575 = vpop.f32.mrf.mxu0
      %v576 = vadd.f32 %v318, %v575
      %v577 = vpop.f32.mrf.mxu0
      %v578 = vpop.f32.mrf.mxu0
      %v579 = vadd.f32 %v318, %v578
      %v580 = vpop.f32.mrf.mxu0
      %581 = vmatprep.mubr.bf16.mxu0 0
      %582 = vmatmul.mubr.bf16.gmra.mxu0 %v438
      %v583 = vpop.f32.mrf.mxu0
      %v584 = vadd.f32 %v318, %v583
      %v585 = vpop.f32.mrf.mxu0
      %v586 = vpop.f32.mrf.mxu0
      %v587 = vadd.f32 %v318, %v586
      %v588 = vpop.f32.mrf.mxu0
      %589 = vmatprep.mubr.bf16.mxu0 0
      %590 = vmatmul.mubr.bf16.gmra.mxu0 %v441
      %v591 = vpop.f32.mrf.mxu0
      %v592 = vadd.f32 %v318, %v591
      %v593 = vpop.f32.mrf.mxu0
      %v594 = vpop.f32.mrf.mxu0
      %v595 = vadd.f32 %v318, %v594
      %v596 = vpop.f32.mrf.mxu0
      %597 = vmatprep.mubr.bf16.mxu0 0
      %598 = vmatmul.mubr.bf16.gmra.mxu0 %v444
      %v599 = vpop.f32.mrf.mxu0
      %v600 = vadd.f32 %v318, %v599
      %v601 = vpop.f32.mrf.mxu0
      %v602 = vpop.f32.mrf.mxu0
      %v603 = vadd.f32 %v318, %v602
      %v604 = vpop.f32.mrf.mxu0
      %605 = vmatprep.mubr.bf16.mxu0 0
      %606 = vmatmul.mubr.bf16.gmra.mxu0 %v447
      %v607 = vpop.f32.mrf.mxu0
      %v608 = vadd.f32 %v318, %v607
      %v609 = vpop.f32.mrf.mxu0
      %v610 = vpop.f32.mrf.mxu0
      %v611 = vadd.f32 %v318, %v610
      %v612 = vpop.f32.mrf.mxu0
      %613 = vdwg.mxu0
      %vm614 = vcmp.gt.f32.partialorder %v488, 0.0
      %vm615 = vcmp.gt.f32.partialorder %v491, 0.0
      %vm616 = vcmp.gt.f32.partialorder %v496, 0.0
      %vm617 = vcmp.gt.f32.partialorder %v499, 0.0
      %vm618 = vcmp.gt.f32.partialorder %v504, 0.0
      %vm619 = vcmp.gt.f32.partialorder %v507, 0.0
      %vm620 = vcmp.gt.f32.partialorder %v512, 0.0
      %vm621 = vcmp.gt.f32.partialorder %v515, 0.0
      %vm622 = vcmp.gt.f32.partialorder %v520, 0.0
      %vm623 = vcmp.gt.f32.partialorder %v523, 0.0
      %vm624 = vcmp.gt.f32.partialorder %v528, 0.0
      %vm625 = vcmp.gt.f32.partialorder %v531, 0.0
      %vm626 = vcmp.gt.f32.partialorder %v536, 0.0
      %vm627 = vcmp.gt.f32.partialorder %v539, 0.0
      %vm628 = vcmp.gt.f32.partialorder %v544, 0.0
      %vm629 = vcmp.gt.f32.partialorder %v547, 0.0
      %vm630 = vcmp.gt.f32.partialorder %v552, 0.0
      %vm631 = vcmp.gt.f32.partialorder %v555, 0.0
      %vm632 = vcmp.gt.f32.partialorder %v560, 0.0
      %vm633 = vcmp.gt.f32.partialorder %v563, 0.0
      %vm634 = vcmp.gt.f32.partialorder %v568, 0.0
      %vm635 = vcmp.gt.f32.partialorder %v571, 0.0
      %vm636 = vcmp.gt.f32.partialorder %v576, 0.0
      %vm637 = vcmp.gt.f32.partialorder %v579, 0.0
      %vm638 = vcmp.gt.f32.partialorder %v584, 0.0
      %vm639 = vcmp.gt.f32.partialorder %v587, 0.0
      %vm640 = vcmp.gt.f32.partialorder %v592, 0.0
      %vm641 = vcmp.gt.f32.partialorder %v595, 0.0
      %vm642 = vcmp.gt.f32.partialorder %v600, 0.0
      %vm643 = vcmp.gt.f32.partialorder %v603, 0.0
      %vm644 = vcmp.gt.f32.partialorder %v608, 0.0
      %vm645 = vcmp.gt.f32.partialorder %v611, 0.0
      %v646 = vmul.f32 %v488, 0.1
      %v647 = vmul.f32 %v491, 0.1
      %v648 = vmul.f32 %v496, 0.1
      %v649 = vmul.f32 %v499, 0.1
      %v650 = vmul.f32 %v504, 0.1
      %v651 = vmul.f32 %v507, 0.1
      %v652 = vmul.f32 %v512, 0.1
      %v653 = vmul.f32 %v515, 0.1
      %v654 = vmul.f32 %v520, 0.1
      %v655 = vmul.f32 %v523, 0.1
      %v656 = vmul.f32 %v528, 0.1
      %v657 = vmul.f32 %v531, 0.1
      %v658 = vmul.f32 %v536, 0.1
      %v659 = vmul.f32 %v539, 0.1
      %v660 = vmul.f32 %v544, 0.1
      %v661 = vmul.f32 %v547, 0.1
      %v662 = vmul.f32 %v552, 0.1
      %v663 = vmul.f32 %v555, 0.1
      %v664 = vmul.f32 %v560, 0.1
      %v665 = vmul.f32 %v563, 0.1
      %v666 = vmul.f32 %v568, 0.1
      %v667 = vmul.f32 %v571, 0.1
      %v668 = vmul.f32 %v576, 0.1
      %v669 = vmul.f32 %v579, 0.1
      %v670 = vmul.f32 %v584, 0.1
      %v671 = vmul.f32 %v587, 0.1
      %v672 = vmul.f32 %v592, 0.1
      %v673 = vmul.f32 %v595, 0.1
      %v674 = vmul.f32 %v600, 0.1
      %v675 = vmul.f32 %v603, 0.1
      %v676 = vmul.f32 %v608, 0.1
      %v677 = vmul.f32 %v611, 0.1
      %v678 = vsel %vm614, %v488, %v646
      %v679 = vsel %vm615, %v491, %v647
      %v680 = vsel %vm616, %v496, %v648
      %v681 = vsel %vm617, %v499, %v649
      %v682 = vsel %vm618, %v504, %v650
      %v683 = vsel %vm619, %v507, %v651
      %v684 = vsel %vm620, %v512, %v652
      %v685 = vsel %vm621, %v515, %v653
      %v686 = vsel %vm622, %v520, %v654
      %v687 = vsel %vm623, %v523, %v655
      %v688 = vsel %vm624, %v528, %v656
      %v689 = vsel %vm625, %v531, %v657
      %v690 = vsel %vm626, %v536, %v658
      %v691 = vsel %vm627, %v539, %v659
      %v692 = vsel %vm628, %v544, %v660
      %v693 = vsel %vm629, %v547, %v661
      %v694 = vsel %vm630, %v552, %v662
      %v695 = vsel %vm631, %v555, %v663
      %v696 = vsel %vm632, %v560, %v664
      %v697 = vsel %vm633, %v563, %v665
      %v698 = vsel %vm634, %v568, %v666
      %v699 = vsel %vm635, %v571, %v667
      %v700 = vsel %vm636, %v576, %v668
      %v701 = vsel %vm637, %v579, %v669
      %v702 = vsel %vm638, %v584, %v670
      %v703 = vsel %vm639, %v587, %v671
      %v704 = vsel %vm640, %v592, %v672
      %v705 = vsel %vm641, %v595, %v673
      %v706 = vsel %vm642, %v600, %v674
      %v707 = vsel %vm643, %v603, %v675
      %v708 = vsel %vm644, %v608, %v676
      %v709 = vsel %vm645, %v611, %v677
      %710 = vst [vmem:[#allocation2] sm:$0xf] 0
      %711 = vst [vmem:[#allocation2 + $0x4] sm:$0xf] 0
      %712 = vst [vmem:[#allocation2 + $0x8] sm:$0x1] 0
      %713 = vst [vmem:[#allocation2 + $0xc] sm:$0xf] 0
      %714 = vst [vmem:[#allocation2 + $0x10] sm:$0xf] 0
      %715 = vst [vmem:[#allocation2 + $0x14] sm:$0x1] 0
      %716 = vst [vmem:[#allocation2 + $0x18] sm:$0xf] 0
      %717 = vst [vmem:[#allocation2 + $0x1c] sm:$0xf] 0
      %718 = vst [vmem:[#allocation2 + $0x20] sm:$0x1] 0
      %719 = vst [vmem:[#allocation2 + $0x24] sm:$0xf] 0
      %720 = vst [vmem:[#allocation2 + $0x28] sm:$0xf] 0
      %721 = vst [vmem:[#allocation2 + $0x2c] sm:$0x1] 0
      %722 = vst [vmem:[#allocation2 + $0x30] sm:$0xf] 0
      %723 = vst [vmem:[#allocation2 + $0x34] sm:$0xf] 0
      %724 = vst [vmem:[#allocation2 + $0x38] sm:$0x1] 0
      %725 = vst [vmem:[#allocation2 + $0x3c] sm:$0xf] 0
      %726 = vst [vmem:[#allocation2 + $0x40] sm:$0xf] 0
      %727 = vst [vmem:[#allocation2 + $0x44] sm:$0x1] 0
      %728 = vst [vmem:[#allocation2 + $0x48] sm:$0xf] 0
      %729 = vst [vmem:[#allocation2 + $0x4c] sm:$0xf] 0
      %730 = vst [vmem:[#allocation2 + $0x50] sm:$0x1] 0
      %731 = vst [vmem:[#allocation2 + $0x54] sm:$0xf] 0
      %732 = vst [vmem:[#allocation2 + $0x58] sm:$0xf] 0
      %733 = vst [vmem:[#allocation2 + $0x5c] sm:$0x1] 0
      %734 = vst [vmem:[#allocation2 + $0x60] sm:$0xf] 0
      %735 = vst [vmem:[#allocation2 + $0x64] sm:$0xf] 0
      %736 = vst [vmem:[#allocation2 + $0x68] sm:$0x1] 0
      %737 = vst [vmem:[#allocation2 + $0x6c] sm:$0xf] 0
      %738 = vst [vmem:[#allocation2 + $0x70] sm:$0xf] 0
      %739 = vst [vmem:[#allocation2 + $0x74] sm:$0x1] 0
      %740 = vst [vmem:[#allocation2 + $0x78] sm:$0xf] 0
      %741 = vst [vmem:[#allocation2 + $0x7c] sm:$0xf] 0
      %742 = vst [vmem:[#allocation2 + $0x80] sm:$0x1] 0
      %743 = vst [vmem:[#allocation2 + $0x84] sm:$0xf] 0
      %744 = vst [vmem:[#allocation2 + $0x88] sm:$0xf] 0
      %745 = vst [vmem:[#allocation2 + $0x8c] sm:$0x1] 0
      %746 = vst [vmem:[#allocation2 + $0x90] sm:$0xf] 0
      %747 = vst [vmem:[#allocation2 + $0x94] sm:$0xf] 0
      %748 = vst [vmem:[#allocation2 + $0x98] sm:$0x1] 0
      %749 = vst [vmem:[#allocation2 + $0x9c] sm:$0xf] 0
      %750 = vst [vmem:[#allocation2 + $0xa0] sm:$0xf] 0
      %751 = vst [vmem:[#allocation2 + $0xa4] sm:$0x1] 0
      %752 = vst [vmem:[#allocation2 + $0xa8] sm:$0xf] 0
      %753 = vst [vmem:[#allocation2 + $0xac] sm:$0xf] 0
      %754 = vst [vmem:[#allocation2 + $0xb0] sm:$0x1] 0
      %755 = vst [vmem:[#allocation2 + $0xb4] sm:$0xf] 0
      %756 = vst [vmem:[#allocation2 + $0xb8] sm:$0xf] 0
      %757 = vst [vmem:[#allocation2 + $0xbc] sm:$0x1] 0
      %758 = vst [vmem:[#allocation2 + $0xc0] sm:$0xf] 0
      %759 = vst [vmem:[#allocation2 + $0xc4] sm:$0xf] 0
      %760 = vst [vmem:[#allocation2 + $0xc8] sm:$0x1] 0
      %761 = vst [vmem:[#allocation2 + $0xcc] sm:$0xf] 0
      %762 = vst [vmem:[#allocation2 + $0xd0] sm:$0xf] 0
      %763 = vst [vmem:[#allocation2 + $0xd4] sm:$0x1] 0
      %v764 = vpack.c.bf16 %v679, %v678
      %v765 = vpack.c.bf16 %v681, %v680
      %v766 = vpack.c.bf16 %v683, %v682
      %v767 = vpack.c.bf16 %v685, %v684
      %v768 = vpack.c.bf16 %v687, %v686
      %v769 = vpack.c.bf16 %v689, %v688
      %v770 = vpack.c.bf16 %v691, %v690
      %v771 = vpack.c.bf16 %v693, %v692
      %v772 = vpack.c.bf16 %v695, %v694
      %v773 = vpack.c.bf16 %v697, %v696
      %v774 = vpack.c.bf16 %v699, %v698
      %v775 = vpack.c.bf16 %v701, %v700
      %v776 = vpack.c.bf16 %v703, %v702
      %v777 = vpack.c.bf16 %v705, %v704
      %v778 = vpack.c.bf16 %v707, %v706
      %v779 = vpack.c.bf16 %v709, %v708
      %v796 = vunpack.c.l.b16 %v764
      %v797 = vunpack.c.h.b16 %v764
      %v798 = vunpack.c.l.b16 %v765
      %v799 = vunpack.c.h.b16 %v765
      %v800 = vunpack.c.l.b16 %v766
      %v801 = vunpack.c.h.b16 %v766
      %v802 = vunpack.c.l.b16 %v767
      %v803 = vunpack.c.h.b16 %v767
      %v804 = vunpack.c.l.b16 %v768
      %v805 = vunpack.c.h.b16 %v768
      %v806 = vunpack.c.l.b16 %v769
      %v807 = vunpack.c.h.b16 %v769
      %v808 = vunpack.c.l.b16 %v770
      %v809 = vunpack.c.h.b16 %v770
      %v810 = vunpack.c.l.b16 %v771
      %v811 = vunpack.c.h.b16 %v771
      %v812 = vunpack.c.l.b16 %v772
      %v813 = vunpack.c.h.b16 %v772
      %v814 = vunpack.c.l.b16 %v773
      %v815 = vunpack.c.h.b16 %v773
      %v816 = vunpack.c.l.b16 %v774
      %v817 = vunpack.c.h.b16 %v774
      %v818 = vunpack.c.l.b16 %v775
      %v819 = vunpack.c.h.b16 %v775
      %v820 = vunpack.c.l.b16 %v776
      %v821 = vunpack.c.h.b16 %v776
      %v822 = vunpack.c.l.b16 %v777
      %v823 = vunpack.c.h.b16 %v777
      %v824 = vunpack.c.l.b16 %v778
      %v825 = vunpack.c.h.b16 %v778
      %v826 = vunpack.c.l.b16 %v779
      %v827 = vunpack.c.h.b16 %v779
      %v828 = vpack.c.b16 %v796, %v796
      %v829 = vpack.c.b16 %v797, %v797
      %v830 = vpack.c.b16 %v798, %v798
      %v831 = vpack.c.b16 %v799, %v799
      %v832 = vpack.c.b16 %v800, %v800
      %v833 = vpack.c.b16 %v801, %v801
      %v834 = vpack.c.b16 %v802, %v802
      %v835 = vpack.c.b16 %v803, %v803
      %v836 = vpack.c.b16 %v804, %v804
      %v837 = vpack.c.b16 %v805, %v805
      %v838 = vpack.c.b16 %v806, %v806
      %v839 = vpack.c.b16 %v807, %v807
      %v840 = vpack.c.b16 %v808, %v808
      %v841 = vpack.c.b16 %v809, %v809
      %v842 = vpack.c.b16 %v810, %v810
      %v843 = vpack.c.b16 %v811, %v811
      %v844 = vpack.c.b16 %v812, %v812
      %v845 = vpack.c.b16 %v813, %v813
      %v846 = vpack.c.b16 %v814, %v814
      %v847 = vpack.c.b16 %v815, %v815
      %v848 = vpack.c.b16 %v816, %v816
      %v849 = vpack.c.b16 %v817, %v817
      %v850 = vpack.c.b16 %v818, %v818
      %v851 = vpack.c.b16 %v819, %v819
      %v852 = vpack.c.b16 %v820, %v820
      %v853 = vpack.c.b16 %v821, %v821
      %v854 = vpack.c.b16 %v822, %v822
      %v855 = vpack.c.b16 %v823, %v823
      %v856 = vpack.c.b16 %v824, %v824
      %v857 = vpack.c.b16 %v825, %v825
      %v858 = vpack.c.b16 %v826, %v826
      %v859 = vpack.c.b16 %v827, %v827
      %vm860 = vsmask.f32 256
      %vm861 = vsmask.f32 4368
      %vm862 = vmor %vm860, %vm861
      %v864 = vshrl.u32 %v828, 16
      %v866 = vrot.slane %v864, 7
      %v867 = vshll.u32 %v828, 16
      %v869 = vor.u32 %v866, %v867
      %v870 = vrot.slane %v866, 4
      %v872 = vshrl.u32 %v829, 16
      %v874 = vrot.slane %v872, 7
      %v875 = vshll.u32 %v829, 16
      %v877 = vor.u32 %v874, %v875
      %v878 = vsel %vm862, %v870, %v877
      %v879 = vrot.slane %v874, 4
      %v881 = vshrl.u32 %v830, 16
      %v883 = vrot.slane %v881, 7
      %v884 = vshll.u32 %v830, 16
      %v886 = vor.u32 %v883, %v884
      %v887 = vrot.slane %v883, 4
      %v889 = vshrl.u32 %v831, 16
      %v891 = vrot.slane %v889, 7
      %v892 = vshll.u32 %v831, 16
      %v894 = vor.u32 %v891, %v892
      %v895 = vsel %vm862, %v887, %v894
      %v896 = vrot.slane %v891, 4
      %v898 = vshrl.u32 %v832, 16
      %v900 = vrot.slane %v898, 7
      %v901 = vshll.u32 %v832, 16
      %v903 = vor.u32 %v900, %v901
      %v904 = vrot.slane %v900, 4
      %v906 = vshrl.u32 %v833, 16
      %v908 = vrot.slane %v906, 7
      %v909 = vshll.u32 %v833, 16
      %v911 = vor.u32 %v908, %v909
      %v912 = vsel %vm862, %v904, %v911
      %v913 = vrot.slane %v908, 4
      %v915 = vshrl.u32 %v834, 16
      %v917 = vrot.slane %v915, 7
      %v918 = vshll.u32 %v834, 16
      %v920 = vor.u32 %v917, %v918
      %v921 = vrot.slane %v917, 4
      %v923 = vshrl.u32 %v835, 16
      %v925 = vrot.slane %v923, 7
      %v926 = vshll.u32 %v835, 16
      %v928 = vor.u32 %v925, %v926
      %v929 = vsel %vm862, %v921, %v928
      %v930 = vrot.slane %v925, 4
      %v932 = vshrl.u32 %v836, 16
      %v934 = vrot.slane %v932, 7
      %v935 = vshll.u32 %v836, 16
      %v937 = vor.u32 %v934, %v935
      %v938 = vrot.slane %v934, 4
      %v940 = vshrl.u32 %v837, 16
      %v942 = vrot.slane %v940, 7
      %v943 = vshll.u32 %v837, 16
      %v945 = vor.u32 %v942, %v943
      %v946 = vsel %vm862, %v938, %v945
      %v947 = vrot.slane %v942, 4
      %v949 = vshrl.u32 %v838, 16
      %v951 = vrot.slane %v949, 7
      %v952 = vshll.u32 %v838, 16
      %v954 = vor.u32 %v951, %v952
      %v955 = vrot.slane %v951, 4
      %v957 = vshrl.u32 %v839, 16
      %v959 = vrot.slane %v957, 7
      %v960 = vshll.u32 %v839, 16
      %v962 = vor.u32 %v959, %v960
      %v963 = vsel %vm862, %v955, %v962
      %v964 = vrot.slane %v959, 4
      %v966 = vshrl.u32 %v840, 16
      %v968 = vrot.slane %v966, 7
      %v969 = vshll.u32 %v840, 16
      %v971 = vor.u32 %v968, %v969
      %v972 = vrot.slane %v968, 4
      %v974 = vshrl.u32 %v841, 16
      %v976 = vrot.slane %v974, 7
      %v977 = vshll.u32 %v841, 16
      %v979 = vor.u32 %v976, %v977
      %v980 = vsel %vm862, %v972, %v979
      %v981 = vrot.slane %v976, 4
      %v983 = vshrl.u32 %v842, 16
      %v985 = vrot.slane %v983, 7
      %v986 = vshll.u32 %v842, 16
      %v988 = vor.u32 %v985, %v986
      %v989 = vrot.slane %v985, 4
      %v991 = vshrl.u32 %v843, 16
      %v993 = vrot.slane %v991, 7
      %v994 = vshll.u32 %v843, 16
      %v996 = vor.u32 %v993, %v994
      %v997 = vsel %vm862, %v989, %v996
      %v998 = vrot.slane %v993, 4
      %v1000 = vshrl.u32 %v844, 16
      %v1002 = vrot.slane %v1000, 7
      %v1003 = vshll.u32 %v844, 16
      %v1005 = vor.u32 %v1002, %v1003
      %v1006 = vrot.slane %v1002, 4
      %v1008 = vshrl.u32 %v845, 16
      %v1010 = vrot.slane %v1008, 7
      %v1011 = vshll.u32 %v845, 16
      %v1013 = vor.u32 %v1010, %v1011
      %v1014 = vsel %vm862, %v1006, %v1013
      %v1015 = vrot.slane %v1010, 4
      %v1017 = vshrl.u32 %v846, 16
      %v1019 = vrot.slane %v1017, 7
      %v1020 = vshll.u32 %v846, 16
      %v1022 = vor.u32 %v1019, %v1020
      %v1023 = vrot.slane %v1019, 4
      %v1025 = vshrl.u32 %v847, 16
      %v1027 = vrot.slane %v1025, 7
      %v1028 = vshll.u32 %v847, 16
      %v1030 = vor.u32 %v1027, %v1028
      %v1031 = vsel %vm862, %v1023, %v1030
      %v1032 = vrot.slane %v1027, 4
      %v1034 = vshrl.u32 %v848, 16
      %v1036 = vrot.slane %v1034, 7
      %v1037 = vshll.u32 %v848, 16
      %v1039 = vor.u32 %v1036, %v1037
      %v1040 = vrot.slane %v1036, 4
      %v1042 = vshrl.u32 %v849, 16
      %v1044 = vrot.slane %v1042, 7
      %v1045 = vshll.u32 %v849, 16
      %v1047 = vor.u32 %v1044, %v1045
      %v1048 = vsel %vm862, %v1040, %v1047
      %v1049 = vrot.slane %v1044, 4
      %v1051 = vshrl.u32 %v850, 16
      %v1053 = vrot.slane %v1051, 7
      %v1054 = vshll.u32 %v850, 16
      %v1056 = vor.u32 %v1053, %v1054
      %v1057 = vrot.slane %v1053, 4
      %v1059 = vshrl.u32 %v851, 16
      %v1061 = vrot.slane %v1059, 7
      %v1062 = vshll.u32 %v851, 16
      %v1064 = vor.u32 %v1061, %v1062
      %v1065 = vsel %vm862, %v1057, %v1064
      %v1066 = vrot.slane %v1061, 4
      %v1068 = vshrl.u32 %v852, 16
      %v1070 = vrot.slane %v1068, 7
      %v1071 = vshll.u32 %v852, 16
      %v1073 = vor.u32 %v1070, %v1071
      %v1074 = vrot.slane %v1070, 4
      %v1076 = vshrl.u32 %v853, 16
      %v1078 = vrot.slane %v1076, 7
      %v1079 = vshll.u32 %v853, 16
      %v1081 = vor.u32 %v1078, %v1079
      %v1082 = vsel %vm862, %v1074, %v1081
      %v1083 = vrot.slane %v1078, 4
      %v1085 = vshrl.u32 %v854, 16
      %v1087 = vrot.slane %v1085, 7
      %v1088 = vshll.u32 %v854, 16
      %v1090 = vor.u32 %v1087, %v1088
      %v1091 = vrot.slane %v1087, 4
      %v1093 = vshrl.u32 %v855, 16
      %v1095 = vrot.slane %v1093, 7
      %v1096 = vshll.u32 %v855, 16
      %v1098 = vor.u32 %v1095, %v1096
      %v1099 = vsel %vm862, %v1091, %v1098
      %v1100 = vrot.slane %v1095, 4
      %v1102 = vshrl.u32 %v856, 16
      %v1104 = vrot.slane %v1102, 7
      %v1105 = vshll.u32 %v856, 16
      %v1107 = vor.u32 %v1104, %v1105
      %v1108 = vrot.slane %v1104, 4
      %v1110 = vshrl.u32 %v857, 16
      %v1112 = vrot.slane %v1110, 7
      %v1113 = vshll.u32 %v857, 16
      %v1115 = vor.u32 %v1112, %v1113
      %v1116 = vsel %vm862, %v1108, %v1115
      %v1117 = vrot.slane %v1112, 4
      %v1119 = vshrl.u32 %v858, 16
      %v1121 = vrot.slane %v1119, 7
      %v1122 = vshll.u32 %v858, 16
      %v1124 = vor.u32 %v1121, %v1122
      %v1125 = vrot.slane %v1121, 4
      %v1127 = vshrl.u32 %v859, 16
      %v1129 = vrot.slane %v1127, 7
      %v1130 = vshll.u32 %v859, 16
      %v1132 = vor.u32 %v1129, %v1130
      %v1133 = vsel %vm862, %v1125, %v1132
      %v1134 = vrot.slane %v1129, 4
      %s1183 = scalar_lea.vmem [#allocation2], 12
      %vm1184 = vcmask 1043456
      %vm1185 = vsmask.f32 7938
      %vm1186 = vmand %vm1184, %vm1185
      %v1187 = vld [vmem:[%s1183] sm:$0xf]
      %v1188 = vsel %vm1186, %v869, %v1187
      %1189 = vst [vmem:[%s1183] sm:$0xf] %v1188
      %1190 = vst [vmem:[%s1183 + $0x4] sm:$0xf] %v878
      %vm1191 = vcmask 1040384
      %vm1192 = vmand %vm1191, %vm860
      %v1193 = vld [vmem:[%s1183 + $0x8] sm:$0x1]
      %v1194 = vsel %vm1192, %v879, %v1193
      %1195 = vst [vmem:[%s1183 + $0x8] sm:$0x1] %v1194
      %v1196 = vld [vmem:[%s1183 + $0xc] sm:$0xf]
      %v1197 = vsel %vm1186, %v886, %v1196
      %1198 = vst [vmem:[%s1183 + $0xc] sm:$0xf] %v1197
      %1199 = vst [vmem:[%s1183 + $0x10] sm:$0xf] %v895
      %v1200 = vld [vmem:[%s1183 + $0x14] sm:$0x1]
      %v1201 = vsel %vm1192, %v896, %v1200
      %1202 = vst [vmem:[%s1183 + $0x14] sm:$0x1] %v1201
      %v1203 = vld [vmem:[%s1183 + $0x18] sm:$0xf]
      %v1204 = vsel %vm1186, %v903, %v1203
      %1205 = vst [vmem:[%s1183 + $0x18] sm:$0xf] %v1204
      %1206 = vst [vmem:[%s1183 + $0x1c] sm:$0xf] %v912
      %v1207 = vld [vmem:[%s1183 + $0x20] sm:$0x1]
      %v1208 = vsel %vm1192, %v913, %v1207
      %1209 = vst [vmem:[%s1183 + $0x20] sm:$0x1] %v1208
      %v1210 = vld [vmem:[%s1183 + $0x24] sm:$0xf]
      %v1211 = vsel %vm1186, %v920, %v1210
      %1212 = vst [vmem:[%s1183 + $0x24] sm:$0xf] %v1211
      %1213 = vst [vmem:[%s1183 + $0x28] sm:$0xf] %v929
      %v1214 = vld [vmem:[%s1183 + $0x2c] sm:$0x1]
      %v1215 = vsel %vm1192, %v930, %v1214
      %1216 = vst [vmem:[%s1183 + $0x2c] sm:$0x1] %v1215
      %v1217 = vld [vmem:[%s1183 + $0x30] sm:$0xf]
      %v1218 = vsel %vm1186, %v937, %v1217
      %1219 = vst [vmem:[%s1183 + $0x30] sm:$0xf] %v1218
      %1220 = vst [vmem:[%s1183 + $0x34] sm:$0xf] %v946
      %v1221 = vld [vmem:[%s1183 + $0x38] sm:$0x1]
      %v1222 = vsel %vm1192, %v947, %v1221
      %1223 = vst [vmem:[%s1183 + $0x38] sm:$0x1] %v1222
      %v1224 = vld [vmem:[%s1183 + $0x3c] sm:$0xf]
      %v1225 = vsel %vm1186, %v954, %v1224
      %1226 = vst [vmem:[%s1183 + $0x3c] sm:$0xf] %v1225
      %1227 = vst [vmem:[%s1183 + $0x40] sm:$0xf] %v963
      %v1228 = vld [vmem:[%s1183 + $0x44] sm:$0x1]
      %v1229 = vsel %vm1192, %v964, %v1228
      %1230 = vst [vmem:[%s1183 + $0x44] sm:$0x1] %v1229
      %v1231 = vld [vmem:[%s1183 + $0x48] sm:$0xf]
      %v1232 = vsel %vm1186, %v971, %v1231
      %1233 = vst [vmem:[%s1183 + $0x48] sm:$0xf] %v1232
      %1234 = vst [vmem:[%s1183 + $0x4c] sm:$0xf] %v980
      %v1235 = vld [vmem:[%s1183 + $0x50] sm:$0x1]
      %v1236 = vsel %vm1192, %v981, %v1235
      %1237 = vst [vmem:[%s1183 + $0x50] sm:$0x1] %v1236
      %v1238 = vld [vmem:[%s1183 + $0x54] sm:$0xf]
      %v1239 = vsel %vm1186, %v988, %v1238
      %1240 = vst [vmem:[%s1183 + $0x54] sm:$0xf] %v1239
      %1241 = vst [vmem:[%s1183 + $0x58] sm:$0xf] %v997
      %v1242 = vld [vmem:[%s1183 + $0x5c] sm:$0x1]
      %v1243 = vsel %vm1192, %v998, %v1242
      %1244 = vst [vmem:[%s1183 + $0x5c] sm:$0x1] %v1243
      %v1245 = vld [vmem:[%s1183 + $0x60] sm:$0xf]
      %v1246 = vsel %vm1186, %v1005, %v1245
      %1247 = vst [vmem:[%s1183 + $0x60] sm:$0xf] %v1246
      %1248 = vst [vmem:[%s1183 + $0x64] sm:$0xf] %v1014
      %v1249 = vld [vmem:[%s1183 + $0x68] sm:$0x1]
      %v1250 = vsel %vm1192, %v1015, %v1249
      %1251 = vst [vmem:[%s1183 + $0x68] sm:$0x1] %v1250
      %v1252 = vld [vmem:[%s1183 + $0x6c] sm:$0xf]
      %v1253 = vsel %vm1186, %v1022, %v1252
      %1254 = vst [vmem:[%s1183 + $0x6c] sm:$0xf] %v1253
      %1255 = vst [vmem:[%s1183 + $0x70] sm:$0xf] %v1031
      %v1256 = vld [vmem:[%s1183 + $0x74] sm:$0x1]
      %v1257 = vsel %vm1192, %v1032, %v1256
      %1258 = vst [vmem:[%s1183 + $0x74] sm:$0x1] %v1257
      %v1259 = vld [vmem:[%s1183 + $0x78] sm:$0xf]
      %v1260 = vsel %vm1186, %v1039, %v1259
      %1261 = vst [vmem:[%s1183 + $0x78] sm:$0xf] %v1260
      %1262 = vst [vmem:[%s1183 + $0x7c] sm:$0xf] %v1048
      %v1263 = vld [vmem:[%s1183 + $0x80] sm:$0x1]
      %v1264 = vsel %vm1192, %v1049, %v1263
      %1265 = vst [vmem:[%s1183 + $0x80] sm:$0x1] %v1264
      %v1266 = vld [vmem:[%s1183 + $0x84] sm:$0xf]
      %v1267 = vsel %vm1186, %v1056, %v1266
      %1268 = vst [vmem:[%s1183 + $0x84] sm:$0xf] %v1267
      %1269 = vst [vmem:[%s1183 + $0x88] sm:$0xf] %v1065
      %v1270 = vld [vmem:[%s1183 + $0x8c] sm:$0x1]
      %v1271 = vsel %vm1192, %v1066, %v1270
      %1272 = vst [vmem:[%s1183 + $0x8c] sm:$0x1] %v1271
      %v1273 = vld [vmem:[%s1183 + $0x90] sm:$0xf]
      %v1274 = vsel %vm1186, %v1073, %v1273
      %1275 = vst [vmem:[%s1183 + $0x90] sm:$0xf] %v1274
      %1276 = vst [vmem:[%s1183 + $0x94] sm:$0xf] %v1082
      %v1277 = vld [vmem:[%s1183 + $0x98] sm:$0x1]
      %v1278 = vsel %vm1192, %v1083, %v1277
      %1279 = vst [vmem:[%s1183 + $0x98] sm:$0x1] %v1278
      %v1280 = vld [vmem:[%s1183 + $0x9c] sm:$0xf]
      %v1281 = vsel %vm1186, %v1090, %v1280
      %1282 = vst [vmem:[%s1183 + $0x9c] sm:$0xf] %v1281
      %1283 = vst [vmem:[%s1183 + $0xa0] sm:$0xf] %v1099
      %v1284 = vld [vmem:[%s1183 + $0xa4] sm:$0x1]
      %v1285 = vsel %vm1192, %v1100, %v1284
      %1286 = vst [vmem:[%s1183 + $0xa4] sm:$0x1] %v1285
      %v1287 = vld [vmem:[%s1183 + $0xa8] sm:$0xf]
      %v1288 = vsel %vm1186, %v1107, %v1287
      %1289 = vst [vmem:[%s1183 + $0xa8] sm:$0xf] %v1288
      %1290 = vst [vmem:[%s1183 + $0xac] sm:$0xf] %v1116
      %v1291 = vld [vmem:[%s1183 + $0xb0] sm:$0x1]
      %v1292 = vsel %vm1192, %v1117, %v1291
      %1293 = vst [vmem:[%s1183 + $0xb0] sm:$0x1] %v1292
      %v1294 = vld [vmem:[%s1183 + $0xb4] sm:$0xf]
      %v1295 = vsel %vm1186, %v1124, %v1294
      %1296 = vst [vmem:[%s1183 + $0xb4] sm:$0xf] %v1295
      %1297 = vst [vmem:[%s1183 + $0xb8] sm:$0xf] %v1133
      %v1298 = vld [vmem:[%s1183 + $0xbc] sm:$0x1]
      %v1299 = vsel %vm1192, %v1134, %v1298
      %1300 = vst [vmem:[%s1183 + $0xbc] sm:$0x1] %v1299
      %v1301 = vld [vmem:[#allocation2] sm:$0xf]
      %v1302 = vld [vmem:[#allocation2 + $0x4] sm:$0xf]
      %v1303 = vld [vmem:[#allocation2 + $0xc] sm:$0xf]
      %v1304 = vld [vmem:[#allocation2 + $0x10] sm:$0xf]
      %v1305 = vld [vmem:[#allocation2 + $0x18] sm:$0xf]
      %v1306 = vld [vmem:[#allocation2 + $0x1c] sm:$0xf]
      %v1307 = vld [vmem:[#allocation2 + $0x24] sm:$0xf]
      %v1308 = vld [vmem:[#allocation2 + $0x28] sm:$0xf]
      %v1309 = vld [vmem:[#allocation2 + $0x30] sm:$0xf]
      %v1310 = vld [vmem:[#allocation2 + $0x34] sm:$0xf]
      %v1311 = vld [vmem:[#allocation2 + $0x3c] sm:$0xf]
      %v1312 = vld [vmem:[#allocation2 + $0x40] sm:$0xf]
      %v1313 = vld [vmem:[#allocation2 + $0x48] sm:$0xf]
      %v1314 = vld [vmem:[#allocation2 + $0x4c] sm:$0xf]
      %v1315 = vld [vmem:[#allocation2 + $0x54] sm:$0xf]
      %v1316 = vld [vmem:[#allocation2 + $0x58] sm:$0xf]
      %v1317 = vld [vmem:[#allocation2 + $0x60] sm:$0xf]
      %v1318 = vld [vmem:[#allocation2 + $0x64] sm:$0xf]
      %v1319 = vld [vmem:[#allocation2 + $0x6c] sm:$0xf]
      %v1320 = vld [vmem:[#allocation2 + $0x70] sm:$0xf]
      %v1321 = vld [vmem:[#allocation2 + $0x78] sm:$0xf]
      %v1322 = vld [vmem:[#allocation2 + $0x7c] sm:$0xf]
      %v1323 = vld [vmem:[#allocation2 + $0x84] sm:$0xf]
      %v1324 = vld [vmem:[#allocation2 + $0x88] sm:$0xf]
      %v1325 = vld [vmem:[#allocation2 + $0x90] sm:$0xf]
      %v1326 = vld [vmem:[#allocation2 + $0x94] sm:$0xf]
      %v1327 = vld [vmem:[#allocation2 + $0x9c] sm:$0xf]
      %v1328 = vld [vmem:[#allocation2 + $0xa0] sm:$0xf]
      %v1329 = vld [vmem:[#allocation2 + $0xa8] sm:$0xf]
      %v1330 = vld [vmem:[#allocation2 + $0xac] sm:$0xf]
      %v1331 = vld [vmem:[#allocation2 + $0xb4] sm:$0xf]
      %v1332 = vld [vmem:[#allocation2 + $0xb8] sm:$0xf]
      %v1333 = vld [vmem:[%s3] sm:$0xf]
      %v1334 = vld [vmem:[%s3 + $0x4] sm:$0xf]
      %v1335 = vld [vmem:[%s3 + $0x8] sm:$0xf]
      %v1336 = vld [vmem:[%s3 + $0xc] sm:$0xf]
      %v1337 = vld [vmem:[%s3 + $0x10] sm:$0xf]
      %v1338 = vld [vmem:[%s3 + $0x14] sm:$0xf]
      %v1339 = vld [vmem:[%s3 + $0x18] sm:$0xf]
      %v1340 = vld [vmem:[%s3 + $0x1c] sm:$0xf]
      %v1341 = vld [vmem:[%s3 + $0x20] sm:$0xf]
      %v1342 = vld [vmem:[%s3 + $0x24] sm:$0xf]
      %v1343 = vld [vmem:[%s3 + $0x28] sm:$0xf]
      %v1344 = vld [vmem:[%s3 + $0x2c] sm:$0xf]
      %v1345 = vld [vmem:[%s3 + $0x30] sm:$0xf]
      %v1346 = vld [vmem:[%s3 + $0x34] sm:$0xf]
      %v1347 = vld [vmem:[%s3 + $0x38] sm:$0xf]
      %v1348 = vld [vmem:[%s3 + $0x3c] sm:$0xf]
      %v1349 = vld [vmem:[#allocation2 + $0x8] sm:$0x1]
      %v1350 = vld [vmem:[#allocation2 + $0x14] sm:$0x1]
      %v1351 = vld [vmem:[#allocation2 + $0x20] sm:$0x1]
      %v1352 = vld [vmem:[#allocation2 + $0x2c] sm:$0x1]
      %v1353 = vld [vmem:[#allocation2 + $0x38] sm:$0x1]
      %v1354 = vld [vmem:[#allocation2 + $0x44] sm:$0x1]
      %v1355 = vld [vmem:[#allocation2 + $0x50] sm:$0x1]
      %v1356 = vld [vmem:[#allocation2 + $0x5c] sm:$0x1]
      %v1357 = vld [vmem:[#allocation2 + $0x68] sm:$0x1]
      %v1358 = vld [vmem:[#allocation2 + $0x74] sm:$0x1]
      %v1359 = vld [vmem:[#allocation2 + $0x80] sm:$0x1]
      %v1360 = vld [vmem:[#allocation2 + $0x8c] sm:$0x1]
      %v1361 = vld [vmem:[#allocation2 + $0x98] sm:$0x1]
      %v1362 = vld [vmem:[#allocation2 + $0xa4] sm:$0x1]
      %v1363 = vld [vmem:[#allocation2 + $0xb0] sm:$0x1]
      %v1364 = vld [vmem:[#allocation2 + $0xbc] sm:$0x1]
      %vm1365 = vsmask.f32 3328
      %vm1366 = vsmask.f32 7440
      %vm1367 = vmor %vm1365, %vm1366
      %v1369 = vshrl.u32 %v1301, 16
      %v1371 = vrot.slane %v1369, 4
      %v1372 = vshll.u32 %v1301, 16
      %v1374 = vrot.slane %v1372, 5
      %v1375 = vor.u32 %v1371, %v1374
      %v1376 = vrot.slane %v1375, 4
      %v1378 = vshll.u32 %v1302, 16
      %v1380 = vrot.slane %v1378, 5
      %v1381 = vsel %vm1367, %v1376, %v1380
      %v1382 = vshrl.u32 %v1302, 16
      %v1384 = vrot.slane %v1382, 4
      %v1385 = vor.u32 %v1384, %v1380
      %v1386 = vrot.slane %v1385, 4
      %v1388 = vshll.u32 %v1349, 16
      %v1390 = vrot.slane %v1388, 5
      %v1391 = vsel %vm1367, %v1386, %v1390
      %v1393 = vshrl.u32 %v1303, 16
      %v1395 = vrot.slane %v1393, 4
      %v1396 = vshll.u32 %v1303, 16
      %v1398 = vrot.slane %v1396, 5
      %v1399 = vor.u32 %v1395, %v1398
      %v1400 = vrot.slane %v1399, 4
      %v1402 = vshll.u32 %v1304, 16
      %v1404 = vrot.slane %v1402, 5
      %v1405 = vsel %vm1367, %v1400, %v1404
      %v1406 = vshrl.u32 %v1304, 16
      %v1408 = vrot.slane %v1406, 4
      %v1409 = vor.u32 %v1408, %v1404
      %v1410 = vrot.slane %v1409, 4
      %v1412 = vshll.u32 %v1350, 16
      %v1414 = vrot.slane %v1412, 5
      %v1415 = vsel %vm1367, %v1410, %v1414
      %v1417 = vshrl.u32 %v1305, 16
      %v1419 = vrot.slane %v1417, 4
      %v1420 = vshll.u32 %v1305, 16
      %v1422 = vrot.slane %v1420, 5
      %v1423 = vor.u32 %v1419, %v1422
      %v1424 = vrot.slane %v1423, 4
      %v1426 = vshll.u32 %v1306, 16
      %v1428 = vrot.slane %v1426, 5
      %v1429 = vsel %vm1367, %v1424, %v1428
      %v1430 = vshrl.u32 %v1306, 16
      %v1432 = vrot.slane %v1430, 4
      %v1433 = vor.u32 %v1432, %v1428
      %v1434 = vrot.slane %v1433, 4
      %v1436 = vshll.u32 %v1351, 16
      %v1438 = vrot.slane %v1436, 5
      %v1439 = vsel %vm1367, %v1434, %v1438
      %v1441 = vshrl.u32 %v1307, 16
      %v1443 = vrot.slane %v1441, 4
      %v1444 = vshll.u32 %v1307, 16
      %v1446 = vrot.slane %v1444, 5
      %v1447 = vor.u32 %v1443, %v1446
      %v1448 = vrot.slane %v1447, 4
      %v1450 = vshll.u32 %v1308, 16
      %v1452 = vrot.slane %v1450, 5
      %v1453 = vsel %vm1367, %v1448, %v1452
      %v1454 = vshrl.u32 %v1308, 16
      %v1456 = vrot.slane %v1454, 4
      %v1457 = vor.u32 %v1456, %v1452
      %v1458 = vrot.slane %v1457, 4
      %v1460 = vshll.u32 %v1352, 16
      %v1462 = vrot.slane %v1460, 5
      %v1463 = vsel %vm1367, %v1458, %v1462
      %v1465 = vshrl.u32 %v1309, 16
      %v1467 = vrot.slane %v1465, 4
      %v1468 = vshll.u32 %v1309, 16
      %v1470 = vrot.slane %v1468, 5
      %v1471 = vor.u32 %v1467, %v1470
      %v1472 = vrot.slane %v1471, 4
      %v1474 = vshll.u32 %v1310, 16
      %v1476 = vrot.slane %v1474, 5
      %v1477 = vsel %vm1367, %v1472, %v1476
      %v1478 = vshrl.u32 %v1310, 16
      %v1480 = vrot.slane %v1478, 4
      %v1481 = vor.u32 %v1480, %v1476
      %v1482 = vrot.slane %v1481, 4
      %v1484 = vshll.u32 %v1353, 16
      %v1486 = vrot.slane %v1484, 5
      %v1487 = vsel %vm1367, %v1482, %v1486
      %v1489 = vshrl.u32 %v1311, 16
      %v1491 = vrot.slane %v1489, 4
      %v1492 = vshll.u32 %v1311, 16
      %v1494 = vrot.slane %v1492, 5
      %v1495 = vor.u32 %v1491, %v1494
      %v1496 = vrot.slane %v1495, 4
      %v1498 = vshll.u32 %v1312, 16
      %v1500 = vrot.slane %v1498, 5
      %v1501 = vsel %vm1367, %v1496, %v1500
      %v1502 = vshrl.u32 %v1312, 16
      %v1504 = vrot.slane %v1502, 4
      %v1505 = vor.u32 %v1504, %v1500
      %v1506 = vrot.slane %v1505, 4
      %v1508 = vshll.u32 %v1354, 16
      %v1510 = vrot.slane %v1508, 5
      %v1511 = vsel %vm1367, %v1506, %v1510
      %v1513 = vshrl.u32 %v1313, 16
      %v1515 = vrot.slane %v1513, 4
      %v1516 = vshll.u32 %v1313, 16
      %v1518 = vrot.slane %v1516, 5
      %v1519 = vor.u32 %v1515, %v1518
      %v1520 = vrot.slane %v1519, 4
      %v1522 = vshll.u32 %v1314, 16
      %v1524 = vrot.slane %v1522, 5
      %v1525 = vsel %vm1367, %v1520, %v1524
      %v1526 = vshrl.u32 %v1314, 16
      %v1528 = vrot.slane %v1526, 4
      %v1529 = vor.u32 %v1528, %v1524
      %v1530 = vrot.slane %v1529, 4
      %v1532 = vshll.u32 %v1355, 16
      %v1534 = vrot.slane %v1532, 5
      %v1535 = vsel %vm1367, %v1530, %v1534
      %v1537 = vshrl.u32 %v1315, 16
      %v1539 = vrot.slane %v1537, 4
      %v1540 = vshll.u32 %v1315, 16
      %v1542 = vrot.slane %v1540, 5
      %v1543 = vor.u32 %v1539, %v1542
      %v1544 = vrot.slane %v1543, 4
      %v1546 = vshll.u32 %v1316, 16
      %v1548 = vrot.slane %v1546, 5
      %v1549 = vsel %vm1367, %v1544, %v1548
      %v1550 = vshrl.u32 %v1316, 16
      %v1552 = vrot.slane %v1550, 4
      %v1553 = vor.u32 %v1552, %v1548
      %v1554 = vrot.slane %v1553, 4
      %v1556 = vshll.u32 %v1356, 16
      %v1558 = vrot.slane %v1556, 5
      %v1559 = vsel %vm1367, %v1554, %v1558
      %v1561 = vshrl.u32 %v1317, 16
      %v1563 = vrot.slane %v1561, 4
      %v1564 = vshll.u32 %v1317, 16
      %v1566 = vrot.slane %v1564, 5
      %v1567 = vor.u32 %v1563, %v1566
      %v1568 = vrot.slane %v1567, 4
      %v1570 = vshll.u32 %v1318, 16
      %v1572 = vrot.slane %v1570, 5
      %v1573 = vsel %vm1367, %v1568, %v1572
      %v1574 = vshrl.u32 %v1318, 16
      %v1576 = vrot.slane %v1574, 4
      %v1577 = vor.u32 %v1576, %v1572
      %v1578 = vrot.slane %v1577, 4
      %v1580 = vshll.u32 %v1357, 16
      %v1582 = vrot.slane %v1580, 5
      %v1583 = vsel %vm1367, %v1578, %v1582
      %v1585 = vshrl.u32 %v1319, 16
      %v1587 = vrot.slane %v1585, 4
      %v1588 = vshll.u32 %v1319, 16
      %v1590 = vrot.slane %v1588, 5
      %v1591 = vor.u32 %v1587, %v1590
      %v1592 = vrot.slane %v1591, 4
      %v1594 = vshll.u32 %v1320, 16
      %v1596 = vrot.slane %v1594, 5
      %v1597 = vsel %vm1367, %v1592, %v1596
      %v1598 = vshrl.u32 %v1320, 16
      %v1600 = vrot.slane %v1598, 4
      %v1601 = vor.u32 %v1600, %v1596
      %v1602 = vrot.slane %v1601, 4
      %v1604 = vshll.u32 %v1358, 16
      %v1606 = vrot.slane %v1604, 5
      %v1607 = vsel %vm1367, %v1602, %v1606
      %v1609 = vshrl.u32 %v1321, 16
      %v1611 = vrot.slane %v1609, 4
      %v1612 = vshll.u32 %v1321, 16
      %v1614 = vrot.slane %v1612, 5
      %v1615 = vor.u32 %v1611, %v1614
      %v1616 = vrot.slane %v1615, 4
      %v1618 = vshll.u32 %v1322, 16
      %v1620 = vrot.slane %v1618, 5
      %v1621 = vsel %vm1367, %v1616, %v1620
      %v1622 = vshrl.u32 %v1322, 16
      %v1624 = vrot.slane %v1622, 4
      %v1625 = vor.u32 %v1624, %v1620
      %v1626 = vrot.slane %v1625, 4
      %v1628 = vshll.u32 %v1359, 16
      %v1630 = vrot.slane %v1628, 5
      %v1631 = vsel %vm1367, %v1626, %v1630
      %v1633 = vshrl.u32 %v1323, 16
      %v1635 = vrot.slane %v1633, 4
      %v1636 = vshll.u32 %v1323, 16
      %v1638 = vrot.slane %v1636, 5
      %v1639 = vor.u32 %v1635, %v1638
      %v1640 = vrot.slane %v1639, 4
      %v1642 = vshll.u32 %v1324, 16
      %v1644 = vrot.slane %v1642, 5
      %v1645 = vsel %vm1367, %v1640, %v1644
      %v1646 = vshrl.u32 %v1324, 16
      %v1648 = vrot.slane %v1646, 4
      %v1649 = vor.u32 %v1648, %v1644
      %v1650 = vrot.slane %v1649, 4
      %v1652 = vshll.u32 %v1360, 16
      %v1654 = vrot.slane %v1652, 5
      %v1655 = vsel %vm1367, %v1650, %v1654
      %v1657 = vshrl.u32 %v1325, 16
      %v1659 = vrot.slane %v1657, 4
      %v1660 = vshll.u32 %v1325, 16
      %v1662 = vrot.slane %v1660, 5
      %v1663 = vor.u32 %v1659, %v1662
      %v1664 = vrot.slane %v1663, 4
      %v1666 = vshll.u32 %v1326, 16
      %v1668 = vrot.slane %v1666, 5
      %v1669 = vsel %vm1367, %v1664, %v1668
      %v1670 = vshrl.u32 %v1326, 16
      %v1672 = vrot.slane %v1670, 4
      %v1673 = vor.u32 %v1672, %v1668
      %v1674 = vrot.slane %v1673, 4
      %v1676 = vshll.u32 %v1361, 16
      %v1678 = vrot.slane %v1676, 5
      %v1679 = vsel %vm1367, %v1674, %v1678
      %v1681 = vshrl.u32 %v1327, 16
      %v1683 = vrot.slane %v1681, 4
      %v1684 = vshll.u32 %v1327, 16
      %v1686 = vrot.slane %v1684, 5
      %v1687 = vor.u32 %v1683, %v1686
      %v1688 = vrot.slane %v1687, 4
      %v1690 = vshll.u32 %v1328, 16
      %v1692 = vrot.slane %v1690, 5
      %v1693 = vsel %vm1367, %v1688, %v1692
      %v1694 = vshrl.u32 %v1328, 16
      %v1696 = vrot.slane %v1694, 4
      %v1697 = vor.u32 %v1696, %v1692
      %v1698 = vrot.slane %v1697, 4
      %v1700 = vshll.u32 %v1362, 16
      %v1702 = vrot.slane %v1700, 5
      %v1703 = vsel %vm1367, %v1698, %v1702
      %v1705 = vshrl.u32 %v1329, 16
      %v1707 = vrot.slane %v1705, 4
      %v1708 = vshll.u32 %v1329, 16
      %v1710 = vrot.slane %v1708, 5
      %v1711 = vor.u32 %v1707, %v1710
      %v1712 = vrot.slane %v1711, 4
      %v1714 = vshll.u32 %v1330, 16
      %v1716 = vrot.slane %v1714, 5
      %v1717 = vsel %vm1367, %v1712, %v1716
      %v1718 = vshrl.u32 %v1330, 16
      %v1720 = vrot.slane %v1718, 4
      %v1721 = vor.u32 %v1720, %v1716
      %v1722 = vrot.slane %v1721, 4
      %v1724 = vshll.u32 %v1363, 16
      %v1726 = vrot.slane %v1724, 5
      %v1727 = vsel %vm1367, %v1722, %v1726
      %v1729 = vshrl.u32 %v1331, 16
      %v1731 = vrot.slane %v1729, 4
      %v1732 = vshll.u32 %v1331, 16
      %v1734 = vrot.slane %v1732, 5
      %v1735 = vor.u32 %v1731, %v1734
      %v1736 = vrot.slane %v1735, 4
      %v1738 = vshll.u32 %v1332, 16
      %v1740 = vrot.slane %v1738, 5
      %v1741 = vsel %vm1367, %v1736, %v1740
      %v1742 = vshrl.u32 %v1332, 16
      %v1744 = vrot.slane %v1742, 4
      %v1745 = vor.u32 %v1744, %v1740
      %v1746 = vrot.slane %v1745, 4
      %v1748 = vshll.u32 %v1364, 16
      %v1750 = vrot.slane %v1748, 5
      %v1751 = vsel %vm1367, %v1746, %v1750
      %s1752 = scalar_lea.vmem %s3, 64
      %v1753 = vld [vmem:[%s1752] sm:$0xf]
      %v1754 = vld [vmem:[%s1752 + $0x4] sm:$0xf]
      %v1755 = vld [vmem:[%s1752 + $0x8] sm:$0xf]
      %v1756 = vld [vmem:[%s1752 + $0xc] sm:$0xf]
      %v1757 = vld [vmem:[%s1752 + $0x10] sm:$0xf]
      %v1758 = vld [vmem:[%s1752 + $0x14] sm:$0xf]
      %v1759 = vld [vmem:[%s1752 + $0x18] sm:$0xf]
      %v1760 = vld [vmem:[%s1752 + $0x1c] sm:$0xf]
      %v1761 = vld [vmem:[%s1752 + $0x20] sm:$0xf]
      %v1762 = vld [vmem:[%s1752 + $0x24] sm:$0xf]
      %v1763 = vld [vmem:[%s1752 + $0x28] sm:$0xf]
      %v1764 = vld [vmem:[%s1752 + $0x2c] sm:$0xf]
      %v1765 = vld [vmem:[%s1752 + $0x30] sm:$0xf]
      %v1766 = vld [vmem:[%s1752 + $0x34] sm:$0xf]
      %v1767 = vld [vmem:[%s1752 + $0x38] sm:$0xf]
      %v1768 = vld [vmem:[%s1752 + $0x3c] sm:$0xf]
      %v1769 = vunpack.c.l.b16 %v1381
      %v1770 = vunpack.c.l.b16 %v1391
      %v1771 = vunpack.c.l.b16 %v1405
      %v1772 = vunpack.c.l.b16 %v1415
      %v1773 = vunpack.c.l.b16 %v1429
      %v1774 = vunpack.c.l.b16 %v1439
      %v1775 = vunpack.c.l.b16 %v1453
      %v1776 = vunpack.c.l.b16 %v1463
      %v1777 = vunpack.c.l.b16 %v1477
      %v1778 = vunpack.c.l.b16 %v1487
      %v1779 = vunpack.c.l.b16 %v1501
      %v1780 = vunpack.c.l.b16 %v1511
      %v1781 = vunpack.c.l.b16 %v1525
      %v1782 = vunpack.c.l.b16 %v1535
      %v1783 = vunpack.c.l.b16 %v1549
      %v1784 = vunpack.c.l.b16 %v1559
      %v1785 = vunpack.c.l.b16 %v1573
      %v1786 = vunpack.c.l.b16 %v1583
      %v1787 = vunpack.c.l.b16 %v1597
      %v1788 = vunpack.c.l.b16 %v1607
      %v1789 = vunpack.c.l.b16 %v1621
      %v1790 = vunpack.c.l.b16 %v1631
      %v1791 = vunpack.c.l.b16 %v1645
      %v1792 = vunpack.c.l.b16 %v1655
      %v1793 = vunpack.c.l.b16 %v1669
      %v1794 = vunpack.c.l.b16 %v1679
      %v1795 = vunpack.c.l.b16 %v1693
      %v1796 = vunpack.c.l.b16 %v1703
      %v1797 = vunpack.c.l.b16 %v1717
      %v1798 = vunpack.c.l.b16 %v1727
      %v1799 = vunpack.c.l.b16 %v1741
      %v1800 = vunpack.c.l.b16 %v1751
      %v1801 = vpack.c.b16 %v1770, %v1769
      %v1802 = vpack.c.b16 %v1772, %v1771
      %v1803 = vpack.c.b16 %v1774, %v1773
      %v1804 = vpack.c.b16 %v1776, %v1775
      %v1805 = vpack.c.b16 %v1778, %v1777
      %v1806 = vpack.c.b16 %v1780, %v1779
      %v1807 = vpack.c.b16 %v1782, %v1781
      %v1808 = vpack.c.b16 %v1784, %v1783
      %v1809 = vpack.c.b16 %v1786, %v1785
      %v1810 = vpack.c.b16 %v1788, %v1787
      %v1811 = vpack.c.b16 %v1790, %v1789
      %v1812 = vpack.c.b16 %v1792, %v1791
      %v1813 = vpack.c.b16 %v1794, %v1793
      %v1814 = vpack.c.b16 %v1796, %v1795
      %v1815 = vpack.c.b16 %v1798, %v1797
      %v1816 = vpack.c.b16 %v1800, %v1799
      %v1849 = vunpack.c.l.b16 %v1753
      %v1850 = vunpack.c.l.b16 %v1754
      %v1851 = vunpack.c.l.b16 %v1755
      %v1852 = vunpack.c.l.b16 %v1756
      %v1853 = vunpack.c.l.b16 %v1757
      %v1854 = vunpack.c.l.b16 %v1758
      %v1855 = vunpack.c.l.b16 %v1759
      %v1856 = vunpack.c.l.b16 %v1760
      %v1857 = vunpack.c.l.b16 %v1761
      %v1858 = vunpack.c.l.b16 %v1762
      %v1859 = vunpack.c.l.b16 %v1763
      %v1860 = vunpack.c.l.b16 %v1764
      %v1861 = vunpack.c.l.b16 %v1765
      %v1862 = vunpack.c.l.b16 %v1766
      %v1863 = vunpack.c.l.b16 %v1767
      %v1864 = vunpack.c.l.b16 %v1768
      %v1865 = vpack.c.b16 %v1850, %v1849
      %v1866 = vpack.c.b16 %v1852, %v1851
      %v1867 = vpack.c.b16 %v1854, %v1853
      %v1868 = vpack.c.b16 %v1856, %v1855
      %v1869 = vpack.c.b16 %v1858, %v1857
      %v1870 = vpack.c.b16 %v1860, %v1859
      %v1871 = vpack.c.b16 %v1862, %v1861
      %v1872 = vpack.c.b16 %v1864, %v1863
      %1881 = vmatprep.subr.bf16.mxu0 0
      %1882 = vmatpush1.bf16.msra.mxu0 %v1872
      %1883 = vmatprep.subr.bf16.mxu0 0
      %1884 = vmatpush1.bf16.msra.mxu0 %v1871
      %1885 = vmatprep.subr.bf16.mxu0 0
      %1886 = vmatpush1.bf16.msra.mxu0 %v1870
      %1887 = vmatprep.subr.bf16.mxu0 0
      %1888 = vmatpush1.bf16.msra.mxu0 %v1869
      %1889 = vmatprep.subr.bf16.mxu0 0
      %1890 = vmatpush1.bf16.msra.mxu0 %v1868
      %1891 = vmatprep.subr.bf16.mxu0 0
      %1892 = vmatpush1.bf16.msra.mxu0 %v1867
      %1893 = vmatprep.subr.bf16.mxu0 0
      %1894 = vmatpush1.bf16.msra.mxu0 %v1866
      %1895 = vmatprep.subr.bf16.mxu0 0
      %1896 = vmatpush1.bf16.msra.mxu0 %v1865
      %1897 = vmatprep.subr.bf16.mxu0 0
      %1898 = vmatpush2.bf16.msra.mxu0 0
      %1899 = vmatprep.subr.bf16.mxu0 0
      %1900 = vmatpush2.bf16.msra.mxu0 0
      %1901 = vmatprep.subr.bf16.mxu0 0
      %1902 = vmatpush2.bf16.msra.mxu0 0
      %1903 = vmatprep.subr.bf16.mxu0 0
      %1904 = vmatpush2.bf16.msra.mxu0 0
      %1905 = vmatprep.subr.bf16.mxu0 0
      %1906 = vmatpush2.bf16.msra.mxu0 0
      %1907 = vmatprep.subr.bf16.mxu0 0
      %1908 = vmatpush2.bf16.msra.mxu0 0
      %1909 = vmatprep.subr.bf16.mxu0 0
      %1910 = vmatpush2.bf16.msra.mxu0 0
      %1911 = vmatprep.subr.bf16.mxu0 0
      %1912 = vmatpush2.bf16.msra.mxu0 0
      %1913 = vmatprep.mubr.bf16.mxu0 0
      %1914 = vmatmul.mubr.bf16.gmra.mxu0 %v1801
      %v1915 = vpop.f32.mrf.mxu0
      %v1916 = vadd.f32 0.0, %v1915
      %v1917 = vpop.f32.mrf.mxu0
      %v1918 = vpop.f32.mrf.mxu0
      %v1919 = vadd.f32 0.0, %v1918
      %v1920 = vpop.f32.mrf.mxu0
      %1921 = vmatprep.mubr.bf16.mxu0 0
      %1922 = vmatmul.mubr.bf16.gmra.mxu0 %v1802
      %v1923 = vpop.f32.mrf.mxu0
      %v1924 = vadd.f32 0.0, %v1923
      %v1925 = vpop.f32.mrf.mxu0
      %v1926 = vpop.f32.mrf.mxu0
      %v1927 = vadd.f32 0.0, %v1926
      %v1928 = vpop.f32.mrf.mxu0
      %1929 = vmatprep.mubr.bf16.mxu0 0
      %1930 = vmatmul.mubr.bf16.gmra.mxu0 %v1803
      %v1931 = vpop.f32.mrf.mxu0
      %v1932 = vadd.f32 0.0, %v1931
      %v1933 = vpop.f32.mrf.mxu0
      %v1934 = vpop.f32.mrf.mxu0
      %v1935 = vadd.f32 0.0, %v1934
      %v1936 = vpop.f32.mrf.mxu0
      %1937 = vmatprep.mubr.bf16.mxu0 0
      %1938 = vmatmul.mubr.bf16.gmra.mxu0 %v1804
      %v1939 = vpop.f32.mrf.mxu0
      %v1940 = vadd.f32 0.0, %v1939
      %v1941 = vpop.f32.mrf.mxu0
      %v1942 = vpop.f32.mrf.mxu0
      %v1943 = vadd.f32 0.0, %v1942
      %v1944 = vpop.f32.mrf.mxu0
      %1945 = vmatprep.mubr.bf16.mxu0 0
      %1946 = vmatmul.mubr.bf16.gmra.mxu0 %v1805
      %v1947 = vpop.f32.mrf.mxu0
      %v1948 = vadd.f32 0.0, %v1947
      %v1949 = vpop.f32.mrf.mxu0
      %v1950 = vpop.f32.mrf.mxu0
      %v1951 = vadd.f32 0.0, %v1950
      %v1952 = vpop.f32.mrf.mxu0
      %1953 = vmatprep.mubr.bf16.mxu0 0
      %1954 = vmatmul.mubr.bf16.gmra.mxu0 %v1806
      %v1955 = vpop.f32.mrf.mxu0
      %v1956 = vadd.f32 0.0, %v1955
      %v1957 = vpop.f32.mrf.mxu0
      %v1958 = vpop.f32.mrf.mxu0
      %v1959 = vadd.f32 0.0, %v1958
      %v1960 = vpop.f32.mrf.mxu0
      %1961 = vmatprep.mubr.bf16.mxu0 0
      %1962 = vmatmul.mubr.bf16.gmra.mxu0 %v1807
      %v1963 = vpop.f32.mrf.mxu0
      %v1964 = vadd.f32 0.0, %v1963
      %v1965 = vpop.f32.mrf.mxu0
      %v1966 = vpop.f32.mrf.mxu0
      %v1967 = vadd.f32 0.0, %v1966
      %v1968 = vpop.f32.mrf.mxu0
      %1969 = vmatprep.mubr.bf16.mxu0 0
      %1970 = vmatmul.mubr.bf16.gmra.mxu0 %v1808
      %v1971 = vpop.f32.mrf.mxu0
      %v1972 = vadd.f32 0.0, %v1971
      %v1973 = vpop.f32.mrf.mxu0
      %v1974 = vpop.f32.mrf.mxu0
      %v1975 = vadd.f32 0.0, %v1974
      %v1976 = vpop.f32.mrf.mxu0
      %1977 = vmatprep.mubr.bf16.mxu0 0
      %1978 = vmatmul.mubr.bf16.gmra.mxu0 %v1809
      %v1979 = vpop.f32.mrf.mxu0
      %v1980 = vadd.f32 0.0, %v1979
      %v1981 = vpop.f32.mrf.mxu0
      %v1982 = vpop.f32.mrf.mxu0
      %v1983 = vadd.f32 0.0, %v1982
      %v1984 = vpop.f32.mrf.mxu0
      %1985 = vmatprep.mubr.bf16.mxu0 0
      %1986 = vmatmul.mubr.bf16.gmra.mxu0 %v1810
      %v1987 = vpop.f32.mrf.mxu0
      %v1988 = vadd.f32 0.0, %v1987
      %v1989 = vpop.f32.mrf.mxu0
      %v1990 = vpop.f32.mrf.mxu0
      %v1991 = vadd.f32 0.0, %v1990
      %v1992 = vpop.f32.mrf.mxu0
      %1993 = vmatprep.mubr.bf16.mxu0 0
      %1994 = vmatmul.mubr.bf16.gmra.mxu0 %v1811
      %v1995 = vpop.f32.mrf.mxu0
      %v1996 = vadd.f32 0.0, %v1995
      %v1997 = vpop.f32.mrf.mxu0
      %v1998 = vpop.f32.mrf.mxu0
      %v1999 = vadd.f32 0.0, %v1998
      %v2000 = vpop.f32.mrf.mxu0
      %2001 = vmatprep.mubr.bf16.mxu0 0
      %2002 = vmatmul.mubr.bf16.gmra.mxu0 %v1812
      %v2003 = vpop.f32.mrf.mxu0
      %v2004 = vadd.f32 0.0, %v2003
      %v2005 = vpop.f32.mrf.mxu0
      %v2006 = vpop.f32.mrf.mxu0
      %v2007 = vadd.f32 0.0, %v2006
      %v2008 = vpop.f32.mrf.mxu0
      %2009 = vmatprep.mubr.bf16.mxu0 0
      %2010 = vmatmul.mubr.bf16.gmra.mxu0 %v1813
      %v2011 = vpop.f32.mrf.mxu0
      %v2012 = vadd.f32 0.0, %v2011
      %v2013 = vpop.f32.mrf.mxu0
      %v2014 = vpop.f32.mrf.mxu0
      %v2015 = vadd.f32 0.0, %v2014
      %v2016 = vpop.f32.mrf.mxu0
      %2017 = vmatprep.mubr.bf16.mxu0 0
      %2018 = vmatmul.mubr.bf16.gmra.mxu0 %v1814
      %v2019 = vpop.f32.mrf.mxu0
      %v2020 = vadd.f32 0.0, %v2019
      %v2021 = vpop.f32.mrf.mxu0
      %v2022 = vpop.f32.mrf.mxu0
      %v2023 = vadd.f32 0.0, %v2022
      %v2024 = vpop.f32.mrf.mxu0
      %2025 = vmatprep.mubr.bf16.mxu0 0
      %2026 = vmatmul.mubr.bf16.gmra.mxu0 %v1815
      %v2027 = vpop.f32.mrf.mxu0
      %v2028 = vadd.f32 0.0, %v2027
      %v2029 = vpop.f32.mrf.mxu0
      %v2030 = vpop.f32.mrf.mxu0
      %v2031 = vadd.f32 0.0, %v2030
      %v2032 = vpop.f32.mrf.mxu0
      %2033 = vmatprep.mubr.bf16.mxu0 0
      %2034 = vmatmul.mubr.bf16.gmra.mxu0 %v1816
      %v2035 = vpop.f32.mrf.mxu0
      %v2036 = vadd.f32 0.0, %v2035
      %v2037 = vpop.f32.mrf.mxu0
      %v2038 = vpop.f32.mrf.mxu0
      %v2039 = vadd.f32 0.0, %v2038
      %v2040 = vpop.f32.mrf.mxu0
      %2041 = vdwg.mxu0
      %v2074 = vunpack.c.l.b16 %v1301
      %v2075 = vunpack.c.l.b16 %v1302
      %v2076 = vunpack.c.l.b16 %v1303
      %v2077 = vunpack.c.l.b16 %v1304
      %v2078 = vunpack.c.l.b16 %v1305
      %v2079 = vunpack.c.l.b16 %v1306
      %v2080 = vunpack.c.l.b16 %v1307
      %v2081 = vunpack.c.l.b16 %v1308
      %v2082 = vunpack.c.l.b16 %v1309
      %v2083 = vunpack.c.l.b16 %v1310
      %v2084 = vunpack.c.l.b16 %v1311
      %v2085 = vunpack.c.l.b16 %v1312
      %v2086 = vunpack.c.l.b16 %v1313
      %v2087 = vunpack.c.l.b16 %v1314
      %v2088 = vunpack.c.l.b16 %v1315
      %v2089 = vunpack.c.l.b16 %v1316
      %v2090 = vunpack.c.l.b16 %v1317
      %v2091 = vunpack.c.l.b16 %v1318
      %v2092 = vunpack.c.l.b16 %v1319
      %v2093 = vunpack.c.l.b16 %v1320
      %v2094 = vunpack.c.l.b16 %v1321
      %v2095 = vunpack.c.l.b16 %v1322
      %v2096 = vunpack.c.l.b16 %v1323
      %v2097 = vunpack.c.l.b16 %v1324
      %v2098 = vunpack.c.l.b16 %v1325
      %v2099 = vunpack.c.l.b16 %v1326
      %v2100 = vunpack.c.l.b16 %v1327
      %v2101 = vunpack.c.l.b16 %v1328
      %v2102 = vunpack.c.l.b16 %v1329
      %v2103 = vunpack.c.l.b16 %v1330
      %v2104 = vunpack.c.l.b16 %v1331
      %v2105 = vunpack.c.l.b16 %v1332
      %v2106 = vpack.c.b16 %v2075, %v2074
      %v2107 = vpack.c.b16 %v2077, %v2076
      %v2108 = vpack.c.b16 %v2079, %v2078
      %v2109 = vpack.c.b16 %v2081, %v2080
      %v2110 = vpack.c.b16 %v2083, %v2082
      %v2111 = vpack.c.b16 %v2085, %v2084
      %v2112 = vpack.c.b16 %v2087, %v2086
      %v2113 = vpack.c.b16 %v2089, %v2088
      %v2114 = vpack.c.b16 %v2091, %v2090
      %v2115 = vpack.c.b16 %v2093, %v2092
      %v2116 = vpack.c.b16 %v2095, %v2094
      %v2117 = vpack.c.b16 %v2097, %v2096
      %v2118 = vpack.c.b16 %v2099, %v2098
      %v2119 = vpack.c.b16 %v2101, %v2100
      %v2120 = vpack.c.b16 %v2103, %v2102
      %v2121 = vpack.c.b16 %v2105, %v2104
      %v2154 = vunpack.c.l.b16 %v1333
      %v2155 = vunpack.c.l.b16 %v1334
      %v2156 = vunpack.c.l.b16 %v1335
      %v2157 = vunpack.c.l.b16 %v1336
      %v2158 = vunpack.c.l.b16 %v1337
      %v2159 = vunpack.c.l.b16 %v1338
      %v2160 = vunpack.c.l.b16 %v1339
      %v2161 = vunpack.c.l.b16 %v1340
      %v2162 = vunpack.c.l.b16 %v1341
      %v2163 = vunpack.c.l.b16 %v1342
      %v2164 = vunpack.c.l.b16 %v1343
      %v2165 = vunpack.c.l.b16 %v1344
      %v2166 = vunpack.c.l.b16 %v1345
      %v2167 = vunpack.c.l.b16 %v1346
      %v2168 = vunpack.c.l.b16 %v1347
      %v2169 = vunpack.c.l.b16 %v1348
      %v2170 = vpack.c.b16 %v2155, %v2154
      %v2171 = vpack.c.b16 %v2157, %v2156
      %v2172 = vpack.c.b16 %v2159, %v2158
      %v2173 = vpack.c.b16 %v2161, %v2160
      %v2174 = vpack.c.b16 %v2163, %v2162
      %v2175 = vpack.c.b16 %v2165, %v2164
      %v2176 = vpack.c.b16 %v2167, %v2166
      %v2177 = vpack.c.b16 %v2169, %v2168
      %2186 = vmatprep.subr.bf16.mxu0 0
      %2187 = vmatpush1.bf16.msra.mxu0 %v2177
      %2188 = vmatprep.subr.bf16.mxu0 0
      %2189 = vmatpush1.bf16.msra.mxu0 %v2176
      %2190 = vmatprep.subr.bf16.mxu0 0
      %2191 = vmatpush1.bf16.msra.mxu0 %v2175
      %2192 = vmatprep.subr.bf16.mxu0 0
      %2193 = vmatpush1.bf16.msra.mxu0 %v2174
      %2194 = vmatprep.subr.bf16.mxu0 0
      %2195 = vmatpush1.bf16.msra.mxu0 %v2173
      %2196 = vmatprep.subr.bf16.mxu0 0
      %2197 = vmatpush1.bf16.msra.mxu0 %v2172
      %2198 = vmatprep.subr.bf16.mxu0 0
      %2199 = vmatpush1.bf16.msra.mxu0 %v2171
      %2200 = vmatprep.subr.bf16.mxu0 0
      %2201 = vmatpush1.bf16.msra.mxu0 %v2170
      %2202 = vmatprep.subr.bf16.mxu0 0
      %2203 = vmatpush2.bf16.msra.mxu0 0
      %2204 = vmatprep.subr.bf16.mxu0 0
      %2205 = vmatpush2.bf16.msra.mxu0 0
      %2206 = vmatprep.subr.bf16.mxu0 0
      %2207 = vmatpush2.bf16.msra.mxu0 0
      %2208 = vmatprep.subr.bf16.mxu0 0
      %2209 = vmatpush2.bf16.msra.mxu0 0
      %2210 = vmatprep.subr.bf16.mxu0 0
      %2211 = vmatpush2.bf16.msra.mxu0 0
      %2212 = vmatprep.subr.bf16.mxu0 0
      %2213 = vmatpush2.bf16.msra.mxu0 0
      %2214 = vmatprep.subr.bf16.mxu0 0
      %2215 = vmatpush2.bf16.msra.mxu0 0
      %2216 = vmatprep.subr.bf16.mxu0 0
      %2217 = vmatpush2.bf16.msra.mxu0 0
      %2218 = vmatprep.mubr.bf16.mxu0 0
      %2219 = vmatmul.mubr.bf16.gmra.mxu0 %v2106
      %v2220 = vpop.f32.mrf.mxu0
      %v2221 = vadd.f32 %v1916, %v2220
      %v2222 = vpop.f32.mrf.mxu0
      %v2223 = vpop.f32.mrf.mxu0
      %v2224 = vadd.f32 %v1919, %v2223
      %v2225 = vpop.f32.mrf.mxu0
      %2226 = vmatprep.mubr.bf16.mxu0 0
      %2227 = vmatmul.mubr.bf16.gmra.mxu0 %v2107
      %v2228 = vpop.f32.mrf.mxu0
      %v2229 = vadd.f32 %v1924, %v2228
      %v2230 = vpop.f32.mrf.mxu0
      %v2231 = vpop.f32.mrf.mxu0
      %v2232 = vadd.f32 %v1927, %v2231
      %v2233 = vpop.f32.mrf.mxu0
      %2234 = vmatprep.mubr.bf16.mxu0 0
      %2235 = vmatmul.mubr.bf16.gmra.mxu0 %v2108
      %v2236 = vpop.f32.mrf.mxu0
      %v2237 = vadd.f32 %v1932, %v2236
      %v2238 = vpop.f32.mrf.mxu0
      %v2239 = vpop.f32.mrf.mxu0
      %v2240 = vadd.f32 %v1935, %v2239
      %v2241 = vpop.f32.mrf.mxu0
      %2242 = vmatprep.mubr.bf16.mxu0 0
      %2243 = vmatmul.mubr.bf16.gmra.mxu0 %v2109
      %v2244 = vpop.f32.mrf.mxu0
      %v2245 = vadd.f32 %v1940, %v2244
      %v2246 = vpop.f32.mrf.mxu0
      %v2247 = vpop.f32.mrf.mxu0
      %v2248 = vadd.f32 %v1943, %v2247
      %v2249 = vpop.f32.mrf.mxu0
      %2250 = vmatprep.mubr.bf16.mxu0 0
      %2251 = vmatmul.mubr.bf16.gmra.mxu0 %v2110
      %v2252 = vpop.f32.mrf.mxu0
      %v2253 = vadd.f32 %v1948, %v2252
      %v2254 = vpop.f32.mrf.mxu0
      %v2255 = vpop.f32.mrf.mxu0
      %v2256 = vadd.f32 %v1951, %v2255
      %v2257 = vpop.f32.mrf.mxu0
      %2258 = vmatprep.mubr.bf16.mxu0 0
      %2259 = vmatmul.mubr.bf16.gmra.mxu0 %v2111
      %v2260 = vpop.f32.mrf.mxu0
      %v2261 = vadd.f32 %v1956, %v2260
      %v2262 = vpop.f32.mrf.mxu0
      %v2263 = vpop.f32.mrf.mxu0
      %v2264 = vadd.f32 %v1959, %v2263
      %v2265 = vpop.f32.mrf.mxu0
      %2266 = vmatprep.mubr.bf16.mxu0 0
      %2267 = vmatmul.mubr.bf16.gmra.mxu0 %v2112
      %v2268 = vpop.f32.mrf.mxu0
      %v2269 = vadd.f32 %v1964, %v2268
      %v2270 = vpop.f32.mrf.mxu0
      %v2271 = vpop.f32.mrf.mxu0
      %v2272 = vadd.f32 %v1967, %v2271
      %v2273 = vpop.f32.mrf.mxu0
      %2274 = vmatprep.mubr.bf16.mxu0 0
      %2275 = vmatmul.mubr.bf16.gmra.mxu0 %v2113
      %v2276 = vpop.f32.mrf.mxu0
      %v2277 = vadd.f32 %v1972, %v2276
      %v2278 = vpop.f32.mrf.mxu0
      %v2279 = vpop.f32.mrf.mxu0
      %v2280 = vadd.f32 %v1975, %v2279
      %v2281 = vpop.f32.mrf.mxu0
      %2282 = vmatprep.mubr.bf16.mxu0 0
      %2283 = vmatmul.mubr.bf16.gmra.mxu0 %v2114
      %v2284 = vpop.f32.mrf.mxu0
      %v2285 = vadd.f32 %v1980, %v2284
      %v2286 = vpop.f32.mrf.mxu0
      %v2287 = vpop.f32.mrf.mxu0
      %v2288 = vadd.f32 %v1983, %v2287
      %v2289 = vpop.f32.mrf.mxu0
      %2290 = vmatprep.mubr.bf16.mxu0 0
      %2291 = vmatmul.mubr.bf16.gmra.mxu0 %v2115
      %v2292 = vpop.f32.mrf.mxu0
      %v2293 = vadd.f32 %v1988, %v2292
      %v2294 = vpop.f32.mrf.mxu0
      %v2295 = vpop.f32.mrf.mxu0
      %v2296 = vadd.f32 %v1991, %v2295
      %v2297 = vpop.f32.mrf.mxu0
      %2298 = vmatprep.mubr.bf16.mxu0 0
      %2299 = vmatmul.mubr.bf16.gmra.mxu0 %v2116
      %v2300 = vpop.f32.mrf.mxu0
      %v2301 = vadd.f32 %v1996, %v2300
      %v2302 = vpop.f32.mrf.mxu0
      %v2303 = vpop.f32.mrf.mxu0
      %v2304 = vadd.f32 %v1999, %v2303
      %v2305 = vpop.f32.mrf.mxu0
      %2306 = vmatprep.mubr.bf16.mxu0 0
      %2307 = vmatmul.mubr.bf16.gmra.mxu0 %v2117
      %v2308 = vpop.f32.mrf.mxu0
      %v2309 = vadd.f32 %v2004, %v2308
      %v2310 = vpop.f32.mrf.mxu0
      %v2311 = vpop.f32.mrf.mxu0
      %v2312 = vadd.f32 %v2007, %v2311
      %v2313 = vpop.f32.mrf.mxu0
      %2314 = vmatprep.mubr.bf16.mxu0 0
      %2315 = vmatmul.mubr.bf16.gmra.mxu0 %v2118
      %v2316 = vpop.f32.mrf.mxu0
      %v2317 = vadd.f32 %v2012, %v2316
      %v2318 = vpop.f32.mrf.mxu0
      %v2319 = vpop.f32.mrf.mxu0
      %v2320 = vadd.f32 %v2015, %v2319
      %v2321 = vpop.f32.mrf.mxu0
      %2322 = vmatprep.mubr.bf16.mxu0 0
      %2323 = vmatmul.mubr.bf16.gmra.mxu0 %v2119
      %v2324 = vpop.f32.mrf.mxu0
      %v2325 = vadd.f32 %v2020, %v2324
      %v2326 = vpop.f32.mrf.mxu0
      %v2327 = vpop.f32.mrf.mxu0
      %v2328 = vadd.f32 %v2023, %v2327
      %v2329 = vpop.f32.mrf.mxu0
      %2330 = vmatprep.mubr.bf16.mxu0 0
      %2331 = vmatmul.mubr.bf16.gmra.mxu0 %v2120
      %v2332 = vpop.f32.mrf.mxu0
      %v2333 = vadd.f32 %v2028, %v2332
      %v2334 = vpop.f32.mrf.mxu0
      %v2335 = vpop.f32.mrf.mxu0
      %v2336 = vadd.f32 %v2031, %v2335
      %v2337 = vpop.f32.mrf.mxu0
      %2338 = vmatprep.mubr.bf16.mxu0 0
      %2339 = vmatmul.mubr.bf16.gmra.mxu0 %v2121
      %v2340 = vpop.f32.mrf.mxu0
      %v2341 = vadd.f32 %v2036, %v2340
      %v2342 = vpop.f32.mrf.mxu0
      %v2343 = vpop.f32.mrf.mxu0
      %v2344 = vadd.f32 %v2039, %v2343
      %v2345 = vpop.f32.mrf.mxu0
      %2346 = vdwg.mxu0
      %v2347 = vld [vmem:[#allocation2] sm:$0xe]
      %v2348 = vld [vmem:[#allocation2 + $0xc] sm:$0xe]
      %v2349 = vld [vmem:[#allocation2 + $0x18] sm:$0xe]
      %v2350 = vld [vmem:[#allocation2 + $0x24] sm:$0xe]
      %v2351 = vld [vmem:[#allocation2 + $0x30] sm:$0xe]
      %v2352 = vld [vmem:[#allocation2 + $0x3c] sm:$0xe]
      %v2353 = vld [vmem:[#allocation2 + $0x48] sm:$0xe]
      %v2354 = vld [vmem:[#allocation2 + $0x54] sm:$0xe]
      %v2355 = vld [vmem:[#allocation2 + $0x60] sm:$0xe]
      %v2356 = vld [vmem:[#allocation2 + $0x6c] sm:$0xe]
      %v2357 = vld [vmem:[#allocation2 + $0x78] sm:$0xe]
      %v2358 = vld [vmem:[#allocation2 + $0x84] sm:$0xe]
      %v2359 = vld [vmem:[#allocation2 + $0x90] sm:$0xe]
      %v2360 = vld [vmem:[#allocation2 + $0x9c] sm:$0xe]
      %v2361 = vld [vmem:[#allocation2 + $0xa8] sm:$0xe]
      %v2362 = vld [vmem:[#allocation2 + $0xb4] sm:$0xe]
      %vm2395 = vcmask 1042432
      %vm2396 = vcmask 1046532
      %vm2397 = vmor %vm2395, %vm2396
      %v2398 = vrot.slane %v2347, 5
      %v2399 = vrot.slane %v2398, 4
      %v2400 = vrot.slane %v1302, 5
      %v2401 = vsel %vm2397, %v2399, %v2400
      %v2402 = vrot.slane %v2400, 4
      %v2403 = vrot.slane %v1349, 5
      %v2404 = vsel %vm2397, %v2402, %v2403
      %v2405 = vrot.slane %v2348, 5
      %v2406 = vrot.slane %v2405, 4
      %v2407 = vrot.slane %v1304, 5
      %v2408 = vsel %vm2397, %v2406, %v2407
      %v2409 = vrot.slane %v2407, 4
      %v2410 = vrot.slane %v1350, 5
      %v2411 = vsel %vm2397, %v2409, %v2410
      %v2412 = vrot.slane %v2349, 5
      %v2413 = vrot.slane %v2412, 4
      %v2414 = vrot.slane %v1306, 5
      %v2415 = vsel %vm2397, %v2413, %v2414
      %v2416 = vrot.slane %v2414, 4
      %v2417 = vrot.slane %v1351, 5
      %v2418 = vsel %vm2397, %v2416, %v2417
      %v2419 = vrot.slane %v2350, 5
      %v2420 = vrot.slane %v2419, 4
      %v2421 = vrot.slane %v1308, 5
      %v2422 = vsel %vm2397, %v2420, %v2421
      %v2423 = vrot.slane %v2421, 4
      %v2424 = vrot.slane %v1352, 5
      %v2425 = vsel %vm2397, %v2423, %v2424
      %v2426 = vrot.slane %v2351, 5
      %v2427 = vrot.slane %v2426, 4
      %v2428 = vrot.slane %v1310, 5
      %v2429 = vsel %vm2397, %v2427, %v2428
      %v2430 = vrot.slane %v2428, 4
      %v2431 = vrot.slane %v1353, 5
      %v2432 = vsel %vm2397, %v2430, %v2431
      %v2433 = vrot.slane %v2352, 5
      %v2434 = vrot.slane %v2433, 4
      %v2435 = vrot.slane %v1312, 5
      %v2436 = vsel %vm2397, %v2434, %v2435
      %v2437 = vrot.slane %v2435, 4
      %v2438 = vrot.slane %v1354, 5
      %v2439 = vsel %vm2397, %v2437, %v2438
      %v2440 = vrot.slane %v2353, 5
      %v2441 = vrot.slane %v2440, 4
      %v2442 = vrot.slane %v1314, 5
      %v2443 = vsel %vm2397, %v2441, %v2442
      %v2444 = vrot.slane %v2442, 4
      %v2445 = vrot.slane %v1355, 5
      %v2446 = vsel %vm2397, %v2444, %v2445
      %v2447 = vrot.slane %v2354, 5
      %v2448 = vrot.slane %v2447, 4
      %v2449 = vrot.slane %v1316, 5
      %v2450 = vsel %vm2397, %v2448, %v2449
      %v2451 = vrot.slane %v2449, 4
      %v2452 = vrot.slane %v1356, 5
      %v2453 = vsel %vm2397, %v2451, %v2452
      %v2454 = vrot.slane %v2355, 5
      %v2455 = vrot.slane %v2454, 4
      %v2456 = vrot.slane %v1318, 5
      %v2457 = vsel %vm2397, %v2455, %v2456
      %v2458 = vrot.slane %v2456, 4
      %v2459 = vrot.slane %v1357, 5
      %v2460 = vsel %vm2397, %v2458, %v2459
      %v2461 = vrot.slane %v2356, 5
      %v2462 = vrot.slane %v2461, 4
      %v2463 = vrot.slane %v1320, 5
      %v2464 = vsel %vm2397, %v2462, %v2463
      %v2465 = vrot.slane %v2463, 4
      %v2466 = vrot.slane %v1358, 5
      %v2467 = vsel %vm2397, %v2465, %v2466
      %v2468 = vrot.slane %v2357, 5
      %v2469 = vrot.slane %v2468, 4
      %v2470 = vrot.slane %v1322, 5
      %v2471 = vsel %vm2397, %v2469, %v2470
      %v2472 = vrot.slane %v2470, 4
      %v2473 = vrot.slane %v1359, 5
      %v2474 = vsel %vm2397, %v2472, %v2473
      %v2475 = vrot.slane %v2358, 5
      %v2476 = vrot.slane %v2475, 4
      %v2477 = vrot.slane %v1324, 5
      %v2478 = vsel %vm2397, %v2476, %v2477
      %v2479 = vrot.slane %v2477, 4
      %v2480 = vrot.slane %v1360, 5
      %v2481 = vsel %vm2397, %v2479, %v2480
      %v2482 = vrot.slane %v2359, 5
      %v2483 = vrot.slane %v2482, 4
      %v2484 = vrot.slane %v1326, 5
      %v2485 = vsel %vm2397, %v2483, %v2484
      %v2486 = vrot.slane %v2484, 4
      %v2487 = vrot.slane %v1361, 5
      %v2488 = vsel %vm2397, %v2486, %v2487
      %v2489 = vrot.slane %v2360, 5
      %v2490 = vrot.slane %v2489, 4
      %v2491 = vrot.slane %v1328, 5
      %v2492 = vsel %vm2397, %v2490, %v2491
      %v2493 = vrot.slane %v2491, 4
      %v2494 = vrot.slane %v1362, 5
      %v2495 = vsel %vm2397, %v2493, %v2494
      %v2496 = vrot.slane %v2361, 5
      %v2497 = vrot.slane %v2496, 4
      %v2498 = vrot.slane %v1330, 5
      %v2499 = vsel %vm2397, %v2497, %v2498
      %v2500 = vrot.slane %v2498, 4
      %v2501 = vrot.slane %v1363, 5
      %v2502 = vsel %vm2397, %v2500, %v2501
      %v2503 = vrot.slane %v2362, 5
      %v2504 = vrot.slane %v2503, 4
      %v2505 = vrot.slane %v1332, 5
      %v2506 = vsel %vm2397, %v2504, %v2505
      %v2507 = vrot.slane %v2505, 4
      %v2508 = vrot.slane %v1364, 5
      %v2509 = vsel %vm2397, %v2507, %v2508
      %s2510 = scalar_lea.vmem %s3, 128
      %v2511 = vld [vmem:[%s2510] sm:$0xf]
      %v2512 = vld [vmem:[%s2510 + $0x4] sm:$0xf]
      %v2513 = vld [vmem:[%s2510 + $0x8] sm:$0xf]
      %v2514 = vld [vmem:[%s2510 + $0xc] sm:$0xf]
      %v2515 = vld [vmem:[%s2510 + $0x10] sm:$0xf]
      %v2516 = vld [vmem:[%s2510 + $0x14] sm:$0xf]
      %v2517 = vld [vmem:[%s2510 + $0x18] sm:$0xf]
      %v2518 = vld [vmem:[%s2510 + $0x1c] sm:$0xf]
      %v2519 = vld [vmem:[%s2510 + $0x20] sm:$0xf]
      %v2520 = vld [vmem:[%s2510 + $0x24] sm:$0xf]
      %v2521 = vld [vmem:[%s2510 + $0x28] sm:$0xf]
      %v2522 = vld [vmem:[%s2510 + $0x2c] sm:$0xf]
      %v2523 = vld [vmem:[%s2510 + $0x30] sm:$0xf]
      %v2524 = vld [vmem:[%s2510 + $0x34] sm:$0xf]
      %v2525 = vld [vmem:[%s2510 + $0x38] sm:$0xf]
      %v2526 = vld [vmem:[%s2510 + $0x3c] sm:$0xf]
      %v2527 = vunpack.c.l.b16 %v2401
      %v2528 = vunpack.c.l.b16 %v2404
      %v2529 = vunpack.c.l.b16 %v2408
      %v2530 = vunpack.c.l.b16 %v2411
      %v2531 = vunpack.c.l.b16 %v2415
      %v2532 = vunpack.c.l.b16 %v2418
      %v2533 = vunpack.c.l.b16 %v2422
      %v2534 = vunpack.c.l.b16 %v2425
      %v2535 = vunpack.c.l.b16 %v2429
      %v2536 = vunpack.c.l.b16 %v2432
      %v2537 = vunpack.c.l.b16 %v2436
      %v2538 = vunpack.c.l.b16 %v2439
      %v2539 = vunpack.c.l.b16 %v2443
      %v2540 = vunpack.c.l.b16 %v2446
      %v2541 = vunpack.c.l.b16 %v2450
      %v2542 = vunpack.c.l.b16 %v2453
      %v2543 = vunpack.c.l.b16 %v2457
      %v2544 = vunpack.c.l.b16 %v2460
      %v2545 = vunpack.c.l.b16 %v2464
      %v2546 = vunpack.c.l.b16 %v2467
      %v2547 = vunpack.c.l.b16 %v2471
      %v2548 = vunpack.c.l.b16 %v2474
      %v2549 = vunpack.c.l.b16 %v2478
      %v2550 = vunpack.c.l.b16 %v2481
      %v2551 = vunpack.c.l.b16 %v2485
      %v2552 = vunpack.c.l.b16 %v2488
      %v2553 = vunpack.c.l.b16 %v2492
      %v2554 = vunpack.c.l.b16 %v2495
      %v2555 = vunpack.c.l.b16 %v2499
      %v2556 = vunpack.c.l.b16 %v2502
      %v2557 = vunpack.c.l.b16 %v2506
      %v2558 = vunpack.c.l.b16 %v2509
      %v2559 = vpack.c.b16 %v2528, %v2527
      %v2560 = vpack.c.b16 %v2530, %v2529
      %v2561 = vpack.c.b16 %v2532, %v2531
      %v2562 = vpack.c.b16 %v2534, %v2533
      %v2563 = vpack.c.b16 %v2536, %v2535
      %v2564 = vpack.c.b16 %v2538, %v2537
      %v2565 = vpack.c.b16 %v2540, %v2539
      %v2566 = vpack.c.b16 %v2542, %v2541
      %v2567 = vpack.c.b16 %v2544, %v2543
      %v2568 = vpack.c.b16 %v2546, %v2545
      %v2569 = vpack.c.b16 %v2548, %v2547
      %v2570 = vpack.c.b16 %v2550, %v2549
      %v2571 = vpack.c.b16 %v2552, %v2551
      %v2572 = vpack.c.b16 %v2554, %v2553
      %v2573 = vpack.c.b16 %v2556, %v2555
      %v2574 = vpack.c.b16 %v2558, %v2557
      %v2607 = vunpack.c.l.b16 %v2511
      %v2608 = vunpack.c.l.b16 %v2512
      %v2609 = vunpack.c.l.b16 %v2513
      %v2610 = vunpack.c.l.b16 %v2514
      %v2611 = vunpack.c.l.b16 %v2515
      %v2612 = vunpack.c.l.b16 %v2516
      %v2613 = vunpack.c.l.b16 %v2517
      %v2614 = vunpack.c.l.b16 %v2518
      %v2615 = vunpack.c.l.b16 %v2519
      %v2616 = vunpack.c.l.b16 %v2520
      %v2617 = vunpack.c.l.b16 %v2521
      %v2618 = vunpack.c.l.b16 %v2522
      %v2619 = vunpack.c.l.b16 %v2523
      %v2620 = vunpack.c.l.b16 %v2524
      %v2621 = vunpack.c.l.b16 %v2525
      %v2622 = vunpack.c.l.b16 %v2526
      %v2623 = vpack.c.b16 %v2608, %v2607
      %v2624 = vpack.c.b16 %v2610, %v2609
      %v2625 = vpack.c.b16 %v2612, %v2611
      %v2626 = vpack.c.b16 %v2614, %v2613
      %v2627 = vpack.c.b16 %v2616, %v2615
      %v2628 = vpack.c.b16 %v2618, %v2617
      %v2629 = vpack.c.b16 %v2620, %v2619
      %v2630 = vpack.c.b16 %v2622, %v2621
      %2639 = vmatprep.subr.bf16.mxu0 0
      %2640 = vmatpush1.bf16.msra.mxu0 %v2630
      %2641 = vmatprep.subr.bf16.mxu0 0
      %2642 = vmatpush1.bf16.msra.mxu0 %v2629
      %2643 = vmatprep.subr.bf16.mxu0 0
      %2644 = vmatpush1.bf16.msra.mxu0 %v2628
      %2645 = vmatprep.subr.bf16.mxu0 0
      %2646 = vmatpush1.bf16.msra.mxu0 %v2627
      %2647 = vmatprep.subr.bf16.mxu0 0
      %2648 = vmatpush1.bf16.msra.mxu0 %v2626
      %2649 = vmatprep.subr.bf16.mxu0 0
      %2650 = vmatpush1.bf16.msra.mxu0 %v2625
      %2651 = vmatprep.subr.bf16.mxu0 0
      %2652 = vmatpush1.bf16.msra.mxu0 %v2624
      %2653 = vmatprep.subr.bf16.mxu0 0
      %2654 = vmatpush1.bf16.msra.mxu0 %v2623
      %2655 = vmatprep.subr.bf16.mxu0 0
      %2656 = vmatpush2.bf16.msra.mxu0 0
      %2657 = vmatprep.subr.bf16.mxu0 0
      %2658 = vmatpush2.bf16.msra.mxu0 0
      %2659 = vmatprep.subr.bf16.mxu0 0
      %2660 = vmatpush2.bf16.msra.mxu0 0
      %2661 = vmatprep.subr.bf16.mxu0 0
      %2662 = vmatpush2.bf16.msra.mxu0 0
      %2663 = vmatprep.subr.bf16.mxu0 0
      %2664 = vmatpush2.bf16.msra.mxu0 0
      %2665 = vmatprep.subr.bf16.mxu0 0
      %2666 = vmatpush2.bf16.msra.mxu0 0
      %2667 = vmatprep.subr.bf16.mxu0 0
      %2668 = vmatpush2.bf16.msra.mxu0 0
      %2669 = vmatprep.subr.bf16.mxu0 0
      %2670 = vmatpush2.bf16.msra.mxu0 0
      %2671 = vmatprep.mubr.bf16.mxu0 0
      %2672 = vmatmul.mubr.bf16.gmra.mxu0 %v2559
      %v2673 = vpop.f32.mrf.mxu0
      %v2674 = vadd.f32 0.0, %v2673
      %v2675 = vpop.f32.mrf.mxu0
      %v2676 = vpop.f32.mrf.mxu0
      %v2677 = vadd.f32 0.0, %v2676
      %v2678 = vpop.f32.mrf.mxu0
      %2679 = vmatprep.mubr.bf16.mxu0 0
      %2680 = vmatmul.mubr.bf16.gmra.mxu0 %v2560
      %v2681 = vpop.f32.mrf.mxu0
      %v2682 = vadd.f32 0.0, %v2681
      %v2683 = vpop.f32.mrf.mxu0
      %v2684 = vpop.f32.mrf.mxu0
      %v2685 = vadd.f32 0.0, %v2684
      %v2686 = vpop.f32.mrf.mxu0
      %2687 = vmatprep.mubr.bf16.mxu0 0
      %2688 = vmatmul.mubr.bf16.gmra.mxu0 %v2561
      %v2689 = vpop.f32.mrf.mxu0
      %v2690 = vadd.f32 0.0, %v2689
      %v2691 = vpop.f32.mrf.mxu0
      %v2692 = vpop.f32.mrf.mxu0
      %v2693 = vadd.f32 0.0, %v2692
      %v2694 = vpop.f32.mrf.mxu0
      %2695 = vmatprep.mubr.bf16.mxu0 0
      %2696 = vmatmul.mubr.bf16.gmra.mxu0 %v2562
      %v2697 = vpop.f32.mrf.mxu0
      %v2698 = vadd.f32 0.0, %v2697
      %v2699 = vpop.f32.mrf.mxu0
      %v2700 = vpop.f32.mrf.mxu0
      %v2701 = vadd.f32 0.0, %v2700
      %v2702 = vpop.f32.mrf.mxu0
      %2703 = vmatprep.mubr.bf16.mxu0 0
      %2704 = vmatmul.mubr.bf16.gmra.mxu0 %v2563
      %v2705 = vpop.f32.mrf.mxu0
      %v2706 = vadd.f32 0.0, %v2705
      %v2707 = vpop.f32.mrf.mxu0
      %v2708 = vpop.f32.mrf.mxu0
      %v2709 = vadd.f32 0.0, %v2708
      %v2710 = vpop.f32.mrf.mxu0
      %2711 = vmatprep.mubr.bf16.mxu0 0
      %2712 = vmatmul.mubr.bf16.gmra.mxu0 %v2564
      %v2713 = vpop.f32.mrf.mxu0
      %v2714 = vadd.f32 0.0, %v2713
      %v2715 = vpop.f32.mrf.mxu0
      %v2716 = vpop.f32.mrf.mxu0
      %v2717 = vadd.f32 0.0, %v2716
      %v2718 = vpop.f32.mrf.mxu0
      %2719 = vmatprep.mubr.bf16.mxu0 0
      %2720 = vmatmul.mubr.bf16.gmra.mxu0 %v2565
      %v2721 = vpop.f32.mrf.mxu0
      %v2722 = vadd.f32 0.0, %v2721
      %v2723 = vpop.f32.mrf.mxu0
      %v2724 = vpop.f32.mrf.mxu0
      %v2725 = vadd.f32 0.0, %v2724
      %v2726 = vpop.f32.mrf.mxu0
      %2727 = vmatprep.mubr.bf16.mxu0 0
      %2728 = vmatmul.mubr.bf16.gmra.mxu0 %v2566
      %v2729 = vpop.f32.mrf.mxu0
      %v2730 = vadd.f32 0.0, %v2729
      %v2731 = vpop.f32.mrf.mxu0
      %v2732 = vpop.f32.mrf.mxu0
      %v2733 = vadd.f32 0.0, %v2732
      %v2734 = vpop.f32.mrf.mxu0
      %2735 = vmatprep.mubr.bf16.mxu0 0
      %2736 = vmatmul.mubr.bf16.gmra.mxu0 %v2567
      %v2737 = vpop.f32.mrf.mxu0
      %v2738 = vadd.f32 0.0, %v2737
      %v2739 = vpop.f32.mrf.mxu0
      %v2740 = vpop.f32.mrf.mxu0
      %v2741 = vadd.f32 0.0, %v2740
      %v2742 = vpop.f32.mrf.mxu0
      %2743 = vmatprep.mubr.bf16.mxu0 0
      %2744 = vmatmul.mubr.bf16.gmra.mxu0 %v2568
      %v2745 = vpop.f32.mrf.mxu0
      %v2746 = vadd.f32 0.0, %v2745
      %v2747 = vpop.f32.mrf.mxu0
      %v2748 = vpop.f32.mrf.mxu0
      %v2749 = vadd.f32 0.0, %v2748
      %v2750 = vpop.f32.mrf.mxu0
      %2751 = vmatprep.mubr.bf16.mxu0 0
      %2752 = vmatmul.mubr.bf16.gmra.mxu0 %v2569
      %v2753 = vpop.f32.mrf.mxu0
      %v2754 = vadd.f32 0.0, %v2753
      %v2755 = vpop.f32.mrf.mxu0
      %v2756 = vpop.f32.mrf.mxu0
      %v2757 = vadd.f32 0.0, %v2756
      %v2758 = vpop.f32.mrf.mxu0
      %2759 = vmatprep.mubr.bf16.mxu0 0
      %2760 = vmatmul.mubr.bf16.gmra.mxu0 %v2570
      %v2761 = vpop.f32.mrf.mxu0
      %v2762 = vadd.f32 0.0, %v2761
      %v2763 = vpop.f32.mrf.mxu0
      %v2764 = vpop.f32.mrf.mxu0
      %v2765 = vadd.f32 0.0, %v2764
      %v2766 = vpop.f32.mrf.mxu0
      %2767 = vmatprep.mubr.bf16.mxu0 0
      %2768 = vmatmul.mubr.bf16.gmra.mxu0 %v2571
      %v2769 = vpop.f32.mrf.mxu0
      %v2770 = vadd.f32 0.0, %v2769
      %v2771 = vpop.f32.mrf.mxu0
      %v2772 = vpop.f32.mrf.mxu0
      %v2773 = vadd.f32 0.0, %v2772
      %v2774 = vpop.f32.mrf.mxu0
      %2775 = vmatprep.mubr.bf16.mxu0 0
      %2776 = vmatmul.mubr.bf16.gmra.mxu0 %v2572
      %v2777 = vpop.f32.mrf.mxu0
      %v2778 = vadd.f32 0.0, %v2777
      %v2779 = vpop.f32.mrf.mxu0
      %v2780 = vpop.f32.mrf.mxu0
      %v2781 = vadd.f32 0.0, %v2780
      %v2782 = vpop.f32.mrf.mxu0
      %2783 = vmatprep.mubr.bf16.mxu0 0
      %2784 = vmatmul.mubr.bf16.gmra.mxu0 %v2573
      %v2785 = vpop.f32.mrf.mxu0
      %v2786 = vadd.f32 0.0, %v2785
      %v2787 = vpop.f32.mrf.mxu0
      %v2788 = vpop.f32.mrf.mxu0
      %v2789 = vadd.f32 0.0, %v2788
      %v2790 = vpop.f32.mrf.mxu0
      %2791 = vmatprep.mubr.bf16.mxu0 0
      %2792 = vmatmul.mubr.bf16.gmra.mxu0 %v2574
      %v2793 = vpop.f32.mrf.mxu0
      %v2794 = vadd.f32 0.0, %v2793
      %v2795 = vpop.f32.mrf.mxu0
      %v2796 = vpop.f32.mrf.mxu0
      %v2797 = vadd.f32 0.0, %v2796
      %v2798 = vpop.f32.mrf.mxu0
      %2799 = vdwg.mxu0
      %v2800 = vadd.f32 %v2221, %v2674
      %v2801 = vadd.f32 %v2224, %v2677
      %v2802 = vadd.f32 %v2229, %v2682
      %v2803 = vadd.f32 %v2232, %v2685
      %v2804 = vadd.f32 %v2237, %v2690
      %v2805 = vadd.f32 %v2240, %v2693
      %v2806 = vadd.f32 %v2245, %v2698
      %v2807 = vadd.f32 %v2248, %v2701
      %v2808 = vadd.f32 %v2253, %v2706
      %v2809 = vadd.f32 %v2256, %v2709
      %v2810 = vadd.f32 %v2261, %v2714
      %v2811 = vadd.f32 %v2264, %v2717
      %v2812 = vadd.f32 %v2269, %v2722
      %v2813 = vadd.f32 %v2272, %v2725
      %v2814 = vadd.f32 %v2277, %v2730
      %v2815 = vadd.f32 %v2280, %v2733
      %v2816 = vadd.f32 %v2285, %v2738
      %v2817 = vadd.f32 %v2288, %v2741
      %v2818 = vadd.f32 %v2293, %v2746
      %v2819 = vadd.f32 %v2296, %v2749
      %v2820 = vadd.f32 %v2301, %v2754
      %v2821 = vadd.f32 %v2304, %v2757
      %v2822 = vadd.f32 %v2309, %v2762
      %v2823 = vadd.f32 %v2312, %v2765
      %v2824 = vadd.f32 %v2317, %v2770
      %v2825 = vadd.f32 %v2320, %v2773
      %v2826 = vadd.f32 %v2325, %v2778
      %v2827 = vadd.f32 %v2328, %v2781
      %v2828 = vadd.f32 %v2333, %v2786
      %v2829 = vadd.f32 %v2336, %v2789
      %v2830 = vadd.f32 %v2341, %v2794
      %v2831 = vadd.f32 %v2344, %v2797
      %v2832 = vld [vmem:[%s1183] sm:$0xf]
      %v2833 = vld [vmem:[%s1183 + $0x4] sm:$0xf]
      %v2834 = vld [vmem:[%s1183 + $0xc] sm:$0xf]
      %v2835 = vld [vmem:[%s1183 + $0x10] sm:$0xf]
      %v2836 = vld [vmem:[%s1183 + $0x18] sm:$0xf]
      %v2837 = vld [vmem:[%s1183 + $0x1c] sm:$0xf]
      %v2838 = vld [vmem:[%s1183 + $0x24] sm:$0xf]
      %v2839 = vld [vmem:[%s1183 + $0x28] sm:$0xf]
      %v2840 = vld [vmem:[%s1183 + $0x30] sm:$0xf]
      %v2841 = vld [vmem:[%s1183 + $0x34] sm:$0xf]
      %v2842 = vld [vmem:[%s1183 + $0x3c] sm:$0xf]
      %v2843 = vld [vmem:[%s1183 + $0x40] sm:$0xf]
      %v2844 = vld [vmem:[%s1183 + $0x48] sm:$0xf]
      %v2845 = vld [vmem:[%s1183 + $0x4c] sm:$0xf]
      %v2846 = vld [vmem:[%s1183 + $0x54] sm:$0xf]
      %v2847 = vld [vmem:[%s1183 + $0x58] sm:$0xf]
      %v2848 = vld [vmem:[%s1183 + $0x60] sm:$0xf]
      %v2849 = vld [vmem:[%s1183 + $0x64] sm:$0xf]
      %v2850 = vld [vmem:[%s1183 + $0x6c] sm:$0xf]
      %v2851 = vld [vmem:[%s1183 + $0x70] sm:$0xf]
      %v2852 = vld [vmem:[%s1183 + $0x78] sm:$0xf]
      %v2853 = vld [vmem:[%s1183 + $0x7c] sm:$0xf]
      %v2854 = vld [vmem:[%s1183 + $0x84] sm:$0xf]
      %v2855 = vld [vmem:[%s1183 + $0x88] sm:$0xf]
      %v2856 = vld [vmem:[%s1183 + $0x90] sm:$0xf]
      %v2857 = vld [vmem:[%s1183 + $0x94] sm:$0xf]
      %v2858 = vld [vmem:[%s1183 + $0x9c] sm:$0xf]
      %v2859 = vld [vmem:[%s1183 + $0xa0] sm:$0xf]
      %v2860 = vld [vmem:[%s1183 + $0xa8] sm:$0xf]
      %v2861 = vld [vmem:[%s1183 + $0xac] sm:$0xf]
      %v2862 = vld [vmem:[%s1183 + $0xb4] sm:$0xf]
      %v2863 = vld [vmem:[%s1183 + $0xb8] sm:$0xf]
      %s2864 = scalar_lea.vmem %s3, 192
      %v2865 = vld [vmem:[%s2864] sm:$0xf]
      %v2866 = vld [vmem:[%s2864 + $0x4] sm:$0xf]
      %v2867 = vld [vmem:[%s2864 + $0x8] sm:$0xf]
      %v2868 = vld [vmem:[%s2864 + $0xc] sm:$0xf]
      %v2869 = vld [vmem:[%s2864 + $0x10] sm:$0xf]
      %v2870 = vld [vmem:[%s2864 + $0x14] sm:$0xf]
      %v2871 = vld [vmem:[%s2864 + $0x18] sm:$0xf]
      %v2872 = vld [vmem:[%s2864 + $0x1c] sm:$0xf]
      %v2873 = vld [vmem:[%s2864 + $0x20] sm:$0xf]
      %v2874 = vld [vmem:[%s2864 + $0x24] sm:$0xf]
      %v2875 = vld [vmem:[%s2864 + $0x28] sm:$0xf]
      %v2876 = vld [vmem:[%s2864 + $0x2c] sm:$0xf]
      %v2877 = vld [vmem:[%s2864 + $0x30] sm:$0xf]
      %v2878 = vld [vmem:[%s2864 + $0x34] sm:$0xf]
      %v2879 = vld [vmem:[%s2864 + $0x38] sm:$0xf]
      %v2880 = vld [vmem:[%s2864 + $0x3c] sm:$0xf]
      %v2913 = vunpack.c.l.b16 %v2832
      %v2914 = vunpack.c.l.b16 %v2833
      %v2915 = vunpack.c.l.b16 %v2834
      %v2916 = vunpack.c.l.b16 %v2835
      %v2917 = vunpack.c.l.b16 %v2836
      %v2918 = vunpack.c.l.b16 %v2837
      %v2919 = vunpack.c.l.b16 %v2838
      %v2920 = vunpack.c.l.b16 %v2839
      %v2921 = vunpack.c.l.b16 %v2840
      %v2922 = vunpack.c.l.b16 %v2841
      %v2923 = vunpack.c.l.b16 %v2842
      %v2924 = vunpack.c.l.b16 %v2843
      %v2925 = vunpack.c.l.b16 %v2844
      %v2926 = vunpack.c.l.b16 %v2845
      %v2927 = vunpack.c.l.b16 %v2846
      %v2928 = vunpack.c.l.b16 %v2847
      %v2929 = vunpack.c.l.b16 %v2848
      %v2930 = vunpack.c.l.b16 %v2849
      %v2931 = vunpack.c.l.b16 %v2850
      %v2932 = vunpack.c.l.b16 %v2851
      %v2933 = vunpack.c.l.b16 %v2852
      %v2934 = vunpack.c.l.b16 %v2853
      %v2935 = vunpack.c.l.b16 %v2854
      %v2936 = vunpack.c.l.b16 %v2855
      %v2937 = vunpack.c.l.b16 %v2856
      %v2938 = vunpack.c.l.b16 %v2857
      %v2939 = vunpack.c.l.b16 %v2858
      %v2940 = vunpack.c.l.b16 %v2859
      %v2941 = vunpack.c.l.b16 %v2860
      %v2942 = vunpack.c.l.b16 %v2861
      %v2943 = vunpack.c.l.b16 %v2862
      %v2944 = vunpack.c.l.b16 %v2863
      %v2945 = vpack.c.b16 %v2914, %v2913
      %v2946 = vpack.c.b16 %v2916, %v2915
      %v2947 = vpack.c.b16 %v2918, %v2917
      %v2948 = vpack.c.b16 %v2920, %v2919
      %v2949 = vpack.c.b16 %v2922, %v2921
      %v2950 = vpack.c.b16 %v2924, %v2923
      %v2951 = vpack.c.b16 %v2926, %v2925
      %v2952 = vpack.c.b16 %v2928, %v2927
      %v2953 = vpack.c.b16 %v2930, %v2929
      %v2954 = vpack.c.b16 %v2932, %v2931
      %v2955 = vpack.c.b16 %v2934, %v2933
      %v2956 = vpack.c.b16 %v2936, %v2935
      %v2957 = vpack.c.b16 %v2938, %v2937
      %v2958 = vpack.c.b16 %v2940, %v2939
      %v2959 = vpack.c.b16 %v2942, %v2941
      %v2960 = vpack.c.b16 %v2944, %v2943
      %v2993 = vunpack.c.l.b16 %v2865
      %v2994 = vunpack.c.l.b16 %v2866
      %v2995 = vunpack.c.l.b16 %v2867
      %v2996 = vunpack.c.l.b16 %v2868
      %v2997 = vunpack.c.l.b16 %v2869
      %v2998 = vunpack.c.l.b16 %v2870
      %v2999 = vunpack.c.l.b16 %v2871
      %v3000 = vunpack.c.l.b16 %v2872
      %v3001 = vunpack.c.l.b16 %v2873
      %v3002 = vunpack.c.l.b16 %v2874
      %v3003 = vunpack.c.l.b16 %v2875
      %v3004 = vunpack.c.l.b16 %v2876
      %v3005 = vunpack.c.l.b16 %v2877
      %v3006 = vunpack.c.l.b16 %v2878
      %v3007 = vunpack.c.l.b16 %v2879
      %v3008 = vunpack.c.l.b16 %v2880
      %v3009 = vpack.c.b16 %v2994, %v2993
      %v3010 = vpack.c.b16 %v2996, %v2995
      %v3011 = vpack.c.b16 %v2998, %v2997
      %v3012 = vpack.c.b16 %v3000, %v2999
      %v3013 = vpack.c.b16 %v3002, %v3001
      %v3014 = vpack.c.b16 %v3004, %v3003
      %v3015 = vpack.c.b16 %v3006, %v3005
      %v3016 = vpack.c.b16 %v3008, %v3007
      %3025 = vmatprep.subr.bf16.mxu0 0
      %3026 = vmatpush1.bf16.msra.mxu0 %v3016
      %3027 = vmatprep.subr.bf16.mxu0 0
      %3028 = vmatpush1.bf16.msra.mxu0 %v3015
      %3029 = vmatprep.subr.bf16.mxu0 0
      %3030 = vmatpush1.bf16.msra.mxu0 %v3014
      %3031 = vmatprep.subr.bf16.mxu0 0
      %3032 = vmatpush1.bf16.msra.mxu0 %v3013
      %3033 = vmatprep.subr.bf16.mxu0 0
      %3034 = vmatpush1.bf16.msra.mxu0 %v3012
      %3035 = vmatprep.subr.bf16.mxu0 0
      %3036 = vmatpush1.bf16.msra.mxu0 %v3011
      %3037 = vmatprep.subr.bf16.mxu0 0
      %3038 = vmatpush1.bf16.msra.mxu0 %v3010
      %3039 = vmatprep.subr.bf16.mxu0 0
      %3040 = vmatpush1.bf16.msra.mxu0 %v3009
      %3041 = vmatprep.subr.bf16.mxu0 0
      %3042 = vmatpush2.bf16.msra.mxu0 0
      %3043 = vmatprep.subr.bf16.mxu0 0
      %3044 = vmatpush2.bf16.msra.mxu0 0
      %3045 = vmatprep.subr.bf16.mxu0 0
      %3046 = vmatpush2.bf16.msra.mxu0 0
      %3047 = vmatprep.subr.bf16.mxu0 0
      %3048 = vmatpush2.bf16.msra.mxu0 0
      %3049 = vmatprep.subr.bf16.mxu0 0
      %3050 = vmatpush2.bf16.msra.mxu0 0
      %3051 = vmatprep.subr.bf16.mxu0 0
      %3052 = vmatpush2.bf16.msra.mxu0 0
      %3053 = vmatprep.subr.bf16.mxu0 0
      %3054 = vmatpush2.bf16.msra.mxu0 0
      %3055 = vmatprep.subr.bf16.mxu0 0
      %3056 = vmatpush2.bf16.msra.mxu0 0
      %3057 = vmatprep.mubr.bf16.mxu0 0
      %3058 = vmatmul.mubr.bf16.gmra.mxu0 %v2945
      %v3059 = vpop.f32.mrf.mxu0
      %v3060 = vadd.f32 0.0, %v3059
      %v3061 = vpop.f32.mrf.mxu0
      %v3062 = vpop.f32.mrf.mxu0
      %v3063 = vadd.f32 0.0, %v3062
      %v3064 = vpop.f32.mrf.mxu0
      %3065 = vmatprep.mubr.bf16.mxu0 0
      %3066 = vmatmul.mubr.bf16.gmra.mxu0 %v2946
      %v3067 = vpop.f32.mrf.mxu0
      %v3068 = vadd.f32 0.0, %v3067
      %v3069 = vpop.f32.mrf.mxu0
      %v3070 = vpop.f32.mrf.mxu0
      %v3071 = vadd.f32 0.0, %v3070
      %v3072 = vpop.f32.mrf.mxu0
      %3073 = vmatprep.mubr.bf16.mxu0 0
      %3074 = vmatmul.mubr.bf16.gmra.mxu0 %v2947
      %v3075 = vpop.f32.mrf.mxu0
      %v3076 = vadd.f32 0.0, %v3075
      %v3077 = vpop.f32.mrf.mxu0
      %v3078 = vpop.f32.mrf.mxu0
      %v3079 = vadd.f32 0.0, %v3078
      %v3080 = vpop.f32.mrf.mxu0
      %3081 = vmatprep.mubr.bf16.mxu0 0
      %3082 = vmatmul.mubr.bf16.gmra.mxu0 %v2948
      %v3083 = vpop.f32.mrf.mxu0
      %v3084 = vadd.f32 0.0, %v3083
      %v3085 = vpop.f32.mrf.mxu0
      %v3086 = vpop.f32.mrf.mxu0
      %v3087 = vadd.f32 0.0, %v3086
      %v3088 = vpop.f32.mrf.mxu0
      %3089 = vmatprep.mubr.bf16.mxu0 0
      %3090 = vmatmul.mubr.bf16.gmra.mxu0 %v2949
      %v3091 = vpop.f32.mrf.mxu0
      %v3092 = vadd.f32 0.0, %v3091
      %v3093 = vpop.f32.mrf.mxu0
      %v3094 = vpop.f32.mrf.mxu0
      %v3095 = vadd.f32 0.0, %v3094
      %v3096 = vpop.f32.mrf.mxu0
      %3097 = vmatprep.mubr.bf16.mxu0 0
      %3098 = vmatmul.mubr.bf16.gmra.mxu0 %v2950
      %v3099 = vpop.f32.mrf.mxu0
      %v3100 = vadd.f32 0.0, %v3099
      %v3101 = vpop.f32.mrf.mxu0
      %v3102 = vpop.f32.mrf.mxu0
      %v3103 = vadd.f32 0.0, %v3102
      %v3104 = vpop.f32.mrf.mxu0
      %3105 = vmatprep.mubr.bf16.mxu0 0
      %3106 = vmatmul.mubr.bf16.gmra.mxu0 %v2951
      %v3107 = vpop.f32.mrf.mxu0
      %v3108 = vadd.f32 0.0, %v3107
      %v3109 = vpop.f32.mrf.mxu0
      %v3110 = vpop.f32.mrf.mxu0
      %v3111 = vadd.f32 0.0, %v3110
      %v3112 = vpop.f32.mrf.mxu0
      %3113 = vmatprep.mubr.bf16.mxu0 0
      %3114 = vmatmul.mubr.bf16.gmra.mxu0 %v2952
      %v3115 = vpop.f32.mrf.mxu0
      %v3116 = vadd.f32 0.0, %v3115
      %v3117 = vpop.f32.mrf.mxu0
      %v3118 = vpop.f32.mrf.mxu0
      %v3119 = vadd.f32 0.0, %v3118
      %v3120 = vpop.f32.mrf.mxu0
      %3121 = vmatprep.mubr.bf16.mxu0 0
      %3122 = vmatmul.mubr.bf16.gmra.mxu0 %v2953
      %v3123 = vpop.f32.mrf.mxu0
      %v3124 = vadd.f32 0.0, %v3123
      %v3125 = vpop.f32.mrf.mxu0
      %v3126 = vpop.f32.mrf.mxu0
      %v3127 = vadd.f32 0.0, %v3126
      %v3128 = vpop.f32.mrf.mxu0
      %3129 = vmatprep.mubr.bf16.mxu0 0
      %3130 = vmatmul.mubr.bf16.gmra.mxu0 %v2954
      %v3131 = vpop.f32.mrf.mxu0
      %v3132 = vadd.f32 0.0, %v3131
      %v3133 = vpop.f32.mrf.mxu0
      %v3134 = vpop.f32.mrf.mxu0
      %v3135 = vadd.f32 0.0, %v3134
      %v3136 = vpop.f32.mrf.mxu0
      %3137 = vmatprep.mubr.bf16.mxu0 0
      %3138 = vmatmul.mubr.bf16.gmra.mxu0 %v2955
      %v3139 = vpop.f32.mrf.mxu0
      %v3140 = vadd.f32 0.0, %v3139
      %v3141 = vpop.f32.mrf.mxu0
      %v3142 = vpop.f32.mrf.mxu0
      %v3143 = vadd.f32 0.0, %v3142
      %v3144 = vpop.f32.mrf.mxu0
      %3145 = vmatprep.mubr.bf16.mxu0 0
      %3146 = vmatmul.mubr.bf16.gmra.mxu0 %v2956
      %v3147 = vpop.f32.mrf.mxu0
      %v3148 = vadd.f32 0.0, %v3147
      %v3149 = vpop.f32.mrf.mxu0
      %v3150 = vpop.f32.mrf.mxu0
      %v3151 = vadd.f32 0.0, %v3150
      %v3152 = vpop.f32.mrf.mxu0
      %3153 = vmatprep.mubr.bf16.mxu0 0
      %3154 = vmatmul.mubr.bf16.gmra.mxu0 %v2957
      %v3155 = vpop.f32.mrf.mxu0
      %v3156 = vadd.f32 0.0, %v3155
      %v3157 = vpop.f32.mrf.mxu0
      %v3158 = vpop.f32.mrf.mxu0
      %v3159 = vadd.f32 0.0, %v3158
      %v3160 = vpop.f32.mrf.mxu0
      %3161 = vmatprep.mubr.bf16.mxu0 0
      %3162 = vmatmul.mubr.bf16.gmra.mxu0 %v2958
      %v3163 = vpop.f32.mrf.mxu0
      %v3164 = vadd.f32 0.0, %v3163
      %v3165 = vpop.f32.mrf.mxu0
      %v3166 = vpop.f32.mrf.mxu0
      %v3167 = vadd.f32 0.0, %v3166
      %v3168 = vpop.f32.mrf.mxu0
      %3169 = vmatprep.mubr.bf16.mxu0 0
      %3170 = vmatmul.mubr.bf16.gmra.mxu0 %v2959
      %v3171 = vpop.f32.mrf.mxu0
      %v3172 = vadd.f32 0.0, %v3171
      %v3173 = vpop.f32.mrf.mxu0
      %v3174 = vpop.f32.mrf.mxu0
      %v3175 = vadd.f32 0.0, %v3174
      %v3176 = vpop.f32.mrf.mxu0
      %3177 = vmatprep.mubr.bf16.mxu0 0
      %3178 = vmatmul.mubr.bf16.gmra.mxu0 %v2960
      %v3179 = vpop.f32.mrf.mxu0
      %v3180 = vadd.f32 0.0, %v3179
      %v3181 = vpop.f32.mrf.mxu0
      %v3182 = vpop.f32.mrf.mxu0
      %v3183 = vadd.f32 0.0, %v3182
      %v3184 = vpop.f32.mrf.mxu0
      %3185 = vdwg.mxu0
      %v3186 = vadd.f32 %v2800, %v3060
      %v3187 = vadd.f32 %v2801, %v3063
      %v3188 = vadd.f32 %v2802, %v3068
      %v3189 = vadd.f32 %v2803, %v3071
      %v3190 = vadd.f32 %v2804, %v3076
      %v3191 = vadd.f32 %v2805, %v3079
      %v3192 = vadd.f32 %v2806, %v3084
      %v3193 = vadd.f32 %v2807, %v3087
      %v3194 = vadd.f32 %v2808, %v3092
      %v3195 = vadd.f32 %v2809, %v3095
      %v3196 = vadd.f32 %v2810, %v3100
      %v3197 = vadd.f32 %v2811, %v3103
      %v3198 = vadd.f32 %v2812, %v3108
      %v3199 = vadd.f32 %v2813, %v3111
      %v3200 = vadd.f32 %v2814, %v3116
      %v3201 = vadd.f32 %v2815, %v3119
      %v3202 = vadd.f32 %v2816, %v3124
      %v3203 = vadd.f32 %v2817, %v3127
      %v3204 = vadd.f32 %v2818, %v3132
      %v3205 = vadd.f32 %v2819, %v3135
      %v3206 = vadd.f32 %v2820, %v3140
      %v3207 = vadd.f32 %v2821, %v3143
      %v3208 = vadd.f32 %v2822, %v3148
      %v3209 = vadd.f32 %v2823, %v3151
      %v3210 = vadd.f32 %v2824, %v3156
      %v3211 = vadd.f32 %v2825, %v3159
      %v3212 = vadd.f32 %v2826, %v3164
      %v3213 = vadd.f32 %v2827, %v3167
      %v3214 = vadd.f32 %v2828, %v3172
      %v3215 = vadd.f32 %v2829, %v3175
      %v3216 = vadd.f32 %v2830, %v3180
      %v3217 = vadd.f32 %v2831, %v3183
      %v3218 = vld [vmem:[%s1183] sm:$0xf]
      %v3219 = vld [vmem:[%s1183 + $0x4] sm:$0xf]
      %v3220 = vld [vmem:[%s1183 + $0x8] sm:$0x1]
      %v3221 = vld [vmem:[%s1183 + $0xc] sm:$0xf]
      %v3222 = vld [vmem:[%s1183 + $0x10] sm:$0xf]
      %v3223 = vld [vmem:[%s1183 + $0x14] sm:$0x1]
      %v3224 = vld [vmem:[%s1183 + $0x18] sm:$0xf]
      %v3225 = vld [vmem:[%s1183 + $0x1c] sm:$0xf]
      %v3226 = vld [vmem:[%s1183 + $0x20] sm:$0x1]
      %v3227 = vld [vmem:[%s1183 + $0x24] sm:$0xf]
      %v3228 = vld [vmem:[%s1183 + $0x28] sm:$0xf]
      %v3229 = vld [vmem:[%s1183 + $0x2c] sm:$0x1]
      %v3230 = vld [vmem:[%s1183 + $0x30] sm:$0xf]
      %v3231 = vld [vmem:[%s1183 + $0x34] sm:$0xf]
      %v3232 = vld [vmem:[%s1183 + $0x38] sm:$0x1]
      %v3233 = vld [vmem:[%s1183 + $0x3c] sm:$0xf]
      %v3234 = vld [vmem:[%s1183 + $0x40] sm:$0xf]
      %v3235 = vld [vmem:[%s1183 + $0x44] sm:$0x1]
      %v3236 = vld [vmem:[%s1183 + $0x48] sm:$0xf]
      %v3237 = vld [vmem:[%s1183 + $0x4c] sm:$0xf]
      %v3238 = vld [vmem:[%s1183 + $0x50] sm:$0x1]
      %v3239 = vld [vmem:[%s1183 + $0x54] sm:$0xf]
      %v3240 = vld [vmem:[%s1183 + $0x58] sm:$0xf]
      %v3241 = vld [vmem:[%s1183 + $0x5c] sm:$0x1]
      %v3242 = vld [vmem:[%s1183 + $0x60] sm:$0xf]
      %v3243 = vld [vmem:[%s1183 + $0x64] sm:$0xf]
      %v3244 = vld [vmem:[%s1183 + $0x68] sm:$0x1]
      %v3245 = vld [vmem:[%s1183 + $0x6c] sm:$0xf]
      %v3246 = vld [vmem:[%s1183 + $0x70] sm:$0xf]
      %v3247 = vld [vmem:[%s1183 + $0x74] sm:$0x1]
      %v3248 = vld [vmem:[%s1183 + $0x78] sm:$0xf]
      %v3249 = vld [vmem:[%s1183 + $0x7c] sm:$0xf]
      %v3250 = vld [vmem:[%s1183 + $0x80] sm:$0x1]
      %v3251 = vld [vmem:[%s1183 + $0x84] sm:$0xf]
      %v3252 = vld [vmem:[%s1183 + $0x88] sm:$0xf]
      %v3253 = vld [vmem:[%s1183 + $0x8c] sm:$0x1]
      %v3254 = vld [vmem:[%s1183 + $0x90] sm:$0xf]
      %v3255 = vld [vmem:[%s1183 + $0x94] sm:$0xf]
      %v3256 = vld [vmem:[%s1183 + $0x98] sm:$0x1]
      %v3257 = vld [vmem:[%s1183 + $0x9c] sm:$0xf]
      %v3258 = vld [vmem:[%s1183 + $0xa0] sm:$0xf]
      %v3259 = vld [vmem:[%s1183 + $0xa4] sm:$0x1]
      %v3260 = vld [vmem:[%s1183 + $0xa8] sm:$0xf]
      %v3261 = vld [vmem:[%s1183 + $0xac] sm:$0xf]
      %v3262 = vld [vmem:[%s1183 + $0xb0] sm:$0x1]
      %v3263 = vld [vmem:[%s1183 + $0xb4] sm:$0xf]
      %v3264 = vld [vmem:[%s1183 + $0xb8] sm:$0xf]
      %v3265 = vld [vmem:[%s1183 + $0xbc] sm:$0x1]
      %v3267 = vshrl.u32 %v3218, 16
      %v3269 = vrot.slane %v3267, 4
      %v3270 = vshll.u32 %v3218, 16
      %v3272 = vrot.slane %v3270, 5
      %v3273 = vor.u32 %v3269, %v3272
      %v3274 = vrot.slane %v3273, 4
      %v3276 = vshll.u32 %v3219, 16
      %v3278 = vrot.slane %v3276, 5
      %v3279 = vsel %vm1367, %v3274, %v3278
      %v3280 = vshrl.u32 %v3219, 16
      %v3282 = vrot.slane %v3280, 4
      %v3283 = vor.u32 %v3282, %v3278
      %v3284 = vrot.slane %v3283, 4
      %v3286 = vshll.u32 %v3220, 16
      %v3288 = vrot.slane %v3286, 5
      %v3289 = vsel %vm1367, %v3284, %v3288
      %v3291 = vshrl.u32 %v3221, 16
      %v3293 = vrot.slane %v3291, 4
      %v3294 = vshll.u32 %v3221, 16
      %v3296 = vrot.slane %v3294, 5
      %v3297 = vor.u32 %v3293, %v3296
      %v3298 = vrot.slane %v3297, 4
      %v3300 = vshll.u32 %v3222, 16
      %v3302 = vrot.slane %v3300, 5
      %v3303 = vsel %vm1367, %v3298, %v3302
      %v3304 = vshrl.u32 %v3222, 16
      %v3306 = vrot.slane %v3304, 4
      %v3307 = vor.u32 %v3306, %v3302
      %v3308 = vrot.slane %v3307, 4
      %v3310 = vshll.u32 %v3223, 16
      %v3312 = vrot.slane %v3310, 5
      %v3313 = vsel %vm1367, %v3308, %v3312
      %v3315 = vshrl.u32 %v3224, 16
      %v3317 = vrot.slane %v3315, 4
      %v3318 = vshll.u32 %v3224, 16
      %v3320 = vrot.slane %v3318, 5
      %v3321 = vor.u32 %v3317, %v3320
      %v3322 = vrot.slane %v3321, 4
      %v3324 = vshll.u32 %v3225, 16
      %v3326 = vrot.slane %v3324, 5
      %v3327 = vsel %vm1367, %v3322, %v3326
      %v3328 = vshrl.u32 %v3225, 16
      %v3330 = vrot.slane %v3328, 4
      %v3331 = vor.u32 %v3330, %v3326
      %v3332 = vrot.slane %v3331, 4
      %v3334 = vshll.u32 %v3226, 16
      %v3336 = vrot.slane %v3334, 5
      %v3337 = vsel %vm1367, %v3332, %v3336
      %v3339 = vshrl.u32 %v3227, 16
      %v3341 = vrot.slane %v3339, 4
      %v3342 = vshll.u32 %v3227, 16
      %v3344 = vrot.slane %v3342, 5
      %v3345 = vor.u32 %v3341, %v3344
      %v3346 = vrot.slane %v3345, 4
      %v3348 = vshll.u32 %v3228, 16
      %v3350 = vrot.slane %v3348, 5
      %v3351 = vsel %vm1367, %v3346, %v3350
      %v3352 = vshrl.u32 %v3228, 16
      %v3354 = vrot.slane %v3352, 4
      %v3355 = vor.u32 %v3354, %v3350
      %v3356 = vrot.slane %v3355, 4
      %v3358 = vshll.u32 %v3229, 16
      %v3360 = vrot.slane %v3358, 5
      %v3361 = vsel %vm1367, %v3356, %v3360
      %v3363 = vshrl.u32 %v3230, 16
      %v3365 = vrot.slane %v3363, 4
      %v3366 = vshll.u32 %v3230, 16
      %v3368 = vrot.slane %v3366, 5
      %v3369 = vor.u32 %v3365, %v3368
      %v3370 = vrot.slane %v3369, 4
      %v3372 = vshll.u32 %v3231, 16
      %v3374 = vrot.slane %v3372, 5
      %v3375 = vsel %vm1367, %v3370, %v3374
      %v3376 = vshrl.u32 %v3231, 16
      %v3378 = vrot.slane %v3376, 4
      %v3379 = vor.u32 %v3378, %v3374
      %v3380 = vrot.slane %v3379, 4
      %v3382 = vshll.u32 %v3232, 16
      %v3384 = vrot.slane %v3382, 5
      %v3385 = vsel %vm1367, %v3380, %v3384
      %v3387 = vshrl.u32 %v3233, 16
      %v3389 = vrot.slane %v3387, 4
      %v3390 = vshll.u32 %v3233, 16
      %v3392 = vrot.slane %v3390, 5
      %v3393 = vor.u32 %v3389, %v3392
      %v3394 = vrot.slane %v3393, 4
      %v3396 = vshll.u32 %v3234, 16
      %v3398 = vrot.slane %v3396, 5
      %v3399 = vsel %vm1367, %v3394, %v3398
      %v3400 = vshrl.u32 %v3234, 16
      %v3402 = vrot.slane %v3400, 4
      %v3403 = vor.u32 %v3402, %v3398
      %v3404 = vrot.slane %v3403, 4
      %v3406 = vshll.u32 %v3235, 16
      %v3408 = vrot.slane %v3406, 5
      %v3409 = vsel %vm1367, %v3404, %v3408
      %v3411 = vshrl.u32 %v3236, 16
      %v3413 = vrot.slane %v3411, 4
      %v3414 = vshll.u32 %v3236, 16
      %v3416 = vrot.slane %v3414, 5
      %v3417 = vor.u32 %v3413, %v3416
      %v3418 = vrot.slane %v3417, 4
      %v3420 = vshll.u32 %v3237, 16
      %v3422 = vrot.slane %v3420, 5
      %v3423 = vsel %vm1367, %v3418, %v3422
      %v3424 = vshrl.u32 %v3237, 16
      %v3426 = vrot.slane %v3424, 4
      %v3427 = vor.u32 %v3426, %v3422
      %v3428 = vrot.slane %v3427, 4
      %v3430 = vshll.u32 %v3238, 16
      %v3432 = vrot.slane %v3430, 5
      %v3433 = vsel %vm1367, %v3428, %v3432
      %v3435 = vshrl.u32 %v3239, 16
      %v3437 = vrot.slane %v3435, 4
      %v3438 = vshll.u32 %v3239, 16
      %v3440 = vrot.slane %v3438, 5
      %v3441 = vor.u32 %v3437, %v3440
      %v3442 = vrot.slane %v3441, 4
      %v3444 = vshll.u32 %v3240, 16
      %v3446 = vrot.slane %v3444, 5
      %v3447 = vsel %vm1367, %v3442, %v3446
      %v3448 = vshrl.u32 %v3240, 16
      %v3450 = vrot.slane %v3448, 4
      %v3451 = vor.u32 %v3450, %v3446
      %v3452 = vrot.slane %v3451, 4
      %v3454 = vshll.u32 %v3241, 16
      %v3456 = vrot.slane %v3454, 5
      %v3457 = vsel %vm1367, %v3452, %v3456
      %v3459 = vshrl.u32 %v3242, 16
      %v3461 = vrot.slane %v3459, 4
      %v3462 = vshll.u32 %v3242, 16
      %v3464 = vrot.slane %v3462, 5
      %v3465 = vor.u32 %v3461, %v3464
      %v3466 = vrot.slane %v3465, 4
      %v3468 = vshll.u32 %v3243, 16
      %v3470 = vrot.slane %v3468, 5
      %v3471 = vsel %vm1367, %v3466, %v3470
      %v3472 = vshrl.u32 %v3243, 16
      %v3474 = vrot.slane %v3472, 4
      %v3475 = vor.u32 %v3474, %v3470
      %v3476 = vrot.slane %v3475, 4
      %v3478 = vshll.u32 %v3244, 16
      %v3480 = vrot.slane %v3478, 5
      %v3481 = vsel %vm1367, %v3476, %v3480
      %v3483 = vshrl.u32 %v3245, 16
      %v3485 = vrot.slane %v3483, 4
      %v3486 = vshll.u32 %v3245, 16
      %v3488 = vrot.slane %v3486, 5
      %v3489 = vor.u32 %v3485, %v3488
      %v3490 = vrot.slane %v3489, 4
      %v3492 = vshll.u32 %v3246, 16
      %v3494 = vrot.slane %v3492, 5
      %v3495 = vsel %vm1367, %v3490, %v3494
      %v3496 = vshrl.u32 %v3246, 16
      %v3498 = vrot.slane %v3496, 4
      %v3499 = vor.u32 %v3498, %v3494
      %v3500 = vrot.slane %v3499, 4
      %v3502 = vshll.u32 %v3247, 16
      %v3504 = vrot.slane %v3502, 5
      %v3505 = vsel %vm1367, %v3500, %v3504
      %v3507 = vshrl.u32 %v3248, 16
      %v3509 = vrot.slane %v3507, 4
      %v3510 = vshll.u32 %v3248, 16
      %v3512 = vrot.slane %v3510, 5
      %v3513 = vor.u32 %v3509, %v3512
      %v3514 = vrot.slane %v3513, 4
      %v3516 = vshll.u32 %v3249, 16
      %v3518 = vrot.slane %v3516, 5
      %v3519 = vsel %vm1367, %v3514, %v3518
      %v3520 = vshrl.u32 %v3249, 16
      %v3522 = vrot.slane %v3520, 4
      %v3523 = vor.u32 %v3522, %v3518
      %v3524 = vrot.slane %v3523, 4
      %v3526 = vshll.u32 %v3250, 16
      %v3528 = vrot.slane %v3526, 5
      %v3529 = vsel %vm1367, %v3524, %v3528
      %v3531 = vshrl.u32 %v3251, 16
      %v3533 = vrot.slane %v3531, 4
      %v3534 = vshll.u32 %v3251, 16
      %v3536 = vrot.slane %v3534, 5
      %v3537 = vor.u32 %v3533, %v3536
      %v3538 = vrot.slane %v3537, 4
      %v3540 = vshll.u32 %v3252, 16
      %v3542 = vrot.slane %v3540, 5
      %v3543 = vsel %vm1367, %v3538, %v3542
      %v3544 = vshrl.u32 %v3252, 16
      %v3546 = vrot.slane %v3544, 4
      %v3547 = vor.u32 %v3546, %v3542
      %v3548 = vrot.slane %v3547, 4
      %v3550 = vshll.u32 %v3253, 16
      %v3552 = vrot.slane %v3550, 5
      %v3553 = vsel %vm1367, %v3548, %v3552
      %v3555 = vshrl.u32 %v3254, 16
      %v3557 = vrot.slane %v3555, 4
      %v3558 = vshll.u32 %v3254, 16
      %v3560 = vrot.slane %v3558, 5
      %v3561 = vor.u32 %v3557, %v3560
      %v3562 = vrot.slane %v3561, 4
      %v3564 = vshll.u32 %v3255, 16
      %v3566 = vrot.slane %v3564, 5
      %v3567 = vsel %vm1367, %v3562, %v3566
      %v3568 = vshrl.u32 %v3255, 16
      %v3570 = vrot.slane %v3568, 4
      %v3571 = vor.u32 %v3570, %v3566
      %v3572 = vrot.slane %v3571, 4
      %v3574 = vshll.u32 %v3256, 16
      %v3576 = vrot.slane %v3574, 5
      %v3577 = vsel %vm1367, %v3572, %v3576
      %v3579 = vshrl.u32 %v3257, 16
      %v3581 = vrot.slane %v3579, 4
      %v3582 = vshll.u32 %v3257, 16
      %v3584 = vrot.slane %v3582, 5
      %v3585 = vor.u32 %v3581, %v3584
      %v3586 = vrot.slane %v3585, 4
      %v3588 = vshll.u32 %v3258, 16
      %v3590 = vrot.slane %v3588, 5
      %v3591 = vsel %vm1367, %v3586, %v3590
      %v3592 = vshrl.u32 %v3258, 16
      %v3594 = vrot.slane %v3592, 4
      %v3595 = vor.u32 %v3594, %v3590
      %v3596 = vrot.slane %v3595, 4
      %v3598 = vshll.u32 %v3259, 16
      %v3600 = vrot.slane %v3598, 5
      %v3601 = vsel %vm1367, %v3596, %v3600
      %v3603 = vshrl.u32 %v3260, 16
      %v3605 = vrot.slane %v3603, 4
      %v3606 = vshll.u32 %v3260, 16
      %v3608 = vrot.slane %v3606, 5
      %v3609 = vor.u32 %v3605, %v3608
      %v3610 = vrot.slane %v3609, 4
      %v3612 = vshll.u32 %v3261, 16
      %v3614 = vrot.slane %v3612, 5
      %v3615 = vsel %vm1367, %v3610, %v3614
      %v3616 = vshrl.u32 %v3261, 16
      %v3618 = vrot.slane %v3616, 4
      %v3619 = vor.u32 %v3618, %v3614
      %v3620 = vrot.slane %v3619, 4
      %v3622 = vshll.u32 %v3262, 16
      %v3624 = vrot.slane %v3622, 5
      %v3625 = vsel %vm1367, %v3620, %v3624
      %v3627 = vshrl.u32 %v3263, 16
      %v3629 = vrot.slane %v3627, 4
      %v3630 = vshll.u32 %v3263, 16
      %v3632 = vrot.slane %v3630, 5
      %v3633 = vor.u32 %v3629, %v3632
      %v3634 = vrot.slane %v3633, 4
      %v3636 = vshll.u32 %v3264, 16
      %v3638 = vrot.slane %v3636, 5
      %v3639 = vsel %vm1367, %v3634, %v3638
      %v3640 = vshrl.u32 %v3264, 16
      %v3642 = vrot.slane %v3640, 4
      %v3643 = vor.u32 %v3642, %v3638
      %v3644 = vrot.slane %v3643, 4
      %v3646 = vshll.u32 %v3265, 16
      %v3648 = vrot.slane %v3646, 5
      %v3649 = vsel %vm1367, %v3644, %v3648
      %s3650 = scalar_lea.vmem %s3, 256
      %v3651 = vld [vmem:[%s3650] sm:$0xf]
      %v3652 = vld [vmem:[%s3650 + $0x4] sm:$0xf]
      %v3653 = vld [vmem:[%s3650 + $0x8] sm:$0xf]
      %v3654 = vld [vmem:[%s3650 + $0xc] sm:$0xf]
      %v3655 = vld [vmem:[%s3650 + $0x10] sm:$0xf]
      %v3656 = vld [vmem:[%s3650 + $0x14] sm:$0xf]
      %v3657 = vld [vmem:[%s3650 + $0x18] sm:$0xf]
      %v3658 = vld [vmem:[%s3650 + $0x1c] sm:$0xf]
      %v3659 = vld [vmem:[%s3650 + $0x20] sm:$0xf]
      %v3660 = vld [vmem:[%s3650 + $0x24] sm:$0xf]
      %v3661 = vld [vmem:[%s3650 + $0x28] sm:$0xf]
      %v3662 = vld [vmem:[%s3650 + $0x2c] sm:$0xf]
      %v3663 = vld [vmem:[%s3650 + $0x30] sm:$0xf]
      %v3664 = vld [vmem:[%s3650 + $0x34] sm:$0xf]
      %v3665 = vld [vmem:[%s3650 + $0x38] sm:$0xf]
      %v3666 = vld [vmem:[%s3650 + $0x3c] sm:$0xf]
      %v3667 = vunpack.c.l.b16 %v3279
      %v3668 = vunpack.c.l.b16 %v3289
      %v3669 = vunpack.c.l.b16 %v3303
      %v3670 = vunpack.c.l.b16 %v3313
      %v3671 = vunpack.c.l.b16 %v3327
      %v3672 = vunpack.c.l.b16 %v3337
      %v3673 = vunpack.c.l.b16 %v3351
      %v3674 = vunpack.c.l.b16 %v3361
      %v3675 = vunpack.c.l.b16 %v3375
      %v3676 = vunpack.c.l.b16 %v3385
      %v3677 = vunpack.c.l.b16 %v3399
      %v3678 = vunpack.c.l.b16 %v3409
      %v3679 = vunpack.c.l.b16 %v3423
      %v3680 = vunpack.c.l.b16 %v3433
      %v3681 = vunpack.c.l.b16 %v3447
      %v3682 = vunpack.c.l.b16 %v3457
      %v3683 = vunpack.c.l.b16 %v3471
      %v3684 = vunpack.c.l.b16 %v3481
      %v3685 = vunpack.c.l.b16 %v3495
      %v3686 = vunpack.c.l.b16 %v3505
      %v3687 = vunpack.c.l.b16 %v3519
      %v3688 = vunpack.c.l.b16 %v3529
      %v3689 = vunpack.c.l.b16 %v3543
      %v3690 = vunpack.c.l.b16 %v3553
      %v3691 = vunpack.c.l.b16 %v3567
      %v3692 = vunpack.c.l.b16 %v3577
      %v3693 = vunpack.c.l.b16 %v3591
      %v3694 = vunpack.c.l.b16 %v3601
      %v3695 = vunpack.c.l.b16 %v3615
      %v3696 = vunpack.c.l.b16 %v3625
      %v3697 = vunpack.c.l.b16 %v3639
      %v3698 = vunpack.c.l.b16 %v3649
      %v3699 = vpack.c.b16 %v3668, %v3667
      %v3700 = vpack.c.b16 %v3670, %v3669
      %v3701 = vpack.c.b16 %v3672, %v3671
      %v3702 = vpack.c.b16 %v3674, %v3673
      %v3703 = vpack.c.b16 %v3676, %v3675
      %v3704 = vpack.c.b16 %v3678, %v3677
      %v3705 = vpack.c.b16 %v3680, %v3679
      %v3706 = vpack.c.b16 %v3682, %v3681
      %v3707 = vpack.c.b16 %v3684, %v3683
      %v3708 = vpack.c.b16 %v3686, %v3685
      %v3709 = vpack.c.b16 %v3688, %v3687
      %v3710 = vpack.c.b16 %v3690, %v3689
      %v3711 = vpack.c.b16 %v3692, %v3691
      %v3712 = vpack.c.b16 %v3694, %v3693
      %v3713 = vpack.c.b16 %v3696, %v3695
      %v3714 = vpack.c.b16 %v3698, %v3697
      %v3747 = vunpack.c.l.b16 %v3651
      %v3748 = vunpack.c.l.b16 %v3652
      %v3749 = vunpack.c.l.b16 %v3653
      %v3750 = vunpack.c.l.b16 %v3654
      %v3751 = vunpack.c.l.b16 %v3655
      %v3752 = vunpack.c.l.b16 %v3656
      %v3753 = vunpack.c.l.b16 %v3657
      %v3754 = vunpack.c.l.b16 %v3658
      %v3755 = vunpack.c.l.b16 %v3659
      %v3756 = vunpack.c.l.b16 %v3660
      %v3757 = vunpack.c.l.b16 %v3661
      %v3758 = vunpack.c.l.b16 %v3662
      %v3759 = vunpack.c.l.b16 %v3663
      %v3760 = vunpack.c.l.b16 %v3664
      %v3761 = vunpack.c.l.b16 %v3665
      %v3762 = vunpack.c.l.b16 %v3666
      %v3763 = vpack.c.b16 %v3748, %v3747
      %v3764 = vpack.c.b16 %v3750, %v3749
      %v3765 = vpack.c.b16 %v3752, %v3751
      %v3766 = vpack.c.b16 %v3754, %v3753
      %v3767 = vpack.c.b16 %v3756, %v3755
      %v3768 = vpack.c.b16 %v3758, %v3757
      %v3769 = vpack.c.b16 %v3760, %v3759
      %v3770 = vpack.c.b16 %v3762, %v3761
      %3779 = vmatprep.subr.bf16.mxu0 0
      %3780 = vmatpush1.bf16.msra.mxu0 %v3770
      %3781 = vmatprep.subr.bf16.mxu0 0
      %3782 = vmatpush1.bf16.msra.mxu0 %v3769
      %3783 = vmatprep.subr.bf16.mxu0 0
      %3784 = vmatpush1.bf16.msra.mxu0 %v3768
      %3785 = vmatprep.subr.bf16.mxu0 0
      %3786 = vmatpush1.bf16.msra.mxu0 %v3767
      %3787 = vmatprep.subr.bf16.mxu0 0
      %3788 = vmatpush1.bf16.msra.mxu0 %v3766
      %3789 = vmatprep.subr.bf16.mxu0 0
      %3790 = vmatpush1.bf16.msra.mxu0 %v3765
      %3791 = vmatprep.subr.bf16.mxu0 0
      %3792 = vmatpush1.bf16.msra.mxu0 %v3764
      %3793 = vmatprep.subr.bf16.mxu0 0
      %3794 = vmatpush1.bf16.msra.mxu0 %v3763
      %3795 = vmatprep.subr.bf16.mxu0 0
      %3796 = vmatpush2.bf16.msra.mxu0 0
      %3797 = vmatprep.subr.bf16.mxu0 0
      %3798 = vmatpush2.bf16.msra.mxu0 0
      %3799 = vmatprep.subr.bf16.mxu0 0
      %3800 = vmatpush2.bf16.msra.mxu0 0
      %3801 = vmatprep.subr.bf16.mxu0 0
      %3802 = vmatpush2.bf16.msra.mxu0 0
      %3803 = vmatprep.subr.bf16.mxu0 0
      %3804 = vmatpush2.bf16.msra.mxu0 0
      %3805 = vmatprep.subr.bf16.mxu0 0
      %3806 = vmatpush2.bf16.msra.mxu0 0
      %3807 = vmatprep.subr.bf16.mxu0 0
      %3808 = vmatpush2.bf16.msra.mxu0 0
      %3809 = vmatprep.subr.bf16.mxu0 0
      %3810 = vmatpush2.bf16.msra.mxu0 0
      %3811 = vmatprep.mubr.bf16.mxu0 0
      %3812 = vmatmul.mubr.bf16.gmra.mxu0 %v3699
      %v3813 = vpop.f32.mrf.mxu0
      %v3814 = vadd.f32 0.0, %v3813
      %v3815 = vpop.f32.mrf.mxu0
      %v3816 = vpop.f32.mrf.mxu0
      %v3817 = vadd.f32 0.0, %v3816
      %v3818 = vpop.f32.mrf.mxu0
      %3819 = vmatprep.mubr.bf16.mxu0 0
      %3820 = vmatmul.mubr.bf16.gmra.mxu0 %v3700
      %v3821 = vpop.f32.mrf.mxu0
      %v3822 = vadd.f32 0.0, %v3821
      %v3823 = vpop.f32.mrf.mxu0
      %v3824 = vpop.f32.mrf.mxu0
      %v3825 = vadd.f32 0.0, %v3824
      %v3826 = vpop.f32.mrf.mxu0
      %3827 = vmatprep.mubr.bf16.mxu0 0
      %3828 = vmatmul.mubr.bf16.gmra.mxu0 %v3701
      %v3829 = vpop.f32.mrf.mxu0
      %v3830 = vadd.f32 0.0, %v3829
      %v3831 = vpop.f32.mrf.mxu0
      %v3832 = vpop.f32.mrf.mxu0
      %v3833 = vadd.f32 0.0, %v3832
      %v3834 = vpop.f32.mrf.mxu0
      %3835 = vmatprep.mubr.bf16.mxu0 0
      %3836 = vmatmul.mubr.bf16.gmra.mxu0 %v3702
      %v3837 = vpop.f32.mrf.mxu0
      %v3838 = vadd.f32 0.0, %v3837
      %v3839 = vpop.f32.mrf.mxu0
      %v3840 = vpop.f32.mrf.mxu0
      %v3841 = vadd.f32 0.0, %v3840
      %v3842 = vpop.f32.mrf.mxu0
      %3843 = vmatprep.mubr.bf16.mxu0 0
      %3844 = vmatmul.mubr.bf16.gmra.mxu0 %v3703
      %v3845 = vpop.f32.mrf.mxu0
      %v3846 = vadd.f32 0.0, %v3845
      %v3847 = vpop.f32.mrf.mxu0
      %v3848 = vpop.f32.mrf.mxu0
      %v3849 = vadd.f32 0.0, %v3848
      %v3850 = vpop.f32.mrf.mxu0
      %3851 = vmatprep.mubr.bf16.mxu0 0
      %3852 = vmatmul.mubr.bf16.gmra.mxu0 %v3704
      %v3853 = vpop.f32.mrf.mxu0
      %v3854 = vadd.f32 0.0, %v3853
      %v3855 = vpop.f32.mrf.mxu0
      %v3856 = vpop.f32.mrf.mxu0
      %v3857 = vadd.f32 0.0, %v3856
      %v3858 = vpop.f32.mrf.mxu0
      %3859 = vmatprep.mubr.bf16.mxu0 0
      %3860 = vmatmul.mubr.bf16.gmra.mxu0 %v3705
      %v3861 = vpop.f32.mrf.mxu0
      %v3862 = vadd.f32 0.0, %v3861
      %v3863 = vpop.f32.mrf.mxu0
      %v3864 = vpop.f32.mrf.mxu0
      %v3865 = vadd.f32 0.0, %v3864
      %v3866 = vpop.f32.mrf.mxu0
      %3867 = vmatprep.mubr.bf16.mxu0 0
      %3868 = vmatmul.mubr.bf16.gmra.mxu0 %v3706
      %v3869 = vpop.f32.mrf.mxu0
      %v3870 = vadd.f32 0.0, %v3869
      %v3871 = vpop.f32.mrf.mxu0
      %v3872 = vpop.f32.mrf.mxu0
      %v3873 = vadd.f32 0.0, %v3872
      %v3874 = vpop.f32.mrf.mxu0
      %3875 = vmatprep.mubr.bf16.mxu0 0
      %3876 = vmatmul.mubr.bf16.gmra.mxu0 %v3707
      %v3877 = vpop.f32.mrf.mxu0
      %v3878 = vadd.f32 0.0, %v3877
      %v3879 = vpop.f32.mrf.mxu0
      %v3880 = vpop.f32.mrf.mxu0
      %v3881 = vadd.f32 0.0, %v3880
      %v3882 = vpop.f32.mrf.mxu0
      %3883 = vmatprep.mubr.bf16.mxu0 0
      %3884 = vmatmul.mubr.bf16.gmra.mxu0 %v3708
      %v3885 = vpop.f32.mrf.mxu0
      %v3886 = vadd.f32 0.0, %v3885
      %v3887 = vpop.f32.mrf.mxu0
      %v3888 = vpop.f32.mrf.mxu0
      %v3889 = vadd.f32 0.0, %v3888
      %v3890 = vpop.f32.mrf.mxu0
      %3891 = vmatprep.mubr.bf16.mxu0 0
      %3892 = vmatmul.mubr.bf16.gmra.mxu0 %v3709
      %v3893 = vpop.f32.mrf.mxu0
      %v3894 = vadd.f32 0.0, %v3893
      %v3895 = vpop.f32.mrf.mxu0
      %v3896 = vpop.f32.mrf.mxu0
      %v3897 = vadd.f32 0.0, %v3896
      %v3898 = vpop.f32.mrf.mxu0
      %3899 = vmatprep.mubr.bf16.mxu0 0
      %3900 = vmatmul.mubr.bf16.gmra.mxu0 %v3710
      %v3901 = vpop.f32.mrf.mxu0
      %v3902 = vadd.f32 0.0, %v3901
      %v3903 = vpop.f32.mrf.mxu0
      %v3904 = vpop.f32.mrf.mxu0
      %v3905 = vadd.f32 0.0, %v3904
      %v3906 = vpop.f32.mrf.mxu0
      %3907 = vmatprep.mubr.bf16.mxu0 0
      %3908 = vmatmul.mubr.bf16.gmra.mxu0 %v3711
      %v3909 = vpop.f32.mrf.mxu0
      %v3910 = vadd.f32 0.0, %v3909
      %v3911 = vpop.f32.mrf.mxu0
      %v3912 = vpop.f32.mrf.mxu0
      %v3913 = vadd.f32 0.0, %v3912
      %v3914 = vpop.f32.mrf.mxu0
      %3915 = vmatprep.mubr.bf16.mxu0 0
      %3916 = vmatmul.mubr.bf16.gmra.mxu0 %v3712
      %v3917 = vpop.f32.mrf.mxu0
      %v3918 = vadd.f32 0.0, %v3917
      %v3919 = vpop.f32.mrf.mxu0
      %v3920 = vpop.f32.mrf.mxu0
      %v3921 = vadd.f32 0.0, %v3920
      %v3922 = vpop.f32.mrf.mxu0
      %3923 = vmatprep.mubr.bf16.mxu0 0
      %3924 = vmatmul.mubr.bf16.gmra.mxu0 %v3713
      %v3925 = vpop.f32.mrf.mxu0
      %v3926 = vadd.f32 0.0, %v3925
      %v3927 = vpop.f32.mrf.mxu0
      %v3928 = vpop.f32.mrf.mxu0
      %v3929 = vadd.f32 0.0, %v3928
      %v3930 = vpop.f32.mrf.mxu0
      %3931 = vmatprep.mubr.bf16.mxu0 0
      %3932 = vmatmul.mubr.bf16.gmra.mxu0 %v3714
      %v3933 = vpop.f32.mrf.mxu0
      %v3934 = vadd.f32 0.0, %v3933
      %v3935 = vpop.f32.mrf.mxu0
      %v3936 = vpop.f32.mrf.mxu0
      %v3937 = vadd.f32 0.0, %v3936
      %v3938 = vpop.f32.mrf.mxu0
      %3939 = vdwg.mxu0
      %v3940 = vadd.f32 %v3186, %v3814
      %v3941 = vadd.f32 %v3187, %v3817
      %v3942 = vadd.f32 %v3188, %v3822
      %v3943 = vadd.f32 %v3189, %v3825
      %v3944 = vadd.f32 %v3190, %v3830
      %v3945 = vadd.f32 %v3191, %v3833
      %v3946 = vadd.f32 %v3192, %v3838
      %v3947 = vadd.f32 %v3193, %v3841
      %v3948 = vadd.f32 %v3194, %v3846
      %v3949 = vadd.f32 %v3195, %v3849
      %v3950 = vadd.f32 %v3196, %v3854
      %v3951 = vadd.f32 %v3197, %v3857
      %v3952 = vadd.f32 %v3198, %v3862
      %v3953 = vadd.f32 %v3199, %v3865
      %v3954 = vadd.f32 %v3200, %v3870
      %v3955 = vadd.f32 %v3201, %v3873
      %v3956 = vadd.f32 %v3202, %v3878
      %v3957 = vadd.f32 %v3203, %v3881
      %v3958 = vadd.f32 %v3204, %v3886
      %v3959 = vadd.f32 %v3205, %v3889
      %v3960 = vadd.f32 %v3206, %v3894
      %v3961 = vadd.f32 %v3207, %v3897
      %v3962 = vadd.f32 %v3208, %v3902
      %v3963 = vadd.f32 %v3209, %v3905
      %v3964 = vadd.f32 %v3210, %v3910
      %v3965 = vadd.f32 %v3211, %v3913
      %v3966 = vadd.f32 %v3212, %v3918
      %v3967 = vadd.f32 %v3213, %v3921
      %v3968 = vadd.f32 %v3214, %v3926
      %v3969 = vadd.f32 %v3215, %v3929
      %v3970 = vadd.f32 %v3216, %v3934
      %v3971 = vadd.f32 %v3217, %v3937
      %v3972 = vld [vmem:[%s1183] sm:$0xe]
      %v3973 = vld [vmem:[%s1183 + $0xc] sm:$0xe]
      %v3974 = vld [vmem:[%s1183 + $0x18] sm:$0xe]
      %v3975 = vld [vmem:[%s1183 + $0x24] sm:$0xe]
      %v3976 = vld [vmem:[%s1183 + $0x30] sm:$0xe]
      %v3977 = vld [vmem:[%s1183 + $0x3c] sm:$0xe]
      %v3978 = vld [vmem:[%s1183 + $0x48] sm:$0xe]
      %v3979 = vld [vmem:[%s1183 + $0x54] sm:$0xe]
      %v3980 = vld [vmem:[%s1183 + $0x60] sm:$0xe]
      %v3981 = vld [vmem:[%s1183 + $0x6c] sm:$0xe]
      %v3982 = vld [vmem:[%s1183 + $0x78] sm:$0xe]
      %v3983 = vld [vmem:[%s1183 + $0x84] sm:$0xe]
      %v3984 = vld [vmem:[%s1183 + $0x90] sm:$0xe]
      %v3985 = vld [vmem:[%s1183 + $0x9c] sm:$0xe]
      %v3986 = vld [vmem:[%s1183 + $0xa8] sm:$0xe]
      %v3987 = vld [vmem:[%s1183 + $0xb4] sm:$0xe]
      %v4036 = vrot.slane %v3972, 5
      %v4037 = vrot.slane %v4036, 4
      %v4038 = vrot.slane %v3219, 5
      %v4039 = vsel %vm2397, %v4037, %v4038
      %v4040 = vrot.slane %v4038, 4
      %v4041 = vrot.slane %v3220, 5
      %v4042 = vsel %vm2397, %v4040, %v4041
      %v4043 = vrot.slane %v3973, 5
      %v4044 = vrot.slane %v4043, 4
      %v4045 = vrot.slane %v3222, 5
      %v4046 = vsel %vm2397, %v4044, %v4045
      %v4047 = vrot.slane %v4045, 4
      %v4048 = vrot.slane %v3223, 5
      %v4049 = vsel %vm2397, %v4047, %v4048
      %v4050 = vrot.slane %v3974, 5
      %v4051 = vrot.slane %v4050, 4
      %v4052 = vrot.slane %v3225, 5
      %v4053 = vsel %vm2397, %v4051, %v4052
      %v4054 = vrot.slane %v4052, 4
      %v4055 = vrot.slane %v3226, 5
      %v4056 = vsel %vm2397, %v4054, %v4055
      %v4057 = vrot.slane %v3975, 5
      %v4058 = vrot.slane %v4057, 4
      %v4059 = vrot.slane %v3228, 5
      %v4060 = vsel %vm2397, %v4058, %v4059
      %v4061 = vrot.slane %v4059, 4
      %v4062 = vrot.slane %v3229, 5
      %v4063 = vsel %vm2397, %v4061, %v4062
      %v4064 = vrot.slane %v3976, 5
      %v4065 = vrot.slane %v4064, 4
      %v4066 = vrot.slane %v3231, 5
      %v4067 = vsel %vm2397, %v4065, %v4066
      %v4068 = vrot.slane %v4066, 4
      %v4069 = vrot.slane %v3232, 5
      %v4070 = vsel %vm2397, %v4068, %v4069
      %v4071 = vrot.slane %v3977, 5
      %v4072 = vrot.slane %v4071, 4
      %v4073 = vrot.slane %v3234, 5
      %v4074 = vsel %vm2397, %v4072, %v4073
      %v4075 = vrot.slane %v4073, 4
      %v4076 = vrot.slane %v3235, 5
      %v4077 = vsel %vm2397, %v4075, %v4076
      %v4078 = vrot.slane %v3978, 5
      %v4079 = vrot.slane %v4078, 4
      %v4080 = vrot.slane %v3237, 5
      %v4081 = vsel %vm2397, %v4079, %v4080
      %v4082 = vrot.slane %v4080, 4
      %v4083 = vrot.slane %v3238, 5
      %v4084 = vsel %vm2397, %v4082, %v4083
      %v4085 = vrot.slane %v3979, 5
      %v4086 = vrot.slane %v4085, 4
      %v4087 = vrot.slane %v3240, 5
      %v4088 = vsel %vm2397, %v4086, %v4087
      %v4089 = vrot.slane %v4087, 4
      %v4090 = vrot.slane %v3241, 5
      %v4091 = vsel %vm2397, %v4089, %v4090
      %v4092 = vrot.slane %v3980, 5
      %v4093 = vrot.slane %v4092, 4
      %v4094 = vrot.slane %v3243, 5
      %v4095 = vsel %vm2397, %v4093, %v4094
      %v4096 = vrot.slane %v4094, 4
      %v4097 = vrot.slane %v3244, 5
      %v4098 = vsel %vm2397, %v4096, %v4097
      %v4099 = vrot.slane %v3981, 5
      %v4100 = vrot.slane %v4099, 4
      %v4101 = vrot.slane %v3246, 5
      %v4102 = vsel %vm2397, %v4100, %v4101
      %v4103 = vrot.slane %v4101, 4
      %v4104 = vrot.slane %v3247, 5
      %v4105 = vsel %vm2397, %v4103, %v4104
      %v4106 = vrot.slane %v3982, 5
      %v4107 = vrot.slane %v4106, 4
      %v4108 = vrot.slane %v3249, 5
      %v4109 = vsel %vm2397, %v4107, %v4108
      %v4110 = vrot.slane %v4108, 4
      %v4111 = vrot.slane %v3250, 5
      %v4112 = vsel %vm2397, %v4110, %v4111
      %v4113 = vrot.slane %v3983, 5
      %v4114 = vrot.slane %v4113, 4
      %v4115 = vrot.slane %v3252, 5
      %v4116 = vsel %vm2397, %v4114, %v4115
      %v4117 = vrot.slane %v4115, 4
      %v4118 = vrot.slane %v3253, 5
      %v4119 = vsel %vm2397, %v4117, %v4118
      %v4120 = vrot.slane %v3984, 5
      %v4121 = vrot.slane %v4120, 4
      %v4122 = vrot.slane %v3255, 5
      %v4123 = vsel %vm2397, %v4121, %v4122
      %v4124 = vrot.slane %v4122, 4
      %v4125 = vrot.slane %v3256, 5
      %v4126 = vsel %vm2397, %v4124, %v4125
      %v4127 = vrot.slane %v3985, 5
      %v4128 = vrot.slane %v4127, 4
      %v4129 = vrot.slane %v3258, 5
      %v4130 = vsel %vm2397, %v4128, %v4129
      %v4131 = vrot.slane %v4129, 4
      %v4132 = vrot.slane %v3259, 5
      %v4133 = vsel %vm2397, %v4131, %v4132
      %v4134 = vrot.slane %v3986, 5
      %v4135 = vrot.slane %v4134, 4
      %v4136 = vrot.slane %v3261, 5
      %v4137 = vsel %vm2397, %v4135, %v4136
      %v4138 = vrot.slane %v4136, 4
      %v4139 = vrot.slane %v3262, 5
      %v4140 = vsel %vm2397, %v4138, %v4139
      %v4141 = vrot.slane %v3987, 5
      %v4142 = vrot.slane %v4141, 4
      %v4143 = vrot.slane %v3264, 5
      %v4144 = vsel %vm2397, %v4142, %v4143
      %v4145 = vrot.slane %v4143, 4
      %v4146 = vrot.slane %v3265, 5
      %v4147 = vsel %vm2397, %v4145, %v4146
      %s4148 = scalar_lea.vmem %s3, 320
      %v4149 = vld [vmem:[%s4148] sm:$0xf]
      %v4150 = vld [vmem:[%s4148 + $0x4] sm:$0xf]
      %v4151 = vld [vmem:[%s4148 + $0x8] sm:$0xf]
      %v4152 = vld [vmem:[%s4148 + $0xc] sm:$0xf]
      %v4153 = vld [vmem:[%s4148 + $0x10] sm:$0xf]
      %v4154 = vld [vmem:[%s4148 + $0x14] sm:$0xf]
      %v4155 = vld [vmem:[%s4148 + $0x18] sm:$0xf]
      %v4156 = vld [vmem:[%s4148 + $0x1c] sm:$0xf]
      %v4157 = vld [vmem:[%s4148 + $0x20] sm:$0xf]
      %v4158 = vld [vmem:[%s4148 + $0x24] sm:$0xf]
      %v4159 = vld [vmem:[%s4148 + $0x28] sm:$0xf]
      %v4160 = vld [vmem:[%s4148 + $0x2c] sm:$0xf]
      %v4161 = vld [vmem:[%s4148 + $0x30] sm:$0xf]
      %v4162 = vld [vmem:[%s4148 + $0x34] sm:$0xf]
      %v4163 = vld [vmem:[%s4148 + $0x38] sm:$0xf]
      %v4164 = vld [vmem:[%s4148 + $0x3c] sm:$0xf]
      %v4165 = vunpack.c.l.b16 %v4039
      %v4166 = vunpack.c.l.b16 %v4042
      %v4167 = vunpack.c.l.b16 %v4046
      %v4168 = vunpack.c.l.b16 %v4049
      %v4169 = vunpack.c.l.b16 %v4053
      %v4170 = vunpack.c.l.b16 %v4056
      %v4171 = vunpack.c.l.b16 %v4060
      %v4172 = vunpack.c.l.b16 %v4063
      %v4173 = vunpack.c.l.b16 %v4067
      %v4174 = vunpack.c.l.b16 %v4070
      %v4175 = vunpack.c.l.b16 %v4074
      %v4176 = vunpack.c.l.b16 %v4077
      %v4177 = vunpack.c.l.b16 %v4081
      %v4178 = vunpack.c.l.b16 %v4084
      %v4179 = vunpack.c.l.b16 %v4088
      %v4180 = vunpack.c.l.b16 %v4091
      %v4181 = vunpack.c.l.b16 %v4095
      %v4182 = vunpack.c.l.b16 %v4098
      %v4183 = vunpack.c.l.b16 %v4102
      %v4184 = vunpack.c.l.b16 %v4105
      %v4185 = vunpack.c.l.b16 %v4109
      %v4186 = vunpack.c.l.b16 %v4112
      %v4187 = vunpack.c.l.b16 %v4116
      %v4188 = vunpack.c.l.b16 %v4119
      %v4189 = vunpack.c.l.b16 %v4123
      %v4190 = vunpack.c.l.b16 %v4126
      %v4191 = vunpack.c.l.b16 %v4130
      %v4192 = vunpack.c.l.b16 %v4133
      %v4193 = vunpack.c.l.b16 %v4137
      %v4194 = vunpack.c.l.b16 %v4140
      %v4195 = vunpack.c.l.b16 %v4144
      %v4196 = vunpack.c.l.b16 %v4147
      %v4197 = vpack.c.b16 %v4166, %v4165
      %v4198 = vpack.c.b16 %v4168, %v4167
      %v4199 = vpack.c.b16 %v4170, %v4169
      %v4200 = vpack.c.b16 %v4172, %v4171
      %v4201 = vpack.c.b16 %v4174, %v4173
      %v4202 = vpack.c.b16 %v4176, %v4175
      %v4203 = vpack.c.b16 %v4178, %v4177
      %v4204 = vpack.c.b16 %v4180, %v4179
      %v4205 = vpack.c.b16 %v4182, %v4181
      %v4206 = vpack.c.b16 %v4184, %v4183
      %v4207 = vpack.c.b16 %v4186, %v4185
      %v4208 = vpack.c.b16 %v4188, %v4187
      %v4209 = vpack.c.b16 %v4190, %v4189
      %v4210 = vpack.c.b16 %v4192, %v4191
      %v4211 = vpack.c.b16 %v4194, %v4193
      %v4212 = vpack.c.b16 %v4196, %v4195
      %v4245 = vunpack.c.l.b16 %v4149
      %v4246 = vunpack.c.l.b16 %v4150
      %v4247 = vunpack.c.l.b16 %v4151
      %v4248 = vunpack.c.l.b16 %v4152
      %v4249 = vunpack.c.l.b16 %v4153
      %v4250 = vunpack.c.l.b16 %v4154
      %v4251 = vunpack.c.l.b16 %v4155
      %v4252 = vunpack.c.l.b16 %v4156
      %v4253 = vunpack.c.l.b16 %v4157
      %v4254 = vunpack.c.l.b16 %v4158
      %v4255 = vunpack.c.l.b16 %v4159
      %v4256 = vunpack.c.l.b16 %v4160
      %v4257 = vunpack.c.l.b16 %v4161
      %v4258 = vunpack.c.l.b16 %v4162
      %v4259 = vunpack.c.l.b16 %v4163
      %v4260 = vunpack.c.l.b16 %v4164
      %v4261 = vpack.c.b16 %v4246, %v4245
      %v4262 = vpack.c.b16 %v4248, %v4247
      %v4263 = vpack.c.b16 %v4250, %v4249
      %v4264 = vpack.c.b16 %v4252, %v4251
      %v4265 = vpack.c.b16 %v4254, %v4253
      %v4266 = vpack.c.b16 %v4256, %v4255
      %v4267 = vpack.c.b16 %v4258, %v4257
      %v4268 = vpack.c.b16 %v4260, %v4259
      %4277 = vmatprep.subr.bf16.mxu0 0
      %4278 = vmatpush1.bf16.msra.mxu0 %v4268
      %4279 = vmatprep.subr.bf16.mxu0 0
      %4280 = vmatpush1.bf16.msra.mxu0 %v4267
      %4281 = vmatprep.subr.bf16.mxu0 0
      %4282 = vmatpush1.bf16.msra.mxu0 %v4266
      %4283 = vmatprep.subr.bf16.mxu0 0
      %4284 = vmatpush1.bf16.msra.mxu0 %v4265
      %4285 = vmatprep.subr.bf16.mxu0 0
      %4286 = vmatpush1.bf16.msra.mxu0 %v4264
      %4287 = vmatprep.subr.bf16.mxu0 0
      %4288 = vmatpush1.bf16.msra.mxu0 %v4263
      %4289 = vmatprep.subr.bf16.mxu0 0
      %4290 = vmatpush1.bf16.msra.mxu0 %v4262
      %4291 = vmatprep.subr.bf16.mxu0 0
      %4292 = vmatpush1.bf16.msra.mxu0 %v4261
      %4293 = vmatprep.subr.bf16.mxu0 0
      %4294 = vmatpush2.bf16.msra.mxu0 0
      %4295 = vmatprep.subr.bf16.mxu0 0
      %4296 = vmatpush2.bf16.msra.mxu0 0
      %4297 = vmatprep.subr.bf16.mxu0 0
      %4298 = vmatpush2.bf16.msra.mxu0 0
      %4299 = vmatprep.subr.bf16.mxu0 0
      %4300 = vmatpush2.bf16.msra.mxu0 0
      %4301 = vmatprep.subr.bf16.mxu0 0
      %4302 = vmatpush2.bf16.msra.mxu0 0
      %4303 = vmatprep.subr.bf16.mxu0 0
      %4304 = vmatpush2.bf16.msra.mxu0 0
      %4305 = vmatprep.subr.bf16.mxu0 0
      %4306 = vmatpush2.bf16.msra.mxu0 0
      %4307 = vmatprep.subr.bf16.mxu0 0
      %4308 = vmatpush2.bf16.msra.mxu0 0
      %4309 = vmatprep.mubr.bf16.mxu0 0
      %4310 = vmatmul.mubr.bf16.gmra.mxu0 %v4197
      %v4311 = vpop.f32.mrf.mxu0
      %v4312 = vadd.f32 0.0, %v4311
      %v4313 = vpop.f32.mrf.mxu0
      %v4314 = vpop.f32.mrf.mxu0
      %v4315 = vadd.f32 0.0, %v4314
      %v4316 = vpop.f32.mrf.mxu0
      %4317 = vmatprep.mubr.bf16.mxu0 0
      %4318 = vmatmul.mubr.bf16.gmra.mxu0 %v4198
      %v4319 = vpop.f32.mrf.mxu0
      %v4320 = vadd.f32 0.0, %v4319
      %v4321 = vpop.f32.mrf.mxu0
      %v4322 = vpop.f32.mrf.mxu0
      %v4323 = vadd.f32 0.0, %v4322
      %v4324 = vpop.f32.mrf.mxu0
      %4325 = vmatprep.mubr.bf16.mxu0 0
      %4326 = vmatmul.mubr.bf16.gmra.mxu0 %v4199
      %v4327 = vpop.f32.mrf.mxu0
      %v4328 = vadd.f32 0.0, %v4327
      %v4329 = vpop.f32.mrf.mxu0
      %v4330 = vpop.f32.mrf.mxu0
      %v4331 = vadd.f32 0.0, %v4330
      %v4332 = vpop.f32.mrf.mxu0
      %4333 = vmatprep.mubr.bf16.mxu0 0
      %4334 = vmatmul.mubr.bf16.gmra.mxu0 %v4200
      %v4335 = vpop.f32.mrf.mxu0
      %v4336 = vadd.f32 0.0, %v4335
      %v4337 = vpop.f32.mrf.mxu0
      %v4338 = vpop.f32.mrf.mxu0
      %v4339 = vadd.f32 0.0, %v4338
      %v4340 = vpop.f32.mrf.mxu0
      %4341 = vmatprep.mubr.bf16.mxu0 0
      %4342 = vmatmul.mubr.bf16.gmra.mxu0 %v4201
      %v4343 = vpop.f32.mrf.mxu0
      %v4344 = vadd.f32 0.0, %v4343
      %v4345 = vpop.f32.mrf.mxu0
      %v4346 = vpop.f32.mrf.mxu0
      %v4347 = vadd.f32 0.0, %v4346
      %v4348 = vpop.f32.mrf.mxu0
      %4349 = vmatprep.mubr.bf16.mxu0 0
      %4350 = vmatmul.mubr.bf16.gmra.mxu0 %v4202
      %v4351 = vpop.f32.mrf.mxu0
      %v4352 = vadd.f32 0.0, %v4351
      %v4353 = vpop.f32.mrf.mxu0
      %v4354 = vpop.f32.mrf.mxu0
      %v4355 = vadd.f32 0.0, %v4354
      %v4356 = vpop.f32.mrf.mxu0
      %4357 = vmatprep.mubr.bf16.mxu0 0
      %4358 = vmatmul.mubr.bf16.gmra.mxu0 %v4203
      %v4359 = vpop.f32.mrf.mxu0
      %v4360 = vadd.f32 0.0, %v4359
      %v4361 = vpop.f32.mrf.mxu0
      %v4362 = vpop.f32.mrf.mxu0
      %v4363 = vadd.f32 0.0, %v4362
      %v4364 = vpop.f32.mrf.mxu0
      %4365 = vmatprep.mubr.bf16.mxu0 0
      %4366 = vmatmul.mubr.bf16.gmra.mxu0 %v4204
      %v4367 = vpop.f32.mrf.mxu0
      %v4368 = vadd.f32 0.0, %v4367
      %v4369 = vpop.f32.mrf.mxu0
      %v4370 = vpop.f32.mrf.mxu0
      %v4371 = vadd.f32 0.0, %v4370
      %v4372 = vpop.f32.mrf.mxu0
      %4373 = vmatprep.mubr.bf16.mxu0 0
      %4374 = vmatmul.mubr.bf16.gmra.mxu0 %v4205
      %v4375 = vpop.f32.mrf.mxu0
      %v4376 = vadd.f32 0.0, %v4375
      %v4377 = vpop.f32.mrf.mxu0
      %v4378 = vpop.f32.mrf.mxu0
      %v4379 = vadd.f32 0.0, %v4378
      %v4380 = vpop.f32.mrf.mxu0
      %4381 = vmatprep.mubr.bf16.mxu0 0
      %4382 = vmatmul.mubr.bf16.gmra.mxu0 %v4206
      %v4383 = vpop.f32.mrf.mxu0
      %v4384 = vadd.f32 0.0, %v4383
      %v4385 = vpop.f32.mrf.mxu0
      %v4386 = vpop.f32.mrf.mxu0
      %v4387 = vadd.f32 0.0, %v4386
      %v4388 = vpop.f32.mrf.mxu0
      %4389 = vmatprep.mubr.bf16.mxu0 0
      %4390 = vmatmul.mubr.bf16.gmra.mxu0 %v4207
      %v4391 = vpop.f32.mrf.mxu0
      %v4392 = vadd.f32 0.0, %v4391
      %v4393 = vpop.f32.mrf.mxu0
      %v4394 = vpop.f32.mrf.mxu0
      %v4395 = vadd.f32 0.0, %v4394
      %v4396 = vpop.f32.mrf.mxu0
      %4397 = vmatprep.mubr.bf16.mxu0 0
      %4398 = vmatmul.mubr.bf16.gmra.mxu0 %v4208
      %v4399 = vpop.f32.mrf.mxu0
      %v4400 = vadd.f32 0.0, %v4399
      %v4401 = vpop.f32.mrf.mxu0
      %v4402 = vpop.f32.mrf.mxu0
      %v4403 = vadd.f32 0.0, %v4402
      %v4404 = vpop.f32.mrf.mxu0
      %4405 = vmatprep.mubr.bf16.mxu0 0
      %4406 = vmatmul.mubr.bf16.gmra.mxu0 %v4209
      %v4407 = vpop.f32.mrf.mxu0
      %v4408 = vadd.f32 0.0, %v4407
      %v4409 = vpop.f32.mrf.mxu0
      %v4410 = vpop.f32.mrf.mxu0
      %v4411 = vadd.f32 0.0, %v4410
      %v4412 = vpop.f32.mrf.mxu0
      %4413 = vmatprep.mubr.bf16.mxu0 0
      %4414 = vmatmul.mubr.bf16.gmra.mxu0 %v4210
      %v4415 = vpop.f32.mrf.mxu0
      %v4416 = vadd.f32 0.0, %v4415
      %v4417 = vpop.f32.mrf.mxu0
      %v4418 = vpop.f32.mrf.mxu0
      %v4419 = vadd.f32 0.0, %v4418
      %v4420 = vpop.f32.mrf.mxu0
      %4421 = vmatprep.mubr.bf16.mxu0 0
      %4422 = vmatmul.mubr.bf16.gmra.mxu0 %v4211
      %v4423 = vpop.f32.mrf.mxu0
      %v4424 = vadd.f32 0.0, %v4423
      %v4425 = vpop.f32.mrf.mxu0
      %v4426 = vpop.f32.mrf.mxu0
      %v4427 = vadd.f32 0.0, %v4426
      %v4428 = vpop.f32.mrf.mxu0
      %4429 = vmatprep.mubr.bf16.mxu0 0
      %4430 = vmatmul.mubr.bf16.gmra.mxu0 %v4212
      %v4431 = vpop.f32.mrf.mxu0
      %v4432 = vadd.f32 0.0, %v4431
      %v4433 = vpop.f32.mrf.mxu0
      %v4434 = vpop.f32.mrf.mxu0
      %v4435 = vadd.f32 0.0, %v4434
      %v4436 = vpop.f32.mrf.mxu0
      %4437 = vdwg.mxu0
      %v4438 = vadd.f32 %v3940, %v4312
      %v4439 = vadd.f32 %v3941, %v4315
      %v4440 = vadd.f32 %v3942, %v4320
      %v4441 = vadd.f32 %v3943, %v4323
      %v4442 = vadd.f32 %v3944, %v4328
      %v4443 = vadd.f32 %v3945, %v4331
      %v4444 = vadd.f32 %v3946, %v4336
      %v4445 = vadd.f32 %v3947, %v4339
      %v4446 = vadd.f32 %v3948, %v4344
      %v4447 = vadd.f32 %v3949, %v4347
      %v4448 = vadd.f32 %v3950, %v4352
      %v4449 = vadd.f32 %v3951, %v4355
      %v4450 = vadd.f32 %v3952, %v4360
      %v4451 = vadd.f32 %v3953, %v4363
      %v4452 = vadd.f32 %v3954, %v4368
      %v4453 = vadd.f32 %v3955, %v4371
      %v4454 = vadd.f32 %v3956, %v4376
      %v4455 = vadd.f32 %v3957, %v4379
      %v4456 = vadd.f32 %v3958, %v4384
      %v4457 = vadd.f32 %v3959, %v4387
      %v4458 = vadd.f32 %v3960, %v4392
      %v4459 = vadd.f32 %v3961, %v4395
      %v4460 = vadd.f32 %v3962, %v4400
      %v4461 = vadd.f32 %v3963, %v4403
      %v4462 = vadd.f32 %v3964, %v4408
      %v4463 = vadd.f32 %v3965, %v4411
      %v4464 = vadd.f32 %v3966, %v4416
      %v4465 = vadd.f32 %v3967, %v4419
      %v4466 = vadd.f32 %v3968, %v4424
      %v4467 = vadd.f32 %v3969, %v4427
      %v4468 = vadd.f32 %v3970, %v4432
      %v4469 = vadd.f32 %v3971, %v4435
      %s4470 = scalar_lea.vmem [#allocation2], 24
      %v4471 = vld [vmem:[%s4470] sm:$0xf]
      %v4472 = vld [vmem:[%s4470 + $0x4] sm:$0xf]
      %v4473 = vld [vmem:[%s4470 + $0xc] sm:$0xf]
      %v4474 = vld [vmem:[%s4470 + $0x10] sm:$0xf]
      %v4475 = vld [vmem:[%s4470 + $0x18] sm:$0xf]
      %v4476 = vld [vmem:[%s4470 + $0x1c] sm:$0xf]
      %v4477 = vld [vmem:[%s4470 + $0x24] sm:$0xf]
      %v4478 = vld [vmem:[%s4470 + $0x28] sm:$0xf]
      %v4479 = vld [vmem:[%s4470 + $0x30] sm:$0xf]
      %v4480 = vld [vmem:[%s4470 + $0x34] sm:$0xf]
      %v4481 = vld [vmem:[%s4470 + $0x3c] sm:$0xf]
      %v4482 = vld [vmem:[%s4470 + $0x40] sm:$0xf]
      %v4483 = vld [vmem:[%s4470 + $0x48] sm:$0xf]
      %v4484 = vld [vmem:[%s4470 + $0x4c] sm:$0xf]
      %v4485 = vld [vmem:[%s4470 + $0x54] sm:$0xf]
      %v4486 = vld [vmem:[%s4470 + $0x58] sm:$0xf]
      %v4487 = vld [vmem:[%s4470 + $0x60] sm:$0xf]
      %v4488 = vld [vmem:[%s4470 + $0x64] sm:$0xf]
      %v4489 = vld [vmem:[%s4470 + $0x6c] sm:$0xf]
      %v4490 = vld [vmem:[%s4470 + $0x70] sm:$0xf]
      %v4491 = vld [vmem:[%s4470 + $0x78] sm:$0xf]
      %v4492 = vld [vmem:[%s4470 + $0x7c] sm:$0xf]
      %v4493 = vld [vmem:[%s4470 + $0x84] sm:$0xf]
      %v4494 = vld [vmem:[%s4470 + $0x88] sm:$0xf]
      %v4495 = vld [vmem:[%s4470 + $0x90] sm:$0xf]
      %v4496 = vld [vmem:[%s4470 + $0x94] sm:$0xf]
      %v4497 = vld [vmem:[%s4470 + $0x9c] sm:$0xf]
      %v4498 = vld [vmem:[%s4470 + $0xa0] sm:$0xf]
      %v4499 = vld [vmem:[%s4470 + $0xa8] sm:$0xf]
      %v4500 = vld [vmem:[%s4470 + $0xac] sm:$0xf]
      %v4501 = vld [vmem:[%s4470 + $0xb4] sm:$0xf]
      %v4502 = vld [vmem:[%s4470 + $0xb8] sm:$0xf]
      %s4503 = scalar_lea.vmem %s3, 384
      %v4504 = vld [vmem:[%s4503] sm:$0xf]
      %v4505 = vld [vmem:[%s4503 + $0x4] sm:$0xf]
      %v4506 = vld [vmem:[%s4503 + $0x8] sm:$0xf]
      %v4507 = vld [vmem:[%s4503 + $0xc] sm:$0xf]
      %v4508 = vld [vmem:[%s4503 + $0x10] sm:$0xf]
      %v4509 = vld [vmem:[%s4503 + $0x14] sm:$0xf]
      %v4510 = vld [vmem:[%s4503 + $0x18] sm:$0xf]
      %v4511 = vld [vmem:[%s4503 + $0x1c] sm:$0xf]
      %v4512 = vld [vmem:[%s4503 + $0x20] sm:$0xf]
      %v4513 = vld [vmem:[%s4503 + $0x24] sm:$0xf]
      %v4514 = vld [vmem:[%s4503 + $0x28] sm:$0xf]
      %v4515 = vld [vmem:[%s4503 + $0x2c] sm:$0xf]
      %v4516 = vld [vmem:[%s4503 + $0x30] sm:$0xf]
      %v4517 = vld [vmem:[%s4503 + $0x34] sm:$0xf]
      %v4518 = vld [vmem:[%s4503 + $0x38] sm:$0xf]
      %v4519 = vld [vmem:[%s4503 + $0x3c] sm:$0xf]
      %v4552 = vunpack.c.l.b16 %v4471
      %v4553 = vunpack.c.l.b16 %v4472
      %v4554 = vunpack.c.l.b16 %v4473
      %v4555 = vunpack.c.l.b16 %v4474
      %v4556 = vunpack.c.l.b16 %v4475
      %v4557 = vunpack.c.l.b16 %v4476
      %v4558 = vunpack.c.l.b16 %v4477
      %v4559 = vunpack.c.l.b16 %v4478
      %v4560 = vunpack.c.l.b16 %v4479
      %v4561 = vunpack.c.l.b16 %v4480
      %v4562 = vunpack.c.l.b16 %v4481
      %v4563 = vunpack.c.l.b16 %v4482
      %v4564 = vunpack.c.l.b16 %v4483
      %v4565 = vunpack.c.l.b16 %v4484
      %v4566 = vunpack.c.l.b16 %v4485
      %v4567 = vunpack.c.l.b16 %v4486
      %v4568 = vunpack.c.l.b16 %v4487
      %v4569 = vunpack.c.l.b16 %v4488
      %v4570 = vunpack.c.l.b16 %v4489
      %v4571 = vunpack.c.l.b16 %v4490
      %v4572 = vunpack.c.l.b16 %v4491
      %v4573 = vunpack.c.l.b16 %v4492
      %v4574 = vunpack.c.l.b16 %v4493
      %v4575 = vunpack.c.l.b16 %v4494
      %v4576 = vunpack.c.l.b16 %v4495
      %v4577 = vunpack.c.l.b16 %v4496
      %v4578 = vunpack.c.l.b16 %v4497
      %v4579 = vunpack.c.l.b16 %v4498
      %v4580 = vunpack.c.l.b16 %v4499
      %v4581 = vunpack.c.l.b16 %v4500
      %v4582 = vunpack.c.l.b16 %v4501
      %v4583 = vunpack.c.l.b16 %v4502
      %v4584 = vpack.c.b16 %v4553, %v4552
      %v4585 = vpack.c.b16 %v4555, %v4554
      %v4586 = vpack.c.b16 %v4557, %v4556
      %v4587 = vpack.c.b16 %v4559, %v4558
      %v4588 = vpack.c.b16 %v4561, %v4560
      %v4589 = vpack.c.b16 %v4563, %v4562
      %v4590 = vpack.c.b16 %v4565, %v4564
      %v4591 = vpack.c.b16 %v4567, %v4566
      %v4592 = vpack.c.b16 %v4569, %v4568
      %v4593 = vpack.c.b16 %v4571, %v4570
      %v4594 = vpack.c.b16 %v4573, %v4572
      %v4595 = vpack.c.b16 %v4575, %v4574
      %v4596 = vpack.c.b16 %v4577, %v4576
      %v4597 = vpack.c.b16 %v4579, %v4578
      %v4598 = vpack.c.b16 %v4581, %v4580
      %v4599 = vpack.c.b16 %v4583, %v4582
      %v4632 = vunpack.c.l.b16 %v4504
      %v4633 = vunpack.c.l.b16 %v4505
      %v4634 = vunpack.c.l.b16 %v4506
      %v4635 = vunpack.c.l.b16 %v4507
      %v4636 = vunpack.c.l.b16 %v4508
      %v4637 = vunpack.c.l.b16 %v4509
      %v4638 = vunpack.c.l.b16 %v4510
      %v4639 = vunpack.c.l.b16 %v4511
      %v4640 = vunpack.c.l.b16 %v4512
      %v4641 = vunpack.c.l.b16 %v4513
      %v4642 = vunpack.c.l.b16 %v4514
      %v4643 = vunpack.c.l.b16 %v4515
      %v4644 = vunpack.c.l.b16 %v4516
      %v4645 = vunpack.c.l.b16 %v4517
      %v4646 = vunpack.c.l.b16 %v4518
      %v4647 = vunpack.c.l.b16 %v4519
      %v4648 = vpack.c.b16 %v4633, %v4632
      %v4649 = vpack.c.b16 %v4635, %v4634
      %v4650 = vpack.c.b16 %v4637, %v4636
      %v4651 = vpack.c.b16 %v4639, %v4638
      %v4652 = vpack.c.b16 %v4641, %v4640
      %v4653 = vpack.c.b16 %v4643, %v4642
      %v4654 = vpack.c.b16 %v4645, %v4644
      %v4655 = vpack.c.b16 %v4647, %v4646
      %4664 = vmatprep.subr.bf16.mxu0 0
      %4665 = vmatpush1.bf16.msra.mxu0 %v4655
      %4666 = vmatprep.subr.bf16.mxu0 0
      %4667 = vmatpush1.bf16.msra.mxu0 %v4654
      %4668 = vmatprep.subr.bf16.mxu0 0
      %4669 = vmatpush1.bf16.msra.mxu0 %v4653
      %4670 = vmatprep.subr.bf16.mxu0 0
      %4671 = vmatpush1.bf16.msra.mxu0 %v4652
      %4672 = vmatprep.subr.bf16.mxu0 0
      %4673 = vmatpush1.bf16.msra.mxu0 %v4651
      %4674 = vmatprep.subr.bf16.mxu0 0
      %4675 = vmatpush1.bf16.msra.mxu0 %v4650
      %4676 = vmatprep.subr.bf16.mxu0 0
      %4677 = vmatpush1.bf16.msra.mxu0 %v4649
      %4678 = vmatprep.subr.bf16.mxu0 0
      %4679 = vmatpush1.bf16.msra.mxu0 %v4648
      %4680 = vmatprep.subr.bf16.mxu0 0
      %4681 = vmatpush2.bf16.msra.mxu0 0
      %4682 = vmatprep.subr.bf16.mxu0 0
      %4683 = vmatpush2.bf16.msra.mxu0 0
      %4684 = vmatprep.subr.bf16.mxu0 0
      %4685 = vmatpush2.bf16.msra.mxu0 0
      %4686 = vmatprep.subr.bf16.mxu0 0
      %4687 = vmatpush2.bf16.msra.mxu0 0
      %4688 = vmatprep.subr.bf16.mxu0 0
      %4689 = vmatpush2.bf16.msra.mxu0 0
      %4690 = vmatprep.subr.bf16.mxu0 0
      %4691 = vmatpush2.bf16.msra.mxu0 0
      %4692 = vmatprep.subr.bf16.mxu0 0
      %4693 = vmatpush2.bf16.msra.mxu0 0
      %4694 = vmatprep.subr.bf16.mxu0 0
      %4695 = vmatpush2.bf16.msra.mxu0 0
      %4696 = vmatprep.mubr.bf16.mxu0 0
      %4697 = vmatmul.mubr.bf16.gmra.mxu0 %v4584
      %v4698 = vpop.f32.mrf.mxu0
      %v4699 = vadd.f32 0.0, %v4698
      %v4700 = vpop.f32.mrf.mxu0
      %v4701 = vpop.f32.mrf.mxu0
      %v4702 = vadd.f32 0.0, %v4701
      %v4703 = vpop.f32.mrf.mxu0
      %4704 = vmatprep.mubr.bf16.mxu0 0
      %4705 = vmatmul.mubr.bf16.gmra.mxu0 %v4585
      %v4706 = vpop.f32.mrf.mxu0
      %v4707 = vadd.f32 0.0, %v4706
      %v4708 = vpop.f32.mrf.mxu0
      %v4709 = vpop.f32.mrf.mxu0
      %v4710 = vadd.f32 0.0, %v4709
      %v4711 = vpop.f32.mrf.mxu0
      %4712 = vmatprep.mubr.bf16.mxu0 0
      %4713 = vmatmul.mubr.bf16.gmra.mxu0 %v4586
      %v4714 = vpop.f32.mrf.mxu0
      %v4715 = vadd.f32 0.0, %v4714
      %v4716 = vpop.f32.mrf.mxu0
      %v4717 = vpop.f32.mrf.mxu0
      %v4718 = vadd.f32 0.0, %v4717
      %v4719 = vpop.f32.mrf.mxu0
      %4720 = vmatprep.mubr.bf16.mxu0 0
      %4721 = vmatmul.mubr.bf16.gmra.mxu0 %v4587
      %v4722 = vpop.f32.mrf.mxu0
      %v4723 = vadd.f32 0.0, %v4722
      %v4724 = vpop.f32.mrf.mxu0
      %v4725 = vpop.f32.mrf.mxu0
      %v4726 = vadd.f32 0.0, %v4725
      %v4727 = vpop.f32.mrf.mxu0
      %4728 = vmatprep.mubr.bf16.mxu0 0
      %4729 = vmatmul.mubr.bf16.gmra.mxu0 %v4588
      %v4730 = vpop.f32.mrf.mxu0
      %v4731 = vadd.f32 0.0, %v4730
      %v4732 = vpop.f32.mrf.mxu0
      %v4733 = vpop.f32.mrf.mxu0
      %v4734 = vadd.f32 0.0, %v4733
      %v4735 = vpop.f32.mrf.mxu0
      %4736 = vmatprep.mubr.bf16.mxu0 0
      %4737 = vmatmul.mubr.bf16.gmra.mxu0 %v4589
      %v4738 = vpop.f32.mrf.mxu0
      %v4739 = vadd.f32 0.0, %v4738
      %v4740 = vpop.f32.mrf.mxu0
      %v4741 = vpop.f32.mrf.mxu0
      %v4742 = vadd.f32 0.0, %v4741
      %v4743 = vpop.f32.mrf.mxu0
      %4744 = vmatprep.mubr.bf16.mxu0 0
      %4745 = vmatmul.mubr.bf16.gmra.mxu0 %v4590
      %v4746 = vpop.f32.mrf.mxu0
      %v4747 = vadd.f32 0.0, %v4746
      %v4748 = vpop.f32.mrf.mxu0
      %v4749 = vpop.f32.mrf.mxu0
      %v4750 = vadd.f32 0.0, %v4749
      %v4751 = vpop.f32.mrf.mxu0
      %4752 = vmatprep.mubr.bf16.mxu0 0
      %4753 = vmatmul.mubr.bf16.gmra.mxu0 %v4591
      %v4754 = vpop.f32.mrf.mxu0
      %v4755 = vadd.f32 0.0, %v4754
      %v4756 = vpop.f32.mrf.mxu0
      %v4757 = vpop.f32.mrf.mxu0
      %v4758 = vadd.f32 0.0, %v4757
      %v4759 = vpop.f32.mrf.mxu0
      %4760 = vmatprep.mubr.bf16.mxu0 0
      %4761 = vmatmul.mubr.bf16.gmra.mxu0 %v4592
      %v4762 = vpop.f32.mrf.mxu0
      %v4763 = vadd.f32 0.0, %v4762
      %v4764 = vpop.f32.mrf.mxu0
      %v4765 = vpop.f32.mrf.mxu0
      %v4766 = vadd.f32 0.0, %v4765
      %v4767 = vpop.f32.mrf.mxu0
      %4768 = vmatprep.mubr.bf16.mxu0 0
      %4769 = vmatmul.mubr.bf16.gmra.mxu0 %v4593
      %v4770 = vpop.f32.mrf.mxu0
      %v4771 = vadd.f32 0.0, %v4770
      %v4772 = vpop.f32.mrf.mxu0
      %v4773 = vpop.f32.mrf.mxu0
      %v4774 = vadd.f32 0.0, %v4773
      %v4775 = vpop.f32.mrf.mxu0
      %4776 = vmatprep.mubr.bf16.mxu0 0
      %4777 = vmatmul.mubr.bf16.gmra.mxu0 %v4594
      %v4778 = vpop.f32.mrf.mxu0
      %v4779 = vadd.f32 0.0, %v4778
      %v4780 = vpop.f32.mrf.mxu0
      %v4781 = vpop.f32.mrf.mxu0
      %v4782 = vadd.f32 0.0, %v4781
      %v4783 = vpop.f32.mrf.mxu0
      %4784 = vmatprep.mubr.bf16.mxu0 0
      %4785 = vmatmul.mubr.bf16.gmra.mxu0 %v4595
      %v4786 = vpop.f32.mrf.mxu0
      %v4787 = vadd.f32 0.0, %v4786
      %v4788 = vpop.f32.mrf.mxu0
      %v4789 = vpop.f32.mrf.mxu0
      %v4790 = vadd.f32 0.0, %v4789
      %v4791 = vpop.f32.mrf.mxu0
      %4792 = vmatprep.mubr.bf16.mxu0 0
      %4793 = vmatmul.mubr.bf16.gmra.mxu0 %v4596
      %v4794 = vpop.f32.mrf.mxu0
      %v4795 = vadd.f32 0.0, %v4794
      %v4796 = vpop.f32.mrf.mxu0
      %v4797 = vpop.f32.mrf.mxu0
      %v4798 = vadd.f32 0.0, %v4797
      %v4799 = vpop.f32.mrf.mxu0
      %4800 = vmatprep.mubr.bf16.mxu0 0
      %4801 = vmatmul.mubr.bf16.gmra.mxu0 %v4597
      %v4802 = vpop.f32.mrf.mxu0
      %v4803 = vadd.f32 0.0, %v4802
      %v4804 = vpop.f32.mrf.mxu0
      %v4805 = vpop.f32.mrf.mxu0
      %v4806 = vadd.f32 0.0, %v4805
      %v4807 = vpop.f32.mrf.mxu0
      %4808 = vmatprep.mubr.bf16.mxu0 0
      %4809 = vmatmul.mubr.bf16.gmra.mxu0 %v4598
      %v4810 = vpop.f32.mrf.mxu0
      %v4811 = vadd.f32 0.0, %v4810
      %v4812 = vpop.f32.mrf.mxu0
      %v4813 = vpop.f32.mrf.mxu0
      %v4814 = vadd.f32 0.0, %v4813
      %v4815 = vpop.f32.mrf.mxu0
      %4816 = vmatprep.mubr.bf16.mxu0 0
      %4817 = vmatmul.mubr.bf16.gmra.mxu0 %v4599
      %v4818 = vpop.f32.mrf.mxu0
      %v4819 = vadd.f32 0.0, %v4818
      %v4820 = vpop.f32.mrf.mxu0
      %v4821 = vpop.f32.mrf.mxu0
      %v4822 = vadd.f32 0.0, %v4821
      %v4823 = vpop.f32.mrf.mxu0
      %4824 = vdwg.mxu0
      %v4825 = vadd.f32 %v4438, %v4699
      %v4826 = vadd.f32 %v4439, %v4702
      %v4827 = vadd.f32 %v4440, %v4707
      %v4828 = vadd.f32 %v4441, %v4710
      %v4829 = vadd.f32 %v4442, %v4715
      %v4830 = vadd.f32 %v4443, %v4718
      %v4831 = vadd.f32 %v4444, %v4723
      %v4832 = vadd.f32 %v4445, %v4726
      %v4833 = vadd.f32 %v4446, %v4731
      %v4834 = vadd.f32 %v4447, %v4734
      %v4835 = vadd.f32 %v4448, %v4739
      %v4836 = vadd.f32 %v4449, %v4742
      %v4837 = vadd.f32 %v4450, %v4747
      %v4838 = vadd.f32 %v4451, %v4750
      %v4839 = vadd.f32 %v4452, %v4755
      %v4840 = vadd.f32 %v4453, %v4758
      %v4841 = vadd.f32 %v4454, %v4763
      %v4842 = vadd.f32 %v4455, %v4766
      %v4843 = vadd.f32 %v4456, %v4771
      %v4844 = vadd.f32 %v4457, %v4774
      %v4845 = vadd.f32 %v4458, %v4779
      %v4846 = vadd.f32 %v4459, %v4782
      %v4847 = vadd.f32 %v4460, %v4787
      %v4848 = vadd.f32 %v4461, %v4790
      %v4849 = vadd.f32 %v4462, %v4795
      %v4850 = vadd.f32 %v4463, %v4798
      %v4851 = vadd.f32 %v4464, %v4803
      %v4852 = vadd.f32 %v4465, %v4806
      %v4853 = vadd.f32 %v4466, %v4811
      %v4854 = vadd.f32 %v4467, %v4814
      %v4855 = vadd.f32 %v4468, %v4819
      %v4856 = vadd.f32 %v4469, %v4822
      %v4857 = vld [vmem:[%s4470] sm:$0xf]
      %v4858 = vld [vmem:[%s4470 + $0x4] sm:$0xf]
      %v4859 = vld [vmem:[%s4470 + $0x8] sm:$0x1]
      %v4860 = vld [vmem:[%s4470 + $0xc] sm:$0xf]
      %v4861 = vld [vmem:[%s4470 + $0x10] sm:$0xf]
      %v4862 = vld [vmem:[%s4470 + $0x14] sm:$0x1]
      %v4863 = vld [vmem:[%s4470 + $0x18] sm:$0xf]
      %v4864 = vld [vmem:[%s4470 + $0x1c] sm:$0xf]
      %v4865 = vld [vmem:[%s4470 + $0x20] sm:$0x1]
      %v4866 = vld [vmem:[%s4470 + $0x24] sm:$0xf]
      %v4867 = vld [vmem:[%s4470 + $0x28] sm:$0xf]
      %v4868 = vld [vmem:[%s4470 + $0x2c] sm:$0x1]
      %v4869 = vld [vmem:[%s4470 + $0x30] sm:$0xf]
      %v4870 = vld [vmem:[%s4470 + $0x34] sm:$0xf]
      %v4871 = vld [vmem:[%s4470 + $0x38] sm:$0x1]
      %v4872 = vld [vmem:[%s4470 + $0x3c] sm:$0xf]
      %v4873 = vld [vmem:[%s4470 + $0x40] sm:$0xf]
      %v4874 = vld [vmem:[%s4470 + $0x44] sm:$0x1]
      %v4875 = vld [vmem:[%s4470 + $0x48] sm:$0xf]
      %v4876 = vld [vmem:[%s4470 + $0x4c] sm:$0xf]
      %v4877 = vld [vmem:[%s4470 + $0x50] sm:$0x1]
      %v4878 = vld [vmem:[%s4470 + $0x54] sm:$0xf]
      %v4879 = vld [vmem:[%s4470 + $0x58] sm:$0xf]
      %v4880 = vld [vmem:[%s4470 + $0x5c] sm:$0x1]
      %v4881 = vld [vmem:[%s4470 + $0x60] sm:$0xf]
      %v4882 = vld [vmem:[%s4470 + $0x64] sm:$0xf]
      %v4883 = vld [vmem:[%s4470 + $0x68] sm:$0x1]
      %v4884 = vld [vmem:[%s4470 + $0x6c] sm:$0xf]
      %v4885 = vld [vmem:[%s4470 + $0x70] sm:$0xf]
      %v4886 = vld [vmem:[%s4470 + $0x74] sm:$0x1]
      %v4887 = vld [vmem:[%s4470 + $0x78] sm:$0xf]
      %v4888 = vld [vmem:[%s4470 + $0x7c] sm:$0xf]
      %v4889 = vld [vmem:[%s4470 + $0x80] sm:$0x1]
      %v4890 = vld [vmem:[%s4470 + $0x84] sm:$0xf]
      %v4891 = vld [vmem:[%s4470 + $0x88] sm:$0xf]
      %v4892 = vld [vmem:[%s4470 + $0x8c] sm:$0x1]
      %v4893 = vld [vmem:[%s4470 + $0x90] sm:$0xf]
      %v4894 = vld [vmem:[%s4470 + $0x94] sm:$0xf]
      %v4895 = vld [vmem:[%s4470 + $0x98] sm:$0x1]
      %v4896 = vld [vmem:[%s4470 + $0x9c] sm:$0xf]
      %v4897 = vld [vmem:[%s4470 + $0xa0] sm:$0xf]
      %v4898 = vld [vmem:[%s4470 + $0xa4] sm:$0x1]
      %v4899 = vld [vmem:[%s4470 + $0xa8] sm:$0xf]
      %v4900 = vld [vmem:[%s4470 + $0xac] sm:$0xf]
      %v4901 = vld [vmem:[%s4470 + $0xb0] sm:$0x1]
      %v4902 = vld [vmem:[%s4470 + $0xb4] sm:$0xf]
      %v4903 = vld [vmem:[%s4470 + $0xb8] sm:$0xf]
      %v4904 = vld [vmem:[%s4470 + $0xbc] sm:$0x1]
      %v4906 = vshrl.u32 %v4857, 16
      %v4908 = vrot.slane %v4906, 4
      %v4909 = vshll.u32 %v4857, 16
      %v4911 = vrot.slane %v4909, 5
      %v4912 = vor.u32 %v4908, %v4911
      %v4913 = vrot.slane %v4912, 4
      %v4915 = vshll.u32 %v4858, 16
      %v4917 = vrot.slane %v4915, 5
      %v4918 = vsel %vm1367, %v4913, %v4917
      %v4919 = vshrl.u32 %v4858, 16
      %v4921 = vrot.slane %v4919, 4
      %v4922 = vor.u32 %v4921, %v4917
      %v4923 = vrot.slane %v4922, 4
      %v4925 = vshll.u32 %v4859, 16
      %v4927 = vrot.slane %v4925, 5
      %v4928 = vsel %vm1367, %v4923, %v4927
      %v4930 = vshrl.u32 %v4860, 16
      %v4932 = vrot.slane %v4930, 4
      %v4933 = vshll.u32 %v4860, 16
      %v4935 = vrot.slane %v4933, 5
      %v4936 = vor.u32 %v4932, %v4935
      %v4937 = vrot.slane %v4936, 4
      %v4939 = vshll.u32 %v4861, 16
      %v4941 = vrot.slane %v4939, 5
      %v4942 = vsel %vm1367, %v4937, %v4941
      %v4943 = vshrl.u32 %v4861, 16
      %v4945 = vrot.slane %v4943, 4
      %v4946 = vor.u32 %v4945, %v4941
      %v4947 = vrot.slane %v4946, 4
      %v4949 = vshll.u32 %v4862, 16
      %v4951 = vrot.slane %v4949, 5
      %v4952 = vsel %vm1367, %v4947, %v4951
      %v4954 = vshrl.u32 %v4863, 16
      %v4956 = vrot.slane %v4954, 4
      %v4957 = vshll.u32 %v4863, 16
      %v4959 = vrot.slane %v4957, 5
      %v4960 = vor.u32 %v4956, %v4959
      %v4961 = vrot.slane %v4960, 4
      %v4963 = vshll.u32 %v4864, 16
      %v4965 = vrot.slane %v4963, 5
      %v4966 = vsel %vm1367, %v4961, %v4965
      %v4967 = vshrl.u32 %v4864, 16
      %v4969 = vrot.slane %v4967, 4
      %v4970 = vor.u32 %v4969, %v4965
      %v4971 = vrot.slane %v4970, 4
      %v4973 = vshll.u32 %v4865, 16
      %v4975 = vrot.slane %v4973, 5
      %v4976 = vsel %vm1367, %v4971, %v4975
      %v4978 = vshrl.u32 %v4866, 16
      %v4980 = vrot.slane %v4978, 4
      %v4981 = vshll.u32 %v4866, 16
      %v4983 = vrot.slane %v4981, 5
      %v4984 = vor.u32 %v4980, %v4983
      %v4985 = vrot.slane %v4984, 4
      %v4987 = vshll.u32 %v4867, 16
      %v4989 = vrot.slane %v4987, 5
      %v4990 = vsel %vm1367, %v4985, %v4989
      %v4991 = vshrl.u32 %v4867, 16
      %v4993 = vrot.slane %v4991, 4
      %v4994 = vor.u32 %v4993, %v4989
      %v4995 = vrot.slane %v4994, 4
      %v4997 = vshll.u32 %v4868, 16
      %v4999 = vrot.slane %v4997, 5
      %v5000 = vsel %vm1367, %v4995, %v4999
      %v5002 = vshrl.u32 %v4869, 16
      %v5004 = vrot.slane %v5002, 4
      %v5005 = vshll.u32 %v4869, 16
      %v5007 = vrot.slane %v5005, 5
      %v5008 = vor.u32 %v5004, %v5007
      %v5009 = vrot.slane %v5008, 4
      %v5011 = vshll.u32 %v4870, 16
      %v5013 = vrot.slane %v5011, 5
      %v5014 = vsel %vm1367, %v5009, %v5013
      %v5015 = vshrl.u32 %v4870, 16
      %v5017 = vrot.slane %v5015, 4
      %v5018 = vor.u32 %v5017, %v5013
      %v5019 = vrot.slane %v5018, 4
      %v5021 = vshll.u32 %v4871, 16
      %v5023 = vrot.slane %v5021, 5
      %v5024 = vsel %vm1367, %v5019, %v5023
      %v5026 = vshrl.u32 %v4872, 16
      %v5028 = vrot.slane %v5026, 4
      %v5029 = vshll.u32 %v4872, 16
      %v5031 = vrot.slane %v5029, 5
      %v5032 = vor.u32 %v5028, %v5031
      %v5033 = vrot.slane %v5032, 4
      %v5035 = vshll.u32 %v4873, 16
      %v5037 = vrot.slane %v5035, 5
      %v5038 = vsel %vm1367, %v5033, %v5037
      %v5039 = vshrl.u32 %v4873, 16
      %v5041 = vrot.slane %v5039, 4
      %v5042 = vor.u32 %v5041, %v5037
      %v5043 = vrot.slane %v5042, 4
      %v5045 = vshll.u32 %v4874, 16
      %v5047 = vrot.slane %v5045, 5
      %v5048 = vsel %vm1367, %v5043, %v5047
      %v5050 = vshrl.u32 %v4875, 16
      %v5052 = vrot.slane %v5050, 4
      %v5053 = vshll.u32 %v4875, 16
      %v5055 = vrot.slane %v5053, 5
      %v5056 = vor.u32 %v5052, %v5055
      %v5057 = vrot.slane %v5056, 4
      %v5059 = vshll.u32 %v4876, 16
      %v5061 = vrot.slane %v5059, 5
      %v5062 = vsel %vm1367, %v5057, %v5061
      %v5063 = vshrl.u32 %v4876, 16
      %v5065 = vrot.slane %v5063, 4
      %v5066 = vor.u32 %v5065, %v5061
      %v5067 = vrot.slane %v5066, 4
      %v5069 = vshll.u32 %v4877, 16
      %v5071 = vrot.slane %v5069, 5
      %v5072 = vsel %vm1367, %v5067, %v5071
      %v5074 = vshrl.u32 %v4878, 16
      %v5076 = vrot.slane %v5074, 4
      %v5077 = vshll.u32 %v4878, 16
      %v5079 = vrot.slane %v5077, 5
      %v5080 = vor.u32 %v5076, %v5079
      %v5081 = vrot.slane %v5080, 4
      %v5083 = vshll.u32 %v4879, 16
      %v5085 = vrot.slane %v5083, 5
      %v5086 = vsel %vm1367, %v5081, %v5085
      %v5087 = vshrl.u32 %v4879, 16
      %v5089 = vrot.slane %v5087, 4
      %v5090 = vor.u32 %v5089, %v5085
      %v5091 = vrot.slane %v5090, 4
      %v5093 = vshll.u32 %v4880, 16
      %v5095 = vrot.slane %v5093, 5
      %v5096 = vsel %vm1367, %v5091, %v5095
      %v5098 = vshrl.u32 %v4881, 16
      %v5100 = vrot.slane %v5098, 4
      %v5101 = vshll.u32 %v4881, 16
      %v5103 = vrot.slane %v5101, 5
      %v5104 = vor.u32 %v5100, %v5103
      %v5105 = vrot.slane %v5104, 4
      %v5107 = vshll.u32 %v4882, 16
      %v5109 = vrot.slane %v5107, 5
      %v5110 = vsel %vm1367, %v5105, %v5109
      %v5111 = vshrl.u32 %v4882, 16
      %v5113 = vrot.slane %v5111, 4
      %v5114 = vor.u32 %v5113, %v5109
      %v5115 = vrot.slane %v5114, 4
      %v5117 = vshll.u32 %v4883, 16
      %v5119 = vrot.slane %v5117, 5
      %v5120 = vsel %vm1367, %v5115, %v5119
      %v5122 = vshrl.u32 %v4884, 16
      %v5124 = vrot.slane %v5122, 4
      %v5125 = vshll.u32 %v4884, 16
      %v5127 = vrot.slane %v5125, 5
      %v5128 = vor.u32 %v5124, %v5127
      %v5129 = vrot.slane %v5128, 4
      %v5131 = vshll.u32 %v4885, 16
      %v5133 = vrot.slane %v5131, 5
      %v5134 = vsel %vm1367, %v5129, %v5133
      %v5135 = vshrl.u32 %v4885, 16
      %v5137 = vrot.slane %v5135, 4
      %v5138 = vor.u32 %v5137, %v5133
      %v5139 = vrot.slane %v5138, 4
      %v5141 = vshll.u32 %v4886, 16
      %v5143 = vrot.slane %v5141, 5
      %v5144 = vsel %vm1367, %v5139, %v5143
      %v5146 = vshrl.u32 %v4887, 16
      %v5148 = vrot.slane %v5146, 4
      %v5149 = vshll.u32 %v4887, 16
      %v5151 = vrot.slane %v5149, 5
      %v5152 = vor.u32 %v5148, %v5151
      %v5153 = vrot.slane %v5152, 4
      %v5155 = vshll.u32 %v4888, 16
      %v5157 = vrot.slane %v5155, 5
      %v5158 = vsel %vm1367, %v5153, %v5157
      %v5159 = vshrl.u32 %v4888, 16
      %v5161 = vrot.slane %v5159, 4
      %v5162 = vor.u32 %v5161, %v5157
      %v5163 = vrot.slane %v5162, 4
      %v5165 = vshll.u32 %v4889, 16
      %v5167 = vrot.slane %v5165, 5
      %v5168 = vsel %vm1367, %v5163, %v5167
      %v5170 = vshrl.u32 %v4890, 16
      %v5172 = vrot.slane %v5170, 4
      %v5173 = vshll.u32 %v4890, 16
      %v5175 = vrot.slane %v5173, 5
      %v5176 = vor.u32 %v5172, %v5175
      %v5177 = vrot.slane %v5176, 4
      %v5179 = vshll.u32 %v4891, 16
      %v5181 = vrot.slane %v5179, 5
      %v5182 = vsel %vm1367, %v5177, %v5181
      %v5183 = vshrl.u32 %v4891, 16
      %v5185 = vrot.slane %v5183, 4
      %v5186 = vor.u32 %v5185, %v5181
      %v5187 = vrot.slane %v5186, 4
      %v5189 = vshll.u32 %v4892, 16
      %v5191 = vrot.slane %v5189, 5
      %v5192 = vsel %vm1367, %v5187, %v5191
      %v5194 = vshrl.u32 %v4893, 16
      %v5196 = vrot.slane %v5194, 4
      %v5197 = vshll.u32 %v4893, 16
      %v5199 = vrot.slane %v5197, 5
      %v5200 = vor.u32 %v5196, %v5199
      %v5201 = vrot.slane %v5200, 4
      %v5203 = vshll.u32 %v4894, 16
      %v5205 = vrot.slane %v5203, 5
      %v5206 = vsel %vm1367, %v5201, %v5205
      %v5207 = vshrl.u32 %v4894, 16
      %v5209 = vrot.slane %v5207, 4
      %v5210 = vor.u32 %v5209, %v5205
      %v5211 = vrot.slane %v5210, 4
      %v5213 = vshll.u32 %v4895, 16
      %v5215 = vrot.slane %v5213, 5
      %v5216 = vsel %vm1367, %v5211, %v5215
      %v5218 = vshrl.u32 %v4896, 16
      %v5220 = vrot.slane %v5218, 4
      %v5221 = vshll.u32 %v4896, 16
      %v5223 = vrot.slane %v5221, 5
      %v5224 = vor.u32 %v5220, %v5223
      %v5225 = vrot.slane %v5224, 4
      %v5227 = vshll.u32 %v4897, 16
      %v5229 = vrot.slane %v5227, 5
      %v5230 = vsel %vm1367, %v5225, %v5229
      %v5231 = vshrl.u32 %v4897, 16
      %v5233 = vrot.slane %v5231, 4
      %v5234 = vor.u32 %v5233, %v5229
      %v5235 = vrot.slane %v5234, 4
      %v5237 = vshll.u32 %v4898, 16
      %v5239 = vrot.slane %v5237, 5
      %v5240 = vsel %vm1367, %v5235, %v5239
      %v5242 = vshrl.u32 %v4899, 16
      %v5244 = vrot.slane %v5242, 4
      %v5245 = vshll.u32 %v4899, 16
      %v5247 = vrot.slane %v5245, 5
      %v5248 = vor.u32 %v5244, %v5247
      %v5249 = vrot.slane %v5248, 4
      %v5251 = vshll.u32 %v4900, 16
      %v5253 = vrot.slane %v5251, 5
      %v5254 = vsel %vm1367, %v5249, %v5253
      %v5255 = vshrl.u32 %v4900, 16
      %v5257 = vrot.slane %v5255, 4
      %v5258 = vor.u32 %v5257, %v5253
      %v5259 = vrot.slane %v5258, 4
      %v5261 = vshll.u32 %v4901, 16
      %v5263 = vrot.slane %v5261, 5
      %v5264 = vsel %vm1367, %v5259, %v5263
      %v5266 = vshrl.u32 %v4902, 16
      %v5268 = vrot.slane %v5266, 4
      %v5269 = vshll.u32 %v4902, 16
      %v5271 = vrot.slane %v5269, 5
      %v5272 = vor.u32 %v5268, %v5271
      %v5273 = vrot.slane %v5272, 4
      %v5275 = vshll.u32 %v4903, 16
      %v5277 = vrot.slane %v5275, 5
      %v5278 = vsel %vm1367, %v5273, %v5277
      %v5279 = vshrl.u32 %v4903, 16
      %v5281 = vrot.slane %v5279, 4
      %v5282 = vor.u32 %v5281, %v5277
      %v5283 = vrot.slane %v5282, 4
      %v5285 = vshll.u32 %v4904, 16
      %v5287 = vrot.slane %v5285, 5
      %v5288 = vsel %vm1367, %v5283, %v5287
      %s5289 = scalar_lea.vmem %s3, 448
      %v5290 = vld [vmem:[%s5289] sm:$0xf]
      %v5291 = vld [vmem:[%s5289 + $0x4] sm:$0xf]
      %v5292 = vld [vmem:[%s5289 + $0x8] sm:$0xf]
      %v5293 = vld [vmem:[%s5289 + $0xc] sm:$0xf]
      %v5294 = vld [vmem:[%s5289 + $0x10] sm:$0xf]
      %v5295 = vld [vmem:[%s5289 + $0x14] sm:$0xf]
      %v5296 = vld [vmem:[%s5289 + $0x18] sm:$0xf]
      %v5297 = vld [vmem:[%s5289 + $0x1c] sm:$0xf]
      %v5298 = vld [vmem:[%s5289 + $0x20] sm:$0xf]
      %v5299 = vld [vmem:[%s5289 + $0x24] sm:$0xf]
      %v5300 = vld [vmem:[%s5289 + $0x28] sm:$0xf]
      %v5301 = vld [vmem:[%s5289 + $0x2c] sm:$0xf]
      %v5302 = vld [vmem:[%s5289 + $0x30] sm:$0xf]
      %v5303 = vld [vmem:[%s5289 + $0x34] sm:$0xf]
      %v5304 = vld [vmem:[%s5289 + $0x38] sm:$0xf]
      %v5305 = vld [vmem:[%s5289 + $0x3c] sm:$0xf]
      %v5306 = vunpack.c.l.b16 %v4918
      %v5307 = vunpack.c.l.b16 %v4928
      %v5308 = vunpack.c.l.b16 %v4942
      %v5309 = vunpack.c.l.b16 %v4952
      %v5310 = vunpack.c.l.b16 %v4966
      %v5311 = vunpack.c.l.b16 %v4976
      %v5312 = vunpack.c.l.b16 %v4990
      %v5313 = vunpack.c.l.b16 %v5000
      %v5314 = vunpack.c.l.b16 %v5014
      %v5315 = vunpack.c.l.b16 %v5024
      %v5316 = vunpack.c.l.b16 %v5038
      %v5317 = vunpack.c.l.b16 %v5048
      %v5318 = vunpack.c.l.b16 %v5062
      %v5319 = vunpack.c.l.b16 %v5072
      %v5320 = vunpack.c.l.b16 %v5086
      %v5321 = vunpack.c.l.b16 %v5096
      %v5322 = vunpack.c.l.b16 %v5110
      %v5323 = vunpack.c.l.b16 %v5120
      %v5324 = vunpack.c.l.b16 %v5134
      %v5325 = vunpack.c.l.b16 %v5144
      %v5326 = vunpack.c.l.b16 %v5158
      %v5327 = vunpack.c.l.b16 %v5168
      %v5328 = vunpack.c.l.b16 %v5182
      %v5329 = vunpack.c.l.b16 %v5192
      %v5330 = vunpack.c.l.b16 %v5206
      %v5331 = vunpack.c.l.b16 %v5216
      %v5332 = vunpack.c.l.b16 %v5230
      %v5333 = vunpack.c.l.b16 %v5240
      %v5334 = vunpack.c.l.b16 %v5254
      %v5335 = vunpack.c.l.b16 %v5264
      %v5336 = vunpack.c.l.b16 %v5278
      %v5337 = vunpack.c.l.b16 %v5288
      %v5338 = vpack.c.b16 %v5307, %v5306
      %v5339 = vpack.c.b16 %v5309, %v5308
      %v5340 = vpack.c.b16 %v5311, %v5310
      %v5341 = vpack.c.b16 %v5313, %v5312
      %v5342 = vpack.c.b16 %v5315, %v5314
      %v5343 = vpack.c.b16 %v5317, %v5316
      %v5344 = vpack.c.b16 %v5319, %v5318
      %v5345 = vpack.c.b16 %v5321, %v5320
      %v5346 = vpack.c.b16 %v5323, %v5322
      %v5347 = vpack.c.b16 %v5325, %v5324
      %v5348 = vpack.c.b16 %v5327, %v5326
      %v5349 = vpack.c.b16 %v5329, %v5328
      %v5350 = vpack.c.b16 %v5331, %v5330
      %v5351 = vpack.c.b16 %v5333, %v5332
      %v5352 = vpack.c.b16 %v5335, %v5334
      %v5353 = vpack.c.b16 %v5337, %v5336
      %v5386 = vunpack.c.l.b16 %v5290
      %v5387 = vunpack.c.l.b16 %v5291
      %v5388 = vunpack.c.l.b16 %v5292
      %v5389 = vunpack.c.l.b16 %v5293
      %v5390 = vunpack.c.l.b16 %v5294
      %v5391 = vunpack.c.l.b16 %v5295
      %v5392 = vunpack.c.l.b16 %v5296
      %v5393 = vunpack.c.l.b16 %v5297
      %v5394 = vunpack.c.l.b16 %v5298
      %v5395 = vunpack.c.l.b16 %v5299
      %v5396 = vunpack.c.l.b16 %v5300
      %v5397 = vunpack.c.l.b16 %v5301
      %v5398 = vunpack.c.l.b16 %v5302
      %v5399 = vunpack.c.l.b16 %v5303
      %v5400 = vunpack.c.l.b16 %v5304
      %v5401 = vunpack.c.l.b16 %v5305
      %v5402 = vpack.c.b16 %v5387, %v5386
      %v5403 = vpack.c.b16 %v5389, %v5388
      %v5404 = vpack.c.b16 %v5391, %v5390
      %v5405 = vpack.c.b16 %v5393, %v5392
      %v5406 = vpack.c.b16 %v5395, %v5394
      %v5407 = vpack.c.b16 %v5397, %v5396
      %v5408 = vpack.c.b16 %v5399, %v5398
      %v5409 = vpack.c.b16 %v5401, %v5400
      %5418 = vmatprep.subr.bf16.mxu0 0
      %5419 = vmatpush1.bf16.msra.mxu0 %v5409
      %5420 = vmatprep.subr.bf16.mxu0 0
      %5421 = vmatpush1.bf16.msra.mxu0 %v5408
      %5422 = vmatprep.subr.bf16.mxu0 0
      %5423 = vmatpush1.bf16.msra.mxu0 %v5407
      %5424 = vmatprep.subr.bf16.mxu0 0
      %5425 = vmatpush1.bf16.msra.mxu0 %v5406
      %5426 = vmatprep.subr.bf16.mxu0 0
      %5427 = vmatpush1.bf16.msra.mxu0 %v5405
      %5428 = vmatprep.subr.bf16.mxu0 0
      %5429 = vmatpush1.bf16.msra.mxu0 %v5404
      %5430 = vmatprep.subr.bf16.mxu0 0
      %5431 = vmatpush1.bf16.msra.mxu0 %v5403
      %5432 = vmatprep.subr.bf16.mxu0 0
      %5433 = vmatpush1.bf16.msra.mxu0 %v5402
      %5434 = vmatprep.subr.bf16.mxu0 0
      %5435 = vmatpush2.bf16.msra.mxu0 0
      %5436 = vmatprep.subr.bf16.mxu0 0
      %5437 = vmatpush2.bf16.msra.mxu0 0
      %5438 = vmatprep.subr.bf16.mxu0 0
      %5439 = vmatpush2.bf16.msra.mxu0 0
      %5440 = vmatprep.subr.bf16.mxu0 0
      %5441 = vmatpush2.bf16.msra.mxu0 0
      %5442 = vmatprep.subr.bf16.mxu0 0
      %5443 = vmatpush2.bf16.msra.mxu0 0
      %5444 = vmatprep.subr.bf16.mxu0 0
      %5445 = vmatpush2.bf16.msra.mxu0 0
      %5446 = vmatprep.subr.bf16.mxu0 0
      %5447 = vmatpush2.bf16.msra.mxu0 0
      %5448 = vmatprep.subr.bf16.mxu0 0
      %5449 = vmatpush2.bf16.msra.mxu0 0
      %5450 = vmatprep.mubr.bf16.mxu0 0
      %5451 = vmatmul.mubr.bf16.gmra.mxu0 %v5338
      %v5452 = vpop.f32.mrf.mxu0
      %v5453 = vadd.f32 0.0, %v5452
      %v5454 = vpop.f32.mrf.mxu0
      %v5455 = vpop.f32.mrf.mxu0
      %v5456 = vadd.f32 0.0, %v5455
      %v5457 = vpop.f32.mrf.mxu0
      %5458 = vmatprep.mubr.bf16.mxu0 0
      %5459 = vmatmul.mubr.bf16.gmra.mxu0 %v5339
      %v5460 = vpop.f32.mrf.mxu0
      %v5461 = vadd.f32 0.0, %v5460
      %v5462 = vpop.f32.mrf.mxu0
      %v5463 = vpop.f32.mrf.mxu0
      %v5464 = vadd.f32 0.0, %v5463
      %v5465 = vpop.f32.mrf.mxu0
      %5466 = vmatprep.mubr.bf16.mxu0 0
      %5467 = vmatmul.mubr.bf16.gmra.mxu0 %v5340
      %v5468 = vpop.f32.mrf.mxu0
      %v5469 = vadd.f32 0.0, %v5468
      %v5470 = vpop.f32.mrf.mxu0
      %v5471 = vpop.f32.mrf.mxu0
      %v5472 = vadd.f32 0.0, %v5471
      %v5473 = vpop.f32.mrf.mxu0
      %5474 = vmatprep.mubr.bf16.mxu0 0
      %5475 = vmatmul.mubr.bf16.gmra.mxu0 %v5341
      %v5476 = vpop.f32.mrf.mxu0
      %v5477 = vadd.f32 0.0, %v5476
      %v5478 = vpop.f32.mrf.mxu0
      %v5479 = vpop.f32.mrf.mxu0
      %v5480 = vadd.f32 0.0, %v5479
      %v5481 = vpop.f32.mrf.mxu0
      %5482 = vmatprep.mubr.bf16.mxu0 0
      %5483 = vmatmul.mubr.bf16.gmra.mxu0 %v5342
      %v5484 = vpop.f32.mrf.mxu0
      %v5485 = vadd.f32 0.0, %v5484
      %v5486 = vpop.f32.mrf.mxu0
      %v5487 = vpop.f32.mrf.mxu0
      %v5488 = vadd.f32 0.0, %v5487
      %v5489 = vpop.f32.mrf.mxu0
      %5490 = vmatprep.mubr.bf16.mxu0 0
      %5491 = vmatmul.mubr.bf16.gmra.mxu0 %v5343
      %v5492 = vpop.f32.mrf.mxu0
      %v5493 = vadd.f32 0.0, %v5492
      %v5494 = vpop.f32.mrf.mxu0
      %v5495 = vpop.f32.mrf.mxu0
      %v5496 = vadd.f32 0.0, %v5495
      %v5497 = vpop.f32.mrf.mxu0
      %5498 = vmatprep.mubr.bf16.mxu0 0
      %5499 = vmatmul.mubr.bf16.gmra.mxu0 %v5344
      %v5500 = vpop.f32.mrf.mxu0
      %v5501 = vadd.f32 0.0, %v5500
      %v5502 = vpop.f32.mrf.mxu0
      %v5503 = vpop.f32.mrf.mxu0
      %v5504 = vadd.f32 0.0, %v5503
      %v5505 = vpop.f32.mrf.mxu0
      %5506 = vmatprep.mubr.bf16.mxu0 0
      %5507 = vmatmul.mubr.bf16.gmra.mxu0 %v5345
      %v5508 = vpop.f32.mrf.mxu0
      %v5509 = vadd.f32 0.0, %v5508
      %v5510 = vpop.f32.mrf.mxu0
      %v5511 = vpop.f32.mrf.mxu0
      %v5512 = vadd.f32 0.0, %v5511
      %v5513 = vpop.f32.mrf.mxu0
      %5514 = vmatprep.mubr.bf16.mxu0 0
      %5515 = vmatmul.mubr.bf16.gmra.mxu0 %v5346
      %v5516 = vpop.f32.mrf.mxu0
      %v5517 = vadd.f32 0.0, %v5516
      %v5518 = vpop.f32.mrf.mxu0
      %v5519 = vpop.f32.mrf.mxu0
      %v5520 = vadd.f32 0.0, %v5519
      %v5521 = vpop.f32.mrf.mxu0
      %5522 = vmatprep.mubr.bf16.mxu0 0
      %5523 = vmatmul.mubr.bf16.gmra.mxu0 %v5347
      %v5524 = vpop.f32.mrf.mxu0
      %v5525 = vadd.f32 0.0, %v5524
      %v5526 = vpop.f32.mrf.mxu0
      %v5527 = vpop.f32.mrf.mxu0
      %v5528 = vadd.f32 0.0, %v5527
      %v5529 = vpop.f32.mrf.mxu0
      %5530 = vmatprep.mubr.bf16.mxu0 0
      %5531 = vmatmul.mubr.bf16.gmra.mxu0 %v5348
      %v5532 = vpop.f32.mrf.mxu0
      %v5533 = vadd.f32 0.0, %v5532
      %v5534 = vpop.f32.mrf.mxu0
      %v5535 = vpop.f32.mrf.mxu0
      %v5536 = vadd.f32 0.0, %v5535
      %v5537 = vpop.f32.mrf.mxu0
      %5538 = vmatprep.mubr.bf16.mxu0 0
      %5539 = vmatmul.mubr.bf16.gmra.mxu0 %v5349
      %v5540 = vpop.f32.mrf.mxu0
      %v5541 = vadd.f32 0.0, %v5540
      %v5542 = vpop.f32.mrf.mxu0
      %v5543 = vpop.f32.mrf.mxu0
      %v5544 = vadd.f32 0.0, %v5543
      %v5545 = vpop.f32.mrf.mxu0
      %5546 = vmatprep.mubr.bf16.mxu0 0
      %5547 = vmatmul.mubr.bf16.gmra.mxu0 %v5350
      %v5548 = vpop.f32.mrf.mxu0
      %v5549 = vadd.f32 0.0, %v5548
      %v5550 = vpop.f32.mrf.mxu0
      %v5551 = vpop.f32.mrf.mxu0
      %v5552 = vadd.f32 0.0, %v5551
      %v5553 = vpop.f32.mrf.mxu0
      %5554 = vmatprep.mubr.bf16.mxu0 0
      %5555 = vmatmul.mubr.bf16.gmra.mxu0 %v5351
      %v5556 = vpop.f32.mrf.mxu0
      %v5557 = vadd.f32 0.0, %v5556
      %v5558 = vpop.f32.mrf.mxu0
      %v5559 = vpop.f32.mrf.mxu0
      %v5560 = vadd.f32 0.0, %v5559
      %v5561 = vpop.f32.mrf.mxu0
      %5562 = vmatprep.mubr.bf16.mxu0 0
      %5563 = vmatmul.mubr.bf16.gmra.mxu0 %v5352
      %v5564 = vpop.f32.mrf.mxu0
      %v5565 = vadd.f32 0.0, %v5564
      %v5566 = vpop.f32.mrf.mxu0
      %v5567 = vpop.f32.mrf.mxu0
      %v5568 = vadd.f32 0.0, %v5567
      %v5569 = vpop.f32.mrf.mxu0
      %5570 = vmatprep.mubr.bf16.mxu0 0
      %5571 = vmatmul.mubr.bf16.gmra.mxu0 %v5353
      %v5572 = vpop.f32.mrf.mxu0
      %v5573 = vadd.f32 0.0, %v5572
      %v5574 = vpop.f32.mrf.mxu0
      %v5575 = vpop.f32.mrf.mxu0
      %v5576 = vadd.f32 0.0, %v5575
      %v5577 = vpop.f32.mrf.mxu0
      %5578 = vdwg.mxu0
      %v5579 = vadd.f32 %v4825, %v5453
      %v5580 = vadd.f32 %v4826, %v5456
      %v5581 = vadd.f32 %v4827, %v5461
      %v5582 = vadd.f32 %v4828, %v5464
      %v5583 = vadd.f32 %v4829, %v5469
      %v5584 = vadd.f32 %v4830, %v5472
      %v5585 = vadd.f32 %v4831, %v5477
      %v5586 = vadd.f32 %v4832, %v5480
      %v5587 = vadd.f32 %v4833, %v5485
      %v5588 = vadd.f32 %v4834, %v5488
      %v5589 = vadd.f32 %v4835, %v5493
      %v5590 = vadd.f32 %v4836, %v5496
      %v5591 = vadd.f32 %v4837, %v5501
      %v5592 = vadd.f32 %v4838, %v5504
      %v5593 = vadd.f32 %v4839, %v5509
      %v5594 = vadd.f32 %v4840, %v5512
      %v5595 = vadd.f32 %v4841, %v5517
      %v5596 = vadd.f32 %v4842, %v5520
      %v5597 = vadd.f32 %v4843, %v5525
      %v5598 = vadd.f32 %v4844, %v5528
      %v5599 = vadd.f32 %v4845, %v5533
      %v5600 = vadd.f32 %v4846, %v5536
      %v5601 = vadd.f32 %v4847, %v5541
      %v5602 = vadd.f32 %v4848, %v5544
      %v5603 = vadd.f32 %v4849, %v5549
      %v5604 = vadd.f32 %v4850, %v5552
      %v5605 = vadd.f32 %v4851, %v5557
      %v5606 = vadd.f32 %v4852, %v5560
      %v5607 = vadd.f32 %v4853, %v5565
      %v5608 = vadd.f32 %v4854, %v5568
      %v5609 = vadd.f32 %v4855, %v5573
      %v5610 = vadd.f32 %v4856, %v5576
      %v5611 = vld [vmem:[%s4470] sm:$0xe]
      %v5612 = vld [vmem:[%s4470 + $0xc] sm:$0xe]
      %v5613 = vld [vmem:[%s4470 + $0x18] sm:$0xe]
      %v5614 = vld [vmem:[%s4470 + $0x24] sm:$0xe]
      %v5615 = vld [vmem:[%s4470 + $0x30] sm:$0xe]
      %v5616 = vld [vmem:[%s4470 + $0x3c] sm:$0xe]
      %v5617 = vld [vmem:[%s4470 + $0x48] sm:$0xe]
      %v5618 = vld [vmem:[%s4470 + $0x54] sm:$0xe]
      %v5619 = vld [vmem:[%s4470 + $0x60] sm:$0xe]
      %v5620 = vld [vmem:[%s4470 + $0x6c] sm:$0xe]
      %v5621 = vld [vmem:[%s4470 + $0x78] sm:$0xe]
      %v5622 = vld [vmem:[%s4470 + $0x84] sm:$0xe]
      %v5623 = vld [vmem:[%s4470 + $0x90] sm:$0xe]
      %v5624 = vld [vmem:[%s4470 + $0x9c] sm:$0xe]
      %v5625 = vld [vmem:[%s4470 + $0xa8] sm:$0xe]
      %v5626 = vld [vmem:[%s4470 + $0xb4] sm:$0xe]
      %v5675 = vrot.slane %v5611, 5
      %v5676 = vrot.slane %v5675, 4
      %v5677 = vrot.slane %v4858, 5
      %v5678 = vsel %vm2397, %v5676, %v5677
      %v5679 = vrot.slane %v5677, 4
      %v5680 = vrot.slane %v4859, 5
      %v5681 = vsel %vm2397, %v5679, %v5680
      %v5682 = vrot.slane %v5612, 5
      %v5683 = vrot.slane %v5682, 4
      %v5684 = vrot.slane %v4861, 5
      %v5685 = vsel %vm2397, %v5683, %v5684
      %v5686 = vrot.slane %v5684, 4
      %v5687 = vrot.slane %v4862, 5
      %v5688 = vsel %vm2397, %v5686, %v5687
      %v5689 = vrot.slane %v5613, 5
      %v5690 = vrot.slane %v5689, 4
      %v5691 = vrot.slane %v4864, 5
      %v5692 = vsel %vm2397, %v5690, %v5691
      %v5693 = vrot.slane %v5691, 4
      %v5694 = vrot.slane %v4865, 5
      %v5695 = vsel %vm2397, %v5693, %v5694
      %v5696 = vrot.slane %v5614, 5
      %v5697 = vrot.slane %v5696, 4
      %v5698 = vrot.slane %v4867, 5
      %v5699 = vsel %vm2397, %v5697, %v5698
      %v5700 = vrot.slane %v5698, 4
      %v5701 = vrot.slane %v4868, 5
      %v5702 = vsel %vm2397, %v5700, %v5701
      %v5703 = vrot.slane %v5615, 5
      %v5704 = vrot.slane %v5703, 4
      %v5705 = vrot.slane %v4870, 5
      %v5706 = vsel %vm2397, %v5704, %v5705
      %v5707 = vrot.slane %v5705, 4
      %v5708 = vrot.slane %v4871, 5
      %v5709 = vsel %vm2397, %v5707, %v5708
      %v5710 = vrot.slane %v5616, 5
      %v5711 = vrot.slane %v5710, 4
      %v5712 = vrot.slane %v4873, 5
      %v5713 = vsel %vm2397, %v5711, %v5712
      %v5714 = vrot.slane %v5712, 4
      %v5715 = vrot.slane %v4874, 5
      %v5716 = vsel %vm2397, %v5714, %v5715
      %v5717 = vrot.slane %v5617, 5
      %v5718 = vrot.slane %v5717, 4
      %v5719 = vrot.slane %v4876, 5
      %v5720 = vsel %vm2397, %v5718, %v5719
      %v5721 = vrot.slane %v5719, 4
      %v5722 = vrot.slane %v4877, 5
      %v5723 = vsel %vm2397, %v5721, %v5722
      %v5724 = vrot.slane %v5618, 5
      %v5725 = vrot.slane %v5724, 4
      %v5726 = vrot.slane %v4879, 5
      %v5727 = vsel %vm2397, %v5725, %v5726
      %v5728 = vrot.slane %v5726, 4
      %v5729 = vrot.slane %v4880, 5
      %v5730 = vsel %vm2397, %v5728, %v5729
      %v5731 = vrot.slane %v5619, 5
      %v5732 = vrot.slane %v5731, 4
      %v5733 = vrot.slane %v4882, 5
      %v5734 = vsel %vm2397, %v5732, %v5733
      %v5735 = vrot.slane %v5733, 4
      %v5736 = vrot.slane %v4883, 5
      %v5737 = vsel %vm2397, %v5735, %v5736
      %v5738 = vrot.slane %v5620, 5
      %v5739 = vrot.slane %v5738, 4
      %v5740 = vrot.slane %v4885, 5
      %v5741 = vsel %vm2397, %v5739, %v5740
      %v5742 = vrot.slane %v5740, 4
      %v5743 = vrot.slane %v4886, 5
      %v5744 = vsel %vm2397, %v5742, %v5743
      %v5745 = vrot.slane %v5621, 5
      %v5746 = vrot.slane %v5745, 4
      %v5747 = vrot.slane %v4888, 5
      %v5748 = vsel %vm2397, %v5746, %v5747
      %v5749 = vrot.slane %v5747, 4
      %v5750 = vrot.slane %v4889, 5
      %v5751 = vsel %vm2397, %v5749, %v5750
      %v5752 = vrot.slane %v5622, 5
      %v5753 = vrot.slane %v5752, 4
      %v5754 = vrot.slane %v4891, 5
      %v5755 = vsel %vm2397, %v5753, %v5754
      %v5756 = vrot.slane %v5754, 4
      %v5757 = vrot.slane %v4892, 5
      %v5758 = vsel %vm2397, %v5756, %v5757
      %v5759 = vrot.slane %v5623, 5
      %v5760 = vrot.slane %v5759, 4
      %v5761 = vrot.slane %v4894, 5
      %v5762 = vsel %vm2397, %v5760, %v5761
      %v5763 = vrot.slane %v5761, 4
      %v5764 = vrot.slane %v4895, 5
      %v5765 = vsel %vm2397, %v5763, %v5764
      %v5766 = vrot.slane %v5624, 5
      %v5767 = vrot.slane %v5766, 4
      %v5768 = vrot.slane %v4897, 5
      %v5769 = vsel %vm2397, %v5767, %v5768
      %v5770 = vrot.slane %v5768, 4
      %v5771 = vrot.slane %v4898, 5
      %v5772 = vsel %vm2397, %v5770, %v5771
      %v5773 = vrot.slane %v5625, 5
      %v5774 = vrot.slane %v5773, 4
      %v5775 = vrot.slane %v4900, 5
      %v5776 = vsel %vm2397, %v5774, %v5775
      %v5777 = vrot.slane %v5775, 4
      %v5778 = vrot.slane %v4901, 5
      %v5779 = vsel %vm2397, %v5777, %v5778
      %v5780 = vrot.slane %v5626, 5
      %v5781 = vrot.slane %v5780, 4
      %v5782 = vrot.slane %v4903, 5
      %v5783 = vsel %vm2397, %v5781, %v5782
      %v5784 = vrot.slane %v5782, 4
      %v5785 = vrot.slane %v4904, 5
      %v5786 = vsel %vm2397, %v5784, %v5785
      %s5787 = scalar_lea.vmem %s3, 512
      %v5788 = vld [vmem:[%s5787] sm:$0xf]
      %v5789 = vld [vmem:[%s5787 + $0x4] sm:$0xf]
      %v5790 = vld [vmem:[%s5787 + $0x8] sm:$0xf]
      %v5791 = vld [vmem:[%s5787 + $0xc] sm:$0xf]
      %v5792 = vld [vmem:[%s5787 + $0x10] sm:$0xf]
      %v5793 = vld [vmem:[%s5787 + $0x14] sm:$0xf]
      %v5794 = vld [vmem:[%s5787 + $0x18] sm:$0xf]
      %v5795 = vld [vmem:[%s5787 + $0x1c] sm:$0xf]
      %v5796 = vld [vmem:[%s5787 + $0x20] sm:$0xf]
      %v5797 = vld [vmem:[%s5787 + $0x24] sm:$0xf]
      %v5798 = vld [vmem:[%s5787 + $0x28] sm:$0xf]
      %v5799 = vld [vmem:[%s5787 + $0x2c] sm:$0xf]
      %v5800 = vld [vmem:[%s5787 + $0x30] sm:$0xf]
      %v5801 = vld [vmem:[%s5787 + $0x34] sm:$0xf]
      %v5802 = vld [vmem:[%s5787 + $0x38] sm:$0xf]
      %v5803 = vld [vmem:[%s5787 + $0x3c] sm:$0xf]
      %v5804 = vunpack.c.l.b16 %v5678
      %v5805 = vunpack.c.l.b16 %v5681
      %v5806 = vunpack.c.l.b16 %v5685
      %v5807 = vunpack.c.l.b16 %v5688
      %v5808 = vunpack.c.l.b16 %v5692
      %v5809 = vunpack.c.l.b16 %v5695
      %v5810 = vunpack.c.l.b16 %v5699
      %v5811 = vunpack.c.l.b16 %v5702
      %v5812 = vunpack.c.l.b16 %v5706
      %v5813 = vunpack.c.l.b16 %v5709
      %v5814 = vunpack.c.l.b16 %v5713
      %v5815 = vunpack.c.l.b16 %v5716
      %v5816 = vunpack.c.l.b16 %v5720
      %v5817 = vunpack.c.l.b16 %v5723
      %v5818 = vunpack.c.l.b16 %v5727
      %v5819 = vunpack.c.l.b16 %v5730
      %v5820 = vunpack.c.l.b16 %v5734
      %v5821 = vunpack.c.l.b16 %v5737
      %v5822 = vunpack.c.l.b16 %v5741
      %v5823 = vunpack.c.l.b16 %v5744
      %v5824 = vunpack.c.l.b16 %v5748
      %v5825 = vunpack.c.l.b16 %v5751
      %v5826 = vunpack.c.l.b16 %v5755
      %v5827 = vunpack.c.l.b16 %v5758
      %v5828 = vunpack.c.l.b16 %v5762
      %v5829 = vunpack.c.l.b16 %v5765
      %v5830 = vunpack.c.l.b16 %v5769
      %v5831 = vunpack.c.l.b16 %v5772
      %v5832 = vunpack.c.l.b16 %v5776
      %v5833 = vunpack.c.l.b16 %v5779
      %v5834 = vunpack.c.l.b16 %v5783
      %v5835 = vunpack.c.l.b16 %v5786
      %v5836 = vpack.c.b16 %v5805, %v5804
      %v5837 = vpack.c.b16 %v5807, %v5806
      %v5838 = vpack.c.b16 %v5809, %v5808
      %v5839 = vpack.c.b16 %v5811, %v5810
      %v5840 = vpack.c.b16 %v5813, %v5812
      %v5841 = vpack.c.b16 %v5815, %v5814
      %v5842 = vpack.c.b16 %v5817, %v5816
      %v5843 = vpack.c.b16 %v5819, %v5818
      %v5844 = vpack.c.b16 %v5821, %v5820
      %v5845 = vpack.c.b16 %v5823, %v5822
      %v5846 = vpack.c.b16 %v5825, %v5824
      %v5847 = vpack.c.b16 %v5827, %v5826
      %v5848 = vpack.c.b16 %v5829, %v5828
      %v5849 = vpack.c.b16 %v5831, %v5830
      %v5850 = vpack.c.b16 %v5833, %v5832
      %v5851 = vpack.c.b16 %v5835, %v5834
      %v5884 = vunpack.c.l.b16 %v5788
      %v5885 = vunpack.c.l.b16 %v5789
      %v5886 = vunpack.c.l.b16 %v5790
      %v5887 = vunpack.c.l.b16 %v5791
      %v5888 = vunpack.c.l.b16 %v5792
      %v5889 = vunpack.c.l.b16 %v5793
      %v5890 = vunpack.c.l.b16 %v5794
      %v5891 = vunpack.c.l.b16 %v5795
      %v5892 = vunpack.c.l.b16 %v5796
      %v5893 = vunpack.c.l.b16 %v5797
      %v5894 = vunpack.c.l.b16 %v5798
      %v5895 = vunpack.c.l.b16 %v5799
      %v5896 = vunpack.c.l.b16 %v5800
      %v5897 = vunpack.c.l.b16 %v5801
      %v5898 = vunpack.c.l.b16 %v5802
      %v5899 = vunpack.c.l.b16 %v5803
      %v5900 = vpack.c.b16 %v5885, %v5884
      %v5901 = vpack.c.b16 %v5887, %v5886
      %v5902 = vpack.c.b16 %v5889, %v5888
      %v5903 = vpack.c.b16 %v5891, %v5890
      %v5904 = vpack.c.b16 %v5893, %v5892
      %v5905 = vpack.c.b16 %v5895, %v5894
      %v5906 = vpack.c.b16 %v5897, %v5896
      %v5907 = vpack.c.b16 %v5899, %v5898
      %5916 = vmatprep.subr.bf16.mxu0 0
      %5917 = vmatpush1.bf16.msra.mxu0 %v5907
      %5918 = vmatprep.subr.bf16.mxu0 0
      %5919 = vmatpush1.bf16.msra.mxu0 %v5906
      %5920 = vmatprep.subr.bf16.mxu0 0
      %5921 = vmatpush1.bf16.msra.mxu0 %v5905
      %5922 = vmatprep.subr.bf16.mxu0 0
      %5923 = vmatpush1.bf16.msra.mxu0 %v5904
      %5924 = vmatprep.subr.bf16.mxu0 0
      %5925 = vmatpush1.bf16.msra.mxu0 %v5903
      %5926 = vmatprep.subr.bf16.mxu0 0
      %5927 = vmatpush1.bf16.msra.mxu0 %v5902
      %5928 = vmatprep.subr.bf16.mxu0 0
      %5929 = vmatpush1.bf16.msra.mxu0 %v5901
      %5930 = vmatprep.subr.bf16.mxu0 0
      %5931 = vmatpush1.bf16.msra.mxu0 %v5900
      %5932 = vmatprep.subr.bf16.mxu0 0
      %5933 = vmatpush2.bf16.msra.mxu0 0
      %5934 = vmatprep.subr.bf16.mxu0 0
      %5935 = vmatpush2.bf16.msra.mxu0 0
      %5936 = vmatprep.subr.bf16.mxu0 0
      %5937 = vmatpush2.bf16.msra.mxu0 0
      %5938 = vmatprep.subr.bf16.mxu0 0
      %5939 = vmatpush2.bf16.msra.mxu0 0
      %5940 = vmatprep.subr.bf16.mxu0 0
      %5941 = vmatpush2.bf16.msra.mxu0 0
      %5942 = vmatprep.subr.bf16.mxu0 0
      %5943 = vmatpush2.bf16.msra.mxu0 0
      %5944 = vmatprep.subr.bf16.mxu0 0
      %5945 = vmatpush2.bf16.msra.mxu0 0
      %5946 = vmatprep.subr.bf16.mxu0 0
      %5947 = vmatpush2.bf16.msra.mxu0 0
      %5948 = vmatprep.mubr.bf16.mxu0 0
      %5949 = vmatmul.mubr.bf16.gmra.mxu0 %v5836
      %v5950 = vpop.f32.mrf.mxu0
      %v5951 = vadd.f32 0.0, %v5950
      %v5952 = vpop.f32.mrf.mxu0
      %v5953 = vpop.f32.mrf.mxu0
      %v5954 = vadd.f32 0.0, %v5953
      %v5955 = vpop.f32.mrf.mxu0
      %5956 = vmatprep.mubr.bf16.mxu0 0
      %5957 = vmatmul.mubr.bf16.gmra.mxu0 %v5837
      %v5958 = vpop.f32.mrf.mxu0
      %v5959 = vadd.f32 0.0, %v5958
      %v5960 = vpop.f32.mrf.mxu0
      %v5961 = vpop.f32.mrf.mxu0
      %v5962 = vadd.f32 0.0, %v5961
      %v5963 = vpop.f32.mrf.mxu0
      %5964 = vmatprep.mubr.bf16.mxu0 0
      %5965 = vmatmul.mubr.bf16.gmra.mxu0 %v5838
      %v5966 = vpop.f32.mrf.mxu0
      %v5967 = vadd.f32 0.0, %v5966
      %v5968 = vpop.f32.mrf.mxu0
      %v5969 = vpop.f32.mrf.mxu0
      %v5970 = vadd.f32 0.0, %v5969
      %v5971 = vpop.f32.mrf.mxu0
      %5972 = vmatprep.mubr.bf16.mxu0 0
      %5973 = vmatmul.mubr.bf16.gmra.mxu0 %v5839
      %v5974 = vpop.f32.mrf.mxu0
      %v5975 = vadd.f32 0.0, %v5974
      %v5976 = vpop.f32.mrf.mxu0
      %v5977 = vpop.f32.mrf.mxu0
      %v5978 = vadd.f32 0.0, %v5977
      %v5979 = vpop.f32.mrf.mxu0
      %5980 = vmatprep.mubr.bf16.mxu0 0
      %5981 = vmatmul.mubr.bf16.gmra.mxu0 %v5840
      %v5982 = vpop.f32.mrf.mxu0
      %v5983 = vadd.f32 0.0, %v5982
      %v5984 = vpop.f32.mrf.mxu0
      %v5985 = vpop.f32.mrf.mxu0
      %v5986 = vadd.f32 0.0, %v5985
      %v5987 = vpop.f32.mrf.mxu0
      %5988 = vmatprep.mubr.bf16.mxu0 0
      %5989 = vmatmul.mubr.bf16.gmra.mxu0 %v5841
      %v5990 = vpop.f32.mrf.mxu0
      %v5991 = vadd.f32 0.0, %v5990
      %v5992 = vpop.f32.mrf.mxu0
      %v5993 = vpop.f32.mrf.mxu0
      %v5994 = vadd.f32 0.0, %v5993
      %v5995 = vpop.f32.mrf.mxu0
      %5996 = vmatprep.mubr.bf16.mxu0 0
      %5997 = vmatmul.mubr.bf16.gmra.mxu0 %v5842
      %v5998 = vpop.f32.mrf.mxu0
      %v5999 = vadd.f32 0.0, %v5998
      %v6000 = vpop.f32.mrf.mxu0
      %v6001 = vpop.f32.mrf.mxu0
      %v6002 = vadd.f32 0.0, %v6001
      %v6003 = vpop.f32.mrf.mxu0
      %6004 = vmatprep.mubr.bf16.mxu0 0
      %6005 = vmatmul.mubr.bf16.gmra.mxu0 %v5843
      %v6006 = vpop.f32.mrf.mxu0
      %v6007 = vadd.f32 0.0, %v6006
      %v6008 = vpop.f32.mrf.mxu0
      %v6009 = vpop.f32.mrf.mxu0
      %v6010 = vadd.f32 0.0, %v6009
      %v6011 = vpop.f32.mrf.mxu0
      %6012 = vmatprep.mubr.bf16.mxu0 0
      %6013 = vmatmul.mubr.bf16.gmra.mxu0 %v5844
      %v6014 = vpop.f32.mrf.mxu0
      %v6015 = vadd.f32 0.0, %v6014
      %v6016 = vpop.f32.mrf.mxu0
      %v6017 = vpop.f32.mrf.mxu0
      %v6018 = vadd.f32 0.0, %v6017
      %v6019 = vpop.f32.mrf.mxu0
      %6020 = vmatprep.mubr.bf16.mxu0 0
      %6021 = vmatmul.mubr.bf16.gmra.mxu0 %v5845
      %v6022 = vpop.f32.mrf.mxu0
      %v6023 = vadd.f32 0.0, %v6022
      %v6024 = vpop.f32.mrf.mxu0
      %v6025 = vpop.f32.mrf.mxu0
      %v6026 = vadd.f32 0.0, %v6025
      %v6027 = vpop.f32.mrf.mxu0
      %6028 = vmatprep.mubr.bf16.mxu0 0
      %6029 = vmatmul.mubr.bf16.gmra.mxu0 %v5846
      %v6030 = vpop.f32.mrf.mxu0
      %v6031 = vadd.f32 0.0, %v6030
      %v6032 = vpop.f32.mrf.mxu0
      %v6033 = vpop.f32.mrf.mxu0
      %v6034 = vadd.f32 0.0, %v6033
      %v6035 = vpop.f32.mrf.mxu0
      %6036 = vmatprep.mubr.bf16.mxu0 0
      %6037 = vmatmul.mubr.bf16.gmra.mxu0 %v5847
      %v6038 = vpop.f32.mrf.mxu0
      %v6039 = vadd.f32 0.0, %v6038
      %v6040 = vpop.f32.mrf.mxu0
      %v6041 = vpop.f32.mrf.mxu0
      %v6042 = vadd.f32 0.0, %v6041
      %v6043 = vpop.f32.mrf.mxu0
      %6044 = vmatprep.mubr.bf16.mxu0 0
      %6045 = vmatmul.mubr.bf16.gmra.mxu0 %v5848
      %v6046 = vpop.f32.mrf.mxu0
      %v6047 = vadd.f32 0.0, %v6046
      %v6048 = vpop.f32.mrf.mxu0
      %v6049 = vpop.f32.mrf.mxu0
      %v6050 = vadd.f32 0.0, %v6049
      %v6051 = vpop.f32.mrf.mxu0
      %6052 = vmatprep.mubr.bf16.mxu0 0
      %6053 = vmatmul.mubr.bf16.gmra.mxu0 %v5849
      %v6054 = vpop.f32.mrf.mxu0
      %v6055 = vadd.f32 0.0, %v6054
      %v6056 = vpop.f32.mrf.mxu0
      %v6057 = vpop.f32.mrf.mxu0
      %v6058 = vadd.f32 0.0, %v6057
      %v6059 = vpop.f32.mrf.mxu0
      %6060 = vmatprep.mubr.bf16.mxu0 0
      %6061 = vmatmul.mubr.bf16.gmra.mxu0 %v5850
      %v6062 = vpop.f32.mrf.mxu0
      %v6063 = vadd.f32 0.0, %v6062
      %v6064 = vpop.f32.mrf.mxu0
      %v6065 = vpop.f32.mrf.mxu0
      %v6066 = vadd.f32 0.0, %v6065
      %v6067 = vpop.f32.mrf.mxu0
      %6068 = vmatprep.mubr.bf16.mxu0 0
      %6069 = vmatmul.mubr.bf16.gmra.mxu0 %v5851
      %v6070 = vpop.f32.mrf.mxu0
      %v6071 = vadd.f32 0.0, %v6070
      %v6072 = vpop.f32.mrf.mxu0
      %v6073 = vpop.f32.mrf.mxu0
      %v6074 = vadd.f32 0.0, %v6073
      %v6075 = vpop.f32.mrf.mxu0
      %6076 = vdwg.mxu0
      %v6077 = vadd.f32 %v5579, %v5951
      %v6078 = vadd.f32 %v5580, %v5954
      %v6079 = vadd.f32 %v5581, %v5959
      %v6080 = vadd.f32 %v5582, %v5962
      %v6081 = vadd.f32 %v5583, %v5967
      %v6082 = vadd.f32 %v5584, %v5970
      %v6083 = vadd.f32 %v5585, %v5975
      %v6084 = vadd.f32 %v5586, %v5978
      %v6085 = vadd.f32 %v5587, %v5983
      %v6086 = vadd.f32 %v5588, %v5986
      %v6087 = vadd.f32 %v5589, %v5991
      %v6088 = vadd.f32 %v5590, %v5994
      %v6089 = vadd.f32 %v5591, %v5999
      %v6090 = vadd.f32 %v5592, %v6002
      %v6091 = vadd.f32 %v5593, %v6007
      %v6092 = vadd.f32 %v5594, %v6010
      %v6093 = vadd.f32 %v5595, %v6015
      %v6094 = vadd.f32 %v5596, %v6018
      %v6095 = vadd.f32 %v5597, %v6023
      %v6096 = vadd.f32 %v5598, %v6026
      %v6097 = vadd.f32 %v5599, %v6031
      %v6098 = vadd.f32 %v5600, %v6034
      %v6099 = vadd.f32 %v5601, %v6039
      %v6100 = vadd.f32 %v5602, %v6042
      %v6101 = vadd.f32 %v5603, %v6047
      %v6102 = vadd.f32 %v5604, %v6050
      %v6103 = vadd.f32 %v5605, %v6055
      %v6104 = vadd.f32 %v5606, %v6058
      %v6105 = vadd.f32 %v5607, %v6063
      %v6106 = vadd.f32 %v5608, %v6066
      %v6107 = vadd.f32 %v5609, %v6071
      %v6108 = vadd.f32 %v5610, %v6074
      %v6109 = vld [vmem:[%s4] sm:$0x1]
      %v6111 = vlaneseq
      %v6112 = vshrl.u32 %v6111, 7
      %v6113 = vsub.s32 0, %v6112
      %v6114 = vrot.slane %v6109, %v6113
      %v6116 = vadd.f32 %v6077, %v6114
      %v6117 = vadd.f32 %v6078, %v6114
      %v6118 = vadd.f32 %v6079, %v6114
      %v6119 = vadd.f32 %v6080, %v6114
      %v6120 = vadd.f32 %v6081, %v6114
      %v6121 = vadd.f32 %v6082, %v6114
      %v6122 = vadd.f32 %v6083, %v6114
      %v6123 = vadd.f32 %v6084, %v6114
      %v6124 = vadd.f32 %v6085, %v6114
      %v6125 = vadd.f32 %v6086, %v6114
      %v6126 = vadd.f32 %v6087, %v6114
      %v6127 = vadd.f32 %v6088, %v6114
      %v6128 = vadd.f32 %v6089, %v6114
      %v6129 = vadd.f32 %v6090, %v6114
      %v6130 = vadd.f32 %v6091, %v6114
      %v6131 = vadd.f32 %v6092, %v6114
      %v6132 = vadd.f32 %v6093, %v6114
      %v6133 = vadd.f32 %v6094, %v6114
      %v6134 = vadd.f32 %v6095, %v6114
      %v6135 = vadd.f32 %v6096, %v6114
      %v6136 = vadd.f32 %v6097, %v6114
      %v6137 = vadd.f32 %v6098, %v6114
      %v6138 = vadd.f32 %v6099, %v6114
      %v6139 = vadd.f32 %v6100, %v6114
      %v6140 = vadd.f32 %v6101, %v6114
      %v6141 = vadd.f32 %v6102, %v6114
      %v6142 = vadd.f32 %v6103, %v6114
      %v6143 = vadd.f32 %v6104, %v6114
      %v6144 = vadd.f32 %v6105, %v6114
      %v6145 = vadd.f32 %v6106, %v6114
      %v6146 = vadd.f32 %v6107, %v6114
      %v6147 = vadd.f32 %v6108, %v6114
      %vm6148 = vcmp.gt.f32.partialorder %v6116, 0.0
      %vm6149 = vcmp.gt.f32.partialorder %v6117, 0.0
      %vm6150 = vcmp.gt.f32.partialorder %v6118, 0.0
      %vm6151 = vcmp.gt.f32.partialorder %v6119, 0.0
      %vm6152 = vcmp.gt.f32.partialorder %v6120, 0.0
      %vm6153 = vcmp.gt.f32.partialorder %v6121, 0.0
      %vm6154 = vcmp.gt.f32.partialorder %v6122, 0.0
      %vm6155 = vcmp.gt.f32.partialorder %v6123, 0.0
      %vm6156 = vcmp.gt.f32.partialorder %v6124, 0.0
      %vm6157 = vcmp.gt.f32.partialorder %v6125, 0.0
      %vm6158 = vcmp.gt.f32.partialorder %v6126, 0.0
      %vm6159 = vcmp.gt.f32.partialorder %v6127, 0.0
      %vm6160 = vcmp.gt.f32.partialorder %v6128, 0.0
      %vm6161 = vcmp.gt.f32.partialorder %v6129, 0.0
      %vm6162 = vcmp.gt.f32.partialorder %v6130, 0.0
      %vm6163 = vcmp.gt.f32.partialorder %v6131, 0.0
      %vm6164 = vcmp.gt.f32.partialorder %v6132, 0.0
      %vm6165 = vcmp.gt.f32.partialorder %v6133, 0.0
      %vm6166 = vcmp.gt.f32.partialorder %v6134, 0.0
      %vm6167 = vcmp.gt.f32.partialorder %v6135, 0.0
      %vm6168 = vcmp.gt.f32.partialorder %v6136, 0.0
      %vm6169 = vcmp.gt.f32.partialorder %v6137, 0.0
      %vm6170 = vcmp.gt.f32.partialorder %v6138, 0.0
      %vm6171 = vcmp.gt.f32.partialorder %v6139, 0.0
      %vm6172 = vcmp.gt.f32.partialorder %v6140, 0.0
      %vm6173 = vcmp.gt.f32.partialorder %v6141, 0.0
      %vm6174 = vcmp.gt.f32.partialorder %v6142, 0.0
      %vm6175 = vcmp.gt.f32.partialorder %v6143, 0.0
      %vm6176 = vcmp.gt.f32.partialorder %v6144, 0.0
      %vm6177 = vcmp.gt.f32.partialorder %v6145, 0.0
      %vm6178 = vcmp.gt.f32.partialorder %v6146, 0.0
      %vm6179 = vcmp.gt.f32.partialorder %v6147, 0.0
      %v6180 = vmul.f32 %v6116, 0.1
      %v6181 = vmul.f32 %v6117, 0.1
      %v6182 = vmul.f32 %v6118, 0.1
      %v6183 = vmul.f32 %v6119, 0.1
      %v6184 = vmul.f32 %v6120, 0.1
      %v6185 = vmul.f32 %v6121, 0.1
      %v6186 = vmul.f32 %v6122, 0.1
      %v6187 = vmul.f32 %v6123, 0.1
      %v6188 = vmul.f32 %v6124, 0.1
      %v6189 = vmul.f32 %v6125, 0.1
      %v6190 = vmul.f32 %v6126, 0.1
      %v6191 = vmul.f32 %v6127, 0.1
      %v6192 = vmul.f32 %v6128, 0.1
      %v6193 = vmul.f32 %v6129, 0.1
      %v6194 = vmul.f32 %v6130, 0.1
      %v6195 = vmul.f32 %v6131, 0.1
      %v6196 = vmul.f32 %v6132, 0.1
      %v6197 = vmul.f32 %v6133, 0.1
      %v6198 = vmul.f32 %v6134, 0.1
      %v6199 = vmul.f32 %v6135, 0.1
      %v6200 = vmul.f32 %v6136, 0.1
      %v6201 = vmul.f32 %v6137, 0.1
      %v6202 = vmul.f32 %v6138, 0.1
      %v6203 = vmul.f32 %v6139, 0.1
      %v6204 = vmul.f32 %v6140, 0.1
      %v6205 = vmul.f32 %v6141, 0.1
      %v6206 = vmul.f32 %v6142, 0.1
      %v6207 = vmul.f32 %v6143, 0.1
      %v6208 = vmul.f32 %v6144, 0.1
      %v6209 = vmul.f32 %v6145, 0.1
      %v6210 = vmul.f32 %v6146, 0.1
      %v6211 = vmul.f32 %v6147, 0.1
      %v6212 = vsel %vm6148, %v6116, %v6180
      %v6213 = vsel %vm6149, %v6117, %v6181
      %v6214 = vsel %vm6150, %v6118, %v6182
      %v6215 = vsel %vm6151, %v6119, %v6183
      %v6216 = vsel %vm6152, %v6120, %v6184
      %v6217 = vsel %vm6153, %v6121, %v6185
      %v6218 = vsel %vm6154, %v6122, %v6186
      %v6219 = vsel %vm6155, %v6123, %v6187
      %v6220 = vsel %vm6156, %v6124, %v6188
      %v6221 = vsel %vm6157, %v6125, %v6189
      %v6222 = vsel %vm6158, %v6126, %v6190
      %v6223 = vsel %vm6159, %v6127, %v6191
      %v6224 = vsel %vm6160, %v6128, %v6192
      %v6225 = vsel %vm6161, %v6129, %v6193
      %v6226 = vsel %vm6162, %v6130, %v6194
      %v6227 = vsel %vm6163, %v6131, %v6195
      %v6228 = vsel %vm6164, %v6132, %v6196
      %v6229 = vsel %vm6165, %v6133, %v6197
      %v6230 = vsel %vm6166, %v6134, %v6198
      %v6231 = vsel %vm6167, %v6135, %v6199
      %v6232 = vsel %vm6168, %v6136, %v6200
      %v6233 = vsel %vm6169, %v6137, %v6201
      %v6234 = vsel %vm6170, %v6138, %v6202
      %v6235 = vsel %vm6171, %v6139, %v6203
      %v6236 = vsel %vm6172, %v6140, %v6204
      %v6237 = vsel %vm6173, %v6141, %v6205
      %v6238 = vsel %vm6174, %v6142, %v6206
      %v6239 = vsel %vm6175, %v6143, %v6207
      %v6240 = vsel %vm6176, %v6144, %v6208
      %v6241 = vsel %vm6177, %v6145, %v6209
      %v6242 = vsel %vm6178, %v6146, %v6210
      %v6243 = vsel %vm6179, %v6147, %v6211
      %v6244 = vpack.c.bf16 %v6213, %v6212
      %v6245 = vpack.c.bf16 %v6215, %v6214
      %v6246 = vpack.c.bf16 %v6217, %v6216
      %v6247 = vpack.c.bf16 %v6219, %v6218
      %v6248 = vpack.c.bf16 %v6221, %v6220
      %v6249 = vpack.c.bf16 %v6223, %v6222
      %v6250 = vpack.c.bf16 %v6225, %v6224
      %v6251 = vpack.c.bf16 %v6227, %v6226
      %v6252 = vpack.c.bf16 %v6229, %v6228
      %v6253 = vpack.c.bf16 %v6231, %v6230
      %v6254 = vpack.c.bf16 %v6233, %v6232
      %v6255 = vpack.c.bf16 %v6235, %v6234
      %v6256 = vpack.c.bf16 %v6237, %v6236
      %v6257 = vpack.c.bf16 %v6239, %v6238
      %v6258 = vpack.c.bf16 %v6241, %v6240
      %v6259 = vpack.c.bf16 %v6243, %v6242
      %v6260 = vld [vmem:[%s5] sm:$0xf]
      %v6261 = vld [vmem:[%s5 + $0x4] sm:$0xf]
      %v6262 = vld [vmem:[%s5 + $0x8] sm:$0xf]
      %v6263 = vld [vmem:[%s5 + $0xc] sm:$0xf]
      %v6264 = vld [vmem:[%s5 + $0x10] sm:$0xf]
      %v6265 = vld [vmem:[%s5 + $0x14] sm:$0xf]
      %v6266 = vld [vmem:[%s5 + $0x18] sm:$0xf]
      %v6267 = vld [vmem:[%s5 + $0x1c] sm:$0xf]
      %v6268 = vld [vmem:[%s5 + $0x20] sm:$0xf]
      %v6269 = vld [vmem:[%s5 + $0x24] sm:$0xf]
      %v6270 = vld [vmem:[%s5 + $0x28] sm:$0xf]
      %v6271 = vld [vmem:[%s5 + $0x2c] sm:$0xf]
      %v6272 = vld [vmem:[%s5 + $0x30] sm:$0xf]
      %v6273 = vld [vmem:[%s5 + $0x34] sm:$0xf]
      %v6274 = vld [vmem:[%s5 + $0x38] sm:$0xf]
      %v6275 = vld [vmem:[%s5 + $0x3c] sm:$0xf]
      %v6276 = vld [vmem:[%s6] sm:$0x1]
      %v6278 = vlaneseq
      %v6279 = vshrl.u32 %v6278, 7
      %v6280 = vsub.s32 0, %v6279
      %v6281 = vrot.slane %v6276, %v6280
      %v6299 = vunpack.c.l.b16 %v6260
      %v6300 = vunpack.c.l.b16 %v6261
      %v6301 = vunpack.c.l.b16 %v6262
      %v6302 = vunpack.c.l.b16 %v6263
      %v6303 = vunpack.c.l.b16 %v6264
      %v6304 = vunpack.c.l.b16 %v6265
      %v6305 = vunpack.c.l.b16 %v6266
      %v6306 = vunpack.c.l.b16 %v6267
      %v6307 = vunpack.c.l.b16 %v6268
      %v6308 = vunpack.c.l.b16 %v6269
      %v6309 = vunpack.c.l.b16 %v6270
      %v6310 = vunpack.c.l.b16 %v6271
      %v6311 = vunpack.c.l.b16 %v6272
      %v6312 = vunpack.c.l.b16 %v6273
      %v6313 = vunpack.c.l.b16 %v6274
      %v6314 = vunpack.c.l.b16 %v6275
      %v6315 = vpack.c.b16 %v6300, %v6299
      %v6316 = vpack.c.b16 %v6302, %v6301
      %v6317 = vpack.c.b16 %v6304, %v6303
      %v6318 = vpack.c.b16 %v6306, %v6305
      %v6319 = vpack.c.b16 %v6308, %v6307
      %v6320 = vpack.c.b16 %v6310, %v6309
      %v6321 = vpack.c.b16 %v6312, %v6311
      %v6322 = vpack.c.b16 %v6314, %v6313
      %6331 = vmatprep.subr.bf16.mxu0 0
      %6332 = vmatpush1.bf16.msra.mxu0 %v6322
      %6333 = vmatprep.subr.bf16.mxu0 0
      %6334 = vmatpush1.bf16.msra.mxu0 %v6321
      %6335 = vmatprep.subr.bf16.mxu0 0
      %6336 = vmatpush1.bf16.msra.mxu0 %v6320
      %6337 = vmatprep.subr.bf16.mxu0 0
      %6338 = vmatpush1.bf16.msra.mxu0 %v6319
      %6339 = vmatprep.subr.bf16.mxu0 0
      %6340 = vmatpush1.bf16.msra.mxu0 %v6318
      %6341 = vmatprep.subr.bf16.mxu0 0
      %6342 = vmatpush1.bf16.msra.mxu0 %v6317
      %6343 = vmatprep.subr.bf16.mxu0 0
      %6344 = vmatpush1.bf16.msra.mxu0 %v6316
      %6345 = vmatprep.subr.bf16.mxu0 0
      %6346 = vmatpush1.bf16.msra.mxu0 %v6315
      %6347 = vmatprep.subr.bf16.mxu0 0
      %6348 = vmatpush2.bf16.msra.mxu0 0
      %6349 = vmatprep.subr.bf16.mxu0 0
      %6350 = vmatpush2.bf16.msra.mxu0 0
      %6351 = vmatprep.subr.bf16.mxu0 0
      %6352 = vmatpush2.bf16.msra.mxu0 0
      %6353 = vmatprep.subr.bf16.mxu0 0
      %6354 = vmatpush2.bf16.msra.mxu0 0
      %6355 = vmatprep.subr.bf16.mxu0 0
      %6356 = vmatpush2.bf16.msra.mxu0 0
      %6357 = vmatprep.subr.bf16.mxu0 0
      %6358 = vmatpush2.bf16.msra.mxu0 0
      %6359 = vmatprep.subr.bf16.mxu0 0
      %6360 = vmatpush2.bf16.msra.mxu0 0
      %6361 = vmatprep.subr.bf16.mxu0 0
      %6362 = vmatpush2.bf16.msra.mxu0 0
      %6363 = vmatprep.mubr.bf16.mxu0 0
      %6364 = vmatmul.mubr.bf16.gmra.mxu0 %v6244
      %v6365 = vpop.f32.mrf.mxu0
      %v6366 = vadd.f32 %v6281, %v6365
      %v6367 = vpop.f32.mrf.mxu0
      %v6368 = vpop.f32.mrf.mxu0
      %v6369 = vadd.f32 %v6281, %v6368
      %v6370 = vpop.f32.mrf.mxu0
      %6371 = vmatprep.mubr.bf16.mxu0 0
      %6372 = vmatmul.mubr.bf16.gmra.mxu0 %v6245
      %v6373 = vpop.f32.mrf.mxu0
      %v6374 = vadd.f32 %v6281, %v6373
      %v6375 = vpop.f32.mrf.mxu0
      %v6376 = vpop.f32.mrf.mxu0
      %v6377 = vadd.f32 %v6281, %v6376
      %v6378 = vpop.f32.mrf.mxu0
      %6379 = vmatprep.mubr.bf16.mxu0 0
      %6380 = vmatmul.mubr.bf16.gmra.mxu0 %v6246
      %v6381 = vpop.f32.mrf.mxu0
      %v6382 = vadd.f32 %v6281, %v6381
      %v6383 = vpop.f32.mrf.mxu0
      %v6384 = vpop.f32.mrf.mxu0
      %v6385 = vadd.f32 %v6281, %v6384
      %v6386 = vpop.f32.mrf.mxu0
      %6387 = vmatprep.mubr.bf16.mxu0 0
      %6388 = vmatmul.mubr.bf16.gmra.mxu0 %v6247
      %v6389 = vpop.f32.mrf.mxu0
      %v6390 = vadd.f32 %v6281, %v6389
      %v6391 = vpop.f32.mrf.mxu0
      %v6392 = vpop.f32.mrf.mxu0
      %v6393 = vadd.f32 %v6281, %v6392
      %v6394 = vpop.f32.mrf.mxu0
      %6395 = vmatprep.mubr.bf16.mxu0 0
      %6396 = vmatmul.mubr.bf16.gmra.mxu0 %v6248
      %v6397 = vpop.f32.mrf.mxu0
      %v6398 = vadd.f32 %v6281, %v6397
      %v6399 = vpop.f32.mrf.mxu0
      %v6400 = vpop.f32.mrf.mxu0
      %v6401 = vadd.f32 %v6281, %v6400
      %v6402 = vpop.f32.mrf.mxu0
      %6403 = vmatprep.mubr.bf16.mxu0 0
      %6404 = vmatmul.mubr.bf16.gmra.mxu0 %v6249
      %v6405 = vpop.f32.mrf.mxu0
      %v6406 = vadd.f32 %v6281, %v6405
      %v6407 = vpop.f32.mrf.mxu0
      %v6408 = vpop.f32.mrf.mxu0
      %v6409 = vadd.f32 %v6281, %v6408
      %v6410 = vpop.f32.mrf.mxu0
      %6411 = vmatprep.mubr.bf16.mxu0 0
      %6412 = vmatmul.mubr.bf16.gmra.mxu0 %v6250
      %v6413 = vpop.f32.mrf.mxu0
      %v6414 = vadd.f32 %v6281, %v6413
      %v6415 = vpop.f32.mrf.mxu0
      %v6416 = vpop.f32.mrf.mxu0
      %v6417 = vadd.f32 %v6281, %v6416
      %v6418 = vpop.f32.mrf.mxu0
      %6419 = vmatprep.mubr.bf16.mxu0 0
      %6420 = vmatmul.mubr.bf16.gmra.mxu0 %v6251
      %v6421 = vpop.f32.mrf.mxu0
      %v6422 = vadd.f32 %v6281, %v6421
      %v6423 = vpop.f32.mrf.mxu0
      %v6424 = vpop.f32.mrf.mxu0
      %v6425 = vadd.f32 %v6281, %v6424
      %v6426 = vpop.f32.mrf.mxu0
      %6427 = vmatprep.mubr.bf16.mxu0 0
      %6428 = vmatmul.mubr.bf16.gmra.mxu0 %v6252
      %v6429 = vpop.f32.mrf.mxu0
      %v6430 = vadd.f32 %v6281, %v6429
      %v6431 = vpop.f32.mrf.mxu0
      %v6432 = vpop.f32.mrf.mxu0
      %v6433 = vadd.f32 %v6281, %v6432
      %v6434 = vpop.f32.mrf.mxu0
      %6435 = vmatprep.mubr.bf16.mxu0 0
      %6436 = vmatmul.mubr.bf16.gmra.mxu0 %v6253
      %v6437 = vpop.f32.mrf.mxu0
      %v6438 = vadd.f32 %v6281, %v6437
      %v6439 = vpop.f32.mrf.mxu0
      %v6440 = vpop.f32.mrf.mxu0
      %v6441 = vadd.f32 %v6281, %v6440
      %v6442 = vpop.f32.mrf.mxu0
      %6443 = vmatprep.mubr.bf16.mxu0 0
      %6444 = vmatmul.mubr.bf16.gmra.mxu0 %v6254
      %v6445 = vpop.f32.mrf.mxu0
      %v6446 = vadd.f32 %v6281, %v6445
      %v6447 = vpop.f32.mrf.mxu0
      %v6448 = vpop.f32.mrf.mxu0
      %v6449 = vadd.f32 %v6281, %v6448
      %v6450 = vpop.f32.mrf.mxu0
      %6451 = vmatprep.mubr.bf16.mxu0 0
      %6452 = vmatmul.mubr.bf16.gmra.mxu0 %v6255
      %v6453 = vpop.f32.mrf.mxu0
      %v6454 = vadd.f32 %v6281, %v6453
      %v6455 = vpop.f32.mrf.mxu0
      %v6456 = vpop.f32.mrf.mxu0
      %v6457 = vadd.f32 %v6281, %v6456
      %v6458 = vpop.f32.mrf.mxu0
      %6459 = vmatprep.mubr.bf16.mxu0 0
      %6460 = vmatmul.mubr.bf16.gmra.mxu0 %v6256
      %v6461 = vpop.f32.mrf.mxu0
      %v6462 = vadd.f32 %v6281, %v6461
      %v6463 = vpop.f32.mrf.mxu0
      %v6464 = vpop.f32.mrf.mxu0
      %v6465 = vadd.f32 %v6281, %v6464
      %v6466 = vpop.f32.mrf.mxu0
      %6467 = vmatprep.mubr.bf16.mxu0 0
      %6468 = vmatmul.mubr.bf16.gmra.mxu0 %v6257
      %v6469 = vpop.f32.mrf.mxu0
      %v6470 = vadd.f32 %v6281, %v6469
      %v6471 = vpop.f32.mrf.mxu0
      %v6472 = vpop.f32.mrf.mxu0
      %v6473 = vadd.f32 %v6281, %v6472
      %v6474 = vpop.f32.mrf.mxu0
      %6475 = vmatprep.mubr.bf16.mxu0 0
      %6476 = vmatmul.mubr.bf16.gmra.mxu0 %v6258
      %v6477 = vpop.f32.mrf.mxu0
      %v6478 = vadd.f32 %v6281, %v6477
      %v6479 = vpop.f32.mrf.mxu0
      %v6480 = vpop.f32.mrf.mxu0
      %v6481 = vadd.f32 %v6281, %v6480
      %v6482 = vpop.f32.mrf.mxu0
      %6483 = vmatprep.mubr.bf16.mxu0 0
      %6484 = vmatmul.mubr.bf16.gmra.mxu0 %v6259
      %v6485 = vpop.f32.mrf.mxu0
      %v6486 = vadd.f32 %v6281, %v6485
      %v6487 = vpop.f32.mrf.mxu0
      %v6488 = vpop.f32.mrf.mxu0
      %v6489 = vadd.f32 %v6281, %v6488
      %v6490 = vpop.f32.mrf.mxu0
      %6491 = vdwg.mxu0
      %vm6492 = vcmp.gt.f32.partialorder %v6366, 0.0
      %vm6493 = vcmp.gt.f32.partialorder %v6369, 0.0
      %vm6494 = vcmp.gt.f32.partialorder %v6374, 0.0
      %vm6495 = vcmp.gt.f32.partialorder %v6377, 0.0
      %vm6496 = vcmp.gt.f32.partialorder %v6382, 0.0
      %vm6497 = vcmp.gt.f32.partialorder %v6385, 0.0
      %vm6498 = vcmp.gt.f32.partialorder %v6390, 0.0
      %vm6499 = vcmp.gt.f32.partialorder %v6393, 0.0
      %vm6500 = vcmp.gt.f32.partialorder %v6398, 0.0
      %vm6501 = vcmp.gt.f32.partialorder %v6401, 0.0
      %vm6502 = vcmp.gt.f32.partialorder %v6406, 0.0
      %vm6503 = vcmp.gt.f32.partialorder %v6409, 0.0
      %vm6504 = vcmp.gt.f32.partialorder %v6414, 0.0
      %vm6505 = vcmp.gt.f32.partialorder %v6417, 0.0
      %vm6506 = vcmp.gt.f32.partialorder %v6422, 0.0
      %vm6507 = vcmp.gt.f32.partialorder %v6425, 0.0
      %vm6508 = vcmp.gt.f32.partialorder %v6430, 0.0
      %vm6509 = vcmp.gt.f32.partialorder %v6433, 0.0
      %vm6510 = vcmp.gt.f32.partialorder %v6438, 0.0
      %vm6511 = vcmp.gt.f32.partialorder %v6441, 0.0
      %vm6512 = vcmp.gt.f32.partialorder %v6446, 0.0
      %vm6513 = vcmp.gt.f32.partialorder %v6449, 0.0
      %vm6514 = vcmp.gt.f32.partialorder %v6454, 0.0
      %vm6515 = vcmp.gt.f32.partialorder %v6457, 0.0
      %vm6516 = vcmp.gt.f32.partialorder %v6462, 0.0
      %vm6517 = vcmp.gt.f32.partialorder %v6465, 0.0
      %vm6518 = vcmp.gt.f32.partialorder %v6470, 0.0
      %vm6519 = vcmp.gt.f32.partialorder %v6473, 0.0
      %vm6520 = vcmp.gt.f32.partialorder %v6478, 0.0
      %vm6521 = vcmp.gt.f32.partialorder %v6481, 0.0
      %vm6522 = vcmp.gt.f32.partialorder %v6486, 0.0
      %vm6523 = vcmp.gt.f32.partialorder %v6489, 0.0
      %v6524 = vmul.f32 %v6366, 0.1
      %v6525 = vmul.f32 %v6369, 0.1
      %v6526 = vmul.f32 %v6374, 0.1
      %v6527 = vmul.f32 %v6377, 0.1
      %v6528 = vmul.f32 %v6382, 0.1
      %v6529 = vmul.f32 %v6385, 0.1
      %v6530 = vmul.f32 %v6390, 0.1
      %v6531 = vmul.f32 %v6393, 0.1
      %v6532 = vmul.f32 %v6398, 0.1
      %v6533 = vmul.f32 %v6401, 0.1
      %v6534 = vmul.f32 %v6406, 0.1
      %v6535 = vmul.f32 %v6409, 0.1
      %v6536 = vmul.f32 %v6414, 0.1
      %v6537 = vmul.f32 %v6417, 0.1
      %v6538 = vmul.f32 %v6422, 0.1
      %v6539 = vmul.f32 %v6425, 0.1
      %v6540 = vmul.f32 %v6430, 0.1
      %v6541 = vmul.f32 %v6433, 0.1
      %v6542 = vmul.f32 %v6438, 0.1
      %v6543 = vmul.f32 %v6441, 0.1
      %v6544 = vmul.f32 %v6446, 0.1
      %v6545 = vmul.f32 %v6449, 0.1
      %v6546 = vmul.f32 %v6454, 0.1
      %v6547 = vmul.f32 %v6457, 0.1
      %v6548 = vmul.f32 %v6462, 0.1
      %v6549 = vmul.f32 %v6465, 0.1
      %v6550 = vmul.f32 %v6470, 0.1
      %v6551 = vmul.f32 %v6473, 0.1
      %v6552 = vmul.f32 %v6478, 0.1
      %v6553 = vmul.f32 %v6481, 0.1
      %v6554 = vmul.f32 %v6486, 0.1
      %v6555 = vmul.f32 %v6489, 0.1
      %v6556 = vsel %vm6492, %v6366, %v6524
      %v6557 = vsel %vm6493, %v6369, %v6525
      %v6558 = vsel %vm6494, %v6374, %v6526
      %v6559 = vsel %vm6495, %v6377, %v6527
      %v6560 = vsel %vm6496, %v6382, %v6528
      %v6561 = vsel %vm6497, %v6385, %v6529
      %v6562 = vsel %vm6498, %v6390, %v6530
      %v6563 = vsel %vm6499, %v6393, %v6531
      %v6564 = vsel %vm6500, %v6398, %v6532
      %v6565 = vsel %vm6501, %v6401, %v6533
      %v6566 = vsel %vm6502, %v6406, %v6534
      %v6567 = vsel %vm6503, %v6409, %v6535
      %v6568 = vsel %vm6504, %v6414, %v6536
      %v6569 = vsel %vm6505, %v6417, %v6537
      %v6570 = vsel %vm6506, %v6422, %v6538
      %v6571 = vsel %vm6507, %v6425, %v6539
      %v6572 = vsel %vm6508, %v6430, %v6540
      %v6573 = vsel %vm6509, %v6433, %v6541
      %v6574 = vsel %vm6510, %v6438, %v6542
      %v6575 = vsel %vm6511, %v6441, %v6543
      %v6576 = vsel %vm6512, %v6446, %v6544
      %v6577 = vsel %vm6513, %v6449, %v6545
      %v6578 = vsel %vm6514, %v6454, %v6546
      %v6579 = vsel %vm6515, %v6457, %v6547
      %v6580 = vsel %vm6516, %v6462, %v6548
      %v6581 = vsel %vm6517, %v6465, %v6549
      %v6582 = vsel %vm6518, %v6470, %v6550
      %v6583 = vsel %vm6519, %v6473, %v6551
      %v6584 = vsel %vm6520, %v6478, %v6552
      %v6585 = vsel %vm6521, %v6481, %v6553
      %v6586 = vsel %vm6522, %v6486, %v6554
      %v6587 = vsel %vm6523, %v6489, %v6555
      %6588 = vst [vmem:[%s278] sm:$0xf] 0
      %6589 = vst [vmem:[%s278 + $0x4] sm:$0xf] 0
      %6590 = vst [vmem:[%s278 + $0x8] sm:$0x1] 0
      %6591 = vst [vmem:[%s278 + $0xc] sm:$0xf] 0
      %6592 = vst [vmem:[%s278 + $0x10] sm:$0xf] 0
      %6593 = vst [vmem:[%s278 + $0x14] sm:$0x1] 0
      %6594 = vst [vmem:[%s278 + $0x18] sm:$0xf] 0
      %6595 = vst [vmem:[%s278 + $0x1c] sm:$0xf] 0
      %6596 = vst [vmem:[%s278 + $0x20] sm:$0x1] 0
      %6597 = vst [vmem:[%s278 + $0x24] sm:$0xf] 0
      %6598 = vst [vmem:[%s278 + $0x28] sm:$0xf] 0
      %6599 = vst [vmem:[%s278 + $0x2c] sm:$0x1] 0
      %6600 = vst [vmem:[%s278 + $0x30] sm:$0xf] 0
      %6601 = vst [vmem:[%s278 + $0x34] sm:$0xf] 0
      %6602 = vst [vmem:[%s278 + $0x38] sm:$0x1] 0
      %6603 = vst [vmem:[%s278 + $0x3c] sm:$0xf] 0
      %6604 = vst [vmem:[%s278 + $0x40] sm:$0xf] 0
      %6605 = vst [vmem:[%s278 + $0x44] sm:$0x1] 0
      %6606 = vst [vmem:[%s278 + $0x48] sm:$0xf] 0
      %6607 = vst [vmem:[%s278 + $0x4c] sm:$0xf] 0
      %6608 = vst [vmem:[%s278 + $0x50] sm:$0x1] 0
      %6609 = vst [vmem:[%s278 + $0x54] sm:$0xf] 0
      %6610 = vst [vmem:[%s278 + $0x58] sm:$0xf] 0
      %6611 = vst [vmem:[%s278 + $0x5c] sm:$0x1] 0
      %6612 = vst [vmem:[%s278 + $0x60] sm:$0xf] 0
      %6613 = vst [vmem:[%s278 + $0x64] sm:$0xf] 0
      %6614 = vst [vmem:[%s278 + $0x68] sm:$0x1] 0
      %6615 = vst [vmem:[%s278 + $0x6c] sm:$0xf] 0
      %6616 = vst [vmem:[%s278 + $0x70] sm:$0xf] 0
      %6617 = vst [vmem:[%s278 + $0x74] sm:$0x1] 0
      %6618 = vst [vmem:[%s278 + $0x78] sm:$0xf] 0
      %6619 = vst [vmem:[%s278 + $0x7c] sm:$0xf] 0
      %6620 = vst [vmem:[%s278 + $0x80] sm:$0x1] 0
      %6621 = vst [vmem:[%s278 + $0x84] sm:$0xf] 0
      %6622 = vst [vmem:[%s278 + $0x88] sm:$0xf] 0
      %6623 = vst [vmem:[%s278 + $0x8c] sm:$0x1] 0
      %6624 = vst [vmem:[%s278 + $0x90] sm:$0xf] 0
      %6625 = vst [vmem:[%s278 + $0x94] sm:$0xf] 0
      %6626 = vst [vmem:[%s278 + $0x98] sm:$0x1] 0
      %6627 = vst [vmem:[%s278 + $0x9c] sm:$0xf] 0
      %6628 = vst [vmem:[%s278 + $0xa0] sm:$0xf] 0
      %6629 = vst [vmem:[%s278 + $0xa4] sm:$0x1] 0
      %6630 = vst [vmem:[%s278 + $0xa8] sm:$0xf] 0
      %6631 = vst [vmem:[%s278 + $0xac] sm:$0xf] 0
      %6632 = vst [vmem:[%s278 + $0xb0] sm:$0x1] 0
      %6633 = vst [vmem:[%s278 + $0xb4] sm:$0xf] 0
      %6634 = vst [vmem:[%s278 + $0xb8] sm:$0xf] 0
      %6635 = vst [vmem:[%s278 + $0xbc] sm:$0x1] 0
      %6636 = vst [vmem:[%s278 + $0xc0] sm:$0xf] 0
      %6637 = vst [vmem:[%s278 + $0xc4] sm:$0xf] 0
      %6638 = vst [vmem:[%s278 + $0xc8] sm:$0x1] 0
      %6639 = vst [vmem:[%s278 + $0xcc] sm:$0xf] 0
      %6640 = vst [vmem:[%s278 + $0xd0] sm:$0xf] 0
      %6641 = vst [vmem:[%s278 + $0xd4] sm:$0x1] 0
      %v6642 = vpack.c.bf16 %v6557, %v6556
      %v6643 = vpack.c.bf16 %v6559, %v6558
      %v6644 = vpack.c.bf16 %v6561, %v6560
      %v6645 = vpack.c.bf16 %v6563, %v6562
      %v6646 = vpack.c.bf16 %v6565, %v6564
      %v6647 = vpack.c.bf16 %v6567, %v6566
      %v6648 = vpack.c.bf16 %v6569, %v6568
      %v6649 = vpack.c.bf16 %v6571, %v6570
      %v6650 = vpack.c.bf16 %v6573, %v6572
      %v6651 = vpack.c.bf16 %v6575, %v6574
      %v6652 = vpack.c.bf16 %v6577, %v6576
      %v6653 = vpack.c.bf16 %v6579, %v6578
      %v6654 = vpack.c.bf16 %v6581, %v6580
      %v6655 = vpack.c.bf16 %v6583, %v6582
      %v6656 = vpack.c.bf16 %v6585, %v6584
      %v6657 = vpack.c.bf16 %v6587, %v6586
      %v6674 = vunpack.c.l.b16 %v6642
      %v6675 = vunpack.c.h.b16 %v6642
      %v6676 = vunpack.c.l.b16 %v6643
      %v6677 = vunpack.c.h.b16 %v6643
      %v6678 = vunpack.c.l.b16 %v6644
      %v6679 = vunpack.c.h.b16 %v6644
      %v6680 = vunpack.c.l.b16 %v6645
      %v6681 = vunpack.c.h.b16 %v6645
      %v6682 = vunpack.c.l.b16 %v6646
      %v6683 = vunpack.c.h.b16 %v6646
      %v6684 = vunpack.c.l.b16 %v6647
      %v6685 = vunpack.c.h.b16 %v6647
      %v6686 = vunpack.c.l.b16 %v6648
      %v6687 = vunpack.c.h.b16 %v6648
      %v6688 = vunpack.c.l.b16 %v6649
      %v6689 = vunpack.c.h.b16 %v6649
      %v6690 = vunpack.c.l.b16 %v6650
      %v6691 = vunpack.c.h.b16 %v6650
      %v6692 = vunpack.c.l.b16 %v6651
      %v6693 = vunpack.c.h.b16 %v6651
      %v6694 = vunpack.c.l.b16 %v6652
      %v6695 = vunpack.c.h.b16 %v6652
      %v6696 = vunpack.c.l.b16 %v6653
      %v6697 = vunpack.c.h.b16 %v6653
      %v6698 = vunpack.c.l.b16 %v6654
      %v6699 = vunpack.c.h.b16 %v6654
      %v6700 = vunpack.c.l.b16 %v6655
      %v6701 = vunpack.c.h.b16 %v6655
      %v6702 = vunpack.c.l.b16 %v6656
      %v6703 = vunpack.c.h.b16 %v6656
      %v6704 = vunpack.c.l.b16 %v6657
      %v6705 = vunpack.c.h.b16 %v6657
      %v6706 = vpack.c.b16 %v6674, %v6674
      %v6707 = vpack.c.b16 %v6675, %v6675
      %v6708 = vpack.c.b16 %v6676, %v6676
      %v6709 = vpack.c.b16 %v6677, %v6677
      %v6710 = vpack.c.b16 %v6678, %v6678
      %v6711 = vpack.c.b16 %v6679, %v6679
      %v6712 = vpack.c.b16 %v6680, %v6680
      %v6713 = vpack.c.b16 %v6681, %v6681
      %v6714 = vpack.c.b16 %v6682, %v6682
      %v6715 = vpack.c.b16 %v6683, %v6683
      %v6716 = vpack.c.b16 %v6684, %v6684
      %v6717 = vpack.c.b16 %v6685, %v6685
      %v6718 = vpack.c.b16 %v6686, %v6686
      %v6719 = vpack.c.b16 %v6687, %v6687
      %v6720 = vpack.c.b16 %v6688, %v6688
      %v6721 = vpack.c.b16 %v6689, %v6689
      %v6722 = vpack.c.b16 %v6690, %v6690
      %v6723 = vpack.c.b16 %v6691, %v6691
      %v6724 = vpack.c.b16 %v6692, %v6692
      %v6725 = vpack.c.b16 %v6693, %v6693
      %v6726 = vpack.c.b16 %v6694, %v6694
      %v6727 = vpack.c.b16 %v6695, %v6695
      %v6728 = vpack.c.b16 %v6696, %v6696
      %v6729 = vpack.c.b16 %v6697, %v6697
      %v6730 = vpack.c.b16 %v6698, %v6698
      %v6731 = vpack.c.b16 %v6699, %v6699
      %v6732 = vpack.c.b16 %v6700, %v6700
      %v6733 = vpack.c.b16 %v6701, %v6701
      %v6734 = vpack.c.b16 %v6702, %v6702
      %v6735 = vpack.c.b16 %v6703, %v6703
      %v6736 = vpack.c.b16 %v6704, %v6704
      %v6737 = vpack.c.b16 %v6705, %v6705
      %v6739 = vshrl.u32 %v6706, 16
      %v6741 = vrot.slane %v6739, 7
      %v6742 = vshll.u32 %v6706, 16
      %v6744 = vor.u32 %v6741, %v6742
      %v6745 = vrot.slane %v6741, 4
      %v6747 = vshrl.u32 %v6707, 16
      %v6749 = vrot.slane %v6747, 7
      %v6750 = vshll.u32 %v6707, 16
      %v6752 = vor.u32 %v6749, %v6750
      %v6753 = vsel %vm862, %v6745, %v6752
      %v6754 = vrot.slane %v6749, 4
      %v6756 = vshrl.u32 %v6708, 16
      %v6758 = vrot.slane %v6756, 7
      %v6759 = vshll.u32 %v6708, 16
      %v6761 = vor.u32 %v6758, %v6759
      %v6762 = vrot.slane %v6758, 4
      %v6764 = vshrl.u32 %v6709, 16
      %v6766 = vrot.slane %v6764, 7
      %v6767 = vshll.u32 %v6709, 16
      %v6769 = vor.u32 %v6766, %v6767
      %v6770 = vsel %vm862, %v6762, %v6769
      %v6771 = vrot.slane %v6766, 4
      %v6773 = vshrl.u32 %v6710, 16
      %v6775 = vrot.slane %v6773, 7
      %v6776 = vshll.u32 %v6710, 16
      %v6778 = vor.u32 %v6775, %v6776
      %v6779 = vrot.slane %v6775, 4
      %v6781 = vshrl.u32 %v6711, 16
      %v6783 = vrot.slane %v6781, 7
      %v6784 = vshll.u32 %v6711, 16
      %v6786 = vor.u32 %v6783, %v6784
      %v6787 = vsel %vm862, %v6779, %v6786
      %v6788 = vrot.slane %v6783, 4
      %v6790 = vshrl.u32 %v6712, 16
      %v6792 = vrot.slane %v6790, 7
      %v6793 = vshll.u32 %v6712, 16
      %v6795 = vor.u32 %v6792, %v6793
      %v6796 = vrot.slane %v6792, 4
      %v6798 = vshrl.u32 %v6713, 16
      %v6800 = vrot.slane %v6798, 7
      %v6801 = vshll.u32 %v6713, 16
      %v6803 = vor.u32 %v6800, %v6801
      %v6804 = vsel %vm862, %v6796, %v6803
      %v6805 = vrot.slane %v6800, 4
      %v6807 = vshrl.u32 %v6714, 16
      %v6809 = vrot.slane %v6807, 7
      %v6810 = vshll.u32 %v6714, 16
      %v6812 = vor.u32 %v6809, %v6810
      %v6813 = vrot.slane %v6809, 4
      %v6815 = vshrl.u32 %v6715, 16
      %v6817 = vrot.slane %v6815, 7
      %v6818 = vshll.u32 %v6715, 16
      %v6820 = vor.u32 %v6817, %v6818
      %v6821 = vsel %vm862, %v6813, %v6820
      %v6822 = vrot.slane %v6817, 4
      %v6824 = vshrl.u32 %v6716, 16
      %v6826 = vrot.slane %v6824, 7
      %v6827 = vshll.u32 %v6716, 16
      %v6829 = vor.u32 %v6826, %v6827
      %v6830 = vrot.slane %v6826, 4
      %v6832 = vshrl.u32 %v6717, 16
      %v6834 = vrot.slane %v6832, 7
      %v6835 = vshll.u32 %v6717, 16
      %v6837 = vor.u32 %v6834, %v6835
      %v6838 = vsel %vm862, %v6830, %v6837
      %v6839 = vrot.slane %v6834, 4
      %v6841 = vshrl.u32 %v6718, 16
      %v6843 = vrot.slane %v6841, 7
      %v6844 = vshll.u32 %v6718, 16
      %v6846 = vor.u32 %v6843, %v6844
      %v6847 = vrot.slane %v6843, 4
      %v6849 = vshrl.u32 %v6719, 16
      %v6851 = vrot.slane %v6849, 7
      %v6852 = vshll.u32 %v6719, 16
      %v6854 = vor.u32 %v6851, %v6852
      %v6855 = vsel %vm862, %v6847, %v6854
      %v6856 = vrot.slane %v6851, 4
      %v6858 = vshrl.u32 %v6720, 16
      %v6860 = vrot.slane %v6858, 7
      %v6861 = vshll.u32 %v6720, 16
      %v6863 = vor.u32 %v6860, %v6861
      %v6864 = vrot.slane %v6860, 4
      %v6866 = vshrl.u32 %v6721, 16
      %v6868 = vrot.slane %v6866, 7
      %v6869 = vshll.u32 %v6721, 16
      %v6871 = vor.u32 %v6868, %v6869
      %v6872 = vsel %vm862, %v6864, %v6871
      %v6873 = vrot.slane %v6868, 4
      %v6875 = vshrl.u32 %v6722, 16
      %v6877 = vrot.slane %v6875, 7
      %v6878 = vshll.u32 %v6722, 16
      %v6880 = vor.u32 %v6877, %v6878
      %v6881 = vrot.slane %v6877, 4
      %v6883 = vshrl.u32 %v6723, 16
      %v6885 = vrot.slane %v6883, 7
      %v6886 = vshll.u32 %v6723, 16
      %v6888 = vor.u32 %v6885, %v6886
      %v6889 = vsel %vm862, %v6881, %v6888
      %v6890 = vrot.slane %v6885, 4
      %v6892 = vshrl.u32 %v6724, 16
      %v6894 = vrot.slane %v6892, 7
      %v6895 = vshll.u32 %v6724, 16
      %v6897 = vor.u32 %v6894, %v6895
      %v6898 = vrot.slane %v6894, 4
      %v6900 = vshrl.u32 %v6725, 16
      %v6902 = vrot.slane %v6900, 7
      %v6903 = vshll.u32 %v6725, 16
      %v6905 = vor.u32 %v6902, %v6903
      %v6906 = vsel %vm862, %v6898, %v6905
      %v6907 = vrot.slane %v6902, 4
      %v6909 = vshrl.u32 %v6726, 16
      %v6911 = vrot.slane %v6909, 7
      %v6912 = vshll.u32 %v6726, 16
      %v6914 = vor.u32 %v6911, %v6912
      %v6915 = vrot.slane %v6911, 4
      %v6917 = vshrl.u32 %v6727, 16
      %v6919 = vrot.slane %v6917, 7
      %v6920 = vshll.u32 %v6727, 16
      %v6922 = vor.u32 %v6919, %v6920
      %v6923 = vsel %vm862, %v6915, %v6922
      %v6924 = vrot.slane %v6919, 4
      %v6926 = vshrl.u32 %v6728, 16
      %v6928 = vrot.slane %v6926, 7
      %v6929 = vshll.u32 %v6728, 16
      %v6931 = vor.u32 %v6928, %v6929
      %v6932 = vrot.slane %v6928, 4
      %v6934 = vshrl.u32 %v6729, 16
      %v6936 = vrot.slane %v6934, 7
      %v6937 = vshll.u32 %v6729, 16
      %v6939 = vor.u32 %v6936, %v6937
      %v6940 = vsel %vm862, %v6932, %v6939
      %v6941 = vrot.slane %v6936, 4
      %v6943 = vshrl.u32 %v6730, 16
      %v6945 = vrot.slane %v6943, 7
      %v6946 = vshll.u32 %v6730, 16
      %v6948 = vor.u32 %v6945, %v6946
      %v6949 = vrot.slane %v6945, 4
      %v6951 = vshrl.u32 %v6731, 16
      %v6953 = vrot.slane %v6951, 7
      %v6954 = vshll.u32 %v6731, 16
      %v6956 = vor.u32 %v6953, %v6954
      %v6957 = vsel %vm862, %v6949, %v6956
      %v6958 = vrot.slane %v6953, 4
      %v6960 = vshrl.u32 %v6732, 16
      %v6962 = vrot.slane %v6960, 7
      %v6963 = vshll.u32 %v6732, 16
      %v6965 = vor.u32 %v6962, %v6963
      %v6966 = vrot.slane %v6962, 4
      %v6968 = vshrl.u32 %v6733, 16
      %v6970 = vrot.slane %v6968, 7
      %v6971 = vshll.u32 %v6733, 16
      %v6973 = vor.u32 %v6970, %v6971
      %v6974 = vsel %vm862, %v6966, %v6973
      %v6975 = vrot.slane %v6970, 4
      %v6977 = vshrl.u32 %v6734, 16
      %v6979 = vrot.slane %v6977, 7
      %v6980 = vshll.u32 %v6734, 16
      %v6982 = vor.u32 %v6979, %v6980
      %v6983 = vrot.slane %v6979, 4
      %v6985 = vshrl.u32 %v6735, 16
      %v6987 = vrot.slane %v6985, 7
      %v6988 = vshll.u32 %v6735, 16
      %v6990 = vor.u32 %v6987, %v6988
      %v6991 = vsel %vm862, %v6983, %v6990
      %v6992 = vrot.slane %v6987, 4
      %v6994 = vshrl.u32 %v6736, 16
      %v6996 = vrot.slane %v6994, 7
      %v6997 = vshll.u32 %v6736, 16
      %v6999 = vor.u32 %v6996, %v6997
      %v7000 = vrot.slane %v6996, 4
      %v7002 = vshrl.u32 %v6737, 16
      %v7004 = vrot.slane %v7002, 7
      %v7005 = vshll.u32 %v6737, 16
      %v7007 = vor.u32 %v7004, %v7005
      %v7008 = vsel %vm862, %v7000, %v7007
      %v7009 = vrot.slane %v7004, 4
      %s7058 = scalar_lea.vmem %s278, 12
      %v7059 = vld [vmem:[%s7058] sm:$0xf]
      %v7060 = vsel %vm1186, %v6744, %v7059
      %7061 = vst [vmem:[%s7058] sm:$0xf] %v7060
      %7062 = vst [vmem:[%s7058 + $0x4] sm:$0xf] %v6753
      %v7063 = vld [vmem:[%s7058 + $0x8] sm:$0x1]
      %v7064 = vsel %vm1192, %v6754, %v7063
      %7065 = vst [vmem:[%s7058 + $0x8] sm:$0x1] %v7064
      %v7066 = vld [vmem:[%s7058 + $0xc] sm:$0xf]
      %v7067 = vsel %vm1186, %v6761, %v7066
      %7068 = vst [vmem:[%s7058 + $0xc] sm:$0xf] %v7067
      %7069 = vst [vmem:[%s7058 + $0x10] sm:$0xf] %v6770
      %v7070 = vld [vmem:[%s7058 + $0x14] sm:$0x1]
      %v7071 = vsel %vm1192, %v6771, %v7070
      %7072 = vst [vmem:[%s7058 + $0x14] sm:$0x1] %v7071
      %v7073 = vld [vmem:[%s7058 + $0x18] sm:$0xf]
      %v7074 = vsel %vm1186, %v6778, %v7073
      %7075 = vst [vmem:[%s7058 + $0x18] sm:$0xf] %v7074
      %7076 = vst [vmem:[%s7058 + $0x1c] sm:$0xf] %v6787
      %v7077 = vld [vmem:[%s7058 + $0x20] sm:$0x1]
      %v7078 = vsel %vm1192, %v6788, %v7077
      %7079 = vst [vmem:[%s7058 + $0x20] sm:$0x1] %v7078
      %v7080 = vld [vmem:[%s7058 + $0x24] sm:$0xf]
      %v7081 = vsel %vm1186, %v6795, %v7080
      %7082 = vst [vmem:[%s7058 + $0x24] sm:$0xf] %v7081
      %7083 = vst [vmem:[%s7058 + $0x28] sm:$0xf] %v6804
      %v7084 = vld [vmem:[%s7058 + $0x2c] sm:$0x1]
      %v7085 = vsel %vm1192, %v6805, %v7084
      %7086 = vst [vmem:[%s7058 + $0x2c] sm:$0x1] %v7085
      %v7087 = vld [vmem:[%s7058 + $0x30] sm:$0xf]
      %v7088 = vsel %vm1186, %v6812, %v7087
      %7089 = vst [vmem:[%s7058 + $0x30] sm:$0xf] %v7088
      %7090 = vst [vmem:[%s7058 + $0x34] sm:$0xf] %v6821
      %v7091 = vld [vmem:[%s7058 + $0x38] sm:$0x1]
      %v7092 = vsel %vm1192, %v6822, %v7091
      %7093 = vst [vmem:[%s7058 + $0x38] sm:$0x1] %v7092
      %v7094 = vld [vmem:[%s7058 + $0x3c] sm:$0xf]
      %v7095 = vsel %vm1186, %v6829, %v7094
      %7096 = vst [vmem:[%s7058 + $0x3c] sm:$0xf] %v7095
      %7097 = vst [vmem:[%s7058 + $0x40] sm:$0xf] %v6838
      %v7098 = vld [vmem:[%s7058 + $0x44] sm:$0x1]
      %v7099 = vsel %vm1192, %v6839, %v7098
      %7100 = vst [vmem:[%s7058 + $0x44] sm:$0x1] %v7099
      %v7101 = vld [vmem:[%s7058 + $0x48] sm:$0xf]
      %v7102 = vsel %vm1186, %v6846, %v7101
      %7103 = vst [vmem:[%s7058 + $0x48] sm:$0xf] %v7102
      %7104 = vst [vmem:[%s7058 + $0x4c] sm:$0xf] %v6855
      %v7105 = vld [vmem:[%s7058 + $0x50] sm:$0x1]
      %v7106 = vsel %vm1192, %v6856, %v7105
      %7107 = vst [vmem:[%s7058 + $0x50] sm:$0x1] %v7106
      %v7108 = vld [vmem:[%s7058 + $0x54] sm:$0xf]
      %v7109 = vsel %vm1186, %v6863, %v7108
      %7110 = vst [vmem:[%s7058 + $0x54] sm:$0xf] %v7109
      %7111 = vst [vmem:[%s7058 + $0x58] sm:$0xf] %v6872
      %v7112 = vld [vmem:[%s7058 + $0x5c] sm:$0x1]
      %v7113 = vsel %vm1192, %v6873, %v7112
      %7114 = vst [vmem:[%s7058 + $0x5c] sm:$0x1] %v7113
      %v7115 = vld [vmem:[%s7058 + $0x60] sm:$0xf]
      %v7116 = vsel %vm1186, %v6880, %v7115
      %7117 = vst [vmem:[%s7058 + $0x60] sm:$0xf] %v7116
      %7118 = vst [vmem:[%s7058 + $0x64] sm:$0xf] %v6889
      %v7119 = vld [vmem:[%s7058 + $0x68] sm:$0x1]
      %v7120 = vsel %vm1192, %v6890, %v7119
      %7121 = vst [vmem:[%s7058 + $0x68] sm:$0x1] %v7120
      %v7122 = vld [vmem:[%s7058 + $0x6c] sm:$0xf]
      %v7123 = vsel %vm1186, %v6897, %v7122
      %7124 = vst [vmem:[%s7058 + $0x6c] sm:$0xf] %v7123
      %7125 = vst [vmem:[%s7058 + $0x70] sm:$0xf] %v6906
      %v7126 = vld [vmem:[%s7058 + $0x74] sm:$0x1]
      %v7127 = vsel %vm1192, %v6907, %v7126
      %7128 = vst [vmem:[%s7058 + $0x74] sm:$0x1] %v7127
      %v7129 = vld [vmem:[%s7058 + $0x78] sm:$0xf]
      %v7130 = vsel %vm1186, %v6914, %v7129
      %7131 = vst [vmem:[%s7058 + $0x78] sm:$0xf] %v7130
      %7132 = vst [vmem:[%s7058 + $0x7c] sm:$0xf] %v6923
      %v7133 = vld [vmem:[%s7058 + $0x80] sm:$0x1]
      %v7134 = vsel %vm1192, %v6924, %v7133
      %7135 = vst [vmem:[%s7058 + $0x80] sm:$0x1] %v7134
      %v7136 = vld [vmem:[%s7058 + $0x84] sm:$0xf]
      %v7137 = vsel %vm1186, %v6931, %v7136
      %7138 = vst [vmem:[%s7058 + $0x84] sm:$0xf] %v7137
      %7139 = vst [vmem:[%s7058 + $0x88] sm:$0xf] %v6940
      %v7140 = vld [vmem:[%s7058 + $0x8c] sm:$0x1]
      %v7141 = vsel %vm1192, %v6941, %v7140
      %7142 = vst [vmem:[%s7058 + $0x8c] sm:$0x1] %v7141
      %v7143 = vld [vmem:[%s7058 + $0x90] sm:$0xf]
      %v7144 = vsel %vm1186, %v6948, %v7143
      %7145 = vst [vmem:[%s7058 + $0x90] sm:$0xf] %v7144
      %7146 = vst [vmem:[%s7058 + $0x94] sm:$0xf] %v6957
      %v7147 = vld [vmem:[%s7058 + $0x98] sm:$0x1]
      %v7148 = vsel %vm1192, %v6958, %v7147
      %7149 = vst [vmem:[%s7058 + $0x98] sm:$0x1] %v7148
      %v7150 = vld [vmem:[%s7058 + $0x9c] sm:$0xf]
      %v7151 = vsel %vm1186, %v6965, %v7150
      %7152 = vst [vmem:[%s7058 + $0x9c] sm:$0xf] %v7151
      %7153 = vst [vmem:[%s7058 + $0xa0] sm:$0xf] %v6974
      %v7154 = vld [vmem:[%s7058 + $0xa4] sm:$0x1]
      %v7155 = vsel %vm1192, %v6975, %v7154
      %7156 = vst [vmem:[%s7058 + $0xa4] sm:$0x1] %v7155
      %v7157 = vld [vmem:[%s7058 + $0xa8] sm:$0xf]
      %v7158 = vsel %vm1186, %v6982, %v7157
      %7159 = vst [vmem:[%s7058 + $0xa8] sm:$0xf] %v7158
      %7160 = vst [vmem:[%s7058 + $0xac] sm:$0xf] %v6991
      %v7161 = vld [vmem:[%s7058 + $0xb0] sm:$0x1]
      %v7162 = vsel %vm1192, %v6992, %v7161
      %7163 = vst [vmem:[%s7058 + $0xb0] sm:$0x1] %v7162
      %v7164 = vld [vmem:[%s7058 + $0xb4] sm:$0xf]
      %v7165 = vsel %vm1186, %v6999, %v7164
      %7166 = vst [vmem:[%s7058 + $0xb4] sm:$0xf] %v7165
      %7167 = vst [vmem:[%s7058 + $0xb8] sm:$0xf] %v7008
      %v7168 = vld [vmem:[%s7058 + $0xbc] sm:$0x1]
      %v7169 = vsel %vm1192, %v7009, %v7168
      %7170 = vst [vmem:[%s7058 + $0xbc] sm:$0x1] %v7169
      %p7171 = scmp.lt.s32.totalorder %s18, 1
      %s7172 = scalar_select %p7171, %s18, 1
      %s7173 = smul.addr %s7172, 54
      %s7174 = smul.addr %s7173, 4
      %s7175 = scalar_lea.vmem %s7, %s7174
      // Predicated region
      $region49: #{detection_block_forward.2} parent=47 // pred_check
        %p7176 = pneg %p188
      $region50: #{detection_block_forward.2} parent=47 // pred_check_branch
        %7178 = sbr.rel (%p7176) target = $region52
      $region51: #{detection_block_forward.2} parent=47 // pred_region
        _
      $region52: #{detection_block_forward.2} parent=47 // pred_fallthru
        _
    $region48: #{detection_block_forward.2} parent=5 // pred_fallthru
      _
    %p7179 = scmp.le.s32.totalorder 2, %s13
    // Predicated region
    $region53: #{detection_block_forward.2} parent=5 // pred_check
      %p7180 = pneg %p7179
    $region54: #{detection_block_forward.2} parent=5 // pred_check_branch
      %7182 = sbr.rel (%p7180) target = $region56
    $region55: #{detection_block_forward.2} parent=5 // pred_region
      %s7183 = ssub.s32 %s13, 2
      // Predicated region
      $region57: #{detection_block_forward.2} parent=55 // pred_check
        %p7184 = pneg %p194
      $region58: #{detection_block_forward.2} parent=55 // pred_check_branch
        %7186 = sbr.rel (%p7184) target = $region60
      $region59: #{detection_block_forward.2} parent=55 // pred_region
        %p7187 = scmp.lt.s32.totalorder %s19, 1
        %s7188 = scalar_select %p7187, %s19, 1
        %s7189 = smul.addr %s7188, 54
        %s7190 = smul.addr %s7189, 4
        %s7191 = scalar_lea.vmem %s7, %s7190
      $region60: #{detection_block_forward.2} parent=55 // pred_fallthru
        _
    $region56: #{detection_block_forward.2} parent=5 // pred_fallthru
      _
  $region6: #{detection_block_forward.2} parent=0 // loop_footer
    %s17 = sadd.s32 1, %s13
  $region7: #{detection_block_forward.2} parent=0 // loop_footer_branch
    %12 = sbr.rel target = $region3
  $region8: #{detection_block_forward.2} parent=0 // loop_exit
    _

</llo_original>
